<compile_context>
chip_gen: v6e
topology: v6e:2x2x1
jax: 0.10.0
libtpu: 0.0.40
codegen_flags: <defaults>
</compile_context>

<pallas_src>
import functools
import math

import jax
import jax.numpy as jnp
from jax import lax
from jax.experimental import pallas as pl
from jax.experimental.pallas import tpu as pltpu

MXU_DTYPE = jnp.bfloat16   # matmul operand dtype (accumulation stays fp32)
LN_EPS = 1e-5


# ----------------------------- in-kernel helpers -----------------------------

def _dot(a, b):
    return jnp.dot(a.astype(MXU_DTYPE), b.astype(MXU_DTYPE),
                   preferred_element_type=jnp.float32)


def _dot_t(a, b):          # a @ b.T without materializing the transpose
    return lax.dot_general(a.astype(MXU_DTYPE), b.astype(MXU_DTYPE),
                           (((1,), (1,)), ((), ())),
                           preferred_element_type=jnp.float32)


def _ln(x, g, b, eps=LN_EPS):
    mu = jnp.mean(x, axis=-1, keepdims=True)
    d = x - mu
    var = jnp.mean(d * d, axis=-1, keepdims=True)
    return d * lax.rsqrt(var + eps) * g + b


def _attn(q, k, v, wo, bo, heads):
    """Per-head softmax attention with the output projection folded into the head
    loop: out = sum_h softmax(q_h k_h^T / sqrt(dh)) v_h @ Wo[h*dh:(h+1)*dh, :] + bo."""
    D = q.shape[-1]
    dh = D // heads
    scale = 1.0 / math.sqrt(dh)
    out = None
    for h in range(heads):                       # static unroll (heads is small)
        sl = slice(h * dh, (h + 1) * dh)
        s = _dot_t(q[:, sl], k[:, sl]) * scale   # (Lq, Lk) fp32
        s = s - jnp.max(s, axis=-1, keepdims=True)
        p = jnp.exp(s)
        p = p * pl.reciprocal(jnp.sum(p, axis=-1, keepdims=True), approx=True)
        oh = _dot(p, v[:, sl])                   # (Lq, dh)
        part = _dot(oh, wo[sl, :])               # (Lq, D) -- out-proj folded in
        out = part if out is None else out + part
    return out + bo


def _self_attn(x, wqkv, bqkv, wo, bo, heads):
    D = x.shape[-1]
    qkv = _dot(x, wqkv) + bqkv                   # fused Q|K|V projection
    return _attn(qkv[:, :D], qkv[:, D:2 * D], qkv[:, 2 * D:], wo, bo, heads)


def _ffn(x, w1, b1, w2, b2):
    h = jnp.maximum(_dot(x, w1) + b1, 0.0)
    return _dot(h, w2) + b2


# ----------------------------- Pallas kernels -----------------------------
# NOTE: nn.Dropout is identity (eval-mode semantics); PyTorch Transformer layers use
# their default post-norm (norm_first=False) + ReLU FFN structure.

def _encoder_layer_kernel(x_ref, wqkv, bqkv, wo, bo, ln1g, ln1b,
                          f1w, f1b, f2w, f2b, ln2g, ln2b, o_ref, *, heads):
    x = x_ref[0].astype(jnp.float32)                       # (L, D)
    a = _self_attn(x, wqkv[...], bqkv[...], wo[...], bo[...], heads)
    x = _ln(x + a, ln1g[...], ln1b[...])
    f = _ffn(x, f1w[...], f1b[...], f2w[...], f2b[...])
    x = _ln(x + f, ln2g[...], ln2b[...])
    o_ref[0] = x.astype(o_ref.dtype)


def _decoder_layer_kernel(t_ref, m_ref,
                          wqkv, bqkv, wo, bo, ln1g, ln1b,
                          cwq, cbq, cwkv, cbkv, cwo, cbo, ln2g, ln2b,
                          f1w, f1b, f2w, f2b, ln3g, ln3b, o_ref, *, heads):
    t = t_ref[0].astype(jnp.float32)                       # (Lq, D)
    m = m_ref[0].astype(jnp.float32)                       # (Lk, D)
    D = t.shape[-1]
    # self-attention + residual + LN
    a = _self_attn(t, wqkv[...], bqkv[...], wo[...], bo[...], heads)
    t = _ln(t + a, ln1g[...], ln1b[...])
    # cross-attention (fused K|V projection of memory) + residual + LN
    q = _dot(t, cwq[...]) + cbq[...]
    kv = _dot(m, cwkv[...]) + cbkv[...]
    a = _attn(q, kv[:, :D], kv[:, D:], cwo[...], cbo[...], heads)
    t = _ln(t + a, ln2g[...], ln2b[...])
    # FFN + residual + LN
    f = _ffn(t, f1w[...], f1b[...], f2w[...], f2b[...])
    t = _ln(t + f, ln3g[...], ln3b[...])
    o_ref[0] = t.astype(o_ref.dtype)


def _patch_embed_kernel(x_ref, g0, b0, w, bp, g1, b1, o_ref):
    x = _ln(x_ref[...].astype(jnp.float32), g0[...], b0[...])
    x = _dot(x, w[...]) + bp[...]
    o_ref[...] = _ln(x, g1[...], b1[...]).astype(o_ref.dtype)


def _linear_kernel(x_ref, w_ref, b_ref, o_ref):
    o_ref[...] = (_dot(x_ref[...], w_ref[...]) + b_ref[...]).astype(o_ref.dtype)


def _layernorm_kernel(x_ref, g_ref, b_ref, o_ref):
    o_ref[...] = _ln(x_ref[...].astype(jnp.float32),
                     g_ref[...], b_ref[...]).astype(o_ref.dtype)


def _cnn_kernel(x_ref, n_ref, w1, b1, w2, b2, w3, b3, o_ref, *, noise_alpha):
    # fused: noise add + conv1(relu) + conv2(relu) + conv3(tanh), all 1x1 convs as
    # row-wise matmuls on the original (unupsampled) positions.
    h = x_ref[...].astype(jnp.float32) + n_ref[...].astype(jnp.float32) * noise_alpha
    h = jnp.maximum(_dot(h, w1[...]) + b1[...], 0.0)
    h = jnp.maximum(_dot(h, w2[...]) + b2[...], 0.0)
    h = jnp.tanh(_dot(h, w3[...]) + b3[...])
    o_ref[...] = h.astype(o_ref.dtype)


# ----------------------------- pallas_call wrappers -----------------------------

def _full_spec(a):
    zeros = (0,) * a.ndim
    return pl.BlockSpec(a.shape, lambda b, _z=zeros: _z)   # same full block every step


def _batch_spec(shape):
    L, D = shape[1], shape[2]
    return pl.BlockSpec((1, L, D), lambda b: (b, 0, 0))


def encoder_layer(x, p, heads):
    B, L, D = x.shape
    mlp = p["ff1_w"].shape[1]
    weights = [p["sa_wqkv"], p["sa_bqkv"], p["sa_wo"], p["sa_bo"],
               p["ln1_g"], p["ln1_b"],
               p["ff1_w"], p["ff1_b"], p["ff2_w"], p["ff2_b"],
               p["ln2_g"], p["ln2_b"]]
    flops = B * (2 * L * D * 3 * D + 4 * L * L * D + 2 * L * D * D + 4 * L * D * mlp)
    bytes_acc = 4 * (2 * B * L * D + sum(int(w.size) for w in weights))
    return pl.pallas_call(
        functools.partial(_encoder_layer_kernel, heads=heads),
        grid=(B,),
        in_specs=[_batch_spec(x.shape)] + [_full_spec(w) for w in weights],
        out_specs=_batch_spec(x.shape),
        out_shape=jax.ShapeDtypeStruct((B, L, D), jnp.float32),
        compiler_params=pltpu.CompilerParams(dimension_semantics=("parallel",)),
        cost_estimate=pl.CostEstimate(flops=int(flops),
                                      transcendentals=int(B * heads * L * L),
                                      bytes_accessed=int(bytes_acc)),
    )(x, *weights)


def decoder_layer(tgt, mem, p, heads):
    B, Lq, D = tgt.shape
    Lk = mem.shape[1]
    mlp = p["ff1_w"].shape[1]
    weights = [p["sa_wqkv"], p["sa_bqkv"], p["sa_wo"], p["sa_bo"],
               p["ln1_g"], p["ln1_b"],
               p["ca_wq"], p["ca_bq"], p["ca_wkv"], p["ca_bkv"],
               p["ca_wo"], p["ca_bo"], p["ln2_g"], p["ln2_b"],
               p["ff1_w"], p["ff1_b"], p["ff2_w"], p["ff2_b"],
               p["ln3_g"], p["ln3_b"]]
    flops = B * (2 * Lq * D * 3 * D + 4 * Lq * Lq * D + 2 * Lq * D * D
                 + 2 * Lq * D * D + 4 * Lk * D * D + 4 * Lq * Lk * D + 2 * Lq * D * D
                 + 4 * Lq * D * mlp)
    bytes_acc = 4 * (2 * B * Lq * D + B * Lk * D + sum(int(w.size) for w in weights))
    return pl.pallas_call(
        functools.partial(_decoder_layer_kernel, heads=heads),
        grid=(B,),
        in_specs=[_batch_spec(tgt.shape), _batch_spec(mem.shape)]
                 + [_full_spec(w) for w in weights],
        out_specs=_batch_spec(tgt.shape),
        out_shape=jax.ShapeDtypeStruct((B, Lq, D), jnp.float32),
        compiler_params=pltpu.CompilerParams(dimension_semantics=("parallel",)),
        cost_estimate=pl.CostEstimate(flops=int(flops),
                                      transcendentals=int(B * heads * Lq * (Lq + Lk)),
                                      bytes_accessed=int(bytes_acc)),
    )(tgt, mem, *weights)


def linear(x, w, b):
    K = x.shape[-1]
    N = w.shape[1]
    x2 = x.reshape(-1, K)
    out = pl.pallas_call(
        _linear_kernel,
        out_shape=jax.ShapeDtypeStruct((x2.shape[0], N), jnp.float32),
    )(x2, w, b.reshape(1, N))
    return out.reshape(x.shape[:-1] + (N,))


def layernorm(x, g, b):
    D = x.shape[-1]
    x2 = x.reshape(-1, D)
    out = pl.pallas_call(
        _layernorm_kernel,
        out_shape=jax.ShapeDtypeStruct(x2.shape, jnp.float32),
    )(x2, g.reshape(1, D), b.reshape(1, D))
    return out.reshape(x.shape)


def to_patch_embedding(imgs, p, patch_width):
    # Rearrange 'b c h (p pw) -> b p (h pw c)', then (LN -> Linear -> LN) in one kernel.
    b, c, h, W = imgs.shape
    n_p = W // patch_width
    x = imgs.reshape(b, c, h, n_p, patch_width)        # b c h p pw
    x = x.transpose(0, 3, 2, 4, 1)                     # b p h pw c
    x = x.reshape(b * n_p, h * patch_width * c)
    dim = p["proj_w"].shape[1]
    out = pl.pallas_call(
        _patch_embed_kernel,
        out_shape=jax.ShapeDtypeStruct((b * n_p, dim), jnp.float32),
    )(x, p["ln0_g"], p["ln0_b"], p["proj_w"], p["proj_b"], p["ln1_g"], p["ln1_b"])
    return out.reshape(b, n_p, dim)


def fcn_decoder(g, noise, noise_alpha, p):
    # TODO(synk): FCNDecoder source was not provided with the module; minimal decoder
    # kept from the previous version: (B,L,D) -> NCHW (B,D,1,L), two [nearest x2 + 1x1
    # conv + ReLU] blocks, final 1x1 conv + tanh.  Since 1x1 convs commute with nearest
    # upsampling, all three convs (plus the noise add) run on the original B*L rows in
    # ONE fused kernel and the 4x spatial upsample is applied once at the end.
    BE, L, D = g.shape
    rows = g.reshape(BE * L, D)
    nrows = noise.reshape(BE * L, D)
    C = p["c3_w"].shape[1]
    y = pl.pallas_call(
        functools.partial(_cnn_kernel, noise_alpha=noise_alpha),
        out_shape=jax.ShapeDtypeStruct((BE * L, C), jnp.float32),
    )(rows, nrows, p["c1_w"], p["c1_b"], p["c2_w"], p["c2_b"], p["c3_w"], p["c3_b"])
    y = y.reshape(BE, L, C).transpose(0, 2, 1)[:, :, None, :]   # (BE, C, 1, L) NCHW
    y = jnp.repeat(jnp.repeat(y, 4, axis=2), 4, axis=3)         # (BE, C, 4, 4L)
    return y


# ----------------------------- TeddyGenerator forward -----------------------------

def forward_style(params, style_imgs, style_tgt, cfg):
    heads = cfg["heads"]
    x = to_patch_embedding(style_imgs, params["patch"], cfg["patch_width"])
    b, n, _ = x.shape
    style_tokens = jnp.broadcast_to(params["style_tokens"],
                                    (b,) + params["style_tokens"].shape[1:])
    x = jnp.concatenate([style_tokens, x], axis=1)
    x = x + params["pos_embedding"][:, : n + cfg["num_style"]]
    for lp in params["encoder_layers"]:
        x = encoder_layer(x, lp, heads)
    x = layernorm(x, params["enc_norm_g"], params["enc_norm_b"])

    t = linear(style_tgt, params["query_style_w"], params["query_style_b"])
    for lp in params["style_dec_layers"]:
        t = decoder_layer(t, x, lp, heads)
    t = layernorm(t, params["dec_norm_g"], params["dec_norm_b"])
    return t


def forward_gen(params, style_emb, gen_tgt, noise_key, cfg):
    heads = cfg["heads"]
    g = linear(gen_tgt, params["query_gen_w"], params["query_gen_b"])
    for lp in params["gen_dec_layers"]:
        g = decoder_layer(g, style_emb, lp, heads)
    g = layernorm(g, params["dec_norm_g"], params["dec_norm_b"])

    # NoiseExpansion: repeat 'b l d -> (b e) l d'; the N(0,1)*noise_alpha add is fused
    # into the cnn kernel.
    e = cfg["expansion_factor"]
    g = jnp.repeat(g, e, axis=0)
    noise = jax.random.normal(noise_key, g.shape, jnp.float32)

    x = fcn_decoder(g, noise, cfg["noise_alpha"], params["cnn"])    # ((b e), c, h, w)
    be, c, h, w = x.shape
    return x.reshape(be // e, e, c, h, w)               # '(b e) c h w -> b e c h w'


def teddy_forward(params, style_imgs, style_tgt, gen_tgt, noise_key, cfg):
    style_emb = forward_style(params, style_imgs, style_tgt, cfg)
    fakes = forward_gen(params, style_emb, gen_tgt, noise_key, cfg)
    return fakes


# ----------------------------- deterministic init -----------------------------

def _init_linear(key, fan_in, fan_out):
    kw, kb = jax.random.split(key)
    bound = 1.0 / math.sqrt(fan_in)
    w = jax.random.uniform(kw, (fan_in, fan_out), jnp.float32, -bound, bound)
    b = jax.random.uniform(kb, (1, fan_out), jnp.float32, -bound, bound)
    return w, b


def _ln_init(dim):
    return jnp.ones((1, dim), jnp.float32), jnp.zeros((1, dim), jnp.float32)


def _init_self_attn(key, dim):
    k0, k1 = jax.random.split(key)
    wqkv, bqkv = _init_linear(k0, dim, 3 * dim)     # fused Q|K|V
    wo, bo = _init_linear(k1, dim, dim)
    return dict(sa_wqkv=wqkv, sa_bqkv=bqkv, sa_wo=wo, sa_bo=bo)


def _init_enc_layer(key, dim, mlp_dim):
    ks = jax.random.split(key, 3)
    p = _init_self_attn(ks[0], dim)
    p["ff1_w"], p["ff1_b"] = _init_linear(ks[1], dim, mlp_dim)
    p["ff2_w"], p["ff2_b"] = _init_linear(ks[2], mlp_dim, dim)
    p["ln1_g"], p["ln1_b"] = _ln_init(dim)
    p["ln2_g"], p["ln2_b"] = _ln_init(dim)
    return p


def _init_dec_layer(key, dim, mlp_dim):
    ks = jax.random.split(key, 6)
    p = _init_self_attn(ks[0], dim)
    p["ca_wq"], p["ca_bq"] = _init_linear(ks[1], dim, dim)
    p["ca_wkv"], p["ca_bkv"] = _init_linear(ks[2], dim, 2 * dim)    # fused K|V
    p["ca_wo"], p["ca_bo"] = _init_linear(ks[3], dim, dim)
    p["ff1_w"], p["ff1_b"] = _init_linear(ks[4], dim, mlp_dim)
    p["ff2_w"], p["ff2_b"] = _init_linear(ks[5], mlp_dim, dim)
    p["ln1_g"], p["ln1_b"] = _ln_init(dim)
    p["ln2_g"], p["ln2_b"] = _ln_init(dim)
    p["ln3_g"], p["ln3_b"] = _ln_init(dim)
    return p


def init_params(key, cfg):
    dim, mlp, depth = cfg["dim"], cfg["mlp_dim"], cfg["depth"]
    patch_dim = cfg["channels"] * cfg["patch_height"] * cfg["patch_width"]
    num_patches = (cfg["image_height"] // cfg["patch_height"]) * (cfg["image_width"] // cfg["patch_width"])
    keys = jax.random.split(key, 12)
    p = {}

    patch = {}
    patch["ln0_g"], patch["ln0_b"] = _ln_init(patch_dim)
    patch["proj_w"], patch["proj_b"] = _init_linear(keys[0], patch_dim, dim)
    patch["ln1_g"], patch["ln1_b"] = _ln_init(dim)
    p["patch"] = patch

    p["pos_embedding"] = jax.random.normal(keys[1], (1, num_patches + cfg["num_style"], dim), jnp.float32)
    p["style_tokens"] = jax.random.normal(keys[2], (1, cfg["num_style"], dim), jnp.float32)
    p["query_style_w"], p["query_style_b"] = _init_linear(keys[3], cfg["query_size"], dim)
    p["query_gen_w"], p["query_gen_b"] = _init_linear(keys[4], cfg["query_size"], dim)

    p["encoder_layers"] = [_init_enc_layer(k, dim, mlp) for k in jax.random.split(keys[5], depth)]
    p["style_dec_layers"] = [_init_dec_layer(k, dim, mlp) for k in jax.random.split(keys[6], depth)]
    p["gen_dec_layers"] = [_init_dec_layer(k, dim, mlp) for k in jax.random.split(keys[7], depth)]
    p["enc_norm_g"], p["enc_norm_b"] = _ln_init(dim)
    p["dec_norm_g"], p["dec_norm_b"] = _ln_init(dim)

    cnn = {}
    cnn["c1_w"], cnn["c1_b"] = _init_linear(keys[8], dim, dim // 2)
    cnn["c2_w"], cnn["c2_b"] = _init_linear(keys[9], dim // 2, dim // 4)
    cnn["c3_w"], cnn["c3_b"] = _init_linear(keys[10], dim // 4, cfg["channels"])
    p["cnn"] = cnn
    return p


# ----------------------------- main -----------------------------

if __name__ == "__main__":
    cfg = dict(
        image_height=8, image_width=16, patch_height=8, patch_width=4,
        channels=3, dim=32, depth=2, heads=4, mlp_dim=64,
        expansion_factor=2, noise_alpha=0.0, query_size=16, num_style=3,
    )

    key = jax.random.PRNGKey(0)
    kp, k1, k2, k3, kn = jax.random.split(key, 5)
    params = init_params(kp, cfg)

    style_imgs = jax.random.normal(
        k1, (2, cfg["channels"], cfg["image_height"], cfg["image_width"]), jnp.float32)
    style_tgt = jax.random.normal(k2, (2, 5, cfg["query_size"]), jnp.float32)
    gen_tgt = jax.random.normal(k3, (2, 6, cfg["query_size"]), jnp.float32)

    fwd = jax.jit(functools.partial(teddy_forward, cfg=cfg))
    fakes = fwd(params, style_imgs, style_tgt, gen_tgt, kn)
    jax.block_until_ready(fakes)

    expected = (2, cfg["expansion_factor"], cfg["channels"], 4, 4 * gen_tgt.shape[1])
    assert fakes.shape == expected, (fakes.shape, expected)
    assert bool(jnp.all(jnp.isfinite(fakes)))
    print("KERNEL_OK")
</pallas_src>

<mosaic_0001>
module attributes {stable_mosaic.version = 11 : i64} {
  func.func @_patch_embed_kernel(%arg0: memref<8x96xf32, #tpu.memory_space<vmem>>, %arg1: memref<1x96xf32, #tpu.memory_space<vmem>>, %arg2: memref<1x96xf32, #tpu.memory_space<vmem>>, %arg3: memref<96x32xf32, #tpu.memory_space<vmem>>, %arg4: memref<1x32xf32, #tpu.memory_space<vmem>>, %arg5: memref<1x32xf32, #tpu.memory_space<vmem>>, %arg6: memref<1x32xf32, #tpu.memory_space<vmem>>, %arg7: memref<8x32xf32, #tpu.memory_space<vmem>>) attributes {dimension_semantics = [], scalar_prefetch = 0 : i64, scratch_operands = 0 : i64, tpu.core_type = #tpu.core_type<tc>} {
    %c0 = arith.constant 0 : index
    %c0_0 = arith.constant 0 : index
    %0 = vector.load %arg0[%c0, %c0_0] : memref<8x96xf32, #tpu.memory_space<vmem>>, vector<8x96xf32>
    %c0_1 = arith.constant 0 : index
    %c0_2 = arith.constant 0 : index
    %1 = vector.load %arg1[%c0_1, %c0_2] : memref<1x96xf32, #tpu.memory_space<vmem>>, vector<1x96xf32>
    %c0_3 = arith.constant 0 : index
    %c0_4 = arith.constant 0 : index
    %2 = vector.load %arg2[%c0_3, %c0_4] : memref<1x96xf32, #tpu.memory_space<vmem>>, vector<1x96xf32>
    %cst = arith.constant dense<0.000000e+00> : vector<8xf32>
    %3 = vector.multi_reduction <add>, %0, %cst [1] : vector<8x96xf32> to vector<8xf32>
    %4 = vector.shape_cast %3 : vector<8xf32> to vector<8x1xf32>
    %cst_5 = arith.constant 9.600000e+01 : f32
    %5 = vector.broadcast %cst_5 : f32 to vector<8x1xf32>
    %6 = arith.divf %4, %5 : vector<8x1xf32>
    %7 = vector.broadcast %6 : vector<8x1xf32> to vector<8x96xf32>
    %8 = arith.subf %0, %7 : vector<8x96xf32>
    %9 = arith.mulf %8, %8 : vector<8x96xf32>
    %cst_6 = arith.constant dense<0.000000e+00> : vector<8xf32>
    %10 = vector.multi_reduction <add>, %9, %cst_6 [1] : vector<8x96xf32> to vector<8xf32>
    %11 = vector.shape_cast %10 : vector<8xf32> to vector<8x1xf32>
    %cst_7 = arith.constant 9.600000e+01 : f32
    %12 = vector.broadcast %cst_7 : f32 to vector<8x1xf32>
    %13 = arith.divf %11, %12 : vector<8x1xf32>
    %cst_8 = arith.constant 9.99999974E-6 : f32
    %14 = vector.broadcast %cst_8 : f32 to vector<8x1xf32>
    %15 = arith.addf %13, %14 : vector<8x1xf32>
    %16 = math.rsqrt %15 : vector<8x1xf32>
    %17 = vector.broadcast %16 : vector<8x1xf32> to vector<8x96xf32>
    %18 = arith.mulf %8, %17 : vector<8x96xf32>
    %19 = vector.broadcast %1 : vector<1x96xf32> to vector<8x96xf32>
    %20 = arith.mulf %18, %19 : vector<8x96xf32>
    %21 = vector.broadcast %2 : vector<1x96xf32> to vector<8x96xf32>
    %22 = arith.addf %20, %21 : vector<8x96xf32>
    %c0_9 = arith.constant 0 : index
    %c0_10 = arith.constant 0 : index
    %23 = vector.load %arg3[%c0_9, %c0_10] : memref<96x32xf32, #tpu.memory_space<vmem>>, vector<96x32xf32>
    %24 = arith.truncf %22 : vector<8x96xf32> to vector<8x96xbf16>
    %25 = arith.truncf %23 : vector<96x32xf32> to vector<96x32xbf16>
    %cst_11 = arith.constant dense<0.000000e+00> : vector<8x32xf32>
    %26 = tpu.matmul %24, %25, %cst_11 {dimension_numbers = #tpu.dot_dimension_numbers<[1], [0], [0], [1], [0, 0, 1, 1], [], []>} : vector<8x96xbf16>, vector<96x32xbf16>, vector<8x32xf32> -> vector<8x32xf32>
    %c0_12 = arith.constant 0 : index
    %c0_13 = arith.constant 0 : index
    %27 = vector.load %arg4[%c0_12, %c0_13] : memref<1x32xf32, #tpu.memory_space<vmem>>, vector<1x32xf32>
    %28 = vector.broadcast %27 : vector<1x32xf32> to vector<8x32xf32>
    %29 = arith.addf %26, %28 : vector<8x32xf32>
    %c0_14 = arith.constant 0 : index
    %c0_15 = arith.constant 0 : index
    %30 = vector.load %arg5[%c0_14, %c0_15] : memref<1x32xf32, #tpu.memory_space<vmem>>, vector<1x32xf32>
    %c0_16 = arith.constant 0 : index
    %c0_17 = arith.constant 0 : index
    %31 = vector.load %arg6[%c0_16, %c0_17] : memref<1x32xf32, #tpu.memory_space<vmem>>, vector<1x32xf32>
    %cst_18 = arith.constant dense<0.000000e+00> : vector<8xf32>
    %32 = vector.multi_reduction <add>, %29, %cst_18 [1] : vector<8x32xf32> to vector<8xf32>
    %33 = vector.shape_cast %32 : vector<8xf32> to vector<8x1xf32>
    %cst_19 = arith.constant 3.200000e+01 : f32
    %34 = vector.broadcast %cst_19 : f32 to vector<8x1xf32>
    %35 = arith.divf %33, %34 : vector<8x1xf32>
    %36 = vector.broadcast %35 : vector<8x1xf32> to vector<8x32xf32>
    %37 = arith.subf %29, %36 : vector<8x32xf32>
    %38 = arith.mulf %37, %37 : vector<8x32xf32>
    %cst_20 = arith.constant dense<0.000000e+00> : vector<8xf32>
    %39 = vector.multi_reduction <add>, %38, %cst_20 [1] : vector<8x32xf32> to vector<8xf32>
    %40 = vector.shape_cast %39 : vector<8xf32> to vector<8x1xf32>
    %cst_21 = arith.constant 3.200000e+01 : f32
    %41 = vector.broadcast %cst_21 : f32 to vector<8x1xf32>
    %42 = arith.divf %40, %41 : vector<8x1xf32>
    %cst_22 = arith.constant 9.99999974E-6 : f32
    %43 = vector.broadcast %cst_22 : f32 to vector<8x1xf32>
    %44 = arith.addf %42, %43 : vector<8x1xf32>
    %45 = math.rsqrt %44 : vector<8x1xf32>
    %46 = vector.broadcast %45 : vector<8x1xf32> to vector<8x32xf32>
    %47 = arith.mulf %37, %46 : vector<8x32xf32>
    %48 = vector.broadcast %30 : vector<1x32xf32> to vector<8x32xf32>
    %49 = arith.mulf %47, %48 : vector<8x32xf32>
    %50 = vector.broadcast %31 : vector<1x32xf32> to vector<8x32xf32>
    %51 = arith.addf %49, %50 : vector<8x32xf32>
    %c0_23 = arith.constant 0 : index
    %c0_24 = arith.constant 0 : index
    %52 = vector.load %arg7[%c0_23, %c0_24] : memref<8x32xf32, #tpu.memory_space<vmem>>, vector<8x32xf32>
    tpu.vector_store %arg7[%c0_23, %c0_24], %51 {strides = array<i32>} : memref<8x32xf32, #tpu.memory_space<vmem>>, vector<8x32xf32>,
    return
  }
}

module attributes {stable_mosaic.version = 11 : i64} {
  func.func @_layernorm_kernel(%arg0: memref<14x32xf32, #tpu.memory_space<vmem>>, %arg1: memref<1x32xf32, #tpu.memory_space<vmem>>, %arg2: memref<1x32xf32, #tpu.memory_space<vmem>>, %arg3: memref<14x32xf32, #tpu.memory_space<vmem>>) attributes {dimension_semantics = [], scalar_prefetch = 0 : i64, scratch_operands = 0 : i64, tpu.core_type = #tpu.core_type<tc>} {
    %c0 = arith.constant 0 : index
    %c0_0 = arith.constant 0 : index
    %0 = vector.load %arg0[%c0, %c0_0] : memref<14x32xf32, #tpu.memory_space<vmem>>, vector<14x32xf32>
    %c0_1 = arith.constant 0 : index
    %c0_2 = arith.constant 0 : index
    %1 = vector.load %arg1[%c0_1, %c0_2] : memref<1x32xf32, #tpu.memory_space<vmem>>, vector<1x32xf32>
    %c0_3 = arith.constant 0 : index
    %c0_4 = arith.constant 0 : index
    %2 = vector.load %arg2[%c0_3, %c0_4] : memref<1x32xf32, #tpu.memory_space<vmem>>, vector<1x32xf32>
    %cst = arith.constant dense<0.000000e+00> : vector<14xf32>
    %3 = vector.multi_reduction <add>, %0, %cst [1] : vector<14x32xf32> to vector<14xf32>
    %4 = vector.shape_cast %3 : vector<14xf32> to vector<14x1xf32>
    %cst_5 = arith.constant 3.200000e+01 : f32
    %5 = vector.broadcast %cst_5 : f32 to vector<14x1xf32>
    %6 = arith.divf %4, %5 : vector<14x1xf32>
    %7 = vector.broadcast %6 : vector<14x1xf32> to vector<14x32xf32>
    %8 = arith.subf %0, %7 : vector<14x32xf32>
    %9 = arith.mulf %8, %8 : vector<14x32xf32>
    %cst_6 = arith.constant dense<0.000000e+00> : vector<14xf32>
    %10 = vector.multi_reduction <add>, %9, %cst_6 [1] : vector<14x32xf32> to vector<14xf32>
    %11 = vector.shape_cast %10 : vector<14xf32> to vector<14x1xf32>
    %cst_7 = arith.constant 3.200000e+01 : f32
    %12 = vector.broadcast %cst_7 : f32 to vector<14x1xf32>
    %13 = arith.divf %11, %12 : vector<14x1xf32>
    %cst_8 = arith.constant 9.99999974E-6 : f32
    %14 = vector.broadcast %cst_8 : f32 to vector<14x1xf32>
    %15 = arith.addf %13, %14 : vector<14x1xf32>
    %16 = math.rsqrt %15 : vector<14x1xf32>
    %17 = vector.broadcast %16 : vector<14x1xf32> to vector<14x32xf32>
    %18 = arith.mulf %8, %17 : vector<14x32xf32>
    %19 = vector.broadcast %1 : vector<1x32xf32> to vector<14x32xf32>
    %20 = arith.mulf %18, %19 : vector<14x32xf32>
    %21 = vector.broadcast %2 : vector<1x32xf32> to vector<14x32xf32>
    %22 = arith.addf %20, %21 : vector<14x32xf32>
    %c0_9 = arith.constant 0 : index
    %c0_10 = arith.constant 0 : index
    %23 = vector.load %arg3[%c0_9, %c0_10] : memref<14x32xf32, #tpu.memory_space<vmem>>, vector<14x32xf32>
    tpu.vector_store %arg3[%c0_9, %c0_10], %22 {strides = array<i32>} : memref<14x32xf32, #tpu.memory_space<vmem>>, vector<14x32xf32>,
    return
  }
}

module attributes {stable_mosaic.version = 11 : i64} {
  func.func @_encoder_layer_kernel(%arg0: i32, %arg1: memref<1x7x32xf32, #tpu.memory_space<vmem>>, %arg2: memref<32x96xf32, #tpu.memory_space<vmem>>, %arg3: memref<1x96xf32, #tpu.memory_space<vmem>>, %arg4: memref<32x32xf32, #tpu.memory_space<vmem>>, %arg5: memref<1x32xf32, #tpu.memory_space<vmem>>, %arg6: memref<1x32xf32, #tpu.memory_space<vmem>>, %arg7: memref<1x32xf32, #tpu.memory_space<vmem>>, %arg8: memref<32x64xf32, #tpu.memory_space<vmem>>, %arg9: memref<1x64xf32, #tpu.memory_space<vmem>>, %arg10: memref<64x32xf32, #tpu.memory_space<vmem>>, %arg11: memref<1x32xf32, #tpu.memory_space<vmem>>, %arg12: memref<1x32xf32, #tpu.memory_space<vmem>>, %arg13: memref<1x32xf32, #tpu.memory_space<vmem>>, %arg14: memref<1x7x32xf32, #tpu.memory_space<vmem>>) attributes {dimension_semantics = [#tpu.dimension_semantics<parallel>], iteration_bounds = array<i64: 2>, scalar_prefetch = 0 : i64, scratch_operands = 0 : i64, tpu.core_type = #tpu.core_type<tc>, window_params = [{transform_indices = @transform_0, window_bounds = array<i64: 1, 7, 32>}, {pipeline_mode = #tpu.pipeline_mode<synchronous>, transform_indices = @transform_1, window_bounds = array<i64: 32, 96>}, {pipeline_mode = #tpu.pipeline_mode<synchronous>, transform_indices = @transform_2, window_bounds = array<i64: 1, 96>}, {pipeline_mode = #tpu.pipeline_mode<synchronous>, transform_indices = @transform_3, window_bounds = array<i64: 32, 32>}, {pipeline_mode = #tpu.pipeline_mode<synchronous>, transform_indices = @transform_4, window_bounds = array<i64: 1, 32>}, {pipeline_mode = #tpu.pipeline_mode<synchronous>, transform_indices = @transform_5, window_bounds = array<i64: 1, 32>}, {pipeline_mode = #tpu.pipeline_mode<synchronous>, transform_indices = @transform_6, window_bounds = array<i64: 1, 32>}, {pipeline_mode = #tpu.pipeline_mode<synchronous>, transform_indices = @transform_7, window_bounds = array<i64: 32, 64>}, {pipeline_mode = #tpu.pipeline_mode<synchronous>, transform_indices = @transform_8, window_bounds = array<i64: 1, 64>}, {pipeline_mode = #tpu.pipeline_mode<synchronous>, transform_indices = @transform_9, window_bounds = array<i64: 64, 32>}, {pipeline_mode = #tpu.pipeline_mode<synchronous>, transform_indices = @transform_10, window_bounds = array<i64: 1, 32>}, {pipeline_mode = #tpu.pipeline_mode<synchronous>, transform_indices = @transform_11, window_bounds = array<i64: 1, 32>}, {pipeline_mode = #tpu.pipeline_mode<synchronous>, transform_indices = @transform_12, window_bounds = array<i64: 1, 32>}, {transform_indices = @transform_13, window_bounds = array<i64: 1, 7, 32>}]} {
    %c0 = arith.constant 0 : index
    %c0_0 = arith.constant 0 : index
    %c0_1 = arith.constant 0 : index
    %0 = vector.load %arg1[%c0, %c0_0, %c0_1] : memref<1x7x32xf32, #tpu.memory_space<vmem>>, vector<1x7x32xf32>
    %1 = vector.shape_cast %0 : vector<1x7x32xf32> to vector<7x32xf32>
    %c0_2 = arith.constant 0 : index
    %c0_3 = arith.constant 0 : index
    %2 = vector.load %arg2[%c0_2, %c0_3] : memref<32x96xf32, #tpu.memory_space<vmem>>, vector<32x96xf32>
    %c0_4 = arith.constant 0 : index
    %c0_5 = arith.constant 0 : index
    %3 = vector.load %arg3[%c0_4, %c0_5] : memref<1x96xf32, #tpu.memory_space<vmem>>, vector<1x96xf32>
    %c0_6 = arith.constant 0 : index
    %c0_7 = arith.constant 0 : index
    %4 = vector.load %arg4[%c0_6, %c0_7] : memref<32x32xf32, #tpu.memory_space<vmem>>, vector<32x32xf32>
    %c0_8 = arith.constant 0 : index
    %c0_9 = arith.constant 0 : index
    %5 = vector.load %arg5[%c0_8, %c0_9] : memref<1x32xf32, #tpu.memory_space<vmem>>, vector<1x32xf32>
    %6 = arith.truncf %1 : vector<7x32xf32> to vector<7x32xbf16>
    %7 = arith.truncf %2 : vector<32x96xf32> to vector<32x96xbf16>
    %cst = arith.constant dense<0.000000e+00> : vector<7x96xf32>
    %8 = tpu.matmul %6, %7, %cst {dimension_numbers = #tpu.dot_dimension_numbers<[1], [0], [0], [1], [0, 0, 1, 1], [], []>} : vector<7x32xbf16>, vector<32x96xbf16>, vector<7x96xf32> -> vector<7x96xf32>
    %9 = vector.broadcast %3 : vector<1x96xf32> to vector<7x96xf32>
    %10 = arith.addf %8, %9 : vector<7x96xf32>
    %11 = vector.extract_strided_slice %10 {offsets = [0, 0], sizes = [7, 32], strides = [1, 1]} : vector<7x96xf32> to vector<7x32xf32>
    %12 = vector.extract_strided_slice %10 {offsets = [0, 32], sizes = [7, 32], strides = [1, 1]} : vector<7x96xf32> to vector<7x32xf32>
    %13 = vector.extract_strided_slice %10 {offsets = [0, 64], sizes = [7, 32], strides = [1, 1]} : vector<7x96xf32> to vector<7x32xf32>
    %14 = vector.extract_strided_slice %11 {offsets = [0, 0], sizes = [7, 8], strides = [1, 1]} : vector<7x32xf32> to vector<7x8xf32>
    %15 = vector.extract_strided_slice %12 {offsets = [0, 0], sizes = [7, 8], strides = [1, 1]} : vector<7x32xf32> to vector<7x8xf32>
    %16 = arith.truncf %14 : vector<7x8xf32> to vector<7x8xbf16>
    %17 = arith.truncf %15 : vector<7x8xf32> to vector<7x8xbf16>
    %cst_10 = arith.constant dense<0.000000e+00> : vector<7x7xf32>
    %18 = tpu.matmul %16, %17, %cst_10 {dimension_numbers = #tpu.dot_dimension_numbers<[1], [1], [0], [0], [0, 0, 1, 0], [], []>} : vector<7x8xbf16>, vector<7x8xbf16>, vector<7x7xf32> -> vector<7x7xf32>
    %cst_11 = arith.constant 0.353553385 : f32
    %19 = vector.broadcast %cst_11 : f32 to vector<7x7xf32>
    %20 = arith.mulf %18, %19 : vector<7x7xf32>
    %cst_12 = arith.constant dense<0xFF800000> : vector<7xf32>
    %21 = vector.multi_reduction <maximumf>, %20, %cst_12 [1] : vector<7x7xf32> to vector<7xf32>
    %22 = vector.shape_cast %21 : vector<7xf32> to vector<7x1xf32>
    %23 = vector.broadcast %22 : vector<7x1xf32> to vector<7x7xf32>
    %24 = arith.subf %20, %23 : vector<7x7xf32>
    %25 = math.exp %24 : vector<7x7xf32>
    %cst_13 = arith.constant dense<0.000000e+00> : vector<7xf32>
    %26 = vector.multi_reduction <add>, %25, %cst_13 [1] : vector<7x7xf32> to vector<7xf32>
    %27 = vector.shape_cast %26 : vector<7xf32> to vector<7x1xf32>
    %28 = tpu.reciprocal %27 {approx = true} : vector<7x1xf32> -> vector<7x1xf32>
    %29 = vector.broadcast %28 : vector<7x1xf32> to vector<7x7xf32>
    %30 = arith.mulf %25, %29 : vector<7x7xf32>
    %31 = vector.extract_strided_slice %13 {offsets = [0, 0], sizes = [7, 8], strides = [1, 1]} : vector<7x32xf32> to vector<7x8xf32>
    %32 = arith.truncf %30 : vector<7x7xf32> to vector<7x7xbf16>
    %33 = arith.truncf %31 : vector<7x8xf32> to vector<7x8xbf16>
    %cst_14 = arith.constant dense<0.000000e+00> : vector<7x8xf32>
    %34 = tpu.matmul %32, %33, %cst_14 {dimension_numbers = #tpu.dot_dimension_numbers<[1], [0], [0], [1], [0, 0, 1, 1], [], []>} : vector<7x7xbf16>, vector<7x8xbf16>, vector<7x8xf32> -> vector<7x8xf32>
    %35 = vector.extract_strided_slice %4 {offsets = [0, 0], sizes = [8, 32], strides = [1, 1]} : vector<32x32xf32> to vector<8x32xf32>
    %36 = arith.truncf %34 : vector<7x8xf32> to vector<7x8xbf16>
    %37 = arith.truncf %35 : vector<8x32xf32> to vector<8x32xbf16>
    %cst_15 = arith.constant dense<0.000000e+00> : vector<7x32xf32>
    %38 = tpu.matmul %36, %37, %cst_15 {dimension_numbers = #tpu.dot_dimension_numbers<[1], [0], [0], [1], [0, 0, 1, 1], [], []>} : vector<7x8xbf16>, vector<8x32xbf16>, vector<7x32xf32> -> vector<7x32xf32>
    %39 = vector.extract_strided_slice %11 {offsets = [0, 8], sizes = [7, 8], strides = [1, 1]} : vector<7x32xf32> to vector<7x8xf32>
    %40 = vector.extract_strided_slice %12 {offsets = [0, 8], sizes = [7, 8], strides = [1, 1]} : vector<7x32xf32> to vector<7x8xf32>
    %41 = arith.truncf %39 : vector<7x8xf32> to vector<7x8xbf16>
    %42 = arith.truncf %40 : vector<7x8xf32> to vector<7x8xbf16>
    %cst_16 = arith.constant dense<0.000000e+00> : vector<7x7xf32>
    %43 = tpu.matmul %41, %42, %cst_16 {dimension_numbers = #tpu.dot_dimension_numbers<[1], [1], [0], [0], [0, 0, 1, 0], [], []>} : vector<7x8xbf16>, vector<7x8xbf16>, vector<7x7xf32> -> vector<7x7xf32>
    %cst_17 = arith.constant 0.353553385 : f32
    %44 = vector.broadcast %cst_17 : f32 to vector<7x7xf32>
    %45 = arith.mulf %43, %44 : vector<7x7xf32>
    %cst_18 = arith.constant dense<0xFF800000> : vector<7xf32>
    %46 = vector.multi_reduction <maximumf>, %45, %cst_18 [1] : vector<7x7xf32> to vector<7xf32>
    %47 = vector.shape_cast %46 : vector<7xf32> to vector<7x1xf32>
    %48 = vector.broadcast %47 : vector<7x1xf32> to vector<7x7xf32>
    %49 = arith.subf %45, %48 : vector<7x7xf32>
    %50 = math.exp %49 : vector<7x7xf32>
    %cst_19 = arith.constant dense<0.000000e+00> : vector<7xf32>
    %51 = vector.multi_reduction <add>, %50, %cst_19 [1] : vector<7x7xf32> to vector<7xf32>
    %52 = vector.shape_cast %51 : vector<7xf32> to vector<7x1xf32>
    %53 = tpu.reciprocal %52 {approx = true} : vector<7x1xf32> -> vector<7x1xf32>
    %54 = vector.broadcast %53 : vector<7x1xf32> to vector<7x7xf32>
    %55 = arith.mulf %50, %54 : vector<7x7xf32>
    %56 = vector.extract_strided_slice %13 {offsets = [0, 8], sizes = [7, 8], strides = [1, 1]} : vector<7x32xf32> to vector<7x8xf32>
    %57 = arith.truncf %55 : vector<7x7xf32> to vector<7x7xbf16>
    %58 = arith.truncf %56 : vector<7x8xf32> to vector<7x8xbf16>
    %cst_20 = arith.constant dense<0.000000e+00> : vector<7x8xf32>
    %59 = tpu.matmul %57, %58, %cst_20 {dimension_numbers = #tpu.dot_dimension_numbers<[1], [0], [0], [1], [0, 0, 1, 1], [], []>} : vector<7x7xbf16>, vector<7x8xbf16>, vector<7x8xf32> -> vector<7x8xf32>
    %60 = vector.extract_strided_slice %4 {offsets = [8, 0], sizes = [8, 32], strides = [1, 1]} : vector<32x32xf32> to vector<8x32xf32>
    %61 = arith.truncf %59 : vector<7x8xf32> to vector<7x8xbf16>
    %62 = arith.truncf %60 : vector<8x32xf32> to vector<8x32xbf16>
    %cst_21 = arith.constant dense<0.000000e+00> : vector<7x32xf32>
    %63 = tpu.matmul %61, %62, %cst_21 {dimension_numbers = #tpu.dot_dimension_numbers<[1], [0], [0], [1], [0, 0, 1, 1], [], []>} : vector<7x8xbf16>, vector<8x32xbf16>, vector<7x32xf32> -> vector<7x32xf32>
    %64 = arith.addf %38, %63 : vector<7x32xf32>
    %65 = vector.extract_strided_slice %11 {offsets = [0, 16], sizes = [7, 8], strides = [1, 1]} : vector<7x32xf32> to vector<7x8xf32>
    %66 = vector.extract_strided_slice %12 {offsets = [0, 16], sizes = [7, 8], strides = [1, 1]} : vector<7x32xf32> to vector<7x8xf32>
    %67 = arith.truncf %65 : vector<7x8xf32> to vector<7x8xbf16>
    %68 = arith.truncf %66 : vector<7x8xf32> to vector<7x8xbf16>
    %cst_22 = arith.constant dense<0.000000e+00> : vector<7x7xf32>
    %69 = tpu.matmul %67, %68, %cst_22 {dimension_numbers = #tpu.dot_dimension_numbers<[1], [1], [0], [0], [0, 0, 1, 0], [], []>} : vector<7x8xbf16>, vector<7x8xbf16>, vector<7x7xf32> -> vector<7x7xf32>
    %cst_23 = arith.constant 0.353553385 : f32
    %70 = vector.broadcast %cst_23 : f32 to vector<7x7xf32>
    %71 = arith.mulf %69, %70 : vector<7x7xf32>
    %cst_24 = arith.constant dense<0xFF800000> : vector<7xf32>
    %72 = vector.multi_reduction <maximumf>, %71, %cst_24 [1] : vector<7x7xf32> to vector<7xf32>
    %73 = vector.shape_cast %72 : vector<7xf32> to vector<7x1xf32>
    %74 = vector.broadcast %73 : vector<7x1xf32> to vector<7x7xf32>
    %75 = arith.subf %71, %74 : vector<7x7xf32>
    %76 = math.exp %75 : vector<7x7xf32>
    %cst_25 = arith.constant dense<0.000000e+00> : vector<7xf32>
    %77 = vector.multi_reduction <add>, %76, %cst_25 [1] : vector<7x7xf32> to vector<7xf32>
    %78 = vector.shape_cast %77 : vector<7xf32> to vector<7x1xf32>
    %79 = tpu.reciprocal %78 {approx = true} : vector<7x1xf32> -> vector<7x1xf32>
    %80 = vector.broadcast %79 : vector<7x1xf32> to vector<7x7xf32>
    %81 = arith.mulf %76, %80 : vector<7x7xf32>
    %82 = vector.extract_strided_slice %13 {offsets = [0, 16], sizes = [7, 8], strides = [1, 1]} : vector<7x32xf32> to vector<7x8xf32>
    %83 = arith.truncf %81 : vector<7x7xf32> to vector<7x7xbf16>
    %84 = arith.truncf %82 : vector<7x8xf32> to vector<7x8xbf16>
    %cst_26 = arith.constant dense<0.000000e+00> : vector<7x8xf32>
    %85 = tpu.matmul %83, %84, %cst_26 {dimension_numbers = #tpu.dot_dimension_numbers<[1], [0], [0], [1], [0, 0, 1, 1], [], []>} : vector<7x7xbf16>, vector<7x8xbf16>, vector<7x8xf32> -> vector<7x8xf32>
    %86 = vector.extract_strided_slice %4 {offsets = [16, 0], sizes = [8, 32], strides = [1, 1]} : vector<32x32xf32> to vector<8x32xf32>
    %87 = arith.truncf %85 : vector<7x8xf32> to vector<7x8xbf16>
    %88 = arith.truncf %86 : vector<8x32xf32> to vector<8x32xbf16>
    %cst_27 = arith.constant dense<0.000000e+00> : vector<7x32xf32>
    %89 = tpu.matmul %87, %88, %cst_27 {dimension_numbers = #tpu.dot_dimension_numbers<[1], [0], [0], [1], [0, 0, 1, 1], [], []>} : vector<7x8xbf16>, vector<8x32xbf16>, vector<7x32xf32> -> vector<7x32xf32>
    %90 = arith.addf %64, %89 : vector<7x32xf32>
    %91 = vector.extract_strided_slice %11 {offsets = [0, 24], sizes = [7, 8], strides = [1, 1]} : vector<7x32xf32> to vector<7x8xf32>
    %92 = vector.extract_strided_slice %12 {offsets = [0, 24], sizes = [7, 8], strides = [1, 1]} : vector<7x32xf32> to vector<7x8xf32>
    %93 = arith.truncf %91 : vector<7x8xf32> to vector<7x8xbf16>
    %94 = arith.truncf %92 : vector<7x8xf32> to vector<7x8xbf16>
    %cst_28 = arith.constant dense<0.000000e+00> : vector<7x7xf32>
    %95 = tpu.matmul %93, %94, %cst_28 {dimension_numbers = #tpu.dot_dimension_numbers<[1], [1], [0], [0], [0, 0, 1, 0], [], []>} : vector<7x8xbf16>, vector<7x8xbf16>, vector<7x7xf32> -> vector<7x7xf32>
    %cst_29 = arith.constant 0.353553385 : f32
    %96 = vector.broadcast %cst_29 : f32 to vector<7x7xf32>
    %97 = arith.mulf %95, %96 : vector<7x7xf32>
    %cst_30 = arith.constant dense<0xFF800000> : vector<7xf32>
    %98 = vector.multi_reduction <maximumf>, %97, %cst_30 [1] : vector<7x7xf32> to vector<7xf32>
    %99 = vector.shape_cast %98 : vector<7xf32> to vector<7x1xf32>
    %100 = vector.broadcast %99 : vector<7x1xf32> to vector<7x7xf32>
    %101 = arith.subf %97, %100 : vector<7x7xf32>
    %102 = math.exp %101 : vector<7x7xf32>
    %cst_31 = arith.constant dense<0.000000e+00> : vector<7xf32>
    %103 = vector.multi_reduction <add>, %102, %cst_31 [1] : vector<7x7xf32> to vector<7xf32>
    %104 = vector.shape_cast %103 : vector<7xf32> to vector<7x1xf32>
    %105 = tpu.reciprocal %104 {approx = true} : vector<7x1xf32> -> vector<7x1xf32>
    %106 = vector.broadcast %105 : vector<7x1xf32> to vector<7x7xf32>
    %107 = arith.mulf %102, %106 : vector<7x7xf32>
    %108 = vector.extract_strided_slice %13 {offsets = [0, 24], sizes = [7, 8], strides = [1, 1]} : vector<7x32xf32> to vector<7x8xf32>
    %109 = arith.truncf %107 : vector<7x7xf32> to vector<7x7xbf16>
    %110 = arith.truncf %108 : vector<7x8xf32> to vector<7x8xbf16>
    %cst_32 = arith.constant dense<0.000000e+00> : vector<7x8xf32>
    %111 = tpu.matmul %109, %110, %cst_32 {dimension_numbers = #tpu.dot_dimension_numbers<[1], [0], [0], [1], [0, 0, 1, 1], [], []>} : vector<7x7xbf16>, vector<7x8xbf16>, vector<7x8xf32> -> vector<7x8xf32>
    %112 = vector.extract_strided_slice %4 {offsets = [24, 0], sizes = [8, 32], strides = [1, 1]} : vector<32x32xf32> to vector<8x32xf32>
    %113 = arith.truncf %111 : vector<7x8xf32> to vector<7x8xbf16>
    %114 = arith.truncf %112 : vector<8x32xf32> to vector<8x32xbf16>
    %cst_33 = arith.constant dense<0.000000e+00> : vector<7x32xf32>
    %115 = tpu.matmul %113, %114, %cst_33 {dimension_numbers = #tpu.dot_dimension_numbers<[1], [0], [0], [1], [0, 0, 1, 1], [], []>} : vector<7x8xbf16>, vector<8x32xbf16>, vector<7x32xf32> -> vector<7x32xf32>
    %116 = arith.addf %90, %115 : vector<7x32xf32>
    %117 = vector.broadcast %5 : vector<1x32xf32> to vector<7x32xf32>
    %118 = arith.addf %116, %117 : vector<7x32xf32>
    %119 = arith.addf %1, %118 : vector<7x32xf32>
    %c0_34 = arith.constant 0 : index
    %c0_35 = arith.constant 0 : index
    %120 = vector.load %arg6[%c0_34, %c0_35] : memref<1x32xf32, #tpu.memory_space<vmem>>, vector<1x32xf32>
    %c0_36 = arith.constant 0 : index
    %c0_37 = arith.constant 0 : index
    %121 = vector.load %arg7[%c0_36, %c0_37] : memref<1x32xf32, #tpu.memory_space<vmem>>, vector<1x32xf32>
    %cst_38 = arith.constant dense<0.000000e+00> : vector<7xf32>
    %122 = vector.multi_reduction <add>, %119, %cst_38 [1] : vector<7x32xf32> to vector<7xf32>
    %123 = vector.shape_cast %122 : vector<7xf32> to vector<7x1xf32>
    %cst_39 = arith.constant 3.200000e+01 : f32
    %124 = vector.broadcast %cst_39 : f32 to vector<7x1xf32>
    %125 = arith.divf %123, %124 : vector<7x1xf32>
    %126 = vector.broadcast %125 : vector<7x1xf32> to vector<7x32xf32>
    %127 = arith.subf %119, %126 : vector<7x32xf32>
    %128 = arith.mulf %127, %127 : vector<7x32xf32>
    %cst_40 = arith.constant dense<0.000000e+00> : vector<7xf32>
    %129 = vector.multi_reduction <add>, %128, %cst_40 [1] : vector<7x32xf32> to vector<7xf32>
    %130 = vector.shape_cast %129 : vector<7xf32> to vector<7x1xf32>
    %cst_41 = arith.constant 3.200000e+01 : f32
    %131 = vector.broadcast %cst_41 : f32 to vector<7x1xf32>
    %132 = arith.divf %130, %131 : vector<7x1xf32>
    %cst_42 = arith.constant 9.99999974E-6 : f32
    %133 = vector.broadcast %cst_42 : f32 to vector<7x1xf32>
    %134 = arith.addf %132, %133 : vector<7x1xf32>
    %135 = math.rsqrt %134 : vector<7x1xf32>
    %136 = vector.broadcast %135 : vector<7x1xf32> to vector<7x32xf32>
    %137 = arith.mulf %127, %136 : vector<7x32xf32>
    %138 = vector.broadcast %120 : vector<1x32xf32> to vector<7x32xf32>
    %139 = arith.mulf %137, %138 : vector<7x32xf32>
    %140 = vector.broadcast %121 : vector<1x32xf32> to vector<7x32xf32>
    %141 = arith.addf %139, %140 : vector<7x32xf32>
    %c0_43 = arith.constant 0 : index
    %c0_44 = arith.constant 0 : index
    %142 = vector.load %arg8[%c0_43, %c0_44] : memref<32x64xf32, #tpu.memory_space<vmem>>, vector<32x64xf32>
    %c0_45 = arith.constant 0 : index
    %c0_46 = arith.constant 0 : index
    %143 = vector.load %arg9[%c0_45, %c0_46] : memref<1x64xf32, #tpu.memory_space<vmem>>, vector<1x64xf32>
    %c0_47 = arith.constant 0 : index
    %c0_48 = arith.constant 0 : index
    %144 = vector.load %arg10[%c0_47, %c0_48] : memref<64x32xf32, #tpu.memory_space<vmem>>, vector<64x32xf32>
    %c0_49 = arith.constant 0 : index
    %c0_50 = arith.constant 0 : index
    %145 = vector.load %arg11[%c0_49, %c0_50] : memref<1x32xf32, #tpu.memory_space<vmem>>, vector<1x32xf32>
    %146 = arith.truncf %141 : vector<7x32xf32> to vector<7x32xbf16>
    %147 = arith.truncf %142 : vector<32x64xf32> to vector<32x64xbf16>
    %cst_51 = arith.constant dense<0.000000e+00> : vector<7x64xf32>
    %148 = tpu.matmul %146, %147, %cst_51 {dimension_numbers = #tpu.dot_dimension_numbers<[1], [0], [0], [1], [0, 0, 1, 1], [], []>} : vector<7x32xbf16>, vector<32x64xbf16>, vector<7x64xf32> -> vector<7x64xf32>
    %149 = vector.broadcast %143 : vector<1x64xf32> to vector<7x64xf32>
    %150 = arith.addf %148, %149 : vector<7x64xf32>
    %cst_52 = arith.constant 0.000000e+00 : f32
    %151 = vector.broadcast %cst_52 : f32 to vector<7x64xf32>
    %152 = arith.maximumf %150, %151 : vector<7x64xf32>
    %153 = arith.truncf %152 : vector<7x64xf32> to vector<7x64xbf16>
    %154 = arith.truncf %144 : vector<64x32xf32> to vector<64x32xbf16>
    %cst_53 = arith.constant dense<0.000000e+00> : vector<7x32xf32>
    %155 = tpu.matmul %153, %154, %cst_53 {dimension_numbers = #tpu.dot_dimension_numbers<[1], [0], [0], [1], [0, 0, 1, 1], [], []>} : vector<7x64xbf16>, vector<64x32xbf16>, vector<7x32xf32> -> vector<7x32xf32>
    %156 = vector.broadcast %145 : vector<1x32xf32> to vector<7x32xf32>
    %157 = arith.addf %155, %156 : vector<7x32xf32>
    %158 = arith.addf %141, %157 : vector<7x32xf32>
    %c0_54 = arith.constant 0 : index
    %c0_55 = arith.constant 0 : index
    %159 = vector.load %arg12[%c0_54, %c0_55] : memref<1x32xf32, #tpu.memory_space<vmem>>, vector<1x32xf32>
    %c0_56 = arith.constant 0 : index
    %c0_57 = arith.constant 0 : index
    %160 = vector.load %arg13[%c0_56, %c0_57] : memref<1x32xf32, #tpu.memory_space<vmem>>, vector<1x32xf32>
    %cst_58 = arith.constant dense<0.000000e+00> : vector<7xf32>
    %161 = vector.multi_reduction <add>, %158, %cst_58 [1] : vector<7x32xf32> to vector<7xf32>
    %162 = vector.shape_cast %161 : vector<7xf32> to vector<7x1xf32>
    %cst_59 = arith.constant 3.200000e+01 : f32
    %163 = vector.broadcast %cst_59 : f32 to vector<7x1xf32>
    %164 = arith.divf %162, %163 : vector<7x1xf32>
    %165 = vector.broadcast %164 : vector<7x1xf32> to vector<7x32xf32>
    %166 = arith.subf %158, %165 : vector<7x32xf32>
    %167 = arith.mulf %166, %166 : vector<7x32xf32>
    %cst_60 = arith.constant dense<0.000000e+00> : vector<7xf32>
    %168 = vector.multi_reduction <add>, %167, %cst_60 [1] : vector<7x32xf32> to vector<7xf32>
    %169 = vector.shape_cast %168 : vector<7xf32> to vector<7x1xf32>
    %cst_61 = arith.constant 3.200000e+01 : f32
    %170 = vector.broadcast %cst_61 : f32 to vector<7x1xf32>
    %171 = arith.divf %169, %170 : vector<7x1xf32>
    %cst_62 = arith.constant 9.99999974E-6 : f32
    %172 = vector.broadcast %cst_62 : f32 to vector<7x1xf32>
    %173 = arith.addf %171, %172 : vector<7x1xf32>
    %174 = math.rsqrt %173 : vector<7x1xf32>
    %175 = vector.broadcast %174 : vector<7x1xf32> to vector<7x32xf32>
    %176 = arith.mulf %166, %175 : vector<7x32xf32>
    %177 = vector.broadcast %159 : vector<1x32xf32> to vector<7x32xf32>
    %178 = arith.mulf %176, %177 : vector<7x32xf32>
    %179 = vector.broadcast %160 : vector<1x32xf32> to vector<7x32xf32>
    %180 = arith.addf %178, %179 : vector<7x32xf32>
    %c0_63 = arith.constant 0 : index
    %c0_64 = arith.constant 0 : index
    %c0_65 = arith.constant 0 : index
    %181 = vector.load %arg14[%c0_63, %c0_64, %c0_65] : memref<1x7x32xf32, #tpu.memory_space<vmem>>, vector<1x7x32xf32>
    %182 = vector.shape_cast %181 : vector<1x7x32xf32> to vector<7x32xf32>
    %183 = vector.shape_cast %180 : vector<7x32xf32> to vector<1x7x32xf32>
    tpu.vector_store %arg14[%c0_63, %c0_64, %c0_65], %183 {strides = array<i32>} : memref<1x7x32xf32, #tpu.memory_space<vmem>>, vector<1x7x32xf32>,
    return
  }
  func.func @transform_0(%arg0: i32) -> (i32, i32, i32) {
    %c0_i32 = arith.constant 0 : i32
    %c0_i32_0 = arith.constant 0 : i32
    %c0_i32_1 = arith.constant 0 : i32
    return %arg0, %c0_i32, %c0_i32_0 : i32, i32, i32
  }
  func.func @transform_1(%arg0: i32) -> (i32, i32) {
    %c0_i32 = arith.constant 0 : i32
    %c0_i32_0 = arith.constant 0 : i32
    %c0_i32_1 = arith.constant 0 : i32
    return %c0_i32, %c0_i32_0 : i32, i32
  }
  func.func @transform_2(%arg0: i32) -> (i32, i32) {
    %c0_i32 = arith.constant 0 : i32
    %c0_i32_0 = arith.constant 0 : i32
    %c0_i32_1 = arith.constant 0 : i32
    return %c0_i32, %c0_i32_0 : i32, i32
  }
  func.func @transform_3(%arg0: i32) -> (i32, i32) {
    %c0_i32 = arith.constant 0 : i32
    %c0_i32_0 = arith.constant 0 : i32
    %c0_i32_1 = arith.constant 0 : i32
    return %c0_i32, %c0_i32_0 : i32, i32
  }
  func.func @transform_4(%arg0: i32) -> (i32, i32) {
    %c0_i32 = arith.constant 0 : i32
    %c0_i32_0 = arith.constant 0 : i32
    %c0_i32_1 = arith.constant 0 : i32
    return %c0_i32, %c0_i32_0 : i32, i32
  }
  func.func @transform_5(%arg0: i32) -> (i32, i32) {
    %c0_i32 = arith.constant 0 : i32
    %c0_i32_0 = arith.constant 0 : i32
    %c0_i32_1 = arith.constant 0 : i32
    return %c0_i32, %c0_i32_0 : i32, i32
  }
  func.func @transform_6(%arg0: i32) -> (i32, i32) {
    %c0_i32 = arith.constant 0 : i32
    %c0_i32_0 = arith.constant 0 : i32
    %c0_i32_1 = arith.constant 0 : i32
    return %c0_i32, %c0_i32_0 : i32, i32
  }
  func.func @transform_7(%arg0: i32) -> (i32, i32) {
    %c0_i32 = arith.constant 0 : i32
    %c0_i32_0 = arith.constant 0 : i32
    %c0_i32_1 = arith.constant 0 : i32
    return %c0_i32, %c0_i32_0 : i32, i32
  }
  func.func @transform_8(%arg0: i32) -> (i32, i32) {
    %c0_i32 = arith.constant 0 : i32
    %c0_i32_0 = arith.constant 0 : i32
    %c0_i32_1 = arith.constant 0 : i32
    return %c0_i32, %c0_i32_0 : i32, i32
  }
  func.func @transform_9(%arg0: i32) -> (i32, i32) {
    %c0_i32 = arith.constant 0 : i32
    %c0_i32_0 = arith.constant 0 : i32
    %c0_i32_1 = arith.constant 0 : i32
    return %c0_i32, %c0_i32_0 : i32, i32
  }
  func.func @transform_10(%arg0: i32) -> (i32, i32) {
    %c0_i32 = arith.constant 0 : i32
    %c0_i32_0 = arith.constant 0 : i32
    %c0_i32_1 = arith.constant 0 : i32
    return %c0_i32, %c0_i32_0 : i32, i32
  }
  func.func @transform_11(%arg0: i32) -> (i32, i32) {
    %c0_i32 = arith.constant 0 : i32
    %c0_i32_0 = arith.constant 0 : i32
    %c0_i32_1 = arith.constant 0 : i32
    return %c0_i32, %c0_i32_0 : i32, i32
  }
  func.func @transform_12(%arg0: i32) -> (i32, i32) {
    %c0_i32 = arith.constant 0 : i32
    %c0_i32_0 = arith.constant 0 : i32
    %c0_i32_1 = arith.constant 0 : i32
    return %c0_i32, %c0_i32_0 : i32, i32
  }
  func.func @transform_13(%arg0: i32) -> (i32, i32, i32) {
    %c0_i32 = arith.constant 0 : i32
    %c0_i32_0 = arith.constant 0 : i32
    %c0_i32_1 = arith.constant 0 : i32
    return %arg0, %c0_i32, %c0_i32_0 : i32, i32, i32
  }
}

module attributes {stable_mosaic.version = 11 : i64} {
  func.func @_linear_kernel(%arg0: memref<10x16xf32, #tpu.memory_space<vmem>>, %arg1: memref<16x32xf32, #tpu.memory_space<vmem>>, %arg2: memref<1x32xf32, #tpu.memory_space<vmem>>, %arg3: memref<10x32xf32, #tpu.memory_space<vmem>>) attributes {dimension_semantics = [], scalar_prefetch = 0 : i64, scratch_operands = 0 : i64, tpu.core_type = #tpu.core_type<tc>} {
    %c0 = arith.constant 0 : index
    %c0_0 = arith.constant 0 : index
    %0 = vector.load %arg0[%c0, %c0_0] : memref<10x16xf32, #tpu.memory_space<vmem>>, vector<10x16xf32>
    %c0_1 = arith.constant 0 : index
    %c0_2 = arith.constant 0 : index
    %1 = vector.load %arg1[%c0_1, %c0_2] : memref<16x32xf32, #tpu.memory_space<vmem>>, vector<16x32xf32>
    %2 = arith.truncf %0 : vector<10x16xf32> to vector<10x16xbf16>
    %3 = arith.truncf %1 : vector<16x32xf32> to vector<16x32xbf16>
    %cst = arith.constant dense<0.000000e+00> : vector<10x32xf32>
    %4 = tpu.matmul %2, %3, %cst {dimension_numbers = #tpu.dot_dimension_numbers<[1], [0], [0], [1], [0, 0, 1, 1], [], []>} : vector<10x16xbf16>, vector<16x32xbf16>, vector<10x32xf32> -> vector<10x32xf32>
    %c0_3 = arith.constant 0 : index
    %c0_4 = arith.constant 0 : index
    %5 = vector.load %arg2[%c0_3, %c0_4] : memref<1x32xf32, #tpu.memory_space<vmem>>, vector<1x32xf32>
    %6 = vector.broadcast %5 : vector<1x32xf32> to vector<10x32xf32>
    %7 = arith.addf %4, %6 : vector<10x32xf32>
    %c0_5 = arith.constant 0 : index
    %c0_6 = arith.constant 0 : index
    %8 = vector.load %arg3[%c0_5, %c0_6] : memref<10x32xf32, #tpu.memory_space<vmem>>, vector<10x32xf32>
    tpu.vector_store %arg3[%c0_5, %c0_6], %7 {strides = array<i32>} : memref<10x32xf32, #tpu.memory_space<vmem>>, vector<10x32xf32>,
    return
  }
}

module attributes {stable_mosaic.version = 11 : i64} {
  func.func @_layernorm_kernel(%arg0: memref<10x32xf32, #tpu.memory_space<vmem>>, %arg1: memref<1x32xf32, #tpu.memory_space<vmem>>, %arg2: memref<1x32xf32, #tpu.memory_space<vmem>>, %arg3: memref<10x32xf32, #tpu.memory_space<vmem>>) attributes {dimension_semantics = [], scalar_prefetch = 0 : i64, scratch_operands = 0 : i64, tpu.core_type = #tpu.core_type<tc>} {
    %c0 = arith.constant 0 : index
    %c0_0 = arith.constant 0 : index
    %0 = vector.load %arg0[%c0, %c0_0] : memref<10x32xf32, #tpu.memory_space<vmem>>, vector<10x32xf32>
    %c0_1 = arith.constant 0 : index
    %c0_2 = arith.constant 0 : index
    %1 = vector.load %arg1[%c0_1, %c0_2] : memref<1x32xf32, #tpu.memory_space<vmem>>, vector<1x32xf32>
    %c0_3 = arith.constant 0 : index
    %c0_4 = arith.constant 0 : index
    %2 = vector.load %arg2[%c0_3, %c0_4] : memref<1x32xf32, #tpu.memory_space<vmem>>, vector<1x32xf32>
    %cst = arith.constant dense<0.000000e+00> : vector<10xf32>
    %3 = vector.multi_reduction <add>, %0, %cst [1] : vector<10x32xf32> to vector<10xf32>
    %4 = vector.shape_cast %3 : vector<10xf32> to vector<10x1xf32>
    %cst_5 = arith.constant 3.200000e+01 : f32
    %5 = vector.broadcast %cst_5 : f32 to vector<10x1xf32>
    %6 = arith.divf %4, %5 : vector<10x1xf32>
    %7 = vector.broadcast %6 : vector<10x1xf32> to vector<10x32xf32>
    %8 = arith.subf %0, %7 : vector<10x32xf32>
    %9 = arith.mulf %8, %8 : vector<10x32xf32>
    %cst_6 = arith.constant dense<0.000000e+00> : vector<10xf32>
    %10 = vector.multi_reduction <add>, %9, %cst_6 [1] : vector<10x32xf32> to vector<10xf32>
    %11 = vector.shape_cast %10 : vector<10xf32> to vector<10x1xf32>
    %cst_7 = arith.constant 3.200000e+01 : f32
    %12 = vector.broadcast %cst_7 : f32 to vector<10x1xf32>
    %13 = arith.divf %11, %12 : vector<10x1xf32>
    %cst_8 = arith.constant 9.99999974E-6 : f32
    %14 = vector.broadcast %cst_8 : f32 to vector<10x1xf32>
    %15 = arith.addf %13, %14 : vector<10x1xf32>
    %16 = math.rsqrt %15 : vector<10x1xf32>
    %17 = vector.broadcast %16 : vector<10x1xf32> to vector<10x32xf32>
    %18 = arith.mulf %8, %17 : vector<10x32xf32>
    %19 = vector.broadcast %1 : vector<1x32xf32> to vector<10x32xf32>
    %20 = arith.mulf %18, %19 : vector<10x32xf32>
    %21 = vector.broadcast %2 : vector<1x32xf32> to vector<10x32xf32>
    %22 = arith.addf %20, %21 : vector<10x32xf32>
    %c0_9 = arith.constant 0 : index
    %c0_10 = arith.constant 0 : index
    %23 = vector.load %arg3[%c0_9, %c0_10] : memref<10x32xf32, #tpu.memory_space<vmem>>, vector<10x32xf32>
    tpu.vector_store %arg3[%c0_9, %c0_10], %22 {strides = array<i32>} : memref<10x32xf32, #tpu.memory_space<vmem>>, vector<10x32xf32>,
    return
  }
}

module attributes {stable_mosaic.version = 11 : i64} {
  func.func @_linear_kernel(%arg0: memref<12x16xf32, #tpu.memory_space<vmem>>, %arg1: memref<16x32xf32, #tpu.memory_space<vmem>>, %arg2: memref<1x32xf32, #tpu.memory_space<vmem>>, %arg3: memref<12x32xf32, #tpu.memory_space<vmem>>) attributes {dimension_semantics = [], scalar_prefetch = 0 : i64, scratch_operands = 0 : i64, tpu.core_type = #tpu.core_type<tc>} {
    %c0 = arith.constant 0 : index
    %c0_0 = arith.constant 0 : index
    %0 = vector.load %arg0[%c0, %c0_0] : memref<12x16xf32, #tpu.memory_space<vmem>>, vector<12x16xf32>
    %c0_1 = arith.constant 0 : index
    %c0_2 = arith.constant 0 : index
    %1 = vector.load %arg1[%c0_1, %c0_2] : memref<16x32xf32, #tpu.memory_space<vmem>>, vector<16x32xf32>
    %2 = arith.truncf %0 : vector<12x16xf32> to vector<12x16xbf16>
    %3 = arith.truncf %1 : vector<16x32xf32> to vector<16x32xbf16>
    %cst = arith.constant dense<0.000000e+00> : vector<12x32xf32>
    %4 = tpu.matmul %2, %3, %cst {dimension_numbers = #tpu.dot_dimension_numbers<[1], [0], [0], [1], [0, 0, 1, 1], [], []>} : vector<12x16xbf16>, vector<16x32xbf16>, vector<12x32xf32> -> vector<12x32xf32>
    %c0_3 = arith.constant 0 : index
    %c0_4 = arith.constant 0 : index
    %5 = vector.load %arg2[%c0_3, %c0_4] : memref<1x32xf32, #tpu.memory_space<vmem>>, vector<1x32xf32>
    %6 = vector.broadcast %5 : vector<1x32xf32> to vector<12x32xf32>
    %7 = arith.addf %4, %6 : vector<12x32xf32>
    %c0_5 = arith.constant 0 : index
    %c0_6 = arith.constant 0 : index
    %8 = vector.load %arg3[%c0_5, %c0_6] : memref<12x32xf32, #tpu.memory_space<vmem>>, vector<12x32xf32>
    tpu.vector_store %arg3[%c0_5, %c0_6], %7 {strides = array<i32>} : memref<12x32xf32, #tpu.memory_space<vmem>>, vector<12x32xf32>,
    return
  }
}

module attributes {stable_mosaic.version = 11 : i64} {
  func.func @_decoder_layer_kernel(%arg0: i32, %arg1: memref<1x6x32xf32, #tpu.memory_space<vmem>>, %arg2: memref<1x5x32xf32, #tpu.memory_space<vmem>>, %arg3: memref<32x96xf32, #tpu.memory_space<vmem>>, %arg4: memref<1x96xf32, #tpu.memory_space<vmem>>, %arg5: memref<32x32xf32, #tpu.memory_space<vmem>>, %arg6: memref<1x32xf32, #tpu.memory_space<vmem>>, %arg7: memref<1x32xf32, #tpu.memory_space<vmem>>, %arg8: memref<1x32xf32, #tpu.memory_space<vmem>>, %arg9: memref<32x32xf32, #tpu.memory_space<vmem>>, %arg10: memref<1x32xf32, #tpu.memory_space<vmem>>, %arg11: memref<32x64xf32, #tpu.memory_space<vmem>>, %arg12: memref<1x64xf32, #tpu.memory_space<vmem>>, %arg13: memref<32x32xf32, #tpu.memory_space<vmem>>, %arg14: memref<1x32xf32, #tpu.memory_space<vmem>>, %arg15: memref<1x32xf32, #tpu.memory_space<vmem>>, %arg16: memref<1x32xf32, #tpu.memory_space<vmem>>, %arg17: memref<32x64xf32, #tpu.memory_space<vmem>>, %arg18: memref<1x64xf32, #tpu.memory_space<vmem>>, %arg19: memref<64x32xf32, #tpu.memory_space<vmem>>, %arg20: memref<1x32xf32, #tpu.memory_space<vmem>>, %arg21: memref<1x32xf32, #tpu.memory_space<vmem>>, %arg22: memref<1x32xf32, #tpu.memory_space<vmem>>, %arg23: memref<1x6x32xf32, #tpu.memory_space<vmem>>) attributes {dimension_semantics = [#tpu.dimension_semantics<parallel>], iteration_bounds = array<i64: 2>, scalar_prefetch = 0 : i64, scratch_operands = 0 : i64, tpu.core_type = #tpu.core_type<tc>, window_params = [{transform_indices = @transform_0, window_bounds = array<i64: 1, 6, 32>}, {transform_indices = @transform_1, window_bounds = array<i64: 1, 5, 32>}, {pipeline_mode = #tpu.pipeline_mode<synchronous>, transform_indices = @transform_2, window_bounds = array<i64: 32, 96>}, {pipeline_mode = #tpu.pipeline_mode<synchronous>, transform_indices = @transform_3, window_bounds = array<i64: 1, 96>}, {pipeline_mode = #tpu.pipeline_mode<synchronous>, transform_indices = @transform_4, window_bounds = array<i64: 32, 32>}, {pipeline_mode = #tpu.pipeline_mode<synchronous>, transform_indices = @transform_5, window_bounds = array<i64: 1, 32>}, {pipeline_mode = #tpu.pipeline_mode<synchronous>, transform_indices = @transform_6, window_bounds = array<i64: 1, 32>}, {pipeline_mode = #tpu.pipeline_mode<synchronous>, transform_indices = @transform_7, window_bounds = array<i64: 1, 32>}, {pipeline_mode = #tpu.pipeline_mode<synchronous>, transform_indices = @transform_8, window_bounds = array<i64: 32, 32>}, {pipeline_mode = #tpu.pipeline_mode<synchronous>, transform_indices = @transform_9, window_bounds = array<i64: 1, 32>}, {pipeline_mode = #tpu.pipeline_mode<synchronous>, transform_indices = @transform_10, window_bounds = array<i64: 32, 64>}, {pipeline_mode = #tpu.pipeline_mode<synchronous>, transform_indices = @transform_11, window_bounds = array<i64: 1, 64>}, {pipeline_mode = #tpu.pipeline_mode<synchronous>, transform_indices = @transform_12, window_bounds = array<i64: 32, 32>}, {pipeline_mode = #tpu.pipeline_mode<synchronous>, transform_indices = @transform_13, window_bounds = array<i64: 1, 32>}, {pipeline_mode = #tpu.pipeline_mode<synchronous>, transform_indices = @transform_14, window_bounds = array<i64: 1, 32>}, {pipeline_mode = #tpu.pipeline_mode<synchronous>, transform_indices = @transform_15, window_bounds = array<i64: 1, 32>}, {pipeline_mode = #tpu.pipeline_mode<synchronous>, transform_indices = @transform_16, window_bounds = array<i64: 32, 64>}, {pipeline_mode = #tpu.pipeline_mode<synchronous>, transform_indices = @transform_17, window_bounds = array<i64: 1, 64>}, {pipeline_mode = #tpu.pipeline_mode<synchronous>, transform_indices = @transform_18, window_bounds = array<i64: 64, 32>}, {pipeline_mode = #tpu.pipeline_mode<synchronous>, transform_indices = @transform_19, window_bounds = array<i64: 1, 32>}, {pipeline_mode = #tpu.pipeline_mode<synchronous>, transform_indices = @transform_20, window_bounds = array<i64: 1, 32>}, {pipeline_mode = #tpu.pipeline_mode<synchronous>, transform_indices = @transform_21, window_bounds = array<i64: 1, 32>}, {transform_indices = @transform_22, window_bounds = array<i64: 1, 6, 32>}]} {
    %c0 = arith.constant 0 : index
    %c0_0 = arith.constant 0 : index
    %c0_1 = arith.constant 0 : index
    %0 = vector.load %arg1[%c0, %c0_0, %c0_1] : memref<1x6x32xf32, #tpu.memory_space<vmem>>, vector<1x6x32xf32>
    %1 = vector.shape_cast %0 : vector<1x6x32xf32> to vector<6x32xf32>
    %c0_2 = arith.constant 0 : index
    %c0_3 = arith.constant 0 : index
    %c0_4 = arith.constant 0 : index
    %2 = vector.load %arg2[%c0_2, %c0_3, %c0_4] : memref<1x5x32xf32, #tpu.memory_space<vmem>>, vector<1x5x32xf32>
    %3 = vector.shape_cast %2 : vector<1x5x32xf32> to vector<5x32xf32>
    %c0_5 = arith.constant 0 : index
    %c0_6 = arith.constant 0 : index
    %4 = vector.load %arg3[%c0_5, %c0_6] : memref<32x96xf32, #tpu.memory_space<vmem>>, vector<32x96xf32>
    %c0_7 = arith.constant 0 : index
    %c0_8 = arith.constant 0 : index
    %5 = vector.load %arg4[%c0_7, %c0_8] : memref<1x96xf32, #tpu.memory_space<vmem>>, vector<1x96xf32>
    %c0_9 = arith.constant 0 : index
    %c0_10 = arith.constant 0 : index
    %6 = vector.load %arg5[%c0_9, %c0_10] : memref<32x32xf32, #tpu.memory_space<vmem>>, vector<32x32xf32>
    %c0_11 = arith.constant 0 : index
    %c0_12 = arith.constant 0 : index
    %7 = vector.load %arg6[%c0_11, %c0_12] : memref<1x32xf32, #tpu.memory_space<vmem>>, vector<1x32xf32>
    %8 = arith.truncf %1 : vector<6x32xf32> to vector<6x32xbf16>
    %9 = arith.truncf %4 : vector<32x96xf32> to vector<32x96xbf16>
    %cst = arith.constant dense<0.000000e+00> : vector<6x96xf32>
    %10 = tpu.matmul %8, %9, %cst {dimension_numbers = #tpu.dot_dimension_numbers<[1], [0], [0], [1], [0, 0, 1, 1], [], []>} : vector<6x32xbf16>, vector<32x96xbf16>, vector<6x96xf32> -> vector<6x96xf32>
    %11 = vector.broadcast %5 : vector<1x96xf32> to vector<6x96xf32>
    %12 = arith.addf %10, %11 : vector<6x96xf32>
    %13 = vector.extract_strided_slice %12 {offsets = [0, 0], sizes = [6, 32], strides = [1, 1]} : vector<6x96xf32> to vector<6x32xf32>
    %14 = vector.extract_strided_slice %12 {offsets = [0, 32], sizes = [6, 32], strides = [1, 1]} : vector<6x96xf32> to vector<6x32xf32>
    %15 = vector.extract_strided_slice %12 {offsets = [0, 64], sizes = [6, 32], strides = [1, 1]} : vector<6x96xf32> to vector<6x32xf32>
    %16 = vector.extract_strided_slice %13 {offsets = [0, 0], sizes = [6, 8], strides = [1, 1]} : vector<6x32xf32> to vector<6x8xf32>
    %17 = vector.extract_strided_slice %14 {offsets = [0, 0], sizes = [6, 8], strides = [1, 1]} : vector<6x32xf32> to vector<6x8xf32>
    %18 = arith.truncf %16 : vector<6x8xf32> to vector<6x8xbf16>
    %19 = arith.truncf %17 : vector<6x8xf32> to vector<6x8xbf16>
    %cst_13 = arith.constant dense<0.000000e+00> : vector<6x6xf32>
    %20 = tpu.matmul %18, %19, %cst_13 {dimension_numbers = #tpu.dot_dimension_numbers<[1], [1], [0], [0], [0, 0, 1, 0], [], []>} : vector<6x8xbf16>, vector<6x8xbf16>, vector<6x6xf32> -> vector<6x6xf32>
    %cst_14 = arith.constant 0.353553385 : f32
    %21 = vector.broadcast %cst_14 : f32 to vector<6x6xf32>
    %22 = arith.mulf %20, %21 : vector<6x6xf32>
    %cst_15 = arith.constant dense<0xFF800000> : vector<6xf32>
    %23 = vector.multi_reduction <maximumf>, %22, %cst_15 [1] : vector<6x6xf32> to vector<6xf32>
    %24 = vector.shape_cast %23 : vector<6xf32> to vector<6x1xf32>
    %25 = vector.broadcast %24 : vector<6x1xf32> to vector<6x6xf32>
    %26 = arith.subf %22, %25 : vector<6x6xf32>
    %27 = math.exp %26 : vector<6x6xf32>
    %cst_16 = arith.constant dense<0.000000e+00> : vector<6xf32>
    %28 = vector.multi_reduction <add>, %27, %cst_16 [1] : vector<6x6xf32> to vector<6xf32>
    %29 = vector.shape_cast %28 : vector<6xf32> to vector<6x1xf32>
    %30 = tpu.reciprocal %29 {approx = true} : vector<6x1xf32> -> vector<6x1xf32>
    %31 = vector.broadcast %30 : vector<6x1xf32> to vector<6x6xf32>
    %32 = arith.mulf %27, %31 : vector<6x6xf32>
    %33 = vector.extract_strided_slice %15 {offsets = [0, 0], sizes = [6, 8], strides = [1, 1]} : vector<6x32xf32> to vector<6x8xf32>
    %34 = arith.truncf %32 : vector<6x6xf32> to vector<6x6xbf16>
    %35 = arith.truncf %33 : vector<6x8xf32> to vector<6x8xbf16>
    %cst_17 = arith.constant dense<0.000000e+00> : vector<6x8xf32>
    %36 = tpu.matmul %34, %35, %cst_17 {dimension_numbers = #tpu.dot_dimension_numbers<[1], [0], [0], [1], [0, 0, 1, 1], [], []>} : vector<6x6xbf16>, vector<6x8xbf16>, vector<6x8xf32> -> vector<6x8xf32>
    %37 = vector.extract_strided_slice %6 {offsets = [0, 0], sizes = [8, 32], strides = [1, 1]} : vector<32x32xf32> to vector<8x32xf32>
    %38 = arith.truncf %36 : vector<6x8xf32> to vector<6x8xbf16>
    %39 = arith.truncf %37 : vector<8x32xf32> to vector<8x32xbf16>
    %cst_18 = arith.constant dense<0.000000e+00> : vector<6x32xf32>
    %40 = tpu.matmul %38, %39, %cst_18 {dimension_numbers = #tpu.dot_dimension_numbers<[1], [0], [0], [1], [0, 0, 1, 1], [], []>} : vector<6x8xbf16>, vector<8x32xbf16>, vector<6x32xf32> -> vector<6x32xf32>
    %41 = vector.extract_strided_slice %13 {offsets = [0, 8], sizes = [6, 8], strides = [1, 1]} : vector<6x32xf32> to vector<6x8xf32>
    %42 = vector.extract_strided_slice %14 {offsets = [0, 8], sizes = [6, 8], strides = [1, 1]} : vector<6x32xf32> to vector<6x8xf32>
    %43 = arith.truncf %41 : vector<6x8xf32> to vector<6x8xbf16>
    %44 = arith.truncf %42 : vector<6x8xf32> to vector<6x8xbf16>
    %cst_19 = arith.constant dense<0.000000e+00> : vector<6x6xf32>
    %45 = tpu.matmul %43, %44, %cst_19 {dimension_numbers = #tpu.dot_dimension_numbers<[1], [1], [0], [0], [0, 0, 1, 0], [], []>} : vector<6x8xbf16>, vector<6x8xbf16>, vector<6x6xf32> -> vector<6x6xf32>
    %cst_20 = arith.constant 0.353553385 : f32
    %46 = vector.broadcast %cst_20 : f32 to vector<6x6xf32>
    %47 = arith.mulf %45, %46 : vector<6x6xf32>
    %cst_21 = arith.constant dense<0xFF800000> : vector<6xf32>
    %48 = vector.multi_reduction <maximumf>, %47, %cst_21 [1] : vector<6x6xf32> to vector<6xf32>
    %49 = vector.shape_cast %48 : vector<6xf32> to vector<6x1xf32>
    %50 = vector.broadcast %49 : vector<6x1xf32> to vector<6x6xf32>
    %51 = arith.subf %47, %50 : vector<6x6xf32>
    %52 = math.exp %51 : vector<6x6xf32>
    %cst_22 = arith.constant dense<0.000000e+00> : vector<6xf32>
    %53 = vector.multi_reduction <add>, %52, %cst_22 [1] : vector<6x6xf32> to vector<6xf32>
    %54 = vector.shape_cast %53 : vector<6xf32> to vector<6x1xf32>
    %55 = tpu.reciprocal %54 {approx = true} : vector<6x1xf32> -> vector<6x1xf32>
    %56 = vector.broadcast %55 : vector<6x1xf32> to vector<6x6xf32>
    %57 = arith.mulf %52, %56 : vector<6x6xf32>
    %58 = vector.extract_strided_slice %15 {offsets = [0, 8], sizes = [6, 8], strides = [1, 1]} : vector<6x32xf32> to vector<6x8xf32>
    %59 = arith.truncf %57 : vector<6x6xf32> to vector<6x6xbf16>
    %60 = arith.truncf %58 : vector<6x8xf32> to vector<6x8xbf16>
    %cst_23 = arith.constant dense<0.000000e+00> : vector<6x8xf32>
    %61 = tpu.matmul %59, %60, %cst_23 {dimension_numbers = #tpu.dot_dimension_numbers<[1], [0], [0], [1], [0, 0, 1, 1], [], []>} : vector<6x6xbf16>, vector<6x8xbf16>, vector<6x8xf32> -> vector<6x8xf32>
    %62 = vector.extract_strided_slice %6 {offsets = [8, 0], sizes = [8, 32], strides = [1, 1]} : vector<32x32xf32> to vector<8x32xf32>
    %63 = arith.truncf %61 : vector<6x8xf32> to vector<6x8xbf16>
    %64 = arith.truncf %62 : vector<8x32xf32> to vector<8x32xbf16>
    %cst_24 = arith.constant dense<0.000000e+00> : vector<6x32xf32>
    %65 = tpu.matmul %63, %64, %cst_24 {dimension_numbers = #tpu.dot_dimension_numbers<[1], [0], [0], [1], [0, 0, 1, 1], [], []>} : vector<6x8xbf16>, vector<8x32xbf16>, vector<6x32xf32> -> vector<6x32xf32>
    %66 = arith.addf %40, %65 : vector<6x32xf32>
    %67 = vector.extract_strided_slice %13 {offsets = [0, 16], sizes = [6, 8], strides = [1, 1]} : vector<6x32xf32> to vector<6x8xf32>
    %68 = vector.extract_strided_slice %14 {offsets = [0, 16], sizes = [6, 8], strides = [1, 1]} : vector<6x32xf32> to vector<6x8xf32>
    %69 = arith.truncf %67 : vector<6x8xf32> to vector<6x8xbf16>
    %70 = arith.truncf %68 : vector<6x8xf32> to vector<6x8xbf16>
    %cst_25 = arith.constant dense<0.000000e+00> : vector<6x6xf32>
    %71 = tpu.matmul %69, %70, %cst_25 {dimension_numbers = #tpu.dot_dimension_numbers<[1], [1], [0], [0], [0, 0, 1, 0], [], []>} : vector<6x8xbf16>, vector<6x8xbf16>, vector<6x6xf32> -> vector<6x6xf32>
    %cst_26 = arith.constant 0.353553385 : f32
    %72 = vector.broadcast %cst_26 : f32 to vector<6x6xf32>
    %73 = arith.mulf %71, %72 : vector<6x6xf32>
    %cst_27 = arith.constant dense<0xFF800000> : vector<6xf32>
    %74 = vector.multi_reduction <maximumf>, %73, %cst_27 [1] : vector<6x6xf32> to vector<6xf32>
    %75 = vector.shape_cast %74 : vector<6xf32> to vector<6x1xf32>
    %76 = vector.broadcast %75 : vector<6x1xf32> to vector<6x6xf32>
    %77 = arith.subf %73, %76 : vector<6x6xf32>
    %78 = math.exp %77 : vector<6x6xf32>
    %cst_28 = arith.constant dense<0.000000e+00> : vector<6xf32>
    %79 = vector.multi_reduction <add>, %78, %cst_28 [1] : vector<6x6xf32> to vector<6xf32>
    %80 = vector.shape_cast %79 : vector<6xf32> to vector<6x1xf32>
    %81 = tpu.reciprocal %80 {approx = true} : vector<6x1xf32> -> vector<6x1xf32>
    %82 = vector.broadcast %81 : vector<6x1xf32> to vector<6x6xf32>
    %83 = arith.mulf %78, %82 : vector<6x6xf32>
    %84 = vector.extract_strided_slice %15 {offsets = [0, 16], sizes = [6, 8], strides = [1, 1]} : vector<6x32xf32> to vector<6x8xf32>
    %85 = arith.truncf %83 : vector<6x6xf32> to vector<6x6xbf16>
    %86 = arith.truncf %84 : vector<6x8xf32> to vector<6x8xbf16>
    %cst_29 = arith.constant dense<0.000000e+00> : vector<6x8xf32>
    %87 = tpu.matmul %85, %86, %cst_29 {dimension_numbers = #tpu.dot_dimension_numbers<[1], [0], [0], [1], [0, 0, 1, 1], [], []>} : vector<6x6xbf16>, vector<6x8xbf16>, vector<6x8xf32> -> vector<6x8xf32>
    %88 = vector.extract_strided_slice %6 {offsets = [16, 0], sizes = [8, 32], strides = [1, 1]} : vector<32x32xf32> to vector<8x32xf32>
    %89 = arith.truncf %87 : vector<6x8xf32> to vector<6x8xbf16>
    %90 = arith.truncf %88 : vector<8x32xf32> to vector<8x32xbf16>
    %cst_30 = arith.constant dense<0.000000e+00> : vector<6x32xf32>
    %91 = tpu.matmul %89, %90, %cst_30 {dimension_numbers = #tpu.dot_dimension_numbers<[1], [0], [0], [1], [0, 0, 1, 1], [], []>} : vector<6x8xbf16>, vector<8x32xbf16>, vector<6x32xf32> -> vector<6x32xf32>
    %92 = arith.addf %66, %91 : vector<6x32xf32>
    %93 = vector.extract_strided_slice %13 {offsets = [0, 24], sizes = [6, 8], strides = [1, 1]} : vector<6x32xf32> to vector<6x8xf32>
    %94 = vector.extract_strided_slice %14 {offsets = [0, 24], sizes = [6, 8], strides = [1, 1]} : vector<6x32xf32> to vector<6x8xf32>
    %95 = arith.truncf %93 : vector<6x8xf32> to vector<6x8xbf16>
    %96 = arith.truncf %94 : vector<6x8xf32> to vector<6x8xbf16>
    %cst_31 = arith.constant dense<0.000000e+00> : vector<6x6xf32>
    %97 = tpu.matmul %95, %96, %cst_31 {dimension_numbers = #tpu.dot_dimension_numbers<[1], [1], [0], [0], [0, 0, 1, 0], [], []>} : vector<6x8xbf16>, vector<6x8xbf16>, vector<6x6xf32> -> vector<6x6xf32>
    %cst_32 = arith.constant 0.353553385 : f32
    %98 = vector.broadcast %cst_32 : f32 to vector<6x6xf32>
    %99 = arith.mulf %97, %98 : vector<6x6xf32>
    %cst_33 = arith.constant dense<0xFF800000> : vector<6xf32>
    %100 = vector.multi_reduction <maximumf>, %99, %cst_33 [1] : vector<6x6xf32> to vector<6xf32>
    %101 = vector.shape_cast %100 : vector<6xf32> to vector<6x1xf32>
    %102 = vector.broadcast %101 : vector<6x1xf32> to vector<6x6xf32>
    %103 = arith.subf %99, %102 : vector<6x6xf32>
    %104 = math.exp %103 : vector<6x6xf32>
    %cst_34 = arith.constant dense<0.000000e+00> : vector<6xf32>
    %105 = vector.multi_reduction <add>, %104, %cst_34 [1] : vector<6x6xf32> to vector<6xf32>
    %106 = vector.shape_cast %105 : vector<6xf32> to vector<6x1xf32>
    %107 = tpu.reciprocal %106 {approx = true} : vector<6x1xf32> -> vector<6x1xf32>
    %108 = vector.broadcast %107 : vector<6x1xf32> to vector<6x6xf32>
    %109 = arith.mulf %104, %108 : vector<6x6xf32>
    %110 = vector.extract_strided_slice %15 {offsets = [0, 24], sizes = [6, 8], strides = [1, 1]} : vector<6x32xf32> to vector<6x8xf32>
    %111 = arith.truncf %109 : vector<6x6xf32> to vector<6x6xbf16>
    %112 = arith.truncf %110 : vector<6x8xf32> to vector<6x8xbf16>
    %cst_35 = arith.constant dense<0.000000e+00> : vector<6x8xf32>
    %113 = tpu.matmul %111, %112, %cst_35 {dimension_numbers = #tpu.dot_dimension_numbers<[1], [0], [0], [1], [0, 0, 1, 1], [], []>} : vector<6x6xbf16>, vector<6x8xbf16>, vector<6x8xf32> -> vector<6x8xf32>
    %114 = vector.extract_strided_slice %6 {offsets = [24, 0], sizes = [8, 32], strides = [1, 1]} : vector<32x32xf32> to vector<8x32xf32>
    %115 = arith.truncf %113 : vector<6x8xf32> to vector<6x8xbf16>
    %116 = arith.truncf %114 : vector<8x32xf32> to vector<8x32xbf16>
    %cst_36 = arith.constant dense<0.000000e+00> : vector<6x32xf32>
    %117 = tpu.matmul %115, %116, %cst_36 {dimension_numbers = #tpu.dot_dimension_numbers<[1], [0], [0], [1], [0, 0, 1, 1], [], []>} : vector<6x8xbf16>, vector<8x32xbf16>, vector<6x32xf32> -> vector<6x32xf32>
    %118 = arith.addf %92, %117 : vector<6x32xf32>
    %119 = vector.broadcast %7 : vector<1x32xf32> to vector<6x32xf32>
    %120 = arith.addf %118, %119 : vector<6x32xf32>
    %121 = arith.addf %1, %120 : vector<6x32xf32>
    %c0_37 = arith.constant 0 : index
    %c0_38 = arith.constant 0 : index
    %122 = vector.load %arg7[%c0_37, %c0_38] : memref<1x32xf32, #tpu.memory_space<vmem>>, vector<1x32xf32>
    %c0_39 = arith.constant 0 : index
    %c0_40 = arith.constant 0 : index
    %123 = vector.load %arg8[%c0_39, %c0_40] : memref<1x32xf32, #tpu.memory_space<vmem>>, vector<1x32xf32>
    %cst_41 = arith.constant dense<0.000000e+00> : vector<6xf32>
    %124 = vector.multi_reduction <add>, %121, %cst_41 [1] : vector<6x32xf32> to vector<6xf32>
    %125 = vector.shape_cast %124 : vector<6xf32> to vector<6x1xf32>
    %cst_42 = arith.constant 3.200000e+01 : f32
    %126 = vector.broadcast %cst_42 : f32 to vector<6x1xf32>
    %127 = arith.divf %125, %126 : vector<6x1xf32>
    %128 = vector.broadcast %127 : vector<6x1xf32> to vector<6x32xf32>
    %129 = arith.subf %121, %128 : vector<6x32xf32>
    %130 = arith.mulf %129, %129 : vector<6x32xf32>
    %cst_43 = arith.constant dense<0.000000e+00> : vector<6xf32>
    %131 = vector.multi_reduction <add>, %130, %cst_43 [1] : vector<6x32xf32> to vector<6xf32>
    %132 = vector.shape_cast %131 : vector<6xf32> to vector<6x1xf32>
    %cst_44 = arith.constant 3.200000e+01 : f32
    %133 = vector.broadcast %cst_44 : f32 to vector<6x1xf32>
    %134 = arith.divf %132, %133 : vector<6x1xf32>
    %cst_45 = arith.constant 9.99999974E-6 : f32
    %135 = vector.broadcast %cst_45 : f32 to vector<6x1xf32>
    %136 = arith.addf %134, %135 : vector<6x1xf32>
    %137 = math.rsqrt %136 : vector<6x1xf32>
    %138 = vector.broadcast %137 : vector<6x1xf32> to vector<6x32xf32>
    %139 = arith.mulf %129, %138 : vector<6x32xf32>
    %140 = vector.broadcast %122 : vector<1x32xf32> to vector<6x32xf32>
    %141 = arith.mulf %139, %140 : vector<6x32xf32>
    %142 = vector.broadcast %123 : vector<1x32xf32> to vector<6x32xf32>
    %143 = arith.addf %141, %142 : vector<6x32xf32>
    %c0_46 = arith.constant 0 : index
    %c0_47 = arith.constant 0 : index
    %144 = vector.load %arg9[%c0_46, %c0_47] : memref<32x32xf32, #tpu.memory_space<vmem>>, vector<32x32xf32>
    %145 = arith.truncf %143 : vector<6x32xf32> to vector<6x32xbf16>
    %146 = arith.truncf %144 : vector<32x32xf32> to vector<32x32xbf16>
    %cst_48 = arith.constant dense<0.000000e+00> : vector<6x32xf32>
    %147 = tpu.matmul %145, %146, %cst_48 {dimension_numbers = #tpu.dot_dimension_numbers<[1], [0], [0], [1], [0, 0, 1, 1], [], []>} : vector<6x32xbf16>, vector<32x32xbf16>, vector<6x32xf32> -> vector<6x32xf32>
    %c0_49 = arith.constant 0 : index
    %c0_50 = arith.constant 0 : index
    %148 = vector.load %arg10[%c0_49, %c0_50] : memref<1x32xf32, #tpu.memory_space<vmem>>, vector<1x32xf32>
    %149 = vector.broadcast %148 : vector<1x32xf32> to vector<6x32xf32>
    %150 = arith.addf %147, %149 : vector<6x32xf32>
    %c0_51 = arith.constant 0 : index
    %c0_52 = arith.constant 0 : index
    %151 = vector.load %arg11[%c0_51, %c0_52] : memref<32x64xf32, #tpu.memory_space<vmem>>, vector<32x64xf32>
    %152 = arith.truncf %3 : vector<5x32xf32> to vector<5x32xbf16>
    %153 = arith.truncf %151 : vector<32x64xf32> to vector<32x64xbf16>
    %cst_53 = arith.constant dense<0.000000e+00> : vector<5x64xf32>
    %154 = tpu.matmul %152, %153, %cst_53 {dimension_numbers = #tpu.dot_dimension_numbers<[1], [0], [0], [1], [0, 0, 1, 1], [], []>} : vector<5x32xbf16>, vector<32x64xbf16>, vector<5x64xf32> -> vector<5x64xf32>
    %c0_54 = arith.constant 0 : index
    %c0_55 = arith.constant 0 : index
    %155 = vector.load %arg12[%c0_54, %c0_55] : memref<1x64xf32, #tpu.memory_space<vmem>>, vector<1x64xf32>
    %156 = vector.broadcast %155 : vector<1x64xf32> to vector<5x64xf32>
    %157 = arith.addf %154, %156 : vector<5x64xf32>
    %158 = vector.extract_strided_slice %157 {offsets = [0, 0], sizes = [5, 32], strides = [1, 1]} : vector<5x64xf32> to vector<5x32xf32>
    %159 = vector.extract_strided_slice %157 {offsets = [0, 32], sizes = [5, 32], strides = [1, 1]} : vector<5x64xf32> to vector<5x32xf32>
    %c0_56 = arith.constant 0 : index
    %c0_57 = arith.constant 0 : index
    %160 = vector.load %arg13[%c0_56, %c0_57] : memref<32x32xf32, #tpu.memory_space<vmem>>, vector<32x32xf32>
    %c0_58 = arith.constant 0 : index
    %c0_59 = arith.constant 0 : index
    %161 = vector.load %arg14[%c0_58, %c0_59] : memref<1x32xf32, #tpu.memory_space<vmem>>, vector<1x32xf32>
    %162 = vector.extract_strided_slice %150 {offsets = [0, 0], sizes = [6, 8], strides = [1, 1]} : vector<6x32xf32> to vector<6x8xf32>
    %163 = vector.extract_strided_slice %158 {offsets = [0, 0], sizes = [5, 8], strides = [1, 1]} : vector<5x32xf32> to vector<5x8xf32>
    %164 = arith.truncf %162 : vector<6x8xf32> to vector<6x8xbf16>
    %165 = arith.truncf %163 : vector<5x8xf32> to vector<5x8xbf16>
    %cst_60 = arith.constant dense<0.000000e+00> : vector<6x5xf32>
    %166 = tpu.matmul %164, %165, %cst_60 {dimension_numbers = #tpu.dot_dimension_numbers<[1], [1], [0], [0], [0, 0, 1, 0], [], []>} : vector<6x8xbf16>, vector<5x8xbf16>, vector<6x5xf32> -> vector<6x5xf32>
    %cst_61 = arith.constant 0.353553385 : f32
    %167 = vector.broadcast %cst_61 : f32 to vector<6x5xf32>
    %168 = arith.mulf %166, %167 : vector<6x5xf32>
    %cst_62 = arith.constant dense<0xFF800000> : vector<6xf32>
    %169 = vector.multi_reduction <maximumf>, %168, %cst_62 [1] : vector<6x5xf32> to vector<6xf32>
    %170 = vector.shape_cast %169 : vector<6xf32> to vector<6x1xf32>
    %171 = vector.broadcast %170 : vector<6x1xf32> to vector<6x5xf32>
    %172 = arith.subf %168, %171 : vector<6x5xf32>
    %173 = math.exp %172 : vector<6x5xf32>
    %cst_63 = arith.constant dense<0.000000e+00> : vector<6xf32>
    %174 = vector.multi_reduction <add>, %173, %cst_63 [1] : vector<6x5xf32> to vector<6xf32>
    %175 = vector.shape_cast %174 : vector<6xf32> to vector<6x1xf32>
    %176 = tpu.reciprocal %175 {approx = true} : vector<6x1xf32> -> vector<6x1xf32>
    %177 = vector.broadcast %176 : vector<6x1xf32> to vector<6x5xf32>
    %178 = arith.mulf %173, %177 : vector<6x5xf32>
    %179 = vector.extract_strided_slice %159 {offsets = [0, 0], sizes = [5, 8], strides = [1, 1]} : vector<5x32xf32> to vector<5x8xf32>
    %180 = arith.truncf %178 : vector<6x5xf32> to vector<6x5xbf16>
    %181 = arith.truncf %179 : vector<5x8xf32> to vector<5x8xbf16>
    %cst_64 = arith.constant dense<0.000000e+00> : vector<6x8xf32>
    %182 = tpu.matmul %180, %181, %cst_64 {dimension_numbers = #tpu.dot_dimension_numbers<[1], [0], [0], [1], [0, 0, 1, 1], [], []>} : vector<6x5xbf16>, vector<5x8xbf16>, vector<6x8xf32> -> vector<6x8xf32>
    %183 = vector.extract_strided_slice %160 {offsets = [0, 0], sizes = [8, 32], strides = [1, 1]} : vector<32x32xf32> to vector<8x32xf32>
    %184 = arith.truncf %182 : vector<6x8xf32> to vector<6x8xbf16>
    %185 = arith.truncf %183 : vector<8x32xf32> to vector<8x32xbf16>
    %cst_65 = arith.constant dense<0.000000e+00> : vector<6x32xf32>
    %186 = tpu.matmul %184, %185, %cst_65 {dimension_numbers = #tpu.dot_dimension_numbers<[1], [0], [0], [1], [0, 0, 1, 1], [], []>} : vector<6x8xbf16>, vector<8x32xbf16>, vector<6x32xf32> -> vector<6x32xf32>
    %187 = vector.extract_strided_slice %150 {offsets = [0, 8], sizes = [6, 8], strides = [1, 1]} : vector<6x32xf32> to vector<6x8xf32>
    %188 = vector.extract_strided_slice %158 {offsets = [0, 8], sizes = [5, 8], strides = [1, 1]} : vector<5x32xf32> to vector<5x8xf32>
    %189 = arith.truncf %187 : vector<6x8xf32> to vector<6x8xbf16>
    %190 = arith.truncf %188 : vector<5x8xf32> to vector<5x8xbf16>
    %cst_66 = arith.constant dense<0.000000e+00> : vector<6x5xf32>
    %191 = tpu.matmul %189, %190, %cst_66 {dimension_numbers = #tpu.dot_dimension_numbers<[1], [1], [0], [0], [0, 0, 1, 0], [], []>} : vector<6x8xbf16>, vector<5x8xbf16>, vector<6x5xf32> -> vector<6x5xf32>
    %cst_67 = arith.constant 0.353553385 : f32
    %192 = vector.broadcast %cst_67 : f32 to vector<6x5xf32>
    %193 = arith.mulf %191, %192 : vector<6x5xf32>
    %cst_68 = arith.constant dense<0xFF800000> : vector<6xf32>
    %194 = vector.multi_reduction <maximumf>, %193, %cst_68 [1] : vector<6x5xf32> to vector<6xf32>
    %195 = vector.shape_cast %194 : vector<6xf32> to vector<6x1xf32>
    %196 = vector.broadcast %195 : vector<6x1xf32> to vector<6x5xf32>
    %197 = arith.subf %193, %196 : vector<6x5xf32>
    %198 = math.exp %197 : vector<6x5xf32>
    %cst_69 = arith.constant dense<0.000000e+00> : vector<6xf32>
    %199 = vector.multi_reduction <add>, %198, %cst_69 [1] : vector<6x5xf32> to vector<6xf32>
    %200 = vector.shape_cast %199 : vector<6xf32> to vector<6x1xf32>
    %201 = tpu.reciprocal %200 {approx = true} : vector<6x1xf32> -> vector<6x1xf32>
    %202 = vector.broadcast %201 : vector<6x1xf32> to vector<6x5xf32>
    %203 = arith.mulf %198, %202 : vector<6x5xf32>
    %204 = vector.extract_strided_slice %159 {offsets = [0, 8], sizes = [5, 8], strides = [1, 1]} : vector<5x32xf32> to vector<5x8xf32>
    %205 = arith.truncf %203 : vector<6x5xf32> to vector<6x5xbf16>
    %206 = arith.truncf %204 : vector<5x8xf32> to vector<5x8xbf16>
    %cst_70 = arith.constant dense<0.000000e+00> : vector<6x8xf32>
    %207 = tpu.matmul %205, %206, %cst_70 {dimension_numbers = #tpu.dot_dimension_numbers<[1], [0], [0], [1], [0, 0, 1, 1], [], []>} : vector<6x5xbf16>, vector<5x8xbf16>, vector<6x8xf32> -> vector<6x8xf32>
    %208 = vector.extract_strided_slice %160 {offsets = [8, 0], sizes = [8, 32], strides = [1, 1]} : vector<32x32xf32> to vector<8x32xf32>
    %209 = arith.truncf %207 : vector<6x8xf32> to vector<6x8xbf16>
    %210 = arith.truncf %208 : vector<8x32xf32> to vector<8x32xbf16>
    %cst_71 = arith.constant dense<0.000000e+00> : vector<6x32xf32>
    %211 = tpu.matmul %209, %210, %cst_71 {dimension_numbers = #tpu.dot_dimension_numbers<[1], [0], [0], [1], [0, 0, 1, 1], [], []>} : vector<6x8xbf16>, vector<8x32xbf16>, vector<6x32xf32> -> vector<6x32xf32>
    %212 = arith.addf %186, %211 : vector<6x32xf32>
    %213 = vector.extract_strided_slice %150 {offsets = [0, 16], sizes = [6, 8], strides = [1, 1]} : vector<6x32xf32> to vector<6x8xf32>
    %214 = vector.extract_strided_slice %158 {offsets = [0, 16], sizes = [5, 8], strides = [1, 1]} : vector<5x32xf32> to vector<5x8xf32>
    %215 = arith.truncf %213 : vector<6x8xf32> to vector<6x8xbf16>
    %216 = arith.truncf %214 : vector<5x8xf32> to vector<5x8xbf16>
    %cst_72 = arith.constant dense<0.000000e+00> : vector<6x5xf32>
    %217 = tpu.matmul %215, %216, %cst_72 {dimension_numbers = #tpu.dot_dimension_numbers<[1], [1], [0], [0], [0, 0, 1, 0], [], []>} : vector<6x8xbf16>, vector<5x8xbf16>, vector<6x5xf32> -> vector<6x5xf32>
    %cst_73 = arith.constant 0.353553385 : f32
    %218 = vector.broadcast %cst_73 : f32 to vector<6x5xf32>
    %219 = arith.mulf %217, %218 : vector<6x5xf32>
    %cst_74 = arith.constant dense<0xFF800000> : vector<6xf32>
    %220 = vector.multi_reduction <maximumf>, %219, %cst_74 [1] : vector<6x5xf32> to vector<6xf32>
    %221 = vector.shape_cast %220 : vector<6xf32> to vector<6x1xf32>
    %222 = vector.broadcast %221 : vector<6x1xf32> to vector<6x5xf32>
    %223 = arith.subf %219, %222 : vector<6x5xf32>
    %224 = math.exp %223 : vector<6x5xf32>
    %cst_75 = arith.constant dense<0.000000e+00> : vector<6xf32>
    %225 = vector.multi_reduction <add>, %224, %cst_75 [1] : vector<6x5xf32> to vector<6xf32>
    %226 = vector.shape_cast %225 : vector<6xf32> to vector<6x1xf32>
    %227 = tpu.reciprocal %226 {approx = true} : vector<6x1xf32> -> vector<6x1xf32>
    %228 = vector.broadcast %227 : vector<6x1xf32> to vector<6x5xf32>
    %229 = arith.mulf %224, %228 : vector<6x5xf32>
    %230 = vector.extract_strided_slice %159 {offsets = [0, 16], sizes = [5, 8], strides = [1, 1]} : vector<5x32xf32> to vector<5x8xf32>
    %231 = arith.truncf %229 : vector<6x5xf32> to vector<6x5xbf16>
    %232 = arith.truncf %230 : vector<5x8xf32> to vector<5x8xbf16>
    %cst_76 = arith.constant dense<0.000000e+00> : vector<6x8xf32>
    %233 = tpu.matmul %231, %232, %cst_76 {dimension_numbers = #tpu.dot_dimension_numbers<[1], [0], [0], [1], [0, 0, 1, 1], [], []>} : vector<6x5xbf16>, vector<5x8xbf16>, vector<6x8xf32> -> vector<6x8xf32>
    %234 = vector.extract_strided_slice %160 {offsets = [16, 0], sizes = [8, 32], strides = [1, 1]} : vector<32x32xf32> to vector<8x32xf32>
    %235 = arith.truncf %233 : vector<6x8xf32> to vector<6x8xbf16>
    %236 = arith.truncf %234 : vector<8x32xf32> to vector<8x32xbf16>
    %cst_77 = arith.constant dense<0.000000e+00> : vector<6x32xf32>
    %237 = tpu.matmul %235, %236, %cst_77 {dimension_numbers = #tpu.dot_dimension_numbers<[1], [0], [0], [1], [0, 0, 1, 1], [], []>} : vector<6x8xbf16>, vector<8x32xbf16>, vector<6x32xf32> -> vector<6x32xf32>
    %238 = arith.addf %212, %237 : vector<6x32xf32>
    %239 = vector.extract_strided_slice %150 {offsets = [0, 24], sizes = [6, 8], strides = [1, 1]} : vector<6x32xf32> to vector<6x8xf32>
    %240 = vector.extract_strided_slice %158 {offsets = [0, 24], sizes = [5, 8], strides = [1, 1]} : vector<5x32xf32> to vector<5x8xf32>
    %241 = arith.truncf %239 : vector<6x8xf32> to vector<6x8xbf16>
    %242 = arith.truncf %240 : vector<5x8xf32> to vector<5x8xbf16>
    %cst_78 = arith.constant dense<0.000000e+00> : vector<6x5xf32>
    %243 = tpu.matmul %241, %242, %cst_78 {dimension_numbers = #tpu.dot_dimension_numbers<[1], [1], [0], [0], [0, 0, 1, 0], [], []>} : vector<6x8xbf16>, vector<5x8xbf16>, vector<6x5xf32> -> vector<6x5xf32>
    %cst_79 = arith.constant 0.353553385 : f32
    %244 = vector.broadcast %cst_79 : f32 to vector<6x5xf32>
    %245 = arith.mulf %243, %244 : vector<6x5xf32>
    %cst_80 = arith.constant dense<0xFF800000> : vector<6xf32>
    %246 = vector.multi_reduction <maximumf>, %245, %cst_80 [1] : vector<6x5xf32> to vector<6xf32>
    %247 = vector.shape_cast %246 : vector<6xf32> to vector<6x1xf32>
    %248 = vector.broadcast %247 : vector<6x1xf32> to vector<6x5xf32>
    %249 = arith.subf %245, %248 : vector<6x5xf32>
    %250 = math.exp %249 : vector<6x5xf32>
    %cst_81 = arith.constant dense<0.000000e+00> : vector<6xf32>
    %251 = vector.multi_reduction <add>, %250, %cst_81 [1] : vector<6x5xf32> to vector<6xf32>
    %252 = vector.shape_cast %251 : vector<6xf32> to vector<6x1xf32>
    %253 = tpu.reciprocal %252 {approx = true} : vector<6x1xf32> -> vector<6x1xf32>
    %254 = vector.broadcast %253 : vector<6x1xf32> to vector<6x5xf32>
    %255 = arith.mulf %250, %254 : vector<6x5xf32>
    %256 = vector.extract_strided_slice %159 {offsets = [0, 24], sizes = [5, 8], strides = [1, 1]} : vector<5x32xf32> to vector<5x8xf32>
    %257 = arith.truncf %255 : vector<6x5xf32> to vector<6x5xbf16>
    %258 = arith.truncf %256 : vector<5x8xf32> to vector<5x8xbf16>
    %cst_82 = arith.constant dense<0.000000e+00> : vector<6x8xf32>
    %259 = tpu.matmul %257, %258, %cst_82 {dimension_numbers = #tpu.dot_dimension_numbers<[1], [0], [0], [1], [0, 0, 1, 1], [], []>} : vector<6x5xbf16>, vector<5x8xbf16>, vector<6x8xf32> -> vector<6x8xf32>
    %260 = vector.extract_strided_slice %160 {offsets = [24, 0], sizes = [8, 32], strides = [1, 1]} : vector<32x32xf32> to vector<8x32xf32>
    %261 = arith.truncf %259 : vector<6x8xf32> to vector<6x8xbf16>
    %262 = arith.truncf %260 : vector<8x32xf32> to vector<8x32xbf16>
    %cst_83 = arith.constant dense<0.000000e+00> : vector<6x32xf32>
    %263 = tpu.matmul %261, %262, %cst_83 {dimension_numbers = #tpu.dot_dimension_numbers<[1], [0], [0], [1], [0, 0, 1, 1], [], []>} : vector<6x8xbf16>, vector<8x32xbf16>, vector<6x32xf32> -> vector<6x32xf32>
    %264 = arith.addf %238, %263 : vector<6x32xf32>
    %265 = vector.broadcast %161 : vector<1x32xf32> to vector<6x32xf32>
    %266 = arith.addf %264, %265 : vector<6x32xf32>
    %267 = arith.addf %143, %266 : vector<6x32xf32>
    %c0_84 = arith.constant 0 : index
    %c0_85 = arith.constant 0 : index
    %268 = vector.load %arg15[%c0_84, %c0_85] : memref<1x32xf32, #tpu.memory_space<vmem>>, vector<1x32xf32>
    %c0_86 = arith.constant 0 : index
    %c0_87 = arith.constant 0 : index
    %269 = vector.load %arg16[%c0_86, %c0_87] : memref<1x32xf32, #tpu.memory_space<vmem>>, vector<1x32xf32>
    %cst_88 = arith.constant dense<0.000000e+00> : vector<6xf32>
    %270 = vector.multi_reduction <add>, %267, %cst_88 [1] : vector<6x32xf32> to vector<6xf32>
    %271 = vector.shape_cast %270 : vector<6xf32> to vector<6x1xf32>
    %cst_89 = arith.constant 3.200000e+01 : f32
    %272 = vector.broadcast %cst_89 : f32 to vector<6x1xf32>
    %273 = arith.divf %271, %272 : vector<6x1xf32>
    %274 = vector.broadcast %273 : vector<6x1xf32> to vector<6x32xf32>
    %275 = arith.subf %267, %274 : vector<6x32xf32>
    %276 = arith.mulf %275, %275 : vector<6x32xf32>
    %cst_90 = arith.constant dense<0.000000e+00> : vector<6xf32>
    %277 = vector.multi_reduction <add>, %276, %cst_90 [1] : vector<6x32xf32> to vector<6xf32>
    %278 = vector.shape_cast %277 : vector<6xf32> to vector<6x1xf32>
    %cst_91 = arith.constant 3.200000e+01 : f32
    %279 = vector.broadcast %cst_91 : f32 to vector<6x1xf32>
    %280 = arith.divf %278, %279 : vector<6x1xf32>
    %cst_92 = arith.constant 9.99999974E-6 : f32
    %281 = vector.broadcast %cst_92 : f32 to vector<6x1xf32>
    %282 = arith.addf %280, %281 : vector<6x1xf32>
    %283 = math.rsqrt %282 : vector<6x1xf32>
    %284 = vector.broadcast %283 : vector<6x1xf32> to vector<6x32xf32>
    %285 = arith.mulf %275, %284 : vector<6x32xf32>
    %286 = vector.broadcast %268 : vector<1x32xf32> to vector<6x32xf32>
    %287 = arith.mulf %285, %286 : vector<6x32xf32>
    %288 = vector.broadcast %269 : vector<1x32xf32> to vector<6x32xf32>
    %289 = arith.addf %287, %288 : vector<6x32xf32>
    %c0_93 = arith.constant 0 : index
    %c0_94 = arith.constant 0 : index
    %290 = vector.load %arg17[%c0_93, %c0_94] : memref<32x64xf32, #tpu.memory_space<vmem>>, vector<32x64xf32>
    %c0_95 = arith.constant 0 : index
    %c0_96 = arith.constant 0 : index
    %291 = vector.load %arg18[%c0_95, %c0_96] : memref<1x64xf32, #tpu.memory_space<vmem>>, vector<1x64xf32>
    %c0_97 = arith.constant 0 : index
    %c0_98 = arith.constant 0 : index
    %292 = vector.load %arg19[%c0_97, %c0_98] : memref<64x32xf32, #tpu.memory_space<vmem>>, vector<64x32xf32>
    %c0_99 = arith.constant 0 : index
    %c0_100 = arith.constant 0 : index
    %293 = vector.load %arg20[%c0_99, %c0_100] : memref<1x32xf32, #tpu.memory_space<vmem>>, vector<1x32xf32>
    %294 = arith.truncf %289 : vector<6x32xf32> to vector<6x32xbf16>
    %295 = arith.truncf %290 : vector<32x64xf32> to vector<32x64xbf16>
    %cst_101 = arith.constant dense<0.000000e+00> : vector<6x64xf32>
    %296 = tpu.matmul %294, %295, %cst_101 {dimension_numbers = #tpu.dot_dimension_numbers<[1], [0], [0], [1], [0, 0, 1, 1], [], []>} : vector<6x32xbf16>, vector<32x64xbf16>, vector<6x64xf32> -> vector<6x64xf32>
    %297 = vector.broadcast %291 : vector<1x64xf32> to vector<6x64xf32>
    %298 = arith.addf %296, %297 : vector<6x64xf32>
    %cst_102 = arith.constant 0.000000e+00 : f32
    %299 = vector.broadcast %cst_102 : f32 to vector<6x64xf32>
    %300 = arith.maximumf %298, %299 : vector<6x64xf32>
    %301 = arith.truncf %300 : vector<6x64xf32> to vector<6x64xbf16>
    %302 = arith.truncf %292 : vector<64x32xf32> to vector<64x32xbf16>
    %cst_103 = arith.constant dense<0.000000e+00> : vector<6x32xf32>
    %303 = tpu.matmul %301, %302, %cst_103 {dimension_numbers = #tpu.dot_dimension_numbers<[1], [0], [0], [1], [0, 0, 1, 1], [], []>} : vector<6x64xbf16>, vector<64x32xbf16>, vector<6x32xf32> -> vector<6x32xf32>
    %304 = vector.broadcast %293 : vector<1x32xf32> to vector<6x32xf32>
    %305 = arith.addf %303, %304 : vector<6x32xf32>
    %306 = arith.addf %289, %305 : vector<6x32xf32>
    %c0_104 = arith.constant 0 : index
    %c0_105 = arith.constant 0 : index
    %307 = vector.load %arg21[%c0_104, %c0_105] : memref<1x32xf32, #tpu.memory_space<vmem>>, vector<1x32xf32>
    %c0_106 = arith.constant 0 : index
    %c0_107 = arith.constant 0 : index
    %308 = vector.load %arg22[%c0_106, %c0_107] : memref<1x32xf32, #tpu.memory_space<vmem>>, vector<1x32xf32>
    %cst_108 = arith.constant dense<0.000000e+00> : vector<6xf32>
    %309 = vector.multi_reduction <add>, %306, %cst_108 [1] : vector<6x32xf32> to vector<6xf32>
    %310 = vector.shape_cast %309 : vector<6xf32> to vector<6x1xf32>
    %cst_109 = arith.constant 3.200000e+01 : f32
    %311 = vector.broadcast %cst_109 : f32 to vector<6x1xf32>
    %312 = arith.divf %310, %311 : vector<6x1xf32>
    %313 = vector.broadcast %312 : vector<6x1xf32> to vector<6x32xf32>
    %314 = arith.subf %306, %313 : vector<6x32xf32>
    %315 = arith.mulf %314, %314 : vector<6x32xf32>
    %cst_110 = arith.constant dense<0.000000e+00> : vector<6xf32>
    %316 = vector.multi_reduction <add>, %315, %cst_110 [1] : vector<6x32xf32> to vector<6xf32>
    %317 = vector.shape_cast %316 : vector<6xf32> to vector<6x1xf32>
    %cst_111 = arith.constant 3.200000e+01 : f32
    %318 = vector.broadcast %cst_111 : f32 to vector<6x1xf32>
    %319 = arith.divf %317, %318 : vector<6x1xf32>
    %cst_112 = arith.constant 9.99999974E-6 : f32
    %320 = vector.broadcast %cst_112 : f32 to vector<6x1xf32>
    %321 = arith.addf %319, %320 : vector<6x1xf32>
    %322 = math.rsqrt %321 : vector<6x1xf32>
    %323 = vector.broadcast %322 : vector<6x1xf32> to vector<6x32xf32>
    %324 = arith.mulf %314, %323 : vector<6x32xf32>
    %325 = vector.broadcast %307 : vector<1x32xf32> to vector<6x32xf32>
    %326 = arith.mulf %324, %325 : vector<6x32xf32>
    %327 = vector.broadcast %308 : vector<1x32xf32> to vector<6x32xf32>
    %328 = arith.addf %326, %327 : vector<6x32xf32>
    %c0_113 = arith.constant 0 : index
    %c0_114 = arith.constant 0 : index
    %c0_115 = arith.constant 0 : index
    %329 = vector.load %arg23[%c0_113, %c0_114, %c0_115] : memref<1x6x32xf32, #tpu.memory_space<vmem>>, vector<1x6x32xf32>
    %330 = vector.shape_cast %329 : vector<1x6x32xf32> to vector<6x32xf32>
    %331 = vector.shape_cast %328 : vector<6x32xf32> to vector<1x6x32xf32>
    tpu.vector_store %arg23[%c0_113, %c0_114, %c0_115], %331 {strides = array<i32>} : memref<1x6x32xf32, #tpu.memory_space<vmem>>, vector<1x6x32xf32>,
    return
  }
  func.func @transform_0(%arg0: i32) -> (i32, i32, i32) {
    %c0_i32 = arith.constant 0 : i32
    %c0_i32_0 = arith.constant 0 : i32
    %c0_i32_1 = arith.constant 0 : i32
    return %arg0, %c0_i32, %c0_i32_0 : i32, i32, i32
  }
  func.func @transform_1(%arg0: i32) -> (i32, i32, i32) {
    %c0_i32 = arith.constant 0 : i32
    %c0_i32_0 = arith.constant 0 : i32
    %c0_i32_1 = arith.constant 0 : i32
    return %arg0, %c0_i32, %c0_i32_0 : i32, i32, i32
  }
  func.func @transform_2(%arg0: i32) -> (i32, i32) {
    %c0_i32 = arith.constant 0 : i32
    %c0_i32_0 = arith.constant 0 : i32
    %c0_i32_1 = arith.constant 0 : i32
    return %c0_i32, %c0_i32_0 : i32, i32
  }
  func.func @transform_3(%arg0: i32) -> (i32, i32) {
    %c0_i32 = arith.constant 0 : i32
    %c0_i32_0 = arith.constant 0 : i32
    %c0_i32_1 = arith.constant 0 : i32
    return %c0_i32, %c0_i32_0 : i32, i32
  }
  func.func @transform_4(%arg0: i32) -> (i32, i32) {
    %c0_i32 = arith.constant 0 : i32
    %c0_i32_0 = arith.constant 0 : i32
    %c0_i32_1 = arith.constant 0 : i32
    return %c0_i32, %c0_i32_0 : i32, i32
  }
  func.func @transform_5(%arg0: i32) -> (i32, i32) {
    %c0_i32 = arith.constant 0 : i32
    %c0_i32_0 = arith.constant 0 : i32
    %c0_i32_1 = arith.constant 0 : i32
    return %c0_i32, %c0_i32_0 : i32, i32
  }
  func.func @transform_6(%arg0: i32) -> (i32, i32) {
    %c0_i32 = arith.constant 0 : i32
    %c0_i32_0 = arith.constant 0 : i32
    %c0_i32_1 = arith.constant 0 : i32
    return %c0_i32, %c0_i32_0 : i32, i32
  }
  func.func @transform_7(%arg0: i32) -> (i32, i32) {
    %c0_i32 = arith.constant 0 : i32
    %c0_i32_0 = arith.constant 0 : i32
    %c0_i32_1 = arith.constant 0 : i32
    return %c0_i32, %c0_i32_0 : i32, i32
  }
  func.func @transform_8(%arg0: i32) -> (i32, i32) {
    %c0_i32 = arith.constant 0 : i32
    %c0_i32_0 = arith.constant 0 : i32
    %c0_i32_1 = arith.constant 0 : i32
    return %c0_i32, %c0_i32_0 : i32, i32
  }
  func.func @transform_9(%arg0: i32) -> (i32, i32) {
    %c0_i32 = arith.constant 0 : i32
    %c0_i32_0 = arith.constant 0 : i32
    %c0_i32_1 = arith.constant 0 : i32
    return %c0_i32, %c0_i32_0 : i32, i32
  }
  func.func @transform_10(%arg0: i32) -> (i32, i32) {
    %c0_i32 = arith.constant 0 : i32
    %c0_i32_0 = arith.constant 0 : i32
    %c0_i32_1 = arith.constant 0 : i32
    return %c0_i32, %c0_i32_0 : i32, i32
  }
  func.func @transform_11(%arg0: i32) -> (i32, i32) {
    %c0_i32 = arith.constant 0 : i32
    %c0_i32_0 = arith.constant 0 : i32
    %c0_i32_1 = arith.constant 0 : i32
    return %c0_i32, %c0_i32_0 : i32, i32
  }
  func.func @transform_12(%arg0: i32) -> (i32, i32) {
    %c0_i32 = arith.constant 0 : i32
    %c0_i32_0 = arith.constant 0 : i32
    %c0_i32_1 = arith.constant 0 : i32
    return %c0_i32, %c0_i32_0 : i32, i32
  }
  func.func @transform_13(%arg0: i32) -> (i32, i32) {
    %c0_i32 = arith.constant 0 : i32
    %c0_i32_0 = arith.constant 0 : i32
    %c0_i32_1 = arith.constant 0 : i32
    return %c0_i32, %c0_i32_0 : i32, i32
  }
  func.func @transform_14(%arg0: i32) -> (i32, i32) {
    %c0_i32 = arith.constant 0 : i32
    %c0_i32_0 = arith.constant 0 : i32
    %c0_i32_1 = arith.constant 0 : i32
    return %c0_i32, %c0_i32_0 : i32, i32
  }
  func.func @transform_15(%arg0: i32) -> (i32, i32) {
    %c0_i32 = arith.constant 0 : i32
    %c0_i32_0 = arith.constant 0 : i32
    %c0_i32_1 = arith.constant 0 : i32
    return %c0_i32, %c0_i32_0 : i32, i32
  }
  func.func @transform_16(%arg0: i32) -> (i32, i32) {
    %c0_i32 = arith.constant 0 : i32
    %c0_i32_0 = arith.constant 0 : i32
    %c0_i32_1 = arith.constant 0 : i32
    return %c0_i32, %c0_i32_0 : i32, i32
  }
  func.func @transform_17(%arg0: i32) -> (i32, i32) {
    %c0_i32 = arith.constant 0 : i32
    %c0_i32_0 = arith.constant 0 : i32
    %c0_i32_1 = arith.constant 0 : i32
    return %c0_i32, %c0_i32_0 : i32, i32
  }
  func.func @transform_18(%arg0: i32) -> (i32, i32) {
    %c0_i32 = arith.constant 0 : i32
    %c0_i32_0 = arith.constant 0 : i32
    %c0_i32_1 = arith.constant 0 : i32
    return %c0_i32, %c0_i32_0 : i32, i32
  }
  func.func @transform_19(%arg0: i32) -> (i32, i32) {
    %c0_i32 = arith.constant 0 : i32
    %c0_i32_0 = arith.constant 0 : i32
    %c0_i32_1 = arith.constant 0 : i32
    return %c0_i32, %c0_i32_0 : i32, i32
  }
  func.func @transform_20(%arg0: i32) -> (i32, i32) {
    %c0_i32 = arith.constant 0 : i32
    %c0_i32_0 = arith.constant 0 : i32
    %c0_i32_1 = arith.constant 0 : i32
    return %c0_i32, %c0_i32_0 : i32, i32
  }
  func.func @transform_21(%arg0: i32) -> (i32, i32) {
    %c0_i32 = arith.constant 0 : i32
    %c0_i32_0 = arith.constant 0 : i32
    %c0_i32_1 = arith.constant 0 : i32
    return %c0_i32, %c0_i32_0 : i32, i32
  }
  func.func @transform_22(%arg0: i32) -> (i32, i32, i32) {
    %c0_i32 = arith.constant 0 : i32
    %c0_i32_0 = arith.constant 0 : i32
    %c0_i32_1 = arith.constant 0 : i32
    return %arg0, %c0_i32, %c0_i32_0 : i32, i32, i32
  }
}

module attributes {stable_mosaic.version = 11 : i64} {
  func.func @_decoder_layer_kernel(%arg0: i32, %arg1: memref<1x5x32xf32, #tpu.memory_space<vmem>>, %arg2: memref<1x7x32xf32, #tpu.memory_space<vmem>>, %arg3: memref<32x96xf32, #tpu.memory_space<vmem>>, %arg4: memref<1x96xf32, #tpu.memory_space<vmem>>, %arg5: memref<32x32xf32, #tpu.memory_space<vmem>>, %arg6: memref<1x32xf32, #tpu.memory_space<vmem>>, %arg7: memref<1x32xf32, #tpu.memory_space<vmem>>, %arg8: memref<1x32xf32, #tpu.memory_space<vmem>>, %arg9: memref<32x32xf32, #tpu.memory_space<vmem>>, %arg10: memref<1x32xf32, #tpu.memory_space<vmem>>, %arg11: memref<32x64xf32, #tpu.memory_space<vmem>>, %arg12: memref<1x64xf32, #tpu.memory_space<vmem>>, %arg13: memref<32x32xf32, #tpu.memory_space<vmem>>, %arg14: memref<1x32xf32, #tpu.memory_space<vmem>>, %arg15: memref<1x32xf32, #tpu.memory_space<vmem>>, %arg16: memref<1x32xf32, #tpu.memory_space<vmem>>, %arg17: memref<32x64xf32, #tpu.memory_space<vmem>>, %arg18: memref<1x64xf32, #tpu.memory_space<vmem>>, %arg19: memref<64x32xf32, #tpu.memory_space<vmem>>, %arg20: memref<1x32xf32, #tpu.memory_space<vmem>>, %arg21: memref<1x32xf32, #tpu.memory_space<vmem>>, %arg22: memref<1x32xf32, #tpu.memory_space<vmem>>, %arg23: memref<1x5x32xf32, #tpu.memory_space<vmem>>) attributes {dimension_semantics = [#tpu.dimension_semantics<parallel>], iteration_bounds = array<i64: 2>, scalar_prefetch = 0 : i64, scratch_operands = 0 : i64, tpu.core_type = #tpu.core_type<tc>, window_params = [{transform_indices = @transform_0, window_bounds = array<i64: 1, 5, 32>}, {transform_indices = @transform_1, window_bounds = array<i64: 1, 7, 32>}, {pipeline_mode = #tpu.pipeline_mode<synchronous>, transform_indices = @transform_2, window_bounds = array<i64: 32, 96>}, {pipeline_mode = #tpu.pipeline_mode<synchronous>, transform_indices = @transform_3, window_bounds = array<i64: 1, 96>}, {pipeline_mode = #tpu.pipeline_mode<synchronous>, transform_indices = @transform_4, window_bounds = array<i64: 32, 32>}, {pipeline_mode = #tpu.pipeline_mode<synchronous>, transform_indices = @transform_5, window_bounds = array<i64: 1, 32>}, {pipeline_mode = #tpu.pipeline_mode<synchronous>, transform_indices = @transform_6, window_bounds = array<i64: 1, 32>}, {pipeline_mode = #tpu.pipeline_mode<synchronous>, transform_indices = @transform_7, window_bounds = array<i64: 1, 32>}, {pipeline_mode = #tpu.pipeline_mode<synchronous>, transform_indices = @transform_8, window_bounds = array<i64: 32, 32>}, {pipeline_mode = #tpu.pipeline_mode<synchronous>, transform_indices = @transform_9, window_bounds = array<i64: 1, 32>}, {pipeline_mode = #tpu.pipeline_mode<synchronous>, transform_indices = @transform_10, window_bounds = array<i64: 32, 64>}, {pipeline_mode = #tpu.pipeline_mode<synchronous>, transform_indices = @transform_11, window_bounds = array<i64: 1, 64>}, {pipeline_mode = #tpu.pipeline_mode<synchronous>, transform_indices = @transform_12, window_bounds = array<i64: 32, 32>}, {pipeline_mode = #tpu.pipeline_mode<synchronous>, transform_indices = @transform_13, window_bounds = array<i64: 1, 32>}, {pipeline_mode = #tpu.pipeline_mode<synchronous>, transform_indices = @transform_14, window_bounds = array<i64: 1, 32>}, {pipeline_mode = #tpu.pipeline_mode<synchronous>, transform_indices = @transform_15, window_bounds = array<i64: 1, 32>}, {pipeline_mode = #tpu.pipeline_mode<synchronous>, transform_indices = @transform_16, window_bounds = array<i64: 32, 64>}, {pipeline_mode = #tpu.pipeline_mode<synchronous>, transform_indices = @transform_17, window_bounds = array<i64: 1, 64>}, {pipeline_mode = #tpu.pipeline_mode<synchronous>, transform_indices = @transform_18, window_bounds = array<i64: 64, 32>}, {pipeline_mode = #tpu.pipeline_mode<synchronous>, transform_indices = @transform_19, window_bounds = array<i64: 1, 32>}, {pipeline_mode = #tpu.pipeline_mode<synchronous>, transform_indices = @transform_20, window_bounds = array<i64: 1, 32>}, {pipeline_mode = #tpu.pipeline_mode<synchronous>, transform_indices = @transform_21, window_bounds = array<i64: 1, 32>}, {transform_indices = @transform_22, window_bounds = array<i64: 1, 5, 32>}]} {
    %c0 = arith.constant 0 : index
    %c0_0 = arith.constant 0 : index
    %c0_1 = arith.constant 0 : index
    %0 = vector.load %arg1[%c0, %c0_0, %c0_1] : memref<1x5x32xf32, #tpu.memory_space<vmem>>, vector<1x5x32xf32>
    %1 = vector.shape_cast %0 : vector<1x5x32xf32> to vector<5x32xf32>
    %c0_2 = arith.constant 0 : index
    %c0_3 = arith.constant 0 : index
    %c0_4 = arith.constant 0 : index
    %2 = vector.load %arg2[%c0_2, %c0_3, %c0_4] : memref<1x7x32xf32, #tpu.memory_space<vmem>>, vector<1x7x32xf32>
    %3 = vector.shape_cast %2 : vector<1x7x32xf32> to vector<7x32xf32>
    %c0_5 = arith.constant 0 : index
    %c0_6 = arith.constant 0 : index
    %4 = vector.load %arg3[%c0_5, %c0_6] : memref<32x96xf32, #tpu.memory_space<vmem>>, vector<32x96xf32>
    %c0_7 = arith.constant 0 : index
    %c0_8 = arith.constant 0 : index
    %5 = vector.load %arg4[%c0_7, %c0_8] : memref<1x96xf32, #tpu.memory_space<vmem>>, vector<1x96xf32>
    %c0_9 = arith.constant 0 : index
    %c0_10 = arith.constant 0 : index
    %6 = vector.load %arg5[%c0_9, %c0_10] : memref<32x32xf32, #tpu.memory_space<vmem>>, vector<32x32xf32>
    %c0_11 = arith.constant 0 : index
    %c0_12 = arith.constant 0 : index
    %7 = vector.load %arg6[%c0_11, %c0_12] : memref<1x32xf32, #tpu.memory_space<vmem>>, vector<1x32xf32>
    %8 = arith.truncf %1 : vector<5x32xf32> to vector<5x32xbf16>
    %9 = arith.truncf %4 : vector<32x96xf32> to vector<32x96xbf16>
    %cst = arith.constant dense<0.000000e+00> : vector<5x96xf32>
    %10 = tpu.matmul %8, %9, %cst {dimension_numbers = #tpu.dot_dimension_numbers<[1], [0], [0], [1], [0, 0, 1, 1], [], []>} : vector<5x32xbf16>, vector<32x96xbf16>, vector<5x96xf32> -> vector<5x96xf32>
    %11 = vector.broadcast %5 : vector<1x96xf32> to vector<5x96xf32>
    %12 = arith.addf %10, %11 : vector<5x96xf32>
    %13 = vector.extract_strided_slice %12 {offsets = [0, 0], sizes = [5, 32], strides = [1, 1]} : vector<5x96xf32> to vector<5x32xf32>
    %14 = vector.extract_strided_slice %12 {offsets = [0, 32], sizes = [5, 32], strides = [1, 1]} : vector<5x96xf32> to vector<5x32xf32>
    %15 = vector.extract_strided_slice %12 {offsets = [0, 64], sizes = [5, 32], strides = [1, 1]} : vector<5x96xf32> to vector<5x32xf32>
    %16 = vector.extract_strided_slice %13 {offsets = [0, 0], sizes = [5, 8], strides = [1, 1]} : vector<5x32xf32> to vector<5x8xf32>
    %17 = vector.extract_strided_slice %14 {offsets = [0, 0], sizes = [5, 8], strides = [1, 1]} : vector<5x32xf32> to vector<5x8xf32>
    %18 = arith.truncf %16 : vector<5x8xf32> to vector<5x8xbf16>
    %19 = arith.truncf %17 : vector<5x8xf32> to vector<5x8xbf16>
    %cst_13 = arith.constant dense<0.000000e+00> : vector<5x5xf32>
    %20 = tpu.matmul %18, %19, %cst_13 {dimension_numbers = #tpu.dot_dimension_numbers<[1], [1], [0], [0], [0, 0, 1, 0], [], []>} : vector<5x8xbf16>, vector<5x8xbf16>, vector<5x5xf32> -> vector<5x5xf32>
    %cst_14 = arith.constant 0.353553385 : f32
    %21 = vector.broadcast %cst_14 : f32 to vector<5x5xf32>
    %22 = arith.mulf %20, %21 : vector<5x5xf32>
    %cst_15 = arith.constant dense<0xFF800000> : vector<5xf32>
    %23 = vector.multi_reduction <maximumf>, %22, %cst_15 [1] : vector<5x5xf32> to vector<5xf32>
    %24 = vector.shape_cast %23 : vector<5xf32> to vector<5x1xf32>
    %25 = vector.broadcast %24 : vector<5x1xf32> to vector<5x5xf32>
    %26 = arith.subf %22, %25 : vector<5x5xf32>
    %27 = math.exp %26 : vector<5x5xf32>
    %cst_16 = arith.constant dense<0.000000e+00> : vector<5xf32>
    %28 = vector.multi_reduction <add>, %27, %cst_16 [1] : vector<5x5xf32> to vector<5xf32>
    %29 = vector.shape_cast %28 : vector<5xf32> to vector<5x1xf32>
    %30 = tpu.reciprocal %29 {approx = true} : vector<5x1xf32> -> vector<5x1xf32>
    %31 = vector.broadcast %30 : vector<5x1xf32> to vector<5x5xf32>
    %32 = arith.mulf %27, %31 : vector<5x5xf32>
    %33 = vector.extract_strided_slice %15 {offsets = [0, 0], sizes = [5, 8], strides = [1, 1]} : vector<5x32xf32> to vector<5x8xf32>
    %34 = arith.truncf %32 : vector<5x5xf32> to vector<5x5xbf16>
    %35 = arith.truncf %33 : vector<5x8xf32> to vector<5x8xbf16>
    %cst_17 = arith.constant dense<0.000000e+00> : vector<5x8xf32>
    %36 = tpu.matmul %34, %35, %cst_17 {dimension_numbers = #tpu.dot_dimension_numbers<[1], [0], [0], [1], [0, 0, 1, 1], [], []>} : vector<5x5xbf16>, vector<5x8xbf16>, vector<5x8xf32> -> vector<5x8xf32>
    %37 = vector.extract_strided_slice %6 {offsets = [0, 0], sizes = [8, 32], strides = [1, 1]} : vector<32x32xf32> to vector<8x32xf32>
    %38 = arith.truncf %36 : vector<5x8xf32> to vector<5x8xbf16>
    %39 = arith.truncf %37 : vector<8x32xf32> to vector<8x32xbf16>
    %cst_18 = arith.constant dense<0.000000e+00> : vector<5x32xf32>
    %40 = tpu.matmul %38, %39, %cst_18 {dimension_numbers = #tpu.dot_dimension_numbers<[1], [0], [0], [1], [0, 0, 1, 1], [], []>} : vector<5x8xbf16>, vector<8x32xbf16>, vector<5x32xf32> -> vector<5x32xf32>
    %41 = vector.extract_strided_slice %13 {offsets = [0, 8], sizes = [5, 8], strides = [1, 1]} : vector<5x32xf32> to vector<5x8xf32>
    %42 = vector.extract_strided_slice %14 {offsets = [0, 8], sizes = [5, 8], strides = [1, 1]} : vector<5x32xf32> to vector<5x8xf32>
    %43 = arith.truncf %41 : vector<5x8xf32> to vector<5x8xbf16>
    %44 = arith.truncf %42 : vector<5x8xf32> to vector<5x8xbf16>
    %cst_19 = arith.constant dense<0.000000e+00> : vector<5x5xf32>
    %45 = tpu.matmul %43, %44, %cst_19 {dimension_numbers = #tpu.dot_dimension_numbers<[1], [1], [0], [0], [0, 0, 1, 0], [], []>} : vector<5x8xbf16>, vector<5x8xbf16>, vector<5x5xf32> -> vector<5x5xf32>
    %cst_20 = arith.constant 0.353553385 : f32
    %46 = vector.broadcast %cst_20 : f32 to vector<5x5xf32>
    %47 = arith.mulf %45, %46 : vector<5x5xf32>
    %cst_21 = arith.constant dense<0xFF800000> : vector<5xf32>
    %48 = vector.multi_reduction <maximumf>, %47, %cst_21 [1] : vector<5x5xf32> to vector<5xf32>
    %49 = vector.shape_cast %48 : vector<5xf32> to vector<5x1xf32>
    %50 = vector.broadcast %49 : vector<5x1xf32> to vector<5x5xf32>
    %51 = arith.subf %47, %50 : vector<5x5xf32>
    %52 = math.exp %51 : vector<5x5xf32>
    %cst_22 = arith.constant dense<0.000000e+00> : vector<5xf32>
    %53 = vector.multi_reduction <add>, %52, %cst_22 [1] : vector<5x5xf32> to vector<5xf32>
    %54 = vector.shape_cast %53 : vector<5xf32> to vector<5x1xf32>
    %55 = tpu.reciprocal %54 {approx = true} : vector<5x1xf32> -> vector<5x1xf32>
    %56 = vector.broadcast %55 : vector<5x1xf32> to vector<5x5xf32>
    %57 = arith.mulf %52, %56 : vector<5x5xf32>
    %58 = vector.extract_strided_slice %15 {offsets = [0, 8], sizes = [5, 8], strides = [1, 1]} : vector<5x32xf32> to vector<5x8xf32>
    %59 = arith.truncf %57 : vector<5x5xf32> to vector<5x5xbf16>
    %60 = arith.truncf %58 : vector<5x8xf32> to vector<5x8xbf16>
    %cst_23 = arith.constant dense<0.000000e+00> : vector<5x8xf32>
    %61 = tpu.matmul %59, %60, %cst_23 {dimension_numbers = #tpu.dot_dimension_numbers<[1], [0], [0], [1], [0, 0, 1, 1], [], []>} : vector<5x5xbf16>, vector<5x8xbf16>, vector<5x8xf32> -> vector<5x8xf32>
    %62 = vector.extract_strided_slice %6 {offsets = [8, 0], sizes = [8, 32], strides = [1, 1]} : vector<32x32xf32> to vector<8x32xf32>
    %63 = arith.truncf %61 : vector<5x8xf32> to vector<5x8xbf16>
    %64 = arith.truncf %62 : vector<8x32xf32> to vector<8x32xbf16>
    %cst_24 = arith.constant dense<0.000000e+00> : vector<5x32xf32>
    %65 = tpu.matmul %63, %64, %cst_24 {dimension_numbers = #tpu.dot_dimension_numbers<[1], [0], [0], [1], [0, 0, 1, 1], [], []>} : vector<5x8xbf16>, vector<8x32xbf16>, vector<5x32xf32> -> vector<5x32xf32>
    %66 = arith.addf %40, %65 : vector<5x32xf32>
    %67 = vector.extract_strided_slice %13 {offsets = [0, 16], sizes = [5, 8], strides = [1, 1]} : vector<5x32xf32> to vector<5x8xf32>
    %68 = vector.extract_strided_slice %14 {offsets = [0, 16], sizes = [5, 8], strides = [1, 1]} : vector<5x32xf32> to vector<5x8xf32>
    %69 = arith.truncf %67 : vector<5x8xf32> to vector<5x8xbf16>
    %70 = arith.truncf %68 : vector<5x8xf32> to vector<5x8xbf16>
    %cst_25 = arith.constant dense<0.000000e+00> : vector<5x5xf32>
    %71 = tpu.matmul %69, %70, %cst_25 {dimension_numbers = #tpu.dot_dimension_numbers<[1], [1], [0], [0], [0, 0, 1, 0], [], []>} : vector<5x8xbf16>, vector<5x8xbf16>, vector<5x5xf32> -> vector<5x5xf32>
    %cst_26 = arith.constant 0.353553385 : f32
    %72 = vector.broadcast %cst_26 : f32 to vector<5x5xf32>
    %73 = arith.mulf %71, %72 : vector<5x5xf32>
    %cst_27 = arith.constant dense<0xFF800000> : vector<5xf32>
    %74 = vector.multi_reduction <maximumf>, %73, %cst_27 [1] : vector<5x5xf32> to vector<5xf32>
    %75 = vector.shape_cast %74 : vector<5xf32> to vector<5x1xf32>
    %76 = vector.broadcast %75 : vector<5x1xf32> to vector<5x5xf32>
    %77 = arith.subf %73, %76 : vector<5x5xf32>
    %78 = math.exp %77 : vector<5x5xf32>
    %cst_28 = arith.constant dense<0.000000e+00> : vector<5xf32>
    %79 = vector.multi_reduction <add>, %78, %cst_28 [1] : vector<5x5xf32> to vector<5xf32>
    %80 = vector.shape_cast %79 : vector<5xf32> to vector<5x1xf32>
    %81 = tpu.reciprocal %80 {approx = true} : vector<5x1xf32> -> vector<5x1xf32>
    %82 = vector.broadcast %81 : vector<5x1xf32> to vector<5x5xf32>
    %83 = arith.mulf %78, %82 : vector<5x5xf32>
    %84 = vector.extract_strided_slice %15 {offsets = [0, 16], sizes = [5, 8], strides = [1, 1]} : vector<5x32xf32> to vector<5x8xf32>
    %85 = arith.truncf %83 : vector<5x5xf32> to vector<5x5xbf16>
    %86 = arith.truncf %84 : vector<5x8xf32> to vector<5x8xbf16>
    %cst_29 = arith.constant dense<0.000000e+00> : vector<5x8xf32>
    %87 = tpu.matmul %85, %86, %cst_29 {dimension_numbers = #tpu.dot_dimension_numbers<[1], [0], [0], [1], [0, 0, 1, 1], [], []>} : vector<5x5xbf16>, vector<5x8xbf16>, vector<5x8xf32> -> vector<5x8xf32>
    %88 = vector.extract_strided_slice %6 {offsets = [16, 0], sizes = [8, 32], strides = [1, 1]} : vector<32x32xf32> to vector<8x32xf32>
    %89 = arith.truncf %87 : vector<5x8xf32> to vector<5x8xbf16>
    %90 = arith.truncf %88 : vector<8x32xf32> to vector<8x32xbf16>
    %cst_30 = arith.constant dense<0.000000e+00> : vector<5x32xf32>
    %91 = tpu.matmul %89, %90, %cst_30 {dimension_numbers = #tpu.dot_dimension_numbers<[1], [0], [0], [1], [0, 0, 1, 1], [], []>} : vector<5x8xbf16>, vector<8x32xbf16>, vector<5x32xf32> -> vector<5x32xf32>
    %92 = arith.addf %66, %91 : vector<5x32xf32>
    %93 = vector.extract_strided_slice %13 {offsets = [0, 24], sizes = [5, 8], strides = [1, 1]} : vector<5x32xf32> to vector<5x8xf32>
    %94 = vector.extract_strided_slice %14 {offsets = [0, 24], sizes = [5, 8], strides = [1, 1]} : vector<5x32xf32> to vector<5x8xf32>
    %95 = arith.truncf %93 : vector<5x8xf32> to vector<5x8xbf16>
    %96 = arith.truncf %94 : vector<5x8xf32> to vector<5x8xbf16>
    %cst_31 = arith.constant dense<0.000000e+00> : vector<5x5xf32>
    %97 = tpu.matmul %95, %96, %cst_31 {dimension_numbers = #tpu.dot_dimension_numbers<[1], [1], [0], [0], [0, 0, 1, 0], [], []>} : vector<5x8xbf16>, vector<5x8xbf16>, vector<5x5xf32> -> vector<5x5xf32>
    %cst_32 = arith.constant 0.353553385 : f32
    %98 = vector.broadcast %cst_32 : f32 to vector<5x5xf32>
    %99 = arith.mulf %97, %98 : vector<5x5xf32>
    %cst_33 = arith.constant dense<0xFF800000> : vector<5xf32>
    %100 = vector.multi_reduction <maximumf>, %99, %cst_33 [1] : vector<5x5xf32> to vector<5xf32>
    %101 = vector.shape_cast %100 : vector<5xf32> to vector<5x1xf32>
    %102 = vector.broadcast %101 : vector<5x1xf32> to vector<5x5xf32>
    %103 = arith.subf %99, %102 : vector<5x5xf32>
    %104 = math.exp %103 : vector<5x5xf32>
    %cst_34 = arith.constant dense<0.000000e+00> : vector<5xf32>
    %105 = vector.multi_reduction <add>, %104, %cst_34 [1] : vector<5x5xf32> to vector<5xf32>
    %106 = vector.shape_cast %105 : vector<5xf32> to vector<5x1xf32>
    %107 = tpu.reciprocal %106 {approx = true} : vector<5x1xf32> -> vector<5x1xf32>
    %108 = vector.broadcast %107 : vector<5x1xf32> to vector<5x5xf32>
    %109 = arith.mulf %104, %108 : vector<5x5xf32>
    %110 = vector.extract_strided_slice %15 {offsets = [0, 24], sizes = [5, 8], strides = [1, 1]} : vector<5x32xf32> to vector<5x8xf32>
    %111 = arith.truncf %109 : vector<5x5xf32> to vector<5x5xbf16>
    %112 = arith.truncf %110 : vector<5x8xf32> to vector<5x8xbf16>
    %cst_35 = arith.constant dense<0.000000e+00> : vector<5x8xf32>
    %113 = tpu.matmul %111, %112, %cst_35 {dimension_numbers = #tpu.dot_dimension_numbers<[1], [0], [0], [1], [0, 0, 1, 1], [], []>} : vector<5x5xbf16>, vector<5x8xbf16>, vector<5x8xf32> -> vector<5x8xf32>
    %114 = vector.extract_strided_slice %6 {offsets = [24, 0], sizes = [8, 32], strides = [1, 1]} : vector<32x32xf32> to vector<8x32xf32>
    %115 = arith.truncf %113 : vector<5x8xf32> to vector<5x8xbf16>
    %116 = arith.truncf %114 : vector<8x32xf32> to vector<8x32xbf16>
    %cst_36 = arith.constant dense<0.000000e+00> : vector<5x32xf32>
    %117 = tpu.matmul %115, %116, %cst_36 {dimension_numbers = #tpu.dot_dimension_numbers<[1], [0], [0], [1], [0, 0, 1, 1], [], []>} : vector<5x8xbf16>, vector<8x32xbf16>, vector<5x32xf32> -> vector<5x32xf32>
    %118 = arith.addf %92, %117 : vector<5x32xf32>
    %119 = vector.broadcast %7 : vector<1x32xf32> to vector<5x32xf32>
    %120 = arith.addf %118, %119 : vector<5x32xf32>
    %121 = arith.addf %1, %120 : vector<5x32xf32>
    %c0_37 = arith.constant 0 : index
    %c0_38 = arith.constant 0 : index
    %122 = vector.load %arg7[%c0_37, %c0_38] : memref<1x32xf32, #tpu.memory_space<vmem>>, vector<1x32xf32>
    %c0_39 = arith.constant 0 : index
    %c0_40 = arith.constant 0 : index
    %123 = vector.load %arg8[%c0_39, %c0_40] : memref<1x32xf32, #tpu.memory_space<vmem>>, vector<1x32xf32>
    %cst_41 = arith.constant dense<0.000000e+00> : vector<5xf32>
    %124 = vector.multi_reduction <add>, %121, %cst_41 [1] : vector<5x32xf32> to vector<5xf32>
    %125 = vector.shape_cast %124 : vector<5xf32> to vector<5x1xf32>
    %cst_42 = arith.constant 3.200000e+01 : f32
    %126 = vector.broadcast %cst_42 : f32 to vector<5x1xf32>
    %127 = arith.divf %125, %126 : vector<5x1xf32>
    %128 = vector.broadcast %127 : vector<5x1xf32> to vector<5x32xf32>
    %129 = arith.subf %121, %128 : vector<5x32xf32>
    %130 = arith.mulf %129, %129 : vector<5x32xf32>
    %cst_43 = arith.constant dense<0.000000e+00> : vector<5xf32>
    %131 = vector.multi_reduction <add>, %130, %cst_43 [1] : vector<5x32xf32> to vector<5xf32>
    %132 = vector.shape_cast %131 : vector<5xf32> to vector<5x1xf32>
    %cst_44 = arith.constant 3.200000e+01 : f32
    %133 = vector.broadcast %cst_44 : f32 to vector<5x1xf32>
    %134 = arith.divf %132, %133 : vector<5x1xf32>
    %cst_45 = arith.constant 9.99999974E-6 : f32
    %135 = vector.broadcast %cst_45 : f32 to vector<5x1xf32>
    %136 = arith.addf %134, %135 : vector<5x1xf32>
    %137 = math.rsqrt %136 : vector<5x1xf32>
    %138 = vector.broadcast %137 : vector<5x1xf32> to vector<5x32xf32>
    %139 = arith.mulf %129, %138 : vector<5x32xf32>
    %140 = vector.broadcast %122 : vector<1x32xf32> to vector<5x32xf32>
    %141 = arith.mulf %139, %140 : vector<5x32xf32>
    %142 = vector.broadcast %123 : vector<1x32xf32> to vector<5x32xf32>
    %143 = arith.addf %141, %142 : vector<5x32xf32>
    %c0_46 = arith.constant 0 : index
    %c0_47 = arith.constant 0 : index
    %144 = vector.load %arg9[%c0_46, %c0_47] : memref<32x32xf32, #tpu.memory_space<vmem>>, vector<32x32xf32>
    %145 = arith.truncf %143 : vector<5x32xf32> to vector<5x32xbf16>
    %146 = arith.truncf %144 : vector<32x32xf32> to vector<32x32xbf16>
    %cst_48 = arith.constant dense<0.000000e+00> : vector<5x32xf32>
    %147 = tpu.matmul %145, %146, %cst_48 {dimension_numbers = #tpu.dot_dimension_numbers<[1], [0], [0], [1], [0, 0, 1, 1], [], []>} : vector<5x32xbf16>, vector<32x32xbf16>, vector<5x32xf32> -> vector<5x32xf32>
    %c0_49 = arith.constant 0 : index
    %c0_50 = arith.constant 0 : index
    %148 = vector.load %arg10[%c0_49, %c0_50] : memref<1x32xf32, #tpu.memory_space<vmem>>, vector<1x32xf32>
    %149 = vector.broadcast %148 : vector<1x32xf32> to vector<5x32xf32>
    %150 = arith.addf %147, %149 : vector<5x32xf32>
    %c0_51 = arith.constant 0 : index
    %c0_52 = arith.constant 0 : index
    %151 = vector.load %arg11[%c0_51, %c0_52] : memref<32x64xf32, #tpu.memory_space<vmem>>, vector<32x64xf32>
    %152 = arith.truncf %3 : vector<7x32xf32> to vector<7x32xbf16>
    %153 = arith.truncf %151 : vector<32x64xf32> to vector<32x64xbf16>
    %cst_53 = arith.constant dense<0.000000e+00> : vector<7x64xf32>
    %154 = tpu.matmul %152, %153, %cst_53 {dimension_numbers = #tpu.dot_dimension_numbers<[1], [0], [0], [1], [0, 0, 1, 1], [], []>} : vector<7x32xbf16>, vector<32x64xbf16>, vector<7x64xf32> -> vector<7x64xf32>
    %c0_54 = arith.constant 0 : index
    %c0_55 = arith.constant 0 : index
    %155 = vector.load %arg12[%c0_54, %c0_55] : memref<1x64xf32, #tpu.memory_space<vmem>>, vector<1x64xf32>
    %156 = vector.broadcast %155 : vector<1x64xf32> to vector<7x64xf32>
    %157 = arith.addf %154, %156 : vector<7x64xf32>
    %158 = vector.extract_strided_slice %157 {offsets = [0, 0], sizes = [7, 32], strides = [1, 1]} : vector<7x64xf32> to vector<7x32xf32>
    %159 = vector.extract_strided_slice %157 {offsets = [0, 32], sizes = [7, 32], strides = [1, 1]} : vector<7x64xf32> to vector<7x32xf32>
    %c0_56 = arith.constant 0 : index
    %c0_57 = arith.constant 0 : index
    %160 = vector.load %arg13[%c0_56, %c0_57] : memref<32x32xf32, #tpu.memory_space<vmem>>, vector<32x32xf32>
    %c0_58 = arith.constant 0 : index
    %c0_59 = arith.constant 0 : index
    %161 = vector.load %arg14[%c0_58, %c0_59] : memref<1x32xf32, #tpu.memory_space<vmem>>, vector<1x32xf32>
    %162 = vector.extract_strided_slice %150 {offsets = [0, 0], sizes = [5, 8], strides = [1, 1]} : vector<5x32xf32> to vector<5x8xf32>
    %163 = vector.extract_strided_slice %158 {offsets = [0, 0], sizes = [7, 8], strides = [1, 1]} : vector<7x32xf32> to vector<7x8xf32>
    %164 = arith.truncf %162 : vector<5x8xf32> to vector<5x8xbf16>
    %165 = arith.truncf %163 : vector<7x8xf32> to vector<7x8xbf16>
    %cst_60 = arith.constant dense<0.000000e+00> : vector<5x7xf32>
    %166 = tpu.matmul %164, %165, %cst_60 {dimension_numbers = #tpu.dot_dimension_numbers<[1], [1], [0], [0], [0, 0, 1, 0], [], []>} : vector<5x8xbf16>, vector<7x8xbf16>, vector<5x7xf32> -> vector<5x7xf32>
    %cst_61 = arith.constant 0.353553385 : f32
    %167 = vector.broadcast %cst_61 : f32 to vector<5x7xf32>
    %168 = arith.mulf %166, %167 : vector<5x7xf32>
    %cst_62 = arith.constant dense<0xFF800000> : vector<5xf32>
    %169 = vector.multi_reduction <maximumf>, %168, %cst_62 [1] : vector<5x7xf32> to vector<5xf32>
    %170 = vector.shape_cast %169 : vector<5xf32> to vector<5x1xf32>
    %171 = vector.broadcast %170 : vector<5x1xf32> to vector<5x7xf32>
    %172 = arith.subf %168, %171 : vector<5x7xf32>
    %173 = math.exp %172 : vector<5x7xf32>
    %cst_63 = arith.constant dense<0.000000e+00> : vector<5xf32>
    %174 = vector.multi_reduction <add>, %173, %cst_63 [1] : vector<5x7xf32> to vector<5xf32>
    %175 = vector.shape_cast %174 : vector<5xf32> to vector<5x1xf32>
    %176 = tpu.reciprocal %175 {approx = true} : vector<5x1xf32> -> vector<5x1xf32>
    %177 = vector.broadcast %176 : vector<5x1xf32> to vector<5x7xf32>
    %178 = arith.mulf %173, %177 : vector<5x7xf32>
    %179 = vector.extract_strided_slice %159 {offsets = [0, 0], sizes = [7, 8], strides = [1, 1]} : vector<7x32xf32> to vector<7x8xf32>
    %180 = arith.truncf %178 : vector<5x7xf32> to vector<5x7xbf16>
    %181 = arith.truncf %179 : vector<7x8xf32> to vector<7x8xbf16>
    %cst_64 = arith.constant dense<0.000000e+00> : vector<5x8xf32>
    %182 = tpu.matmul %180, %181, %cst_64 {dimension_numbers = #tpu.dot_dimension_numbers<[1], [0], [0], [1], [0, 0, 1, 1], [], []>} : vector<5x7xbf16>, vector<7x8xbf16>, vector<5x8xf32> -> vector<5x8xf32>
    %183 = vector.extract_strided_slice %160 {offsets = [0, 0], sizes = [8, 32], strides = [1, 1]} : vector<32x32xf32> to vector<8x32xf32>
    %184 = arith.truncf %182 : vector<5x8xf32> to vector<5x8xbf16>
    %185 = arith.truncf %183 : vector<8x32xf32> to vector<8x32xbf16>
    %cst_65 = arith.constant dense<0.000000e+00> : vector<5x32xf32>
    %186 = tpu.matmul %184, %185, %cst_65 {dimension_numbers = #tpu.dot_dimension_numbers<[1], [0], [0], [1], [0, 0, 1, 1], [], []>} : vector<5x8xbf16>, vector<8x32xbf16>, vector<5x32xf32> -> vector<5x32xf32>
    %187 = vector.extract_strided_slice %150 {offsets = [0, 8], sizes = [5, 8], strides = [1, 1]} : vector<5x32xf32> to vector<5x8xf32>
    %188 = vector.extract_strided_slice %158 {offsets = [0, 8], sizes = [7, 8], strides = [1, 1]} : vector<7x32xf32> to vector<7x8xf32>
    %189 = arith.truncf %187 : vector<5x8xf32> to vector<5x8xbf16>
    %190 = arith.truncf %188 : vector<7x8xf32> to vector<7x8xbf16>
    %cst_66 = arith.constant dense<0.000000e+00> : vector<5x7xf32>
    %191 = tpu.matmul %189, %190, %cst_66 {dimension_numbers = #tpu.dot_dimension_numbers<[1], [1], [0], [0], [0, 0, 1, 0], [], []>} : vector<5x8xbf16>, vector<7x8xbf16>, vector<5x7xf32> -> vector<5x7xf32>
    %cst_67 = arith.constant 0.353553385 : f32
    %192 = vector.broadcast %cst_67 : f32 to vector<5x7xf32>
    %193 = arith.mulf %191, %192 : vector<5x7xf32>
    %cst_68 = arith.constant dense<0xFF800000> : vector<5xf32>
    %194 = vector.multi_reduction <maximumf>, %193, %cst_68 [1] : vector<5x7xf32> to vector<5xf32>
    %195 = vector.shape_cast %194 : vector<5xf32> to vector<5x1xf32>
    %196 = vector.broadcast %195 : vector<5x1xf32> to vector<5x7xf32>
    %197 = arith.subf %193, %196 : vector<5x7xf32>
    %198 = math.exp %197 : vector<5x7xf32>
    %cst_69 = arith.constant dense<0.000000e+00> : vector<5xf32>
    %199 = vector.multi_reduction <add>, %198, %cst_69 [1] : vector<5x7xf32> to vector<5xf32>
    %200 = vector.shape_cast %199 : vector<5xf32> to vector<5x1xf32>
    %201 = tpu.reciprocal %200 {approx = true} : vector<5x1xf32> -> vector<5x1xf32>
    %202 = vector.broadcast %201 : vector<5x1xf32> to vector<5x7xf32>
    %203 = arith.mulf %198, %202 : vector<5x7xf32>
    %204 = vector.extract_strided_slice %159 {offsets = [0, 8], sizes = [7, 8], strides = [1, 1]} : vector<7x32xf32> to vector<7x8xf32>
    %205 = arith.truncf %203 : vector<5x7xf32> to vector<5x7xbf16>
    %206 = arith.truncf %204 : vector<7x8xf32> to vector<7x8xbf16>
    %cst_70 = arith.constant dense<0.000000e+00> : vector<5x8xf32>
    %207 = tpu.matmul %205, %206, %cst_70 {dimension_numbers = #tpu.dot_dimension_numbers<[1], [0], [0], [1], [0, 0, 1, 1], [], []>} : vector<5x7xbf16>, vector<7x8xbf16>, vector<5x8xf32> -> vector<5x8xf32>
    %208 = vector.extract_strided_slice %160 {offsets = [8, 0], sizes = [8, 32], strides = [1, 1]} : vector<32x32xf32> to vector<8x32xf32>
    %209 = arith.truncf %207 : vector<5x8xf32> to vector<5x8xbf16>
    %210 = arith.truncf %208 : vector<8x32xf32> to vector<8x32xbf16>
    %cst_71 = arith.constant dense<0.000000e+00> : vector<5x32xf32>
    %211 = tpu.matmul %209, %210, %cst_71 {dimension_numbers = #tpu.dot_dimension_numbers<[1], [0], [0], [1], [0, 0, 1, 1], [], []>} : vector<5x8xbf16>, vector<8x32xbf16>, vector<5x32xf32> -> vector<5x32xf32>
    %212 = arith.addf %186, %211 : vector<5x32xf32>
    %213 = vector.extract_strided_slice %150 {offsets = [0, 16], sizes = [5, 8], strides = [1, 1]} : vector<5x32xf32> to vector<5x8xf32>
    %214 = vector.extract_strided_slice %158 {offsets = [0, 16], sizes = [7, 8], strides = [1, 1]} : vector<7x32xf32> to vector<7x8xf32>
    %215 = arith.truncf %213 : vector<5x8xf32> to vector<5x8xbf16>
    %216 = arith.truncf %214 : vector<7x8xf32> to vector<7x8xbf16>
    %cst_72 = arith.constant dense<0.000000e+00> : vector<5x7xf32>
    %217 = tpu.matmul %215, %216, %cst_72 {dimension_numbers = #tpu.dot_dimension_numbers<[1], [1], [0], [0], [0, 0, 1, 0], [], []>} : vector<5x8xbf16>, vector<7x8xbf16>, vector<5x7xf32> -> vector<5x7xf32>
    %cst_73 = arith.constant 0.353553385 : f32
    %218 = vector.broadcast %cst_73 : f32 to vector<5x7xf32>
    %219 = arith.mulf %217, %218 : vector<5x7xf32>
    %cst_74 = arith.constant dense<0xFF800000> : vector<5xf32>
    %220 = vector.multi_reduction <maximumf>, %219, %cst_74 [1] : vector<5x7xf32> to vector<5xf32>
    %221 = vector.shape_cast %220 : vector<5xf32> to vector<5x1xf32>
    %222 = vector.broadcast %221 : vector<5x1xf32> to vector<5x7xf32>
    %223 = arith.subf %219, %222 : vector<5x7xf32>
    %224 = math.exp %223 : vector<5x7xf32>
    %cst_75 = arith.constant dense<0.000000e+00> : vector<5xf32>
    %225 = vector.multi_reduction <add>, %224, %cst_75 [1] : vector<5x7xf32> to vector<5xf32>
    %226 = vector.shape_cast %225 : vector<5xf32> to vector<5x1xf32>
    %227 = tpu.reciprocal %226 {approx = true} : vector<5x1xf32> -> vector<5x1xf32>
    %228 = vector.broadcast %227 : vector<5x1xf32> to vector<5x7xf32>
    %229 = arith.mulf %224, %228 : vector<5x7xf32>
    %230 = vector.extract_strided_slice %159 {offsets = [0, 16], sizes = [7, 8], strides = [1, 1]} : vector<7x32xf32> to vector<7x8xf32>
    %231 = arith.truncf %229 : vector<5x7xf32> to vector<5x7xbf16>
    %232 = arith.truncf %230 : vector<7x8xf32> to vector<7x8xbf16>
    %cst_76 = arith.constant dense<0.000000e+00> : vector<5x8xf32>
    %233 = tpu.matmul %231, %232, %cst_76 {dimension_numbers = #tpu.dot_dimension_numbers<[1], [0], [0], [1], [0, 0, 1, 1], [], []>} : vector<5x7xbf16>, vector<7x8xbf16>, vector<5x8xf32> -> vector<5x8xf32>
    %234 = vector.extract_strided_slice %160 {offsets = [16, 0], sizes = [8, 32], strides = [1, 1]} : vector<32x32xf32> to vector<8x32xf32>
    %235 = arith.truncf %233 : vector<5x8xf32> to vector<5x8xbf16>
    %236 = arith.truncf %234 : vector<8x32xf32> to vector<8x32xbf16>
    %cst_77 = arith.constant dense<0.000000e+00> : vector<5x32xf32>
    %237 = tpu.matmul %235, %236, %cst_77 {dimension_numbers = #tpu.dot_dimension_numbers<[1], [0], [0], [1], [0, 0, 1, 1], [], []>} : vector<5x8xbf16>, vector<8x32xbf16>, vector<5x32xf32> -> vector<5x32xf32>
    %238 = arith.addf %212, %237 : vector<5x32xf32>
    %239 = vector.extract_strided_slice %150 {offsets = [0, 24], sizes = [5, 8], strides = [1, 1]} : vector<5x32xf32> to vector<5x8xf32>
    %240 = vector.extract_strided_slice %158 {offsets = [0, 24], sizes = [7, 8], strides = [1, 1]} : vector<7x32xf32> to vector<7x8xf32>
    %241 = arith.truncf %239 : vector<5x8xf32> to vector<5x8xbf16>
    %242 = arith.truncf %240 : vector<7x8xf32> to vector<7x8xbf16>
    %cst_78 = arith.constant dense<0.000000e+00> : vector<5x7xf32>
    %243 = tpu.matmul %241, %242, %cst_78 {dimension_numbers = #tpu.dot_dimension_numbers<[1], [1], [0], [0], [0, 0, 1, 0], [], []>} : vector<5x8xbf16>, vector<7x8xbf16>, vector<5x7xf32> -> vector<5x7xf32>
    %cst_79 = arith.constant 0.353553385 : f32
    %244 = vector.broadcast %cst_79 : f32 to vector<5x7xf32>
    %245 = arith.mulf %243, %244 : vector<5x7xf32>
    %cst_80 = arith.constant dense<0xFF800000> : vector<5xf32>
    %246 = vector.multi_reduction <maximumf>, %245, %cst_80 [1] : vector<5x7xf32> to vector<5xf32>
    %247 = vector.shape_cast %246 : vector<5xf32> to vector<5x1xf32>
    %248 = vector.broadcast %247 : vector<5x1xf32> to vector<5x7xf32>
    %249 = arith.subf %245, %248 : vector<5x7xf32>
    %250 = math.exp %249 : vector<5x7xf32>
    %cst_81 = arith.constant dense<0.000000e+00> : vector<5xf32>
    %251 = vector.multi_reduction <add>, %250, %cst_81 [1] : vector<5x7xf32> to vector<5xf32>
    %252 = vector.shape_cast %251 : vector<5xf32> to vector<5x1xf32>
    %253 = tpu.reciprocal %252 {approx = true} : vector<5x1xf32> -> vector<5x1xf32>
    %254 = vector.broadcast %253 : vector<5x1xf32> to vector<5x7xf32>
    %255 = arith.mulf %250, %254 : vector<5x7xf32>
    %256 = vector.extract_strided_slice %159 {offsets = [0, 24], sizes = [7, 8], strides = [1, 1]} : vector<7x32xf32> to vector<7x8xf32>
    %257 = arith.truncf %255 : vector<5x7xf32> to vector<5x7xbf16>
    %258 = arith.truncf %256 : vector<7x8xf32> to vector<7x8xbf16>
    %cst_82 = arith.constant dense<0.000000e+00> : vector<5x8xf32>
    %259 = tpu.matmul %257, %258, %cst_82 {dimension_numbers = #tpu.dot_dimension_numbers<[1], [0], [0], [1], [0, 0, 1, 1], [], []>} : vector<5x7xbf16>, vector<7x8xbf16>, vector<5x8xf32> -> vector<5x8xf32>
    %260 = vector.extract_strided_slice %160 {offsets = [24, 0], sizes = [8, 32], strides = [1, 1]} : vector<32x32xf32> to vector<8x32xf32>
    %261 = arith.truncf %259 : vector<5x8xf32> to vector<5x8xbf16>
    %262 = arith.truncf %260 : vector<8x32xf32> to vector<8x32xbf16>
    %cst_83 = arith.constant dense<0.000000e+00> : vector<5x32xf32>
    %263 = tpu.matmul %261, %262, %cst_83 {dimension_numbers = #tpu.dot_dimension_numbers<[1], [0], [0], [1], [0, 0, 1, 1], [], []>} : vector<5x8xbf16>, vector<8x32xbf16>, vector<5x32xf32> -> vector<5x32xf32>
    %264 = arith.addf %238, %263 : vector<5x32xf32>
    %265 = vector.broadcast %161 : vector<1x32xf32> to vector<5x32xf32>
    %266 = arith.addf %264, %265 : vector<5x32xf32>
    %267 = arith.addf %143, %266 : vector<5x32xf32>
    %c0_84 = arith.constant 0 : index
    %c0_85 = arith.constant 0 : index
    %268 = vector.load %arg15[%c0_84, %c0_85] : memref<1x32xf32, #tpu.memory_space<vmem>>, vector<1x32xf32>
    %c0_86 = arith.constant 0 : index
    %c0_87 = arith.constant 0 : index
    %269 = vector.load %arg16[%c0_86, %c0_87] : memref<1x32xf32, #tpu.memory_space<vmem>>, vector<1x32xf32>
    %cst_88 = arith.constant dense<0.000000e+00> : vector<5xf32>
    %270 = vector.multi_reduction <add>, %267, %cst_88 [1] : vector<5x32xf32> to vector<5xf32>
    %271 = vector.shape_cast %270 : vector<5xf32> to vector<5x1xf32>
    %cst_89 = arith.constant 3.200000e+01 : f32
    %272 = vector.broadcast %cst_89 : f32 to vector<5x1xf32>
    %273 = arith.divf %271, %272 : vector<5x1xf32>
    %274 = vector.broadcast %273 : vector<5x1xf32> to vector<5x32xf32>
    %275 = arith.subf %267, %274 : vector<5x32xf32>
    %276 = arith.mulf %275, %275 : vector<5x32xf32>
    %cst_90 = arith.constant dense<0.000000e+00> : vector<5xf32>
    %277 = vector.multi_reduction <add>, %276, %cst_90 [1] : vector<5x32xf32> to vector<5xf32>
    %278 = vector.shape_cast %277 : vector<5xf32> to vector<5x1xf32>
    %cst_91 = arith.constant 3.200000e+01 : f32
    %279 = vector.broadcast %cst_91 : f32 to vector<5x1xf32>
    %280 = arith.divf %278, %279 : vector<5x1xf32>
    %cst_92 = arith.constant 9.99999974E-6 : f32
    %281 = vector.broadcast %cst_92 : f32 to vector<5x1xf32>
    %282 = arith.addf %280, %281 : vector<5x1xf32>
    %283 = math.rsqrt %282 : vector<5x1xf32>
    %284 = vector.broadcast %283 : vector<5x1xf32> to vector<5x32xf32>
    %285 = arith.mulf %275, %284 : vector<5x32xf32>
    %286 = vector.broadcast %268 : vector<1x32xf32> to vector<5x32xf32>
    %287 = arith.mulf %285, %286 : vector<5x32xf32>
    %288 = vector.broadcast %269 : vector<1x32xf32> to vector<5x32xf32>
    %289 = arith.addf %287, %288 : vector<5x32xf32>
    %c0_93 = arith.constant 0 : index
    %c0_94 = arith.constant 0 : index
    %290 = vector.load %arg17[%c0_93, %c0_94] : memref<32x64xf32, #tpu.memory_space<vmem>>, vector<32x64xf32>
    %c0_95 = arith.constant 0 : index
    %c0_96 = arith.constant 0 : index
    %291 = vector.load %arg18[%c0_95, %c0_96] : memref<1x64xf32, #tpu.memory_space<vmem>>, vector<1x64xf32>
    %c0_97 = arith.constant 0 : index
    %c0_98 = arith.constant 0 : index
    %292 = vector.load %arg19[%c0_97, %c0_98] : memref<64x32xf32, #tpu.memory_space<vmem>>, vector<64x32xf32>
    %c0_99 = arith.constant 0 : index
    %c0_100 = arith.constant 0 : index
    %293 = vector.load %arg20[%c0_99, %c0_100] : memref<1x32xf32, #tpu.memory_space<vmem>>, vector<1x32xf32>
    %294 = arith.truncf %289 : vector<5x32xf32> to vector<5x32xbf16>
    %295 = arith.truncf %290 : vector<32x64xf32> to vector<32x64xbf16>
    %cst_101 = arith.constant dense<0.000000e+00> : vector<5x64xf32>
    %296 = tpu.matmul %294, %295, %cst_101 {dimension_numbers = #tpu.dot_dimension_numbers<[1], [0], [0], [1], [0, 0, 1, 1], [], []>} : vector<5x32xbf16>, vector<32x64xbf16>, vector<5x64xf32> -> vector<5x64xf32>
    %297 = vector.broadcast %291 : vector<1x64xf32> to vector<5x64xf32>
    %298 = arith.addf %296, %297 : vector<5x64xf32>
    %cst_102 = arith.constant 0.000000e+00 : f32
    %299 = vector.broadcast %cst_102 : f32 to vector<5x64xf32>
    %300 = arith.maximumf %298, %299 : vector<5x64xf32>
    %301 = arith.truncf %300 : vector<5x64xf32> to vector<5x64xbf16>
    %302 = arith.truncf %292 : vector<64x32xf32> to vector<64x32xbf16>
    %cst_103 = arith.constant dense<0.000000e+00> : vector<5x32xf32>
    %303 = tpu.matmul %301, %302, %cst_103 {dimension_numbers = #tpu.dot_dimension_numbers<[1], [0], [0], [1], [0, 0, 1, 1], [], []>} : vector<5x64xbf16>, vector<64x32xbf16>, vector<5x32xf32> -> vector<5x32xf32>
    %304 = vector.broadcast %293 : vector<1x32xf32> to vector<5x32xf32>
    %305 = arith.addf %303, %304 : vector<5x32xf32>
    %306 = arith.addf %289, %305 : vector<5x32xf32>
    %c0_104 = arith.constant 0 : index
    %c0_105 = arith.constant 0 : index
    %307 = vector.load %arg21[%c0_104, %c0_105] : memref<1x32xf32, #tpu.memory_space<vmem>>, vector<1x32xf32>
    %c0_106 = arith.constant 0 : index
    %c0_107 = arith.constant 0 : index
    %308 = vector.load %arg22[%c0_106, %c0_107] : memref<1x32xf32, #tpu.memory_space<vmem>>, vector<1x32xf32>
    %cst_108 = arith.constant dense<0.000000e+00> : vector<5xf32>
    %309 = vector.multi_reduction <add>, %306, %cst_108 [1] : vector<5x32xf32> to vector<5xf32>
    %310 = vector.shape_cast %309 : vector<5xf32> to vector<5x1xf32>
    %cst_109 = arith.constant 3.200000e+01 : f32
    %311 = vector.broadcast %cst_109 : f32 to vector<5x1xf32>
    %312 = arith.divf %310, %311 : vector<5x1xf32>
    %313 = vector.broadcast %312 : vector<5x1xf32> to vector<5x32xf32>
    %314 = arith.subf %306, %313 : vector<5x32xf32>
    %315 = arith.mulf %314, %314 : vector<5x32xf32>
    %cst_110 = arith.constant dense<0.000000e+00> : vector<5xf32>
    %316 = vector.multi_reduction <add>, %315, %cst_110 [1] : vector<5x32xf32> to vector<5xf32>
    %317 = vector.shape_cast %316 : vector<5xf32> to vector<5x1xf32>
    %cst_111 = arith.constant 3.200000e+01 : f32
    %318 = vector.broadcast %cst_111 : f32 to vector<5x1xf32>
    %319 = arith.divf %317, %318 : vector<5x1xf32>
    %cst_112 = arith.constant 9.99999974E-6 : f32
    %320 = vector.broadcast %cst_112 : f32 to vector<5x1xf32>
    %321 = arith.addf %319, %320 : vector<5x1xf32>
    %322 = math.rsqrt %321 : vector<5x1xf32>
    %323 = vector.broadcast %322 : vector<5x1xf32> to vector<5x32xf32>
    %324 = arith.mulf %314, %323 : vector<5x32xf32>
    %325 = vector.broadcast %307 : vector<1x32xf32> to vector<5x32xf32>
    %326 = arith.mulf %324, %325 : vector<5x32xf32>
    %327 = vector.broadcast %308 : vector<1x32xf32> to vector<5x32xf32>
    %328 = arith.addf %326, %327 : vector<5x32xf32>
    %c0_113 = arith.constant 0 : index
    %c0_114 = arith.constant 0 : index
    %c0_115 = arith.constant 0 : index
    %329 = vector.load %arg23[%c0_113, %c0_114, %c0_115] : memref<1x5x32xf32, #tpu.memory_space<vmem>>, vector<1x5x32xf32>
    %330 = vector.shape_cast %329 : vector<1x5x32xf32> to vector<5x32xf32>
    %331 = vector.shape_cast %328 : vector<5x32xf32> to vector<1x5x32xf32>
    tpu.vector_store %arg23[%c0_113, %c0_114, %c0_115], %331 {strides = array<i32>} : memref<1x5x32xf32, #tpu.memory_space<vmem>>, vector<1x5x32xf32>,
    return
  }
  func.func @transform_0(%arg0: i32) -> (i32, i32, i32) {
    %c0_i32 = arith.constant 0 : i32
    %c0_i32_0 = arith.constant 0 : i32
    %c0_i32_1 = arith.constant 0 : i32
    return %arg0, %c0_i32, %c0_i32_0 : i32, i32, i32
  }
  func.func @transform_1(%arg0: i32) -> (i32, i32, i32) {
    %c0_i32 = arith.constant 0 : i32
    %c0_i32_0 = arith.constant 0 : i32
    %c0_i32_1 = arith.constant 0 : i32
    return %arg0, %c0_i32, %c0_i32_0 : i32, i32, i32
  }
  func.func @transform_2(%arg0: i32) -> (i32, i32) {
    %c0_i32 = arith.constant 0 : i32
    %c0_i32_0 = arith.constant 0 : i32
    %c0_i32_1 = arith.constant 0 : i32
    return %c0_i32, %c0_i32_0 : i32, i32
  }
  func.func @transform_3(%arg0: i32) -> (i32, i32) {
    %c0_i32 = arith.constant 0 : i32
    %c0_i32_0 = arith.constant 0 : i32
    %c0_i32_1 = arith.constant 0 : i32
    return %c0_i32, %c0_i32_0 : i32, i32
  }
  func.func @transform_4(%arg0: i32) -> (i32, i32) {
    %c0_i32 = arith.constant 0 : i32
    %c0_i32_0 = arith.constant 0 : i32
    %c0_i32_1 = arith.constant 0 : i32
    return %c0_i32, %c0_i32_0 : i32, i32
  }
  func.func @transform_5(%arg0: i32) -> (i32, i32) {
    %c0_i32 = arith.constant 0 : i32
    %c0_i32_0 = arith.constant 0 : i32
    %c0_i32_1 = arith.constant 0 : i32
    return %c0_i32, %c0_i32_0 : i32, i32
  }
  func.func @transform_6(%arg0: i32) -> (i32, i32) {
    %c0_i32 = arith.constant 0 : i32
    %c0_i32_0 = arith.constant 0 : i32
    %c0_i32_1 = arith.constant 0 : i32
    return %c0_i32, %c0_i32_0 : i32, i32
  }
  func.func @transform_7(%arg0: i32) -> (i32, i32) {
    %c0_i32 = arith.constant 0 : i32
    %c0_i32_0 = arith.constant 0 : i32
    %c0_i32_1 = arith.constant 0 : i32
    return %c0_i32, %c0_i32_0 : i32, i32
  }
  func.func @transform_8(%arg0: i32) -> (i32, i32) {
    %c0_i32 = arith.constant 0 : i32
    %c0_i32_0 = arith.constant 0 : i32
    %c0_i32_1 = arith.constant 0 : i32
    return %c0_i32, %c0_i32_0 : i32, i32
  }
  func.func @transform_9(%arg0: i32) -> (i32, i32) {
    %c0_i32 = arith.constant 0 : i32
    %c0_i32_0 = arith.constant 0 : i32
    %c0_i32_1 = arith.constant 0 : i32
    return %c0_i32, %c0_i32_0 : i32, i32
  }
  func.func @transform_10(%arg0: i32) -> (i32, i32) {
    %c0_i32 = arith.constant 0 : i32
    %c0_i32_0 = arith.constant 0 : i32
    %c0_i32_1 = arith.constant 0 : i32
    return %c0_i32, %c0_i32_0 : i32, i32
  }
  func.func @transform_11(%arg0: i32) -> (i32, i32) {
    %c0_i32 = arith.constant 0 : i32
    %c0_i32_0 = arith.constant 0 : i32
    %c0_i32_1 = arith.constant 0 : i32
    return %c0_i32, %c0_i32_0 : i32, i32
  }
  func.func @transform_12(%arg0: i32) -> (i32, i32) {
    %c0_i32 = arith.constant 0 : i32
    %c0_i32_0 = arith.constant 0 : i32
    %c0_i32_1 = arith.constant 0 : i32
    return %c0_i32, %c0_i32_0 : i32, i32
  }
  func.func @transform_13(%arg0: i32) -> (i32, i32) {
    %c0_i32 = arith.constant 0 : i32
    %c0_i32_0 = arith.constant 0 : i32
    %c0_i32_1 = arith.constant 0 : i32
    return %c0_i32, %c0_i32_0 : i32, i32
  }
  func.func @transform_14(%arg0: i32) -> (i32, i32) {
    %c0_i32 = arith.constant 0 : i32
    %c0_i32_0 = arith.constant 0 : i32
    %c0_i32_1 = arith.constant 0 : i32
    return %c0_i32, %c0_i32_0 : i32, i32
  }
  func.func @transform_15(%arg0: i32) -> (i32, i32) {
    %c0_i32 = arith.constant 0 : i32
    %c0_i32_0 = arith.constant 0 : i32
    %c0_i32_1 = arith.constant 0 : i32
    return %c0_i32, %c0_i32_0 : i32, i32
  }
  func.func @transform_16(%arg0: i32) -> (i32, i32) {
    %c0_i32 = arith.constant 0 : i32
    %c0_i32_0 = arith.constant 0 : i32
    %c0_i32_1 = arith.constant 0 : i32
    return %c0_i32, %c0_i32_0 : i32, i32
  }
  func.func @transform_17(%arg0: i32) -> (i32, i32) {
    %c0_i32 = arith.constant 0 : i32
    %c0_i32_0 = arith.constant 0 : i32
    %c0_i32_1 = arith.constant 0 : i32
    return %c0_i32, %c0_i32_0 : i32, i32
  }
  func.func @transform_18(%arg0: i32) -> (i32, i32) {
    %c0_i32 = arith.constant 0 : i32
    %c0_i32_0 = arith.constant 0 : i32
    %c0_i32_1 = arith.constant 0 : i32
    return %c0_i32, %c0_i32_0 : i32, i32
  }
  func.func @transform_19(%arg0: i32) -> (i32, i32) {
    %c0_i32 = arith.constant 0 : i32
    %c0_i32_0 = arith.constant 0 : i32
    %c0_i32_1 = arith.constant 0 : i32
    return %c0_i32, %c0_i32_0 : i32, i32
  }
  func.func @transform_20(%arg0: i32) -> (i32, i32) {
    %c0_i32 = arith.constant 0 : i32
    %c0_i32_0 = arith.constant 0 : i32
    %c0_i32_1 = arith.constant 0 : i32
    return %c0_i32, %c0_i32_0 : i32, i32
  }
  func.func @transform_21(%arg0: i32) -> (i32, i32) {
    %c0_i32 = arith.constant 0 : i32
    %c0_i32_0 = arith.constant 0 : i32
    %c0_i32_1 = arith.constant 0 : i32
    return %c0_i32, %c0_i32_0 : i32, i32
  }
  func.func @transform_22(%arg0: i32) -> (i32, i32, i32) {
    %c0_i32 = arith.constant 0 : i32
    %c0_i32_0 = arith.constant 0 : i32
    %c0_i32_1 = arith.constant 0 : i32
    return %arg0, %c0_i32, %c0_i32_0 : i32, i32, i32
  }
}

module attributes {stable_mosaic.version = 11 : i64} {
  func.func @_layernorm_kernel(%arg0: memref<12x32xf32, #tpu.memory_space<vmem>>, %arg1: memref<1x32xf32, #tpu.memory_space<vmem>>, %arg2: memref<1x32xf32, #tpu.memory_space<vmem>>, %arg3: memref<12x32xf32, #tpu.memory_space<vmem>>) attributes {dimension_semantics = [], scalar_prefetch = 0 : i64, scratch_operands = 0 : i64, tpu.core_type = #tpu.core_type<tc>} {
    %c0 = arith.constant 0 : index
    %c0_0 = arith.constant 0 : index
    %0 = vector.load %arg0[%c0, %c0_0] : memref<12x32xf32, #tpu.memory_space<vmem>>, vector<12x32xf32>
    %c0_1 = arith.constant 0 : index
    %c0_2 = arith.constant 0 : index
    %1 = vector.load %arg1[%c0_1, %c0_2] : memref<1x32xf32, #tpu.memory_space<vmem>>, vector<1x32xf32>
    %c0_3 = arith.constant 0 : index
    %c0_4 = arith.constant 0 : index
    %2 = vector.load %arg2[%c0_3, %c0_4] : memref<1x32xf32, #tpu.memory_space<vmem>>, vector<1x32xf32>
    %cst = arith.constant dense<0.000000e+00> : vector<12xf32>
    %3 = vector.multi_reduction <add>, %0, %cst [1] : vector<12x32xf32> to vector<12xf32>
    %4 = vector.shape_cast %3 : vector<12xf32> to vector<12x1xf32>
    %cst_5 = arith.constant 3.200000e+01 : f32
    %5 = vector.broadcast %cst_5 : f32 to vector<12x1xf32>
    %6 = arith.divf %4, %5 : vector<12x1xf32>
    %7 = vector.broadcast %6 : vector<12x1xf32> to vector<12x32xf32>
    %8 = arith.subf %0, %7 : vector<12x32xf32>
    %9 = arith.mulf %8, %8 : vector<12x32xf32>
    %cst_6 = arith.constant dense<0.000000e+00> : vector<12xf32>
    %10 = vector.multi_reduction <add>, %9, %cst_6 [1] : vector<12x32xf32> to vector<12xf32>
    %11 = vector.shape_cast %10 : vector<12xf32> to vector<12x1xf32>
    %cst_7 = arith.constant 3.200000e+01 : f32
    %12 = vector.broadcast %cst_7 : f32 to vector<12x1xf32>
    %13 = arith.divf %11, %12 : vector<12x1xf32>
    %cst_8 = arith.constant 9.99999974E-6 : f32
    %14 = vector.broadcast %cst_8 : f32 to vector<12x1xf32>
    %15 = arith.addf %13, %14 : vector<12x1xf32>
    %16 = math.rsqrt %15 : vector<12x1xf32>
    %17 = vector.broadcast %16 : vector<12x1xf32> to vector<12x32xf32>
    %18 = arith.mulf %8, %17 : vector<12x32xf32>
    %19 = vector.broadcast %1 : vector<1x32xf32> to vector<12x32xf32>
    %20 = arith.mulf %18, %19 : vector<12x32xf32>
    %21 = vector.broadcast %2 : vector<1x32xf32> to vector<12x32xf32>
    %22 = arith.addf %20, %21 : vector<12x32xf32>
    %c0_9 = arith.constant 0 : index
    %c0_10 = arith.constant 0 : index
    %23 = vector.load %arg3[%c0_9, %c0_10] : memref<12x32xf32, #tpu.memory_space<vmem>>, vector<12x32xf32>
    tpu.vector_store %arg3[%c0_9, %c0_10], %22 {strides = array<i32>} : memref<12x32xf32, #tpu.memory_space<vmem>>, vector<12x32xf32>,
    return
  }
}

module attributes {stable_mosaic.version = 11 : i64} {
  func.func @_cnn_kernel(%arg0: memref<24x32xf32, #tpu.memory_space<vmem>>, %arg1: memref<24x32xf32, #tpu.memory_space<vmem>>, %arg2: memref<32x16xf32, #tpu.memory_space<vmem>>, %arg3: memref<1x16xf32, #tpu.memory_space<vmem>>, %arg4: memref<16x8xf32, #tpu.memory_space<vmem>>, %arg5: memref<1x8xf32, #tpu.memory_space<vmem>>, %arg6: memref<8x3xf32, #tpu.memory_space<vmem>>, %arg7: memref<1x3xf32, #tpu.memory_space<vmem>>, %arg8: memref<24x3xf32, #tpu.memory_space<vmem>>) attributes {dimension_semantics = [], scalar_prefetch = 0 : i64, scratch_operands = 0 : i64, tpu.core_type = #tpu.core_type<tc>} {
    %c0 = arith.constant 0 : index
    %c0_0 = arith.constant 0 : index
    %0 = vector.load %arg0[%c0, %c0_0] : memref<24x32xf32, #tpu.memory_space<vmem>>, vector<24x32xf32>
    %c0_1 = arith.constant 0 : index
    %c0_2 = arith.constant 0 : index
    %1 = vector.load %arg1[%c0_1, %c0_2] : memref<24x32xf32, #tpu.memory_space<vmem>>, vector<24x32xf32>
    %cst = arith.constant 0.000000e+00 : f32
    %2 = vector.broadcast %cst : f32 to vector<24x32xf32>
    %3 = arith.mulf %1, %2 : vector<24x32xf32>
    %4 = arith.addf %0, %3 : vector<24x32xf32>
    %c0_3 = arith.constant 0 : index
    %c0_4 = arith.constant 0 : index
    %5 = vector.load %arg2[%c0_3, %c0_4] : memref<32x16xf32, #tpu.memory_space<vmem>>, vector<32x16xf32>
    %6 = arith.truncf %4 : vector<24x32xf32> to vector<24x32xbf16>
    %7 = arith.truncf %5 : vector<32x16xf32> to vector<32x16xbf16>
    %cst_5 = arith.constant dense<0.000000e+00> : vector<24x16xf32>
    %8 = tpu.matmul %6, %7, %cst_5 {dimension_numbers = #tpu.dot_dimension_numbers<[1], [0], [0], [1], [0, 0, 1, 1], [], []>} : vector<24x32xbf16>, vector<32x16xbf16>, vector<24x16xf32> -> vector<24x16xf32>
    %c0_6 = arith.constant 0 : index
    %c0_7 = arith.constant 0 : index
    %9 = vector.load %arg3[%c0_6, %c0_7] : memref<1x16xf32, #tpu.memory_space<vmem>>, vector<1x16xf32>
    %10 = vector.broadcast %9 : vector<1x16xf32> to vector<24x16xf32>
    %11 = arith.addf %8, %10 : vector<24x16xf32>
    %cst_8 = arith.constant 0.000000e+00 : f32
    %12 = vector.broadcast %cst_8 : f32 to vector<24x16xf32>
    %13 = arith.maximumf %11, %12 : vector<24x16xf32>
    %c0_9 = arith.constant 0 : index
    %c0_10 = arith.constant 0 : index
    %14 = vector.load %arg4[%c0_9, %c0_10] : memref<16x8xf32, #tpu.memory_space<vmem>>, vector<16x8xf32>
    %15 = arith.truncf %13 : vector<24x16xf32> to vector<24x16xbf16>
    %16 = arith.truncf %14 : vector<16x8xf32> to vector<16x8xbf16>
    %cst_11 = arith.constant dense<0.000000e+00> : vector<24x8xf32>
    %17 = tpu.matmul %15, %16, %cst_11 {dimension_numbers = #tpu.dot_dimension_numbers<[1], [0], [0], [1], [0, 0, 1, 1], [], []>} : vector<24x16xbf16>, vector<16x8xbf16>, vector<24x8xf32> -> vector<24x8xf32>
    %c0_12 = arith.constant 0 : index
    %c0_13 = arith.constant 0 : index
    %18 = vector.load %arg5[%c0_12, %c0_13] : memref<1x8xf32, #tpu.memory_space<vmem>>, vector<1x8xf32>
    %19 = vector.broadcast %18 : vector<1x8xf32> to vector<24x8xf32>
    %20 = arith.addf %17, %19 : vector<24x8xf32>
    %cst_14 = arith.constant 0.000000e+00 : f32
    %21 = vector.broadcast %cst_14 : f32 to vector<24x8xf32>
    %22 = arith.maximumf %20, %21 : vector<24x8xf32>
    %c0_15 = arith.constant 0 : index
    %c0_16 = arith.constant 0 : index
    %23 = vector.load %arg6[%c0_15, %c0_16] : memref<8x3xf32, #tpu.memory_space<vmem>>, vector<8x3xf32>
    %24 = arith.truncf %22 : vector<24x8xf32> to vector<24x8xbf16>
    %25 = arith.truncf %23 : vector<8x3xf32> to vector<8x3xbf16>
    %cst_17 = arith.constant dense<0.000000e+00> : vector<24x3xf32>
    %26 = tpu.matmul %24, %25, %cst_17 {dimension_numbers = #tpu.dot_dimension_numbers<[1], [0], [0], [1], [0, 0, 1, 1], [], []>} : vector<24x8xbf16>, vector<8x3xbf16>, vector<24x3xf32> -> vector<24x3xf32>
    %c0_18 = arith.constant 0 : index
    %c0_19 = arith.constant 0 : index
    %27 = vector.load %arg7[%c0_18, %c0_19] : memref<1x3xf32, #tpu.memory_space<vmem>>, vector<1x3xf32>
    %28 = vector.broadcast %27 : vector<1x3xf32> to vector<24x3xf32>
    %29 = arith.addf %26, %28 : vector<24x3xf32>
    %30 = math.tanh %29 : vector<24x3xf32>
    %c0_20 = arith.constant 0 : index
    %c0_21 = arith.constant 0 : index
    %31 = vector.load %arg8[%c0_20, %c0_21] : memref<24x3xf32, #tpu.memory_space<vmem>>, vector<24x3xf32>
    tpu.vector_store %arg8[%c0_20, %c0_21], %30 {strides = array<i32>} : memref<24x3xf32, #tpu.memory_space<vmem>>, vector<24x3xf32>,
    return
  }
}

</mosaic_0001>

<llo_original>
// kernel: teddy_forward.15
$region0: #{teddy_forward.15}
  #allocation0 [shape = 'u32[]', space=smem, size = 0x4, offset = 0x4, fixed_abs, tag = 'smem constant byte address 0x4 - core index']
  #allocation1 [shape = 'u32[144,128]{1,0:T(1,128)}', space=vmem, size = 0x12000, scoped, tag = 'internal scratch']
  %s0 = inlined_call_operand.vmem [shape: f32[8,96], index: 0, kind: input, shape index: {}]
  %s1 = inlined_call_operand.vmem [shape: f32[1,96], index: 1, kind: input, shape index: {}]
  %s2 = inlined_call_operand.vmem [shape: f32[1,96], index: 2, kind: input, shape index: {}]
  %s3 = inlined_call_operand.vmem [shape: f32[96,32], index: 3, kind: input, shape index: {}]
  %s4 = inlined_call_operand.vmem [shape: f32[1,32], index: 4, kind: input, shape index: {}]
  %s5 = inlined_call_operand.vmem [shape: f32[1,32], index: 5, kind: input, shape index: {}]
  %s6 = inlined_call_operand.vmem [shape: f32[1,32], index: 6, kind: input, shape index: {}]
  %s7 = inlined_call_operand.vmem [shape: f32[8,32], index: 7, kind: output, shape index: {}]
  %s8 = sld [smem:[#allocation0]]
  $region38: #{teddy_forward.15} parent=0
    _
  %s10 = ssub.s32 1, %s8
  %s11 = scalar_select 0, %s10, %s8
  // Predicated region
  $region2: #{teddy_forward.15} parent=0 // pred_check
    _
  $region3: #{teddy_forward.15} parent=0 // pred_check_branch
    %13 = sbr.rel (0) target = $region5
  $region4: #{teddy_forward.15} parent=0 // pred_region
    _
  $region5: #{teddy_forward.15} parent=0 // pred_fallthru
    _
  // Predicated region
  $region6: #{teddy_forward.15} parent=0 // pred_check
    _
  $region7: #{teddy_forward.15} parent=0 // pred_check_branch
    %15 = sbr.rel (0) target = $region9
  $region8: #{teddy_forward.15} parent=0 // pred_region
    _
  $region9: #{teddy_forward.15} parent=0 // pred_fallthru
    _
  // Predicated region
  $region10: #{teddy_forward.15} parent=0 // pred_check
    _
  $region11: #{teddy_forward.15} parent=0 // pred_check_branch
    %17 = sbr.rel (0) target = $region13
  $region12: #{teddy_forward.15} parent=0 // pred_region
    _
  $region13: #{teddy_forward.15} parent=0 // pred_fallthru
    _
  // Predicated region
  $region14: #{teddy_forward.15} parent=0 // pred_check
    _
  $region15: #{teddy_forward.15} parent=0 // pred_check_branch
    %19 = sbr.rel (0) target = $region17
  $region16: #{teddy_forward.15} parent=0 // pred_region
    _
  $region17: #{teddy_forward.15} parent=0 // pred_fallthru
    _
  // Predicated region
  $region18: #{teddy_forward.15} parent=0 // pred_check
    _
  $region19: #{teddy_forward.15} parent=0 // pred_check_branch
    %21 = sbr.rel (0) target = $region21
  $region20: #{teddy_forward.15} parent=0 // pred_region
    _
  $region21: #{teddy_forward.15} parent=0 // pred_fallthru
    _
  // Predicated region
  $region22: #{teddy_forward.15} parent=0 // pred_check
    _
  $region23: #{teddy_forward.15} parent=0 // pred_check_branch
    %23 = sbr.rel (0) target = $region25
  $region24: #{teddy_forward.15} parent=0 // pred_region
    _
  $region25: #{teddy_forward.15} parent=0 // pred_fallthru
    _
  // Predicated region
  $region26: #{teddy_forward.15} parent=0 // pred_check
    _
  $region27: #{teddy_forward.15} parent=0 // pred_check_branch
    %25 = sbr.rel (0) target = $region29
  $region28: #{teddy_forward.15} parent=0 // pred_region
    _
  $region29: #{teddy_forward.15} parent=0 // pred_fallthru
    _
  %v27 = vld [vmem:[%s0] sm:$0xff]
  %v28 = vld [vmem:[%s1] sm:$0x1]
  %v29 = vld [vmem:[%s2] sm:$0x1]
  %vm30 = vcmask 785408
  %v31 = vsel %vm30, %v27, 0.0
  %32 = vadd.xlane.f32.xlu0 %v31
  %v33 = vpop.xlane.xlu0 %32
  %v34 = vrcp.pop 96.0
  %v35 = vmul.f32 %v33, %v34
  %v36 = vsub.f32 %v27, %v35
  %v37 = vmul.f32 %v36, %v36
  %v38 = vsel %vm30, %v37, 0.0
  %39 = vadd.xlane.f32.xlu0 %v38
  %v40 = vpop.xlane.xlu0 %39
  %v41 = vmul.f32 %v40, %v34
  %v42 = vadd.f32 %v41, 1e-05
  %v43 = vrsqrt.pop %v42
  %v44 = vmul.f32 %v36, %v43
  %v46 = vlaneseq
  %v47 = vshrl.u32 %v46, 7
  %v48 = vsub.s32 0, %v47
  %v49 = vrot.slane %v28, %v48
  %v51 = vmul.f32 %v44, %v49
  %v53 = vlaneseq
  %v54 = vshrl.u32 %v53, 7
  %v55 = vsub.s32 0, %v54
  %v56 = vrot.slane %v29, %v55
  %v58 = vadd.f32 %v51, %v56
  %v59 = vld [vmem:[%s3] sm:$0xff]
  %v60 = vld [vmem:[%s3 + $0x8] sm:$0xff]
  %v61 = vld [vmem:[%s3 + $0x10] sm:$0xff]
  %v62 = vld [vmem:[%s3 + $0x18] sm:$0xff]
  %v63 = vld [vmem:[%s3 + $0x20] sm:$0xff]
  %v64 = vld [vmem:[%s3 + $0x28] sm:$0xff]
  %v65 = vld [vmem:[%s3 + $0x30] sm:$0xff]
  %v66 = vld [vmem:[%s3 + $0x38] sm:$0xff]
  %v67 = vld [vmem:[%s3 + $0x40] sm:$0xff]
  %v68 = vld [vmem:[%s3 + $0x48] sm:$0xff]
  %v69 = vld [vmem:[%s3 + $0x50] sm:$0xff]
  %v70 = vld [vmem:[%s3 + $0x58] sm:$0xff]
  %v71 = vpack.c.bf16 %v58, %v58
  %v72 = vpack.c.bf16 %v60, %v59
  %v73 = vpack.c.bf16 %v62, %v61
  %v74 = vpack.c.bf16 %v64, %v63
  %v75 = vpack.c.bf16 %v66, %v65
  %v76 = vpack.c.bf16 %v68, %v67
  %v77 = vpack.c.bf16 %v70, %v69
  %v78 = vld [vmem:[%s4] sm:$0x1]
  %v80 = vlaneseq
  %v81 = vshrl.u32 %v80, 7
  %v82 = vsub.s32 0, %v81
  %v83 = vrot.slane %v78, %v82
  %v86 = vsel %vm30, %v71, 0
  %88 = vmatprep.subr.bf16.mxu0 0
  %89 = vmatpush1.bf16.msra.mxu0 0
  %90 = vmatprep.subr.bf16.mxu0 0
  %91 = vmatpush1.bf16.msra.mxu0 0
  %92 = vmatprep.subr.bf16.mxu0 0
  %93 = vmatpush1.bf16.msra.mxu0 %v77
  %94 = vmatprep.subr.bf16.mxu0 0
  %95 = vmatpush1.bf16.msra.mxu0 %v76
  %96 = vmatprep.subr.bf16.mxu0 0
  %97 = vmatpush1.bf16.msra.mxu0 %v75
  %98 = vmatprep.subr.bf16.mxu0 0
  %99 = vmatpush1.bf16.msra.mxu0 %v74
  %100 = vmatprep.subr.bf16.mxu0 0
  %101 = vmatpush1.bf16.msra.mxu0 %v73
  %102 = vmatprep.subr.bf16.mxu0 0
  %103 = vmatpush1.bf16.msra.mxu0 %v72
  %104 = vmatprep.subr.bf16.mxu0 0
  %105 = vmatpush2.bf16.msra.mxu0 0
  %106 = vmatprep.subr.bf16.mxu0 0
  %107 = vmatpush2.bf16.msra.mxu0 0
  %108 = vmatprep.subr.bf16.mxu0 0
  %109 = vmatpush2.bf16.msra.mxu0 0
  %110 = vmatprep.subr.bf16.mxu0 0
  %111 = vmatpush2.bf16.msra.mxu0 0
  %112 = vmatprep.subr.bf16.mxu0 0
  %113 = vmatpush2.bf16.msra.mxu0 0
  %114 = vmatprep.subr.bf16.mxu0 0
  %115 = vmatpush2.bf16.msra.mxu0 0
  %116 = vmatprep.subr.bf16.mxu0 0
  %117 = vmatpush2.bf16.msra.mxu0 0
  %118 = vmatprep.subr.bf16.mxu0 0
  %119 = vmatpush2.bf16.msra.mxu0 0
  %120 = vmatprep.mubr.bf16.mxu0 0
  %121 = vmatmul.mubr.bf16.gmra.mxu0 %v86
  %v122 = vpop.f32.mrf.mxu0
  %v123 = vadd.f32 %v83, %v122
  %v124 = vpop.f32.mrf.mxu0
  %v125 = vpop.f32.mrf.mxu0
  %v126 = vpop.f32.mrf.mxu0
  %127 = vdwg.mxu0
  %v128 = vld [vmem:[%s5] sm:$0x1]
  %v129 = vld [vmem:[%s6] sm:$0x1]
  %vm130 = vcmask 261120
  %v131 = vsel %vm130, %v123, 0.0
  %132 = vadd.xlane.f32.xlu0 %v131
  %v133 = vpop.xlane.xlu0 %132
  %v134 = vrcp.pop 32.0
  %v135 = vmul.f32 %v133, %v134
  %v136 = vsub.f32 %v123, %v135
  %v137 = vmul.f32 %v136, %v136
  %v138 = vsel %vm130, %v137, 0.0
  %139 = vadd.xlane.f32.xlu0 %v138
  %v140 = vpop.xlane.xlu0 %139
  %v141 = vmul.f32 %v140, %v134
  %v142 = vadd.f32 %v141, 1e-05
  %v143 = vrsqrt.pop %v142
  %v144 = vmul.f32 %v136, %v143
  %v146 = vlaneseq
  %v147 = vshrl.u32 %v146, 7
  %v148 = vsub.s32 0, %v147
  %v149 = vrot.slane %v128, %v148
  %v151 = vmul.f32 %v144, %v149
  %v153 = vlaneseq
  %v154 = vshrl.u32 %v153, 7
  %v155 = vsub.s32 0, %v154
  %v156 = vrot.slane %v129, %v155
  %v158 = vadd.f32 %v151, %v156
  %159 = vst.msk [vmem:[%s7] sm:$0xff] %vm130, %v158
  // Predicated region
  $region30: #{teddy_forward.15} parent=0 // pred_check
    _
  $region31: #{teddy_forward.15} parent=0 // pred_check_branch
    %161 = sbr.rel (0) target = $region33
  $region32: #{teddy_forward.15} parent=0 // pred_region
    _
  $region33: #{teddy_forward.15} parent=0 // pred_fallthru
    _
  // Predicated region
  $region34: #{teddy_forward.15} parent=0 // pred_check
    _
  $region35: #{teddy_forward.15} parent=0 // pred_check_branch
    %163 = sbr.rel (0) target = $region37
  $region36: #{teddy_forward.15} parent=0 // pred_region
    _
  $region37: #{teddy_forward.15} parent=0 // pred_fallthru
    _

// kernel: teddy_forward.18
$region0: #{teddy_forward.18}
  #allocation0 [shape = 'u32[]', space=smem, size = 0x4, offset = 0x4, fixed_abs, tag = 'smem constant byte address 0x4 - core index']
  #allocation1 [shape = 'u32[144,128]{1,0:T(1,128)}', space=vmem, size = 0x12000, scoped, tag = 'internal scratch']
  %s0 = inlined_call_operand.vmem [shape: f32[14,32], index: 0, kind: input, shape index: {}]
  %s1 = inlined_call_operand.vmem [shape: f32[1,32], index: 1, kind: input, shape index: {}]
  %s2 = inlined_call_operand.vmem [shape: f32[1,32], index: 2, kind: input, shape index: {}]
  %s3 = inlined_call_operand.vmem [shape: f32[14,32], index: 3, kind: output, shape index: {}]
  %s4 = sld [smem:[#allocation0]]
  $region22: #{teddy_forward.18} parent=0
    _
  %s6 = ssub.s32 1, %s4
  %s7 = scalar_select 0, %s6, %s4
  // Predicated region
  $region2: #{teddy_forward.18} parent=0 // pred_check
    _
  $region3: #{teddy_forward.18} parent=0 // pred_check_branch
    %9 = sbr.rel (0) target = $region5
  $region4: #{teddy_forward.18} parent=0 // pred_region
    _
  $region5: #{teddy_forward.18} parent=0 // pred_fallthru
    _
  // Predicated region
  $region6: #{teddy_forward.18} parent=0 // pred_check
    _
  $region7: #{teddy_forward.18} parent=0 // pred_check_branch
    %11 = sbr.rel (0) target = $region9
  $region8: #{teddy_forward.18} parent=0 // pred_region
    _
  $region9: #{teddy_forward.18} parent=0 // pred_fallthru
    _
  // Predicated region
  $region10: #{teddy_forward.18} parent=0 // pred_check
    _
  $region11: #{teddy_forward.18} parent=0 // pred_check_branch
    %13 = sbr.rel (0) target = $region13
  $region12: #{teddy_forward.18} parent=0 // pred_region
    _
  $region13: #{teddy_forward.18} parent=0 // pred_fallthru
    _
  %v14 = vld [vmem:[%s0] sm:$0xff]
  %v15 = vld [vmem:[%s0 + $0x8] sm:$0x3f]
  %v16 = vld [vmem:[%s1] sm:$0x1]
  %v17 = vld [vmem:[%s2] sm:$0x1]
  %vm18 = vcmask 261120
  %v19 = vsel %vm18, %v14, 0.0
  %20 = vadd.xlane.f32.xlu0 %v19
  %v21 = vpop.xlane.xlu0 %20
  %vm22 = vcmask 259072
  %v23 = vsel %vm22, %v15, 0.0
  %24 = vadd.xlane.f32.xlu0 %v23
  %v25 = vpop.xlane.xlu0 %24
  %v26 = vrcp.pop 32.0
  %v27 = vmul.f32 %v21, %v26
  %v28 = vmul.f32 %v25, %v26
  %v29 = vsub.f32 %v14, %v27
  %v30 = vsub.f32 %v15, %v28
  %v31 = vmul.f32 %v29, %v29
  %v32 = vmul.f32 %v30, %v30
  %v33 = vsel %vm18, %v31, 0.0
  %34 = vadd.xlane.f32.xlu0 %v33
  %v35 = vpop.xlane.xlu0 %34
  %v36 = vsel %vm22, %v32, 0.0
  %37 = vadd.xlane.f32.xlu0 %v36
  %v38 = vpop.xlane.xlu0 %37
  %v39 = vmul.f32 %v35, %v26
  %v40 = vmul.f32 %v38, %v26
  %v41 = vadd.f32 %v39, 1e-05
  %v42 = vadd.f32 %v40, 1e-05
  %v43 = vrsqrt.pop %v41
  %v44 = vrsqrt.pop %v42
  %v45 = vmul.f32 %v29, %v43
  %v46 = vmul.f32 %v30, %v44
  %v48 = vlaneseq
  %v49 = vshrl.u32 %v48, 7
  %v50 = vsub.s32 0, %v49
  %v51 = vrot.slane %v16, %v50
  %v53 = vmul.f32 %v45, %v51
  %v54 = vmul.f32 %v46, %v51
  %v56 = vlaneseq
  %v57 = vshrl.u32 %v56, 7
  %v58 = vsub.s32 0, %v57
  %v59 = vrot.slane %v17, %v58
  %v61 = vadd.f32 %v53, %v59
  %v62 = vadd.f32 %v54, %v59
  %63 = vst.msk [vmem:[%s3] sm:$0xff] %vm18, %v61
  %64 = vst.msk [vmem:[%s3 + $0x8] sm:$0x3f] %vm22, %v62
  // Predicated region
  $region14: #{teddy_forward.18} parent=0 // pred_check
    _
  $region15: #{teddy_forward.18} parent=0 // pred_check_branch
    %66 = sbr.rel (0) target = $region17
  $region16: #{teddy_forward.18} parent=0 // pred_region
    _
  $region17: #{teddy_forward.18} parent=0 // pred_fallthru
    _
  // Predicated region
  $region18: #{teddy_forward.18} parent=0 // pred_check
    _
  $region19: #{teddy_forward.18} parent=0 // pred_check_branch
    %68 = sbr.rel (0) target = $region21
  $region20: #{teddy_forward.18} parent=0 // pred_region
    _
  $region21: #{teddy_forward.18} parent=0 // pred_fallthru
    _

// kernel: teddy_forward.14
$region0: #{teddy_forward.14}
  #allocation0 [shape = 'u32[]', space=smem, size = 0x4, offset = 0x4, fixed_abs, tag = 'smem constant byte address 0x4 - core index']
  #allocation1 [shape = 'u32[144,128]{1,0:T(1,128)}', space=vmem, size = 0x12000, scoped, tag = 'internal scratch']
  %s0 = inlined_call_operand.vmem [shape: f32[10,16], index: 0, kind: input, shape index: {}]
  %s1 = inlined_call_operand.vmem [shape: f32[16,32], index: 1, kind: input, shape index: {}]
  %s2 = inlined_call_operand.vmem [shape: f32[1,32], index: 2, kind: input, shape index: {}]
  %s3 = inlined_call_operand.vmem [shape: f32[10,32], index: 3, kind: output, shape index: {}]
  %s4 = sld [smem:[#allocation0]]
  $region22: #{teddy_forward.14} parent=0
    _
  %s6 = ssub.s32 1, %s4
  %s7 = scalar_select 0, %s6, %s4
  // Predicated region
  $region2: #{teddy_forward.14} parent=0 // pred_check
    _
  $region3: #{teddy_forward.14} parent=0 // pred_check_branch
    %9 = sbr.rel (0) target = $region5
  $region4: #{teddy_forward.14} parent=0 // pred_region
    _
  $region5: #{teddy_forward.14} parent=0 // pred_fallthru
    _
  // Predicated region
  $region6: #{teddy_forward.14} parent=0 // pred_check
    _
  $region7: #{teddy_forward.14} parent=0 // pred_check_branch
    %11 = sbr.rel (0) target = $region9
  $region8: #{teddy_forward.14} parent=0 // pred_region
    _
  $region9: #{teddy_forward.14} parent=0 // pred_fallthru
    _
  // Predicated region
  $region10: #{teddy_forward.14} parent=0 // pred_check
    _
  $region11: #{teddy_forward.14} parent=0 // pred_check_branch
    %13 = sbr.rel (0) target = $region13
  $region12: #{teddy_forward.14} parent=0 // pred_region
    _
  $region13: #{teddy_forward.14} parent=0 // pred_fallthru
    _
  %v15 = vld [vmem:[%s0] sm:$0xff]
  %v16 = vld [vmem:[%s0 + $0x8] sm:$0x3]
  %v17 = vld [vmem:[%s1] sm:$0xff]
  %v18 = vld [vmem:[%s1 + $0x8] sm:$0xff]
  %v19 = vpack.c.bf16 %v16, %v15
  %v20 = vpack.c.bf16 %v18, %v17
  %v21 = vld [vmem:[%s2] sm:$0x1]
  %v23 = vlaneseq
  %v24 = vshrl.u32 %v23, 7
  %v25 = vsub.s32 0, %v24
  %v26 = vrot.slane %v21, %v25
  %vm28 = vcmask 130048
  %v30 = vsel %vm28, %v19, 0
  %32 = vmatprep.subr.bf16.mxu0 0
  %33 = vmatpush1.bf16.msra.mxu0 0
  %34 = vmatprep.subr.bf16.mxu0 0
  %35 = vmatpush1.bf16.msra.mxu0 0
  %36 = vmatprep.subr.bf16.mxu0 0
  %37 = vmatpush1.bf16.msra.mxu0 0
  %38 = vmatprep.subr.bf16.mxu0 0
  %39 = vmatpush1.bf16.msra.mxu0 0
  %40 = vmatprep.subr.bf16.mxu0 0
  %41 = vmatpush1.bf16.msra.mxu0 0
  %42 = vmatprep.subr.bf16.mxu0 0
  %43 = vmatpush1.bf16.msra.mxu0 0
  %44 = vmatprep.subr.bf16.mxu0 0
  %45 = vmatpush1.bf16.msra.mxu0 0
  %46 = vmatprep.subr.bf16.mxu0 0
  %47 = vmatpush1.bf16.msra.mxu0 %v20
  %48 = vmatprep.subr.bf16.mxu0 0
  %49 = vmatpush2.bf16.msra.mxu0 0
  %50 = vmatprep.subr.bf16.mxu0 0
  %51 = vmatpush2.bf16.msra.mxu0 0
  %52 = vmatprep.subr.bf16.mxu0 0
  %53 = vmatpush2.bf16.msra.mxu0 0
  %54 = vmatprep.subr.bf16.mxu0 0
  %55 = vmatpush2.bf16.msra.mxu0 0
  %56 = vmatprep.subr.bf16.mxu0 0
  %57 = vmatpush2.bf16.msra.mxu0 0
  %58 = vmatprep.subr.bf16.mxu0 0
  %59 = vmatpush2.bf16.msra.mxu0 0
  %60 = vmatprep.subr.bf16.mxu0 0
  %61 = vmatpush2.bf16.msra.mxu0 0
  %62 = vmatprep.subr.bf16.mxu0 0
  %63 = vmatpush2.bf16.msra.mxu0 0
  %64 = vmatprep.mubr.bf16.mxu0 0
  %65 = vmatmul.mubr.bf16.gmra.mxu0 %v30
  %v66 = vpop.f32.mrf.mxu0
  %v67 = vadd.f32 %v26, %v66
  %v68 = vpop.f32.mrf.mxu0
  %v69 = vpop.f32.mrf.mxu0
  %v70 = vadd.f32 %v26, %v69
  %v71 = vpop.f32.mrf.mxu0
  %72 = vdwg.mxu0
  %vm73 = vcmask 261120
  %74 = vst.msk [vmem:[%s3] sm:$0xff] %vm73, %v67
  %vm75 = vcmask 254976
  %76 = vst.msk [vmem:[%s3 + $0x8] sm:$0x3] %vm75, %v70
  // Predicated region
  $region14: #{teddy_forward.14} parent=0 // pred_check
    _
  $region15: #{teddy_forward.14} parent=0 // pred_check_branch
    %78 = sbr.rel (0) target = $region17
  $region16: #{teddy_forward.14} parent=0 // pred_region
    _
  $region17: #{teddy_forward.14} parent=0 // pred_fallthru
    _
  // Predicated region
  $region18: #{teddy_forward.14} parent=0 // pred_check
    _
  $region19: #{teddy_forward.14} parent=0 // pred_check_branch
    %80 = sbr.rel (0) target = $region21
  $region20: #{teddy_forward.14} parent=0 // pred_region
    _
  $region21: #{teddy_forward.14} parent=0 // pred_fallthru
    _

// kernel: teddy_forward.16
$region0: #{teddy_forward.16}
  #allocation0 [shape = 'u32[]', space=smem, size = 0x4, offset = 0x4, fixed_abs, tag = 'smem constant byte address 0x4 - core index']
  #allocation1 [shape = 'u32[144,128]{1,0:T(1,128)}', space=vmem, size = 0x12000, scoped, tag = 'internal scratch']
  %s0 = inlined_call_operand.vmem [shape: f32[2,7,32], index: 0, kind: input, shape index: {}]
  %s1 = inlined_call_operand.vmem [shape: f32[32,96], index: 1, kind: input, shape index: {}]
  %s2 = inlined_call_operand.vmem [shape: f32[1,96], index: 2, kind: input, shape index: {}]
  %s3 = inlined_call_operand.vmem [shape: f32[32,32], index: 3, kind: input, shape index: {}]
  %s4 = inlined_call_operand.vmem [shape: f32[1,32], index: 4, kind: input, shape index: {}]
  %s5 = inlined_call_operand.vmem [shape: f32[1,32], index: 5, kind: input, shape index: {}]
  %s6 = inlined_call_operand.vmem [shape: f32[1,32], index: 6, kind: input, shape index: {}]
  %s7 = inlined_call_operand.vmem [shape: f32[32,64], index: 7, kind: input, shape index: {}]
  %s8 = inlined_call_operand.vmem [shape: f32[1,64], index: 8, kind: input, shape index: {}]
  %s9 = inlined_call_operand.vmem [shape: f32[64,32], index: 9, kind: input, shape index: {}]
  %s10 = inlined_call_operand.vmem [shape: f32[1,32], index: 10, kind: input, shape index: {}]
  %s11 = inlined_call_operand.vmem [shape: f32[1,32], index: 11, kind: input, shape index: {}]
  %s12 = inlined_call_operand.vmem [shape: f32[1,32], index: 12, kind: input, shape index: {}]
  %s13 = inlined_call_operand.vmem [shape: f32[2,7,32], index: 13, kind: output, shape index: {}]
  %s14 = sld [smem:[#allocation0]]
  $region85: #{teddy_forward.16} parent=0
    _
  %s16 = ssub.s32 1, %s14
  %s17 = scalar_select 0, %s16, %s14
  loop: start=0, step=1, limit=4
  $region2: #{teddy_forward.16} parent=0 // loop_pre_header
    _
  $region3: #{teddy_forward.16} parent=0 // loop_header
    %s19 = sphi 0, %s23
    %p20 = scmp.ge.s32.totalorder %s19, 4
    %s29 = sphi 0, %s31
    %s32 = sphi 0, %s29
    %s33 = sphi 0, %s32
    %s49 = sphi 0, %s33
    %s53 = sphi 0, %s53
    %s55 = sphi 0, %s53
    %s56 = sphi 0, %s55
    %s70 = sphi 0, %s56
    %s74 = sphi 0, %s74
    %s76 = sphi 0, %s74
    %s77 = sphi 0, %s76
    %s91 = sphi 0, %s77
    %s95 = sphi 0, %s95
    %s97 = sphi 0, %s95
    %s98 = sphi 0, %s97
    %s112 = sphi 0, %s98
    %s116 = sphi 0, %s116
    %s118 = sphi 0, %s116
    %s119 = sphi 0, %s118
    %s133 = sphi 0, %s119
    %s137 = sphi 0, %s137
    %s139 = sphi 0, %s137
    %s140 = sphi 0, %s139
    %s154 = sphi 0, %s140
    %s158 = sphi 0, %s158
    %s160 = sphi 0, %s158
    %s161 = sphi 0, %s160
    %s175 = sphi 0, %s161
    %s179 = sphi 0, %s179
    %s181 = sphi 0, %s179
    %s182 = sphi 0, %s181
    %s196 = sphi 0, %s182
    %s200 = sphi 0, %s200
    %s202 = sphi 0, %s200
    %s203 = sphi 0, %s202
    %s217 = sphi 0, %s203
    %s221 = sphi 0, %s221
    %s223 = sphi 0, %s221
    %s224 = sphi 0, %s223
    %s238 = sphi 0, %s224
    %s242 = sphi 0, %s242
    %s244 = sphi 0, %s242
    %s245 = sphi 0, %s244
    %s259 = sphi 0, %s245
    %s263 = sphi 0, %s263
    %s265 = sphi 0, %s263
    %s266 = sphi 0, %s265
    %s280 = sphi 0, %s266
    %s284 = sphi 0, %s284
    %s286 = sphi 0, %s284
    %s287 = sphi 0, %s286
    %s301 = sphi 0, %s287
    %s307 = sphi 0, %s309
    %s310 = sphi 0, %s307
    %s311 = sphi 0, %s310
    %s327 = sphi 0, %s311
  $region4: #{teddy_forward.16} parent=0 // loop_header_branch
    %22 = sbr.rel (%p20) target = $region8
  $region5: #{teddy_forward.16} parent=0 // loop_body
    %s24 = ssub.s32 %s19, 1
    %s25 = ssub.s32 %s19, 2
    %s26 = sadd.s32 %s19, 1
    %s27 = ssub.s32 %s19, %s26
    %p28 = scmp.eq.s32.totalorder %s27, 0
    %s30 = sadd.s32 %s29, 1
    %s31 = scalar_select %p28, %s29, %s30
    %p34 = pneg %p28
    %p35 = scmp.eq.s32.totalorder %s19, 1
    %p36 = por %p34, %p35
    %p37 = scmp.ne.s32.totalorder %s29, %s32
    %p38 = scmp.eq.s32.totalorder %s19, 0
    %p39 = por %p37, %p38
    %p40 = scmp.ne.s32.totalorder %s29, %s32
    %p41 = scmp.eq.s32.totalorder %s24, 1
    %p42 = por %p40, %p41
    %p43 = scmp.ne.s32.totalorder %s32, %s33
    %p44 = scmp.eq.s32.totalorder %s24, 0
    %p45 = por %p43, %p44
    %p46 = scmp.ne.s32.totalorder %s32, %s33
    %p47 = scmp.eq.s32.totalorder %s25, 1
    %p48 = por %p46, %p47
    %p50 = scmp.ne.s32.totalorder %s33, %s49
    %p51 = scmp.eq.s32.totalorder %s25, 0
    %p52 = por %p50, %p51
    %s54 = sadd.s32 %s53, 1
    %p57 = scmp.eq.s32.totalorder %s19, 1
    %p58 = scmp.ne.s32.totalorder %s53, %s55
    %p59 = scmp.eq.s32.totalorder %s19, 0
    %p60 = por %p58, %p59
    %p61 = scmp.ne.s32.totalorder %s53, %s55
    %p62 = scmp.eq.s32.totalorder %s24, 1
    %p63 = por %p61, %p62
    %p64 = scmp.ne.s32.totalorder %s55, %s56
    %p65 = scmp.eq.s32.totalorder %s24, 0
    %p66 = por %p64, %p65
    %p67 = scmp.ne.s32.totalorder %s55, %s56
    %p68 = scmp.eq.s32.totalorder %s25, 1
    %p69 = por %p67, %p68
    %p71 = scmp.ne.s32.totalorder %s56, %s70
    %p72 = scmp.eq.s32.totalorder %s25, 0
    %p73 = por %p71, %p72
    %s75 = sadd.s32 %s74, 1
    %p78 = scmp.eq.s32.totalorder %s19, 1
    %p79 = scmp.ne.s32.totalorder %s74, %s76
    %p80 = scmp.eq.s32.totalorder %s19, 0
    %p81 = por %p79, %p80
    %p82 = scmp.ne.s32.totalorder %s74, %s76
    %p83 = scmp.eq.s32.totalorder %s24, 1
    %p84 = por %p82, %p83
    %p85 = scmp.ne.s32.totalorder %s76, %s77
    %p86 = scmp.eq.s32.totalorder %s24, 0
    %p87 = por %p85, %p86
    %p88 = scmp.ne.s32.totalorder %s76, %s77
    %p89 = scmp.eq.s32.totalorder %s25, 1
    %p90 = por %p88, %p89
    %p92 = scmp.ne.s32.totalorder %s77, %s91
    %p93 = scmp.eq.s32.totalorder %s25, 0
    %p94 = por %p92, %p93
    %s96 = sadd.s32 %s95, 1
    %p99 = scmp.eq.s32.totalorder %s19, 1
    %p100 = scmp.ne.s32.totalorder %s95, %s97
    %p101 = scmp.eq.s32.totalorder %s19, 0
    %p102 = por %p100, %p101
    %p103 = scmp.ne.s32.totalorder %s95, %s97
    %p104 = scmp.eq.s32.totalorder %s24, 1
    %p105 = por %p103, %p104
    %p106 = scmp.ne.s32.totalorder %s97, %s98
    %p107 = scmp.eq.s32.totalorder %s24, 0
    %p108 = por %p106, %p107
    %p109 = scmp.ne.s32.totalorder %s97, %s98
    %p110 = scmp.eq.s32.totalorder %s25, 1
    %p111 = por %p109, %p110
    %p113 = scmp.ne.s32.totalorder %s98, %s112
    %p114 = scmp.eq.s32.totalorder %s25, 0
    %p115 = por %p113, %p114
    %s117 = sadd.s32 %s116, 1
    %p120 = scmp.eq.s32.totalorder %s19, 1
    %p121 = scmp.ne.s32.totalorder %s116, %s118
    %p122 = scmp.eq.s32.totalorder %s19, 0
    %p123 = por %p121, %p122
    %p124 = scmp.ne.s32.totalorder %s116, %s118
    %p125 = scmp.eq.s32.totalorder %s24, 1
    %p126 = por %p124, %p125
    %p127 = scmp.ne.s32.totalorder %s118, %s119
    %p128 = scmp.eq.s32.totalorder %s24, 0
    %p129 = por %p127, %p128
    %p130 = scmp.ne.s32.totalorder %s118, %s119
    %p131 = scmp.eq.s32.totalorder %s25, 1
    %p132 = por %p130, %p131
    %p134 = scmp.ne.s32.totalorder %s119, %s133
    %p135 = scmp.eq.s32.totalorder %s25, 0
    %p136 = por %p134, %p135
    %s138 = sadd.s32 %s137, 1
    %p141 = scmp.eq.s32.totalorder %s19, 1
    %p142 = scmp.ne.s32.totalorder %s137, %s139
    %p143 = scmp.eq.s32.totalorder %s19, 0
    %p144 = por %p142, %p143
    %p145 = scmp.ne.s32.totalorder %s137, %s139
    %p146 = scmp.eq.s32.totalorder %s24, 1
    %p147 = por %p145, %p146
    %p148 = scmp.ne.s32.totalorder %s139, %s140
    %p149 = scmp.eq.s32.totalorder %s24, 0
    %p150 = por %p148, %p149
    %p151 = scmp.ne.s32.totalorder %s139, %s140
    %p152 = scmp.eq.s32.totalorder %s25, 1
    %p153 = por %p151, %p152
    %p155 = scmp.ne.s32.totalorder %s140, %s154
    %p156 = scmp.eq.s32.totalorder %s25, 0
    %p157 = por %p155, %p156
    %s159 = sadd.s32 %s158, 1
    %p162 = scmp.eq.s32.totalorder %s19, 1
    %p163 = scmp.ne.s32.totalorder %s158, %s160
    %p164 = scmp.eq.s32.totalorder %s19, 0
    %p165 = por %p163, %p164
    %p166 = scmp.ne.s32.totalorder %s158, %s160
    %p167 = scmp.eq.s32.totalorder %s24, 1
    %p168 = por %p166, %p167
    %p169 = scmp.ne.s32.totalorder %s160, %s161
    %p170 = scmp.eq.s32.totalorder %s24, 0
    %p171 = por %p169, %p170
    %p172 = scmp.ne.s32.totalorder %s160, %s161
    %p173 = scmp.eq.s32.totalorder %s25, 1
    %p174 = por %p172, %p173
    %p176 = scmp.ne.s32.totalorder %s161, %s175
    %p177 = scmp.eq.s32.totalorder %s25, 0
    %p178 = por %p176, %p177
    %s180 = sadd.s32 %s179, 1
    %p183 = scmp.eq.s32.totalorder %s19, 1
    %p184 = scmp.ne.s32.totalorder %s179, %s181
    %p185 = scmp.eq.s32.totalorder %s19, 0
    %p186 = por %p184, %p185
    %p187 = scmp.ne.s32.totalorder %s179, %s181
    %p188 = scmp.eq.s32.totalorder %s24, 1
    %p189 = por %p187, %p188
    %p190 = scmp.ne.s32.totalorder %s181, %s182
    %p191 = scmp.eq.s32.totalorder %s24, 0
    %p192 = por %p190, %p191
    %p193 = scmp.ne.s32.totalorder %s181, %s182
    %p194 = scmp.eq.s32.totalorder %s25, 1
    %p195 = por %p193, %p194
    %p197 = scmp.ne.s32.totalorder %s182, %s196
    %p198 = scmp.eq.s32.totalorder %s25, 0
    %p199 = por %p197, %p198
    %s201 = sadd.s32 %s200, 1
    %p204 = scmp.eq.s32.totalorder %s19, 1
    %p205 = scmp.ne.s32.totalorder %s200, %s202
    %p206 = scmp.eq.s32.totalorder %s19, 0
    %p207 = por %p205, %p206
    %p208 = scmp.ne.s32.totalorder %s200, %s202
    %p209 = scmp.eq.s32.totalorder %s24, 1
    %p210 = por %p208, %p209
    %p211 = scmp.ne.s32.totalorder %s202, %s203
    %p212 = scmp.eq.s32.totalorder %s24, 0
    %p213 = por %p211, %p212
    %p214 = scmp.ne.s32.totalorder %s202, %s203
    %p215 = scmp.eq.s32.totalorder %s25, 1
    %p216 = por %p214, %p215
    %p218 = scmp.ne.s32.totalorder %s203, %s217
    %p219 = scmp.eq.s32.totalorder %s25, 0
    %p220 = por %p218, %p219
    %s222 = sadd.s32 %s221, 1
    %p225 = scmp.eq.s32.totalorder %s19, 1
    %p226 = scmp.ne.s32.totalorder %s221, %s223
    %p227 = scmp.eq.s32.totalorder %s19, 0
    %p228 = por %p226, %p227
    %p229 = scmp.ne.s32.totalorder %s221, %s223
    %p230 = scmp.eq.s32.totalorder %s24, 1
    %p231 = por %p229, %p230
    %p232 = scmp.ne.s32.totalorder %s223, %s224
    %p233 = scmp.eq.s32.totalorder %s24, 0
    %p234 = por %p232, %p233
    %p235 = scmp.ne.s32.totalorder %s223, %s224
    %p236 = scmp.eq.s32.totalorder %s25, 1
    %p237 = por %p235, %p236
    %p239 = scmp.ne.s32.totalorder %s224, %s238
    %p240 = scmp.eq.s32.totalorder %s25, 0
    %p241 = por %p239, %p240
    %s243 = sadd.s32 %s242, 1
    %p246 = scmp.eq.s32.totalorder %s19, 1
    %p247 = scmp.ne.s32.totalorder %s242, %s244
    %p248 = scmp.eq.s32.totalorder %s19, 0
    %p249 = por %p247, %p248
    %p250 = scmp.ne.s32.totalorder %s242, %s244
    %p251 = scmp.eq.s32.totalorder %s24, 1
    %p252 = por %p250, %p251
    %p253 = scmp.ne.s32.totalorder %s244, %s245
    %p254 = scmp.eq.s32.totalorder %s24, 0
    %p255 = por %p253, %p254
    %p256 = scmp.ne.s32.totalorder %s244, %s245
    %p257 = scmp.eq.s32.totalorder %s25, 1
    %p258 = por %p256, %p257
    %p260 = scmp.ne.s32.totalorder %s245, %s259
    %p261 = scmp.eq.s32.totalorder %s25, 0
    %p262 = por %p260, %p261
    %s264 = sadd.s32 %s263, 1
    %p267 = scmp.eq.s32.totalorder %s19, 1
    %p268 = scmp.ne.s32.totalorder %s263, %s265
    %p269 = scmp.eq.s32.totalorder %s19, 0
    %p270 = por %p268, %p269
    %p271 = scmp.ne.s32.totalorder %s263, %s265
    %p272 = scmp.eq.s32.totalorder %s24, 1
    %p273 = por %p271, %p272
    %p274 = scmp.ne.s32.totalorder %s265, %s266
    %p275 = scmp.eq.s32.totalorder %s24, 0
    %p276 = por %p274, %p275
    %p277 = scmp.ne.s32.totalorder %s265, %s266
    %p278 = scmp.eq.s32.totalorder %s25, 1
    %p279 = por %p277, %p278
    %p281 = scmp.ne.s32.totalorder %s266, %s280
    %p282 = scmp.eq.s32.totalorder %s25, 0
    %p283 = por %p281, %p282
    %s285 = sadd.s32 %s284, 1
    %p288 = scmp.eq.s32.totalorder %s19, 1
    %p289 = scmp.ne.s32.totalorder %s284, %s286
    %p290 = scmp.eq.s32.totalorder %s19, 0
    %p291 = por %p289, %p290
    %p292 = scmp.ne.s32.totalorder %s284, %s286
    %p293 = scmp.eq.s32.totalorder %s24, 1
    %p294 = por %p292, %p293
    %p295 = scmp.ne.s32.totalorder %s286, %s287
    %p296 = scmp.eq.s32.totalorder %s24, 0
    %p297 = por %p295, %p296
    %p298 = scmp.ne.s32.totalorder %s286, %s287
    %p299 = scmp.eq.s32.totalorder %s25, 1
    %p300 = por %p298, %p299
    %p302 = scmp.ne.s32.totalorder %s287, %s301
    %p303 = scmp.eq.s32.totalorder %s25, 0
    %p304 = por %p302, %p303
    %s305 = ssub.s32 %s19, %s26
    %p306 = scmp.eq.s32.totalorder %s305, 0
    %s308 = sadd.s32 %s307, 1
    %s309 = scalar_select %p306, %s307, %s308
    %p312 = pneg %p306
    %p313 = scmp.eq.s32.totalorder %s19, 1
    %p314 = por %p312, %p313
    %p315 = scmp.ne.s32.totalorder %s307, %s310
    %p316 = scmp.eq.s32.totalorder %s19, 0
    %p317 = por %p315, %p316
    %p318 = scmp.ne.s32.totalorder %s307, %s310
    %p319 = scmp.eq.s32.totalorder %s24, 1
    %p320 = por %p318, %p319
    %p321 = scmp.ne.s32.totalorder %s310, %s311
    %p322 = scmp.eq.s32.totalorder %s24, 0
    %p323 = por %p321, %p322
    %p324 = scmp.ne.s32.totalorder %s310, %s311
    %p325 = scmp.eq.s32.totalorder %s25, 1
    %p326 = por %p324, %p325
    %p328 = scmp.ne.s32.totalorder %s311, %s327
    %p329 = scmp.eq.s32.totalorder %s25, 0
    %p330 = por %p328, %p329
    %p331 = scmp.le.s32.totalorder 1, %s19
    %p332 = scmp.lt.s32.totalorder %s19, 3
    %p333 = pnand %p331, %p332
    %p334 = pneg %p333
    // Predicated region
    $region9: #{teddy_forward.16} parent=5 // pred_check
      _
    $region10: #{teddy_forward.16} parent=5 // pred_check_branch
      %336 = sbr.rel (%p333) target = $region12
    $region11: #{teddy_forward.16} parent=5 // pred_region
      %s337 = ssub.s32 %s19, 1
      // Predicated region
      $region13: #{teddy_forward.16} parent=11 // pred_check
        %p338 = pneg %p66
      $region14: #{teddy_forward.16} parent=11 // pred_check_branch
        %340 = sbr.rel (%p338) target = $region16
      $region15: #{teddy_forward.16} parent=11 // pred_region
        _
      $region16: #{teddy_forward.16} parent=11 // pred_fallthru
        _
      // Predicated region
      $region17: #{teddy_forward.16} parent=11 // pred_check
        %p341 = pneg %p87
      $region18: #{teddy_forward.16} parent=11 // pred_check_branch
        %343 = sbr.rel (%p341) target = $region20
      $region19: #{teddy_forward.16} parent=11 // pred_region
        _
      $region20: #{teddy_forward.16} parent=11 // pred_fallthru
        _
      // Predicated region
      $region21: #{teddy_forward.16} parent=11 // pred_check
        %p344 = pneg %p108
      $region22: #{teddy_forward.16} parent=11 // pred_check_branch
        %346 = sbr.rel (%p344) target = $region24
      $region23: #{teddy_forward.16} parent=11 // pred_region
        _
      $region24: #{teddy_forward.16} parent=11 // pred_fallthru
        _
      // Predicated region
      $region25: #{teddy_forward.16} parent=11 // pred_check
        %p347 = pneg %p129
      $region26: #{teddy_forward.16} parent=11 // pred_check_branch
        %349 = sbr.rel (%p347) target = $region28
      $region27: #{teddy_forward.16} parent=11 // pred_region
        _
      $region28: #{teddy_forward.16} parent=11 // pred_fallthru
        _
      // Predicated region
      $region29: #{teddy_forward.16} parent=11 // pred_check
        %p350 = pneg %p150
      $region30: #{teddy_forward.16} parent=11 // pred_check_branch
        %352 = sbr.rel (%p350) target = $region32
      $region31: #{teddy_forward.16} parent=11 // pred_region
        _
      $region32: #{teddy_forward.16} parent=11 // pred_fallthru
        _
      // Predicated region
      $region33: #{teddy_forward.16} parent=11 // pred_check
        %p353 = pneg %p171
      $region34: #{teddy_forward.16} parent=11 // pred_check_branch
        %355 = sbr.rel (%p353) target = $region36
      $region35: #{teddy_forward.16} parent=11 // pred_region
        _
      $region36: #{teddy_forward.16} parent=11 // pred_fallthru
        _
      // Predicated region
      $region37: #{teddy_forward.16} parent=11 // pred_check
        %p356 = pneg %p192
      $region38: #{teddy_forward.16} parent=11 // pred_check_branch
        %358 = sbr.rel (%p356) target = $region40
      $region39: #{teddy_forward.16} parent=11 // pred_region
        _
      $region40: #{teddy_forward.16} parent=11 // pred_fallthru
        _
      // Predicated region
      $region41: #{teddy_forward.16} parent=11 // pred_check
        %p359 = pneg %p213
      $region42: #{teddy_forward.16} parent=11 // pred_check_branch
        %361 = sbr.rel (%p359) target = $region44
      $region43: #{teddy_forward.16} parent=11 // pred_region
        _
      $region44: #{teddy_forward.16} parent=11 // pred_fallthru
        _
      // Predicated region
      $region45: #{teddy_forward.16} parent=11 // pred_check
        %p362 = pneg %p234
      $region46: #{teddy_forward.16} parent=11 // pred_check_branch
        %364 = sbr.rel (%p362) target = $region48
      $region47: #{teddy_forward.16} parent=11 // pred_region
        _
      $region48: #{teddy_forward.16} parent=11 // pred_fallthru
        _
      // Predicated region
      $region49: #{teddy_forward.16} parent=11 // pred_check
        %p365 = pneg %p255
      $region50: #{teddy_forward.16} parent=11 // pred_check_branch
        %367 = sbr.rel (%p365) target = $region52
      $region51: #{teddy_forward.16} parent=11 // pred_region
        _
      $region52: #{teddy_forward.16} parent=11 // pred_fallthru
        _
      // Predicated region
      $region53: #{teddy_forward.16} parent=11 // pred_check
        %p368 = pneg %p276
      $region54: #{teddy_forward.16} parent=11 // pred_check_branch
        %370 = sbr.rel (%p368) target = $region56
      $region55: #{teddy_forward.16} parent=11 // pred_region
        _
      $region56: #{teddy_forward.16} parent=11 // pred_fallthru
        _
      // Predicated region
      $region57: #{teddy_forward.16} parent=11 // pred_check
        %p371 = pneg %p297
      $region58: #{teddy_forward.16} parent=11 // pred_check_branch
        %373 = sbr.rel (%p371) target = $region60
      $region59: #{teddy_forward.16} parent=11 // pred_region
        _
      $region60: #{teddy_forward.16} parent=11 // pred_fallthru
        _
    $region12: #{teddy_forward.16} parent=5 // pred_fallthru
      _
    %p374 = scmp.lt.s32.totalorder %s19, 2
    // Predicated region
    $region61: #{teddy_forward.16} parent=5 // pred_check
      %p375 = pneg %p374
    $region62: #{teddy_forward.16} parent=5 // pred_check_branch
      %377 = sbr.rel (%p375) target = $region64
    $region63: #{teddy_forward.16} parent=5 // pred_region
      // Predicated region
      $region65: #{teddy_forward.16} parent=63 // pred_check
        %p378 = pneg %p39
      $region66: #{teddy_forward.16} parent=63 // pred_check_branch
        %380 = sbr.rel (%p378) target = $region68
      $region67: #{teddy_forward.16} parent=63 // pred_region
        %p381 = scmp.lt.s32.totalorder %s19, 1
        %s382 = scalar_select %p381, %s19, 1
        %s383 = smul.addr %s382, 8
        %s384 = scalar_lea.vmem %s0, %s383
      $region68: #{teddy_forward.16} parent=63 // pred_fallthru
        _
    $region64: #{teddy_forward.16} parent=5 // pred_fallthru
      _
    %p385 = scmp.le.s32.totalorder 1, %s19
    %p386 = scmp.lt.s32.totalorder %s19, 3
    %p387 = pnand %p385, %p386
    %p388 = pneg %p387
    // Predicated region
    $region69: #{teddy_forward.16} parent=5 // pred_check
      _
    $region70: #{teddy_forward.16} parent=5 // pred_check_branch
      %390 = sbr.rel (%p387) target = $region72
    $region71: #{teddy_forward.16} parent=5 // pred_region
      %s391 = ssub.s32 %s19, 1
      %p392 = scmp.lt.s32.totalorder %s24, 1
      %s393 = scalar_select %p392, %s24, 1
      %s394 = smul.addr %s393, 8
      %s395 = scalar_lea.vmem %s0, %s394
      %p396 = pneg %p45
      %p397 = pneg %p42
      %p398 = pneg %p66
      %p399 = pneg %p63
      %p400 = pneg %p87
      %p401 = pneg %p84
      %p402 = pneg %p108
      %p403 = pneg %p105
      %p404 = pneg %p129
      %p405 = pneg %p126
      %p406 = pneg %p150
      %p407 = pneg %p147
      %p408 = pneg %p171
      %p409 = pneg %p168
      %p410 = pneg %p192
      %p411 = pneg %p189
      %p412 = pneg %p213
      %p413 = pneg %p210
      %p414 = pneg %p234
      %p415 = pneg %p231
      %p416 = pneg %p255
      %p417 = pneg %p252
      %p418 = pneg %p276
      %p419 = pneg %p273
      %p420 = pneg %p297
      %p421 = pneg %p294
      %p422 = pneg %p323
      %p423 = pneg %p320
      %p424 = scmp.lt.s32.totalorder %s24, 1
      %s425 = scalar_select %p424, %s24, 1
      %s426 = smul.addr %s425, 8
      %s427 = scalar_lea.vmem %s13, %s426
      %p428 = scmp.lt.s32.totalorder %s24, 1
      %s429 = scalar_select %p428, %s24, 1
      %s430 = smul.addr %s429, 8
      %s431 = scalar_lea.vmem %s0, %s430
      %p432 = scmp.lt.s32.totalorder %s24, 1
      %s433 = scalar_select %p432, %s24, 1
      %s434 = smul.addr %s433, 8
      %s435 = scalar_lea.vmem %s13, %s434
      %v437 = vld [vmem:[%s431] sm:$0x7f]
      %v438 = vld [vmem:[%s1] sm:$0xff]
      %v439 = vld [vmem:[%s1 + $0x8] sm:$0xff]
      %v440 = vld [vmem:[%s1 + $0x10] sm:$0xff]
      %v441 = vld [vmem:[%s1 + $0x18] sm:$0xff]
      %v442 = vld [vmem:[%s2] sm:$0x1]
      %v443 = vld [vmem:[%s3] sm:$0xff]
      %v444 = vld [vmem:[%s3 + $0x8] sm:$0xff]
      %v445 = vld [vmem:[%s3 + $0x10] sm:$0xff]
      %v446 = vld [vmem:[%s3 + $0x18] sm:$0xff]
      %v447 = vld [vmem:[%s4] sm:$0x1]
      %v448 = vpack.c.bf16 %v437, %v437
      %v449 = vpack.c.bf16 %v439, %v438
      %v450 = vpack.c.bf16 %v441, %v440
      %v452 = vlaneseq
      %v453 = vshrl.u32 %v452, 7
      %v454 = vsub.s32 0, %v453
      %v455 = vrot.slane %v442, %v454
      %vm457 = vcmask 261120
      %v459 = vsel %vm457, %v448, 0
      %461 = vmatprep.subr.bf16.mxu0 0
      %462 = vmatpush1.bf16.msra.mxu0 0
      %463 = vmatprep.subr.bf16.mxu0 0
      %464 = vmatpush1.bf16.msra.mxu0 0
      %465 = vmatprep.subr.bf16.mxu0 0
      %466 = vmatpush1.bf16.msra.mxu0 0
      %467 = vmatprep.subr.bf16.mxu0 0
      %468 = vmatpush1.bf16.msra.mxu0 0
      %469 = vmatprep.subr.bf16.mxu0 0
      %470 = vmatpush1.bf16.msra.mxu0 0
      %471 = vmatprep.subr.bf16.mxu0 0
      %472 = vmatpush1.bf16.msra.mxu0 0
      %473 = vmatprep.subr.bf16.mxu0 0
      %474 = vmatpush1.bf16.msra.mxu0 %v450
      %475 = vmatprep.subr.bf16.mxu0 0
      %476 = vmatpush1.bf16.msra.mxu0 %v449
      %477 = vmatprep.subr.bf16.mxu0 0
      %478 = vmatpush2.bf16.msra.mxu0 0
      %479 = vmatprep.subr.bf16.mxu0 0
      %480 = vmatpush2.bf16.msra.mxu0 0
      %481 = vmatprep.subr.bf16.mxu0 0
      %482 = vmatpush2.bf16.msra.mxu0 0
      %483 = vmatprep.subr.bf16.mxu0 0
      %484 = vmatpush2.bf16.msra.mxu0 0
      %485 = vmatprep.subr.bf16.mxu0 0
      %486 = vmatpush2.bf16.msra.mxu0 0
      %487 = vmatprep.subr.bf16.mxu0 0
      %488 = vmatpush2.bf16.msra.mxu0 0
      %489 = vmatprep.subr.bf16.mxu0 0
      %490 = vmatpush2.bf16.msra.mxu0 0
      %491 = vmatprep.subr.bf16.mxu0 0
      %492 = vmatpush2.bf16.msra.mxu0 0
      %493 = vmatprep.mubr.bf16.mxu0 0
      %494 = vmatmul.mubr.bf16.gmra.mxu0 %v459
      %v495 = vpop.f32.mrf.mxu0
      %v496 = vadd.f32 %v455, %v495
      %v497 = vpop.f32.mrf.mxu0
      %v498 = vpop.f32.mrf.mxu0
      %v499 = vpop.f32.mrf.mxu0
      %500 = vdwg.mxu0
      %v501 = vpack.c.bf16 %v496, %v496
      %503 = vrot.lane.b32.xlu0 %v501, 96
      %v504 = vpop.permute.xlu0 %503
      %vm505 = vcmask 64512
      %v507 = vsel %vm505, %v501, 0
      %v510 = vsel %vm505, %v504, 0
      %512 = vmatprep.subr.bf16.mxu0 0
      %513 = vmatpush1.bf16.xpose.msra.mxu0 0
      %514 = vmatprep.subr.bf16.mxu0 0
      %515 = vmatpush1.bf16.xpose.msra.mxu0 0
      %516 = vmatprep.subr.bf16.mxu0 0
      %517 = vmatpush1.bf16.xpose.msra.mxu0 0
      %518 = vmatprep.subr.bf16.mxu0 0
      %519 = vmatpush1.bf16.xpose.msra.mxu0 0
      %520 = vmatprep.subr.bf16.mxu0 0
      %521 = vmatpush1.bf16.xpose.msra.mxu0 0
      %522 = vmatprep.subr.bf16.mxu0 0
      %523 = vmatpush1.bf16.xpose.msra.mxu0 0
      %524 = vmatprep.subr.bf16.mxu0 0
      %525 = vmatpush1.bf16.xpose.msra.mxu0 0
      %526 = vmatprep.subr.bf16.mxu0 0
      %527 = vmatpush1.bf16.xpose.msra.mxu0 %v510
      %528 = vmatprep.subr.bf16.mxu0 0
      %529 = vmatpush2.bf16.xpose.msra.mxu0 0
      %530 = vmatprep.subr.bf16.mxu0 0
      %531 = vmatpush2.bf16.xpose.msra.mxu0 0
      %532 = vmatprep.subr.bf16.mxu0 0
      %533 = vmatpush2.bf16.xpose.msra.mxu0 0
      %534 = vmatprep.subr.bf16.mxu0 0
      %535 = vmatpush2.bf16.xpose.msra.mxu0 0
      %536 = vmatprep.subr.bf16.mxu0 0
      %537 = vmatpush2.bf16.xpose.msra.mxu0 0
      %538 = vmatprep.subr.bf16.mxu0 0
      %539 = vmatpush2.bf16.xpose.msra.mxu0 0
      %540 = vmatprep.subr.bf16.mxu0 0
      %541 = vmatpush2.bf16.xpose.msra.mxu0 0
      %542 = vmatprep.subr.bf16.mxu0 0
      %543 = vmatpush2.bf16.xpose.msra.mxu0 0
      %544 = vmatprep.mubr.bf16.mxu0 0
      %545 = vmatmul.mubr.bf16.gmra.mxu0 %v507
      %v546 = vpop.f32.mrf.mxu0
      %v547 = vadd.f32 0.0, %v546
      %v548 = vpop.f32.mrf.mxu0
      %v549 = vpop.f32.mrf.mxu0
      %v550 = vpop.f32.mrf.mxu0
      %551 = vdwg.mxu0
      %v552 = vmul.f32 %v547, 0.35355338
      %vm553 = vcmask 55296
      %v554 = vsel %vm553, %v552, -inf
      %555 = vmax.xlane.f32.xlu0 %v554
      %v556 = vpop.xlane.xlu0 %555
      %v557 = vsub.f32 %v552, %v556
      %v558 = vmul.f32 %v557, 1.442695
      %v559 = vpow.pop %v558
      %v560 = vsel %vm553, %v559, 0.0
      %561 = vadd.xlane.f32.xlu0 %v560
      %v562 = vpop.xlane.xlu0 %561
      %v563 = vrcp.pop %v562
      %v564 = vmul.f32 %v559, %v563
      %v565 = vpack.c.bf16 %v564, %v564
      %566 = vrot.lane.b32.xlu0 %v501, 64
      %v567 = vpop.permute.xlu0 %566
      %vm568 = vcmask 56320
      %v570 = vsel %vm568, %v565, 0
      %vm572 = vcmask 1042432
      %vm573 = vcmask 1043456
      %v574 = vsel %vm572, 4294967295, 65535
      %v575 = vsel %vm573, %v574, 0
      %v577 = vand.u32 %v567, %v575
      %579 = vmatprep.subr.bf16.mxu0 0
      %580 = vmatpush1.bf16.msra.mxu0 0
      %581 = vmatprep.subr.bf16.mxu0 0
      %582 = vmatpush1.bf16.msra.mxu0 0
      %583 = vmatprep.subr.bf16.mxu0 0
      %584 = vmatpush1.bf16.msra.mxu0 0
      %585 = vmatprep.subr.bf16.mxu0 0
      %586 = vmatpush1.bf16.msra.mxu0 0
      %587 = vmatprep.subr.bf16.mxu0 0
      %588 = vmatpush1.bf16.msra.mxu0 0
      %589 = vmatprep.subr.bf16.mxu0 0
      %590 = vmatpush1.bf16.msra.mxu0 0
      %591 = vmatprep.subr.bf16.mxu0 0
      %592 = vmatpush1.bf16.msra.mxu0 0
      %593 = vmatprep.subr.bf16.mxu0 0
      %594 = vmatpush1.bf16.msra.mxu0 %v577
      %595 = vmatprep.subr.bf16.mxu0 0
      %596 = vmatpush2.bf16.msra.mxu0 0
      %597 = vmatprep.subr.bf16.mxu0 0
      %598 = vmatpush2.bf16.msra.mxu0 0
      %599 = vmatprep.subr.bf16.mxu0 0
      %600 = vmatpush2.bf16.msra.mxu0 0
      %601 = vmatprep.subr.bf16.mxu0 0
      %602 = vmatpush2.bf16.msra.mxu0 0
      %603 = vmatprep.subr.bf16.mxu0 0
      %604 = vmatpush2.bf16.msra.mxu0 0
      %605 = vmatprep.subr.bf16.mxu0 0
      %606 = vmatpush2.bf16.msra.mxu0 0
      %607 = vmatprep.subr.bf16.mxu0 0
      %608 = vmatpush2.bf16.msra.mxu0 0
      %609 = vmatprep.subr.bf16.mxu0 0
      %610 = vmatpush2.bf16.msra.mxu0 0
      %611 = vmatprep.mubr.bf16.mxu0 0
      %612 = vmatmul.mubr.bf16.gmra.mxu0 %v570
      %v613 = vpop.f32.mrf.mxu0
      %v614 = vadd.f32 0.0, %v613
      %v615 = vpop.f32.mrf.mxu0
      %v616 = vpop.f32.mrf.mxu0
      %v617 = vpop.f32.mrf.mxu0
      %618 = vdwg.mxu0
      %v619 = vpack.c.bf16 %v614, %v614
      %v620 = vpack.c.bf16 %v443, %v443
      %621 = vrot.lane.b32.xlu0 %v501, 120
      %v622 = vpop.permute.xlu0 %621
      %623 = vrot.lane.b32.xlu0 %v501, 88
      %v624 = vpop.permute.xlu0 %623
      %v626 = vsel %vm505, %v622, 0
      %v629 = vsel %vm505, %v624, 0
      %631 = vmatprep.subr.bf16.mxu0 0
      %632 = vmatpush1.bf16.xpose.msra.mxu0 0
      %633 = vmatprep.subr.bf16.mxu0 0
      %634 = vmatpush1.bf16.xpose.msra.mxu0 0
      %635 = vmatprep.subr.bf16.mxu0 0
      %636 = vmatpush1.bf16.xpose.msra.mxu0 0
      %637 = vmatprep.subr.bf16.mxu0 0
      %638 = vmatpush1.bf16.xpose.msra.mxu0 0
      %639 = vmatprep.subr.bf16.mxu0 0
      %640 = vmatpush1.bf16.xpose.msra.mxu0 0
      %641 = vmatprep.subr.bf16.mxu0 0
      %642 = vmatpush1.bf16.xpose.msra.mxu0 0
      %643 = vmatprep.subr.bf16.mxu0 0
      %644 = vmatpush1.bf16.xpose.msra.mxu0 0
      %645 = vmatprep.subr.bf16.mxu0 0
      %646 = vmatpush1.bf16.xpose.msra.mxu0 %v629
      %647 = vmatprep.subr.bf16.mxu0 0
      %648 = vmatpush2.bf16.xpose.msra.mxu0 0
      %649 = vmatprep.subr.bf16.mxu0 0
      %650 = vmatpush2.bf16.xpose.msra.mxu0 0
      %651 = vmatprep.subr.bf16.mxu0 0
      %652 = vmatpush2.bf16.xpose.msra.mxu0 0
      %653 = vmatprep.subr.bf16.mxu0 0
      %654 = vmatpush2.bf16.xpose.msra.mxu0 0
      %655 = vmatprep.subr.bf16.mxu0 0
      %656 = vmatpush2.bf16.xpose.msra.mxu0 0
      %657 = vmatprep.subr.bf16.mxu0 0
      %658 = vmatpush2.bf16.xpose.msra.mxu0 0
      %659 = vmatprep.subr.bf16.mxu0 0
      %660 = vmatpush2.bf16.xpose.msra.mxu0 0
      %661 = vmatprep.subr.bf16.mxu0 0
      %662 = vmatpush2.bf16.xpose.msra.mxu0 0
      %663 = vmatprep.mubr.bf16.mxu0 0
      %664 = vmatmul.mubr.bf16.gmra.mxu0 %v626
      %v665 = vpop.f32.mrf.mxu0
      %v666 = vadd.f32 0.0, %v665
      %v667 = vpop.f32.mrf.mxu0
      %v668 = vpop.f32.mrf.mxu0
      %v669 = vpop.f32.mrf.mxu0
      %670 = vdwg.mxu0
      %v671 = vmul.f32 %v666, 0.35355338
      %v672 = vsel %vm553, %v671, -inf
      %673 = vmax.xlane.f32.xlu0 %v672
      %v674 = vpop.xlane.xlu0 %673
      %v675 = vsub.f32 %v671, %v674
      %v676 = vmul.f32 %v675, 1.442695
      %v677 = vpow.pop %v676
      %v678 = vsel %vm553, %v677, 0.0
      %679 = vadd.xlane.f32.xlu0 %v678
      %v680 = vpop.xlane.xlu0 %679
      %v681 = vrcp.pop %v680
      %v682 = vmul.f32 %v677, %v681
      %v683 = vpack.c.bf16 %v682, %v682
      %684 = vrot.lane.b32.xlu0 %v501, 56
      %v685 = vpop.permute.xlu0 %684
      %v687 = vsel %vm568, %v683, 0
      %v690 = vand.u32 %v685, %v575
      %692 = vmatprep.subr.bf16.mxu0 0
      %693 = vmatpush1.bf16.msra.mxu0 0
      %694 = vmatprep.subr.bf16.mxu0 0
      %695 = vmatpush1.bf16.msra.mxu0 0
      %696 = vmatprep.subr.bf16.mxu0 0
      %697 = vmatpush1.bf16.msra.mxu0 0
      %698 = vmatprep.subr.bf16.mxu0 0
      %699 = vmatpush1.bf16.msra.mxu0 0
      %700 = vmatprep.subr.bf16.mxu0 0
      %701 = vmatpush1.bf16.msra.mxu0 0
      %702 = vmatprep.subr.bf16.mxu0 0
      %703 = vmatpush1.bf16.msra.mxu0 0
      %704 = vmatprep.subr.bf16.mxu0 0
      %705 = vmatpush1.bf16.msra.mxu0 0
      %706 = vmatprep.subr.bf16.mxu0 0
      %707 = vmatpush1.bf16.msra.mxu0 %v690
      %708 = vmatprep.subr.bf16.mxu0 0
      %709 = vmatpush2.bf16.msra.mxu0 0
      %710 = vmatprep.subr.bf16.mxu0 0
      %711 = vmatpush2.bf16.msra.mxu0 0
      %712 = vmatprep.subr.bf16.mxu0 0
      %713 = vmatpush2.bf16.msra.mxu0 0
      %714 = vmatprep.subr.bf16.mxu0 0
      %715 = vmatpush2.bf16.msra.mxu0 0
      %716 = vmatprep.subr.bf16.mxu0 0
      %717 = vmatpush2.bf16.msra.mxu0 0
      %718 = vmatprep.subr.bf16.mxu0 0
      %719 = vmatpush2.bf16.msra.mxu0 0
      %720 = vmatprep.subr.bf16.mxu0 0
      %721 = vmatpush2.bf16.msra.mxu0 0
      %722 = vmatprep.subr.bf16.mxu0 0
      %723 = vmatpush2.bf16.msra.mxu0 0
      %724 = vmatprep.mubr.bf16.mxu0 0
      %725 = vmatmul.mubr.bf16.gmra.mxu0 %v687
      %v726 = vpop.f32.mrf.mxu0
      %v727 = vadd.f32 0.0, %v726
      %v728 = vpop.f32.mrf.mxu0
      %v729 = vpop.f32.mrf.mxu0
      %v730 = vpop.f32.mrf.mxu0
      %731 = vdwg.mxu0
      %v732 = vpack.c.bf16 %v727, %v727
      %v733 = vpack.c.bf16 %v444, %v444
      %v735 = vsel %vm505, %v732, 0
      %v738 = vsel %vm573, %v733, 0
      %740 = vmatprep.subr.bf16.mxu0 0
      %741 = vmatpush1.bf16.msra.mxu0 0
      %742 = vmatprep.subr.bf16.mxu0 0
      %743 = vmatpush1.bf16.msra.mxu0 0
      %744 = vmatprep.subr.bf16.mxu0 0
      %745 = vmatpush1.bf16.msra.mxu0 0
      %746 = vmatprep.subr.bf16.mxu0 0
      %747 = vmatpush1.bf16.msra.mxu0 0
      %748 = vmatprep.subr.bf16.mxu0 0
      %749 = vmatpush1.bf16.msra.mxu0 0
      %750 = vmatprep.subr.bf16.mxu0 0
      %751 = vmatpush1.bf16.msra.mxu0 0
      %752 = vmatprep.subr.bf16.mxu0 0
      %753 = vmatpush1.bf16.msra.mxu0 0
      %754 = vmatprep.subr.bf16.mxu0 0
      %755 = vmatpush1.bf16.msra.mxu0 %v738
      %756 = vmatprep.subr.bf16.mxu0 0
      %757 = vmatpush2.bf16.msra.mxu0 0
      %758 = vmatprep.subr.bf16.mxu0 0
      %759 = vmatpush2.bf16.msra.mxu0 0
      %760 = vmatprep.subr.bf16.mxu0 0
      %761 = vmatpush2.bf16.msra.mxu0 0
      %762 = vmatprep.subr.bf16.mxu0 0
      %763 = vmatpush2.bf16.msra.mxu0 0
      %764 = vmatprep.subr.bf16.mxu0 0
      %765 = vmatpush2.bf16.msra.mxu0 0
      %766 = vmatprep.subr.bf16.mxu0 0
      %767 = vmatpush2.bf16.msra.mxu0 0
      %768 = vmatprep.subr.bf16.mxu0 0
      %769 = vmatpush2.bf16.msra.mxu0 0
      %770 = vmatprep.subr.bf16.mxu0 0
      %771 = vmatpush2.bf16.msra.mxu0 0
      %772 = vmatprep.mubr.bf16.mxu0 0
      %773 = vmatmul.mubr.bf16.gmra.mxu0 %v735
      %v774 = vpop.f32.mrf.mxu0
      %v775 = vadd.f32 0.0, %v774
      %v776 = vpop.f32.mrf.mxu0
      %v777 = vpop.f32.mrf.mxu0
      %v778 = vpop.f32.mrf.mxu0
      %779 = vdwg.mxu0
      %v781 = vsel %vm505, %v619, 0
      %v784 = vsel %vm573, %v620, 0
      %786 = vmatprep.subr.bf16.mxu0 0
      %787 = vmatpush1.bf16.msra.mxu0 0
      %788 = vmatprep.subr.bf16.mxu0 0
      %789 = vmatpush1.bf16.msra.mxu0 0
      %790 = vmatprep.subr.bf16.mxu0 0
      %791 = vmatpush1.bf16.msra.mxu0 0
      %792 = vmatprep.subr.bf16.mxu0 0
      %793 = vmatpush1.bf16.msra.mxu0 0
      %794 = vmatprep.subr.bf16.mxu0 0
      %795 = vmatpush1.bf16.msra.mxu0 0
      %796 = vmatprep.subr.bf16.mxu0 0
      %797 = vmatpush1.bf16.msra.mxu0 0
      %798 = vmatprep.subr.bf16.mxu0 0
      %799 = vmatpush1.bf16.msra.mxu0 0
      %800 = vmatprep.subr.bf16.mxu0 0
      %801 = vmatpush1.bf16.msra.mxu0 %v784
      %802 = vmatprep.subr.bf16.mxu0 0
      %803 = vmatpush2.bf16.msra.mxu0 0
      %804 = vmatprep.subr.bf16.mxu0 0
      %805 = vmatpush2.bf16.msra.mxu0 0
      %806 = vmatprep.subr.bf16.mxu0 0
      %807 = vmatpush2.bf16.msra.mxu0 0
      %808 = vmatprep.subr.bf16.mxu0 0
      %809 = vmatpush2.bf16.msra.mxu0 0
      %810 = vmatprep.subr.bf16.mxu0 0
      %811 = vmatpush2.bf16.msra.mxu0 0
      %812 = vmatprep.subr.bf16.mxu0 0
      %813 = vmatpush2.bf16.msra.mxu0 0
      %814 = vmatprep.subr.bf16.mxu0 0
      %815 = vmatpush2.bf16.msra.mxu0 0
      %816 = vmatprep.subr.bf16.mxu0 0
      %817 = vmatpush2.bf16.msra.mxu0 0
      %818 = vmatprep.mubr.bf16.mxu0 0
      %819 = vmatmul.mubr.bf16.gmra.mxu0 %v781
      %v820 = vpop.f32.mrf.mxu0
      %v821 = vadd.f32 %v775, %v820
      %v822 = vpop.f32.mrf.mxu0
      %v823 = vpop.f32.mrf.mxu0
      %v824 = vpop.f32.mrf.mxu0
      %825 = vdwg.mxu0
      %826 = vrot.lane.b32.xlu0 %v501, 112
      %v827 = vpop.permute.xlu0 %826
      %828 = vrot.lane.b32.xlu0 %v501, 80
      %v829 = vpop.permute.xlu0 %828
      %v831 = vsel %vm505, %v827, 0
      %v834 = vsel %vm505, %v829, 0
      %836 = vmatprep.subr.bf16.mxu0 0
      %837 = vmatpush1.bf16.xpose.msra.mxu0 0
      %838 = vmatprep.subr.bf16.mxu0 0
      %839 = vmatpush1.bf16.xpose.msra.mxu0 0
      %840 = vmatprep.subr.bf16.mxu0 0
      %841 = vmatpush1.bf16.xpose.msra.mxu0 0
      %842 = vmatprep.subr.bf16.mxu0 0
      %843 = vmatpush1.bf16.xpose.msra.mxu0 0
      %844 = vmatprep.subr.bf16.mxu0 0
      %845 = vmatpush1.bf16.xpose.msra.mxu0 0
      %846 = vmatprep.subr.bf16.mxu0 0
      %847 = vmatpush1.bf16.xpose.msra.mxu0 0
      %848 = vmatprep.subr.bf16.mxu0 0
      %849 = vmatpush1.bf16.xpose.msra.mxu0 0
      %850 = vmatprep.subr.bf16.mxu0 0
      %851 = vmatpush1.bf16.xpose.msra.mxu0 %v834
      %852 = vmatprep.subr.bf16.mxu0 0
      %853 = vmatpush2.bf16.xpose.msra.mxu0 0
      %854 = vmatprep.subr.bf16.mxu0 0
      %855 = vmatpush2.bf16.xpose.msra.mxu0 0
      %856 = vmatprep.subr.bf16.mxu0 0
      %857 = vmatpush2.bf16.xpose.msra.mxu0 0
      %858 = vmatprep.subr.bf16.mxu0 0
      %859 = vmatpush2.bf16.xpose.msra.mxu0 0
      %860 = vmatprep.subr.bf16.mxu0 0
      %861 = vmatpush2.bf16.xpose.msra.mxu0 0
      %862 = vmatprep.subr.bf16.mxu0 0
      %863 = vmatpush2.bf16.xpose.msra.mxu0 0
      %864 = vmatprep.subr.bf16.mxu0 0
      %865 = vmatpush2.bf16.xpose.msra.mxu0 0
      %866 = vmatprep.subr.bf16.mxu0 0
      %867 = vmatpush2.bf16.xpose.msra.mxu0 0
      %868 = vmatprep.mubr.bf16.mxu0 0
      %869 = vmatmul.mubr.bf16.gmra.mxu0 %v831
      %v870 = vpop.f32.mrf.mxu0
      %v871 = vadd.f32 0.0, %v870
      %v872 = vpop.f32.mrf.mxu0
      %v873 = vpop.f32.mrf.mxu0
      %v874 = vpop.f32.mrf.mxu0
      %875 = vdwg.mxu0
      %v876 = vmul.f32 %v871, 0.35355338
      %v877 = vsel %vm553, %v876, -inf
      %878 = vmax.xlane.f32.xlu0 %v877
      %v879 = vpop.xlane.xlu0 %878
      %v880 = vsub.f32 %v876, %v879
      %v881 = vmul.f32 %v880, 1.442695
      %v882 = vpow.pop %v881
      %v883 = vsel %vm553, %v882, 0.0
      %884 = vadd.xlane.f32.xlu0 %v883
      %v885 = vpop.xlane.xlu0 %884
      %v886 = vrcp.pop %v885
      %v887 = vmul.f32 %v882, %v886
      %v888 = vpack.c.bf16 %v887, %v887
      %889 = vrot.lane.b32.xlu0 %v501, 48
      %v890 = vpop.permute.xlu0 %889
      %v892 = vsel %vm568, %v888, 0
      %v895 = vand.u32 %v890, %v575
      %897 = vmatprep.subr.bf16.mxu0 0
      %898 = vmatpush1.bf16.msra.mxu0 0
      %899 = vmatprep.subr.bf16.mxu0 0
      %900 = vmatpush1.bf16.msra.mxu0 0
      %901 = vmatprep.subr.bf16.mxu0 0
      %902 = vmatpush1.bf16.msra.mxu0 0
      %903 = vmatprep.subr.bf16.mxu0 0
      %904 = vmatpush1.bf16.msra.mxu0 0
      %905 = vmatprep.subr.bf16.mxu0 0
      %906 = vmatpush1.bf16.msra.mxu0 0
      %907 = vmatprep.subr.bf16.mxu0 0
      %908 = vmatpush1.bf16.msra.mxu0 0
      %909 = vmatprep.subr.bf16.mxu0 0
      %910 = vmatpush1.bf16.msra.mxu0 0
      %911 = vmatprep.subr.bf16.mxu0 0
      %912 = vmatpush1.bf16.msra.mxu0 %v895
      %913 = vmatprep.subr.bf16.mxu0 0
      %914 = vmatpush2.bf16.msra.mxu0 0
      %915 = vmatprep.subr.bf16.mxu0 0
      %916 = vmatpush2.bf16.msra.mxu0 0
      %917 = vmatprep.subr.bf16.mxu0 0
      %918 = vmatpush2.bf16.msra.mxu0 0
      %919 = vmatprep.subr.bf16.mxu0 0
      %920 = vmatpush2.bf16.msra.mxu0 0
      %921 = vmatprep.subr.bf16.mxu0 0
      %922 = vmatpush2.bf16.msra.mxu0 0
      %923 = vmatprep.subr.bf16.mxu0 0
      %924 = vmatpush2.bf16.msra.mxu0 0
      %925 = vmatprep.subr.bf16.mxu0 0
      %926 = vmatpush2.bf16.msra.mxu0 0
      %927 = vmatprep.subr.bf16.mxu0 0
      %928 = vmatpush2.bf16.msra.mxu0 0
      %929 = vmatprep.mubr.bf16.mxu0 0
      %930 = vmatmul.mubr.bf16.gmra.mxu0 %v892
      %v931 = vpop.f32.mrf.mxu0
      %v932 = vadd.f32 0.0, %v931
      %v933 = vpop.f32.mrf.mxu0
      %v934 = vpop.f32.mrf.mxu0
      %v935 = vpop.f32.mrf.mxu0
      %936 = vdwg.mxu0
      %v937 = vpack.c.bf16 %v932, %v932
      %v938 = vpack.c.bf16 %v445, %v445
      %v940 = vsel %vm505, %v937, 0
      %v943 = vsel %vm573, %v938, 0
      %945 = vmatprep.subr.bf16.mxu0 0
      %946 = vmatpush1.bf16.msra.mxu0 0
      %947 = vmatprep.subr.bf16.mxu0 0
      %948 = vmatpush1.bf16.msra.mxu0 0
      %949 = vmatprep.subr.bf16.mxu0 0
      %950 = vmatpush1.bf16.msra.mxu0 0
      %951 = vmatprep.subr.bf16.mxu0 0
      %952 = vmatpush1.bf16.msra.mxu0 0
      %953 = vmatprep.subr.bf16.mxu0 0
      %954 = vmatpush1.bf16.msra.mxu0 0
      %955 = vmatprep.subr.bf16.mxu0 0
      %956 = vmatpush1.bf16.msra.mxu0 0
      %957 = vmatprep.subr.bf16.mxu0 0
      %958 = vmatpush1.bf16.msra.mxu0 0
      %959 = vmatprep.subr.bf16.mxu0 0
      %960 = vmatpush1.bf16.msra.mxu0 %v943
      %961 = vmatprep.subr.bf16.mxu0 0
      %962 = vmatpush2.bf16.msra.mxu0 0
      %963 = vmatprep.subr.bf16.mxu0 0
      %964 = vmatpush2.bf16.msra.mxu0 0
      %965 = vmatprep.subr.bf16.mxu0 0
      %966 = vmatpush2.bf16.msra.mxu0 0
      %967 = vmatprep.subr.bf16.mxu0 0
      %968 = vmatpush2.bf16.msra.mxu0 0
      %969 = vmatprep.subr.bf16.mxu0 0
      %970 = vmatpush2.bf16.msra.mxu0 0
      %971 = vmatprep.subr.bf16.mxu0 0
      %972 = vmatpush2.bf16.msra.mxu0 0
      %973 = vmatprep.subr.bf16.mxu0 0
      %974 = vmatpush2.bf16.msra.mxu0 0
      %975 = vmatprep.subr.bf16.mxu0 0
      %976 = vmatpush2.bf16.msra.mxu0 0
      %977 = vmatprep.mubr.bf16.mxu0 0
      %978 = vmatmul.mubr.bf16.gmra.mxu0 %v940
      %v979 = vpop.f32.mrf.mxu0
      %v980 = vadd.f32 0.0, %v979
      %v981 = vpop.f32.mrf.mxu0
      %v982 = vpop.f32.mrf.mxu0
      %v983 = vpop.f32.mrf.mxu0
      %984 = vdwg.mxu0
      %v985 = vadd.f32 %v821, %v980
      %986 = vrot.lane.b32.xlu0 %v501, 104
      %v987 = vpop.permute.xlu0 %986
      %988 = vrot.lane.b32.xlu0 %v501, 72
      %v989 = vpop.permute.xlu0 %988
      %v991 = vsel %vm505, %v987, 0
      %v994 = vsel %vm505, %v989, 0
      %996 = vmatprep.subr.bf16.mxu0 0
      %997 = vmatpush1.bf16.xpose.msra.mxu0 0
      %998 = vmatprep.subr.bf16.mxu0 0
      %999 = vmatpush1.bf16.xpose.msra.mxu0 0
      %1000 = vmatprep.subr.bf16.mxu0 0
      %1001 = vmatpush1.bf16.xpose.msra.mxu0 0
      %1002 = vmatprep.subr.bf16.mxu0 0
      %1003 = vmatpush1.bf16.xpose.msra.mxu0 0
      %1004 = vmatprep.subr.bf16.mxu0 0
      %1005 = vmatpush1.bf16.xpose.msra.mxu0 0
      %1006 = vmatprep.subr.bf16.mxu0 0
      %1007 = vmatpush1.bf16.xpose.msra.mxu0 0
      %1008 = vmatprep.subr.bf16.mxu0 0
      %1009 = vmatpush1.bf16.xpose.msra.mxu0 0
      %1010 = vmatprep.subr.bf16.mxu0 0
      %1011 = vmatpush1.bf16.xpose.msra.mxu0 %v994
      %1012 = vmatprep.subr.bf16.mxu0 0
      %1013 = vmatpush2.bf16.xpose.msra.mxu0 0
      %1014 = vmatprep.subr.bf16.mxu0 0
      %1015 = vmatpush2.bf16.xpose.msra.mxu0 0
      %1016 = vmatprep.subr.bf16.mxu0 0
      %1017 = vmatpush2.bf16.xpose.msra.mxu0 0
      %1018 = vmatprep.subr.bf16.mxu0 0
      %1019 = vmatpush2.bf16.xpose.msra.mxu0 0
      %1020 = vmatprep.subr.bf16.mxu0 0
      %1021 = vmatpush2.bf16.xpose.msra.mxu0 0
      %1022 = vmatprep.subr.bf16.mxu0 0
      %1023 = vmatpush2.bf16.xpose.msra.mxu0 0
      %1024 = vmatprep.subr.bf16.mxu0 0
      %1025 = vmatpush2.bf16.xpose.msra.mxu0 0
      %1026 = vmatprep.subr.bf16.mxu0 0
      %1027 = vmatpush2.bf16.xpose.msra.mxu0 0
      %1028 = vmatprep.mubr.bf16.mxu0 0
      %1029 = vmatmul.mubr.bf16.gmra.mxu0 %v991
      %v1030 = vpop.f32.mrf.mxu0
      %v1031 = vadd.f32 0.0, %v1030
      %v1032 = vpop.f32.mrf.mxu0
      %v1033 = vpop.f32.mrf.mxu0
      %v1034 = vpop.f32.mrf.mxu0
      %1035 = vdwg.mxu0
      %v1036 = vmul.f32 %v1031, 0.35355338
      %v1037 = vsel %vm553, %v1036, -inf
      %1038 = vmax.xlane.f32.xlu0 %v1037
      %v1039 = vpop.xlane.xlu0 %1038
      %v1040 = vsub.f32 %v1036, %v1039
      %v1041 = vmul.f32 %v1040, 1.442695
      %v1042 = vpow.pop %v1041
      %v1043 = vsel %vm553, %v1042, 0.0
      %1044 = vadd.xlane.f32.xlu0 %v1043
      %v1045 = vpop.xlane.xlu0 %1044
      %v1046 = vrcp.pop %v1045
      %v1047 = vmul.f32 %v1042, %v1046
      %v1048 = vpack.c.bf16 %v1047, %v1047
      %1049 = vrot.lane.b32.xlu0 %v501, 40
      %v1050 = vpop.permute.xlu0 %1049
      %v1052 = vsel %vm568, %v1048, 0
      %v1055 = vand.u32 %v1050, %v575
      %1057 = vmatprep.subr.bf16.mxu0 0
      %1058 = vmatpush1.bf16.msra.mxu0 0
      %1059 = vmatprep.subr.bf16.mxu0 0
      %1060 = vmatpush1.bf16.msra.mxu0 0
      %1061 = vmatprep.subr.bf16.mxu0 0
      %1062 = vmatpush1.bf16.msra.mxu0 0
      %1063 = vmatprep.subr.bf16.mxu0 0
      %1064 = vmatpush1.bf16.msra.mxu0 0
      %1065 = vmatprep.subr.bf16.mxu0 0
      %1066 = vmatpush1.bf16.msra.mxu0 0
      %1067 = vmatprep.subr.bf16.mxu0 0
      %1068 = vmatpush1.bf16.msra.mxu0 0
      %1069 = vmatprep.subr.bf16.mxu0 0
      %1070 = vmatpush1.bf16.msra.mxu0 0
      %1071 = vmatprep.subr.bf16.mxu0 0
      %1072 = vmatpush1.bf16.msra.mxu0 %v1055
      %1073 = vmatprep.subr.bf16.mxu0 0
      %1074 = vmatpush2.bf16.msra.mxu0 0
      %1075 = vmatprep.subr.bf16.mxu0 0
      %1076 = vmatpush2.bf16.msra.mxu0 0
      %1077 = vmatprep.subr.bf16.mxu0 0
      %1078 = vmatpush2.bf16.msra.mxu0 0
      %1079 = vmatprep.subr.bf16.mxu0 0
      %1080 = vmatpush2.bf16.msra.mxu0 0
      %1081 = vmatprep.subr.bf16.mxu0 0
      %1082 = vmatpush2.bf16.msra.mxu0 0
      %1083 = vmatprep.subr.bf16.mxu0 0
      %1084 = vmatpush2.bf16.msra.mxu0 0
      %1085 = vmatprep.subr.bf16.mxu0 0
      %1086 = vmatpush2.bf16.msra.mxu0 0
      %1087 = vmatprep.subr.bf16.mxu0 0
      %1088 = vmatpush2.bf16.msra.mxu0 0
      %1089 = vmatprep.mubr.bf16.mxu0 0
      %1090 = vmatmul.mubr.bf16.gmra.mxu0 %v1052
      %v1091 = vpop.f32.mrf.mxu0
      %v1092 = vadd.f32 0.0, %v1091
      %v1093 = vpop.f32.mrf.mxu0
      %v1094 = vpop.f32.mrf.mxu0
      %v1095 = vpop.f32.mrf.mxu0
      %1096 = vdwg.mxu0
      %v1097 = vpack.c.bf16 %v1092, %v1092
      %v1098 = vpack.c.bf16 %v446, %v446
      %v1100 = vsel %vm505, %v1097, 0
      %v1103 = vsel %vm573, %v1098, 0
      %1105 = vmatprep.subr.bf16.mxu0 0
      %1106 = vmatpush1.bf16.msra.mxu0 0
      %1107 = vmatprep.subr.bf16.mxu0 0
      %1108 = vmatpush1.bf16.msra.mxu0 0
      %1109 = vmatprep.subr.bf16.mxu0 0
      %1110 = vmatpush1.bf16.msra.mxu0 0
      %1111 = vmatprep.subr.bf16.mxu0 0
      %1112 = vmatpush1.bf16.msra.mxu0 0
      %1113 = vmatprep.subr.bf16.mxu0 0
      %1114 = vmatpush1.bf16.msra.mxu0 0
      %1115 = vmatprep.subr.bf16.mxu0 0
      %1116 = vmatpush1.bf16.msra.mxu0 0
      %1117 = vmatprep.subr.bf16.mxu0 0
      %1118 = vmatpush1.bf16.msra.mxu0 0
      %1119 = vmatprep.subr.bf16.mxu0 0
      %1120 = vmatpush1.bf16.msra.mxu0 %v1103
      %1121 = vmatprep.subr.bf16.mxu0 0
      %1122 = vmatpush2.bf16.msra.mxu0 0
      %1123 = vmatprep.subr.bf16.mxu0 0
      %1124 = vmatpush2.bf16.msra.mxu0 0
      %1125 = vmatprep.subr.bf16.mxu0 0
      %1126 = vmatpush2.bf16.msra.mxu0 0
      %1127 = vmatprep.subr.bf16.mxu0 0
      %1128 = vmatpush2.bf16.msra.mxu0 0
      %1129 = vmatprep.subr.bf16.mxu0 0
      %1130 = vmatpush2.bf16.msra.mxu0 0
      %1131 = vmatprep.subr.bf16.mxu0 0
      %1132 = vmatpush2.bf16.msra.mxu0 0
      %1133 = vmatprep.subr.bf16.mxu0 0
      %1134 = vmatpush2.bf16.msra.mxu0 0
      %1135 = vmatprep.subr.bf16.mxu0 0
      %1136 = vmatpush2.bf16.msra.mxu0 0
      %1137 = vmatprep.mubr.bf16.mxu0 0
      %1138 = vmatmul.mubr.bf16.gmra.mxu0 %v1100
      %v1139 = vpop.f32.mrf.mxu0
      %v1140 = vadd.f32 0.0, %v1139
      %v1141 = vpop.f32.mrf.mxu0
      %v1142 = vpop.f32.mrf.mxu0
      %v1143 = vpop.f32.mrf.mxu0
      %1144 = vdwg.mxu0
      %v1145 = vadd.f32 %v985, %v1140
      %v1147 = vlaneseq
      %v1148 = vshrl.u32 %v1147, 7
      %v1149 = vsub.s32 0, %v1148
      %v1150 = vrot.slane %v447, %v1149
      %v1152 = vadd.f32 %v1145, %v1150
      %v1153 = vadd.f32 %v437, %v1152
      %v1154 = vld [vmem:[%s5] sm:$0x1]
      %v1155 = vld [vmem:[%s6] sm:$0x1]
      %vm1156 = vcmask 260096
      %v1157 = vsel %vm1156, %v1153, 0.0
      %1158 = vadd.xlane.f32.xlu0 %v1157
      %v1159 = vpop.xlane.xlu0 %1158
      %v1160 = vrcp.pop 32.0
      %v1161 = vmul.f32 %v1159, %v1160
      %v1162 = vsub.f32 %v1153, %v1161
      %v1163 = vmul.f32 %v1162, %v1162
      %v1164 = vsel %vm1156, %v1163, 0.0
      %1165 = vadd.xlane.f32.xlu0 %v1164
      %v1166 = vpop.xlane.xlu0 %1165
      %v1167 = vmul.f32 %v1166, %v1160
      %v1168 = vadd.f32 %v1167, 1e-05
      %v1169 = vrsqrt.pop %v1168
      %v1170 = vmul.f32 %v1162, %v1169
      %v1172 = vlaneseq
      %v1173 = vshrl.u32 %v1172, 7
      %v1174 = vsub.s32 0, %v1173
      %v1175 = vrot.slane %v1154, %v1174
      %v1177 = vmul.f32 %v1170, %v1175
      %v1179 = vlaneseq
      %v1180 = vshrl.u32 %v1179, 7
      %v1181 = vsub.s32 0, %v1180
      %v1182 = vrot.slane %v1155, %v1181
      %v1184 = vadd.f32 %v1177, %v1182
      %v1185 = vld [vmem:[%s7] sm:$0xff]
      %v1186 = vld [vmem:[%s7 + $0x8] sm:$0xff]
      %v1187 = vld [vmem:[%s7 + $0x10] sm:$0xff]
      %v1188 = vld [vmem:[%s7 + $0x18] sm:$0xff]
      %v1189 = vld [vmem:[%s8] sm:$0x1]
      %v1190 = vld [vmem:[%s9] sm:$0xff]
      %v1191 = vld [vmem:[%s9 + $0x8] sm:$0xff]
      %v1192 = vld [vmem:[%s9 + $0x10] sm:$0xff]
      %v1193 = vld [vmem:[%s9 + $0x18] sm:$0xff]
      %v1194 = vld [vmem:[%s9 + $0x20] sm:$0xff]
      %v1195 = vld [vmem:[%s9 + $0x28] sm:$0xff]
      %v1196 = vld [vmem:[%s9 + $0x30] sm:$0xff]
      %v1197 = vld [vmem:[%s9 + $0x38] sm:$0xff]
      %v1198 = vld [vmem:[%s10] sm:$0x1]
      %v1199 = vpack.c.bf16 %v1184, %v1184
      %v1200 = vpack.c.bf16 %v1186, %v1185
      %v1201 = vpack.c.bf16 %v1188, %v1187
      %v1203 = vlaneseq
      %v1204 = vshrl.u32 %v1203, 7
      %v1205 = vsub.s32 0, %v1204
      %v1206 = vrot.slane %v1189, %v1205
      %v1209 = vsel %vm457, %v1199, 0
      %1211 = vmatprep.subr.bf16.mxu0 0
      %1212 = vmatpush1.bf16.msra.mxu0 0
      %1213 = vmatprep.subr.bf16.mxu0 0
      %1214 = vmatpush1.bf16.msra.mxu0 0
      %1215 = vmatprep.subr.bf16.mxu0 0
      %1216 = vmatpush1.bf16.msra.mxu0 0
      %1217 = vmatprep.subr.bf16.mxu0 0
      %1218 = vmatpush1.bf16.msra.mxu0 0
      %1219 = vmatprep.subr.bf16.mxu0 0
      %1220 = vmatpush1.bf16.msra.mxu0 0
      %1221 = vmatprep.subr.bf16.mxu0 0
      %1222 = vmatpush1.bf16.msra.mxu0 0
      %1223 = vmatprep.subr.bf16.mxu0 0
      %1224 = vmatpush1.bf16.msra.mxu0 %v1201
      %1225 = vmatprep.subr.bf16.mxu0 0
      %1226 = vmatpush1.bf16.msra.mxu0 %v1200
      %1227 = vmatprep.subr.bf16.mxu0 0
      %1228 = vmatpush2.bf16.msra.mxu0 0
      %1229 = vmatprep.subr.bf16.mxu0 0
      %1230 = vmatpush2.bf16.msra.mxu0 0
      %1231 = vmatprep.subr.bf16.mxu0 0
      %1232 = vmatpush2.bf16.msra.mxu0 0
      %1233 = vmatprep.subr.bf16.mxu0 0
      %1234 = vmatpush2.bf16.msra.mxu0 0
      %1235 = vmatprep.subr.bf16.mxu0 0
      %1236 = vmatpush2.bf16.msra.mxu0 0
      %1237 = vmatprep.subr.bf16.mxu0 0
      %1238 = vmatpush2.bf16.msra.mxu0 0
      %1239 = vmatprep.subr.bf16.mxu0 0
      %1240 = vmatpush2.bf16.msra.mxu0 0
      %1241 = vmatprep.subr.bf16.mxu0 0
      %1242 = vmatpush2.bf16.msra.mxu0 0
      %1243 = vmatprep.mubr.bf16.mxu0 0
      %1244 = vmatmul.mubr.bf16.gmra.mxu0 %v1209
      %v1245 = vpop.f32.mrf.mxu0
      %v1246 = vadd.f32 %v1206, %v1245
      %v1247 = vpop.f32.mrf.mxu0
      %v1248 = vpop.f32.mrf.mxu0
      %v1249 = vpop.f32.mrf.mxu0
      %1250 = vdwg.mxu0
      %v1251 = vmax.f32 %v1246, 0.0
      %v1252 = vpack.c.bf16 %v1251, %v1251
      %v1253 = vpack.c.bf16 %v1191, %v1190
      %v1254 = vpack.c.bf16 %v1193, %v1192
      %v1255 = vpack.c.bf16 %v1195, %v1194
      %v1256 = vpack.c.bf16 %v1197, %v1196
      %v1258 = vlaneseq
      %v1259 = vshrl.u32 %v1258, 7
      %v1260 = vsub.s32 0, %v1259
      %v1261 = vrot.slane %v1198, %v1260
      %vm1263 = vcmask 523264
      %v1265 = vsel %vm1263, %v1252, 0
      %1267 = vmatprep.subr.bf16.mxu0 0
      %1268 = vmatpush1.bf16.msra.mxu0 0
      %1269 = vmatprep.subr.bf16.mxu0 0
      %1270 = vmatpush1.bf16.msra.mxu0 0
      %1271 = vmatprep.subr.bf16.mxu0 0
      %1272 = vmatpush1.bf16.msra.mxu0 0
      %1273 = vmatprep.subr.bf16.mxu0 0
      %1274 = vmatpush1.bf16.msra.mxu0 0
      %1275 = vmatprep.subr.bf16.mxu0 0
      %1276 = vmatpush1.bf16.msra.mxu0 %v1256
      %1277 = vmatprep.subr.bf16.mxu0 0
      %1278 = vmatpush1.bf16.msra.mxu0 %v1255
      %1279 = vmatprep.subr.bf16.mxu0 0
      %1280 = vmatpush1.bf16.msra.mxu0 %v1254
      %1281 = vmatprep.subr.bf16.mxu0 0
      %1282 = vmatpush1.bf16.msra.mxu0 %v1253
      %1283 = vmatprep.subr.bf16.mxu0 0
      %1284 = vmatpush2.bf16.msra.mxu0 0
      %1285 = vmatprep.subr.bf16.mxu0 0
      %1286 = vmatpush2.bf16.msra.mxu0 0
      %1287 = vmatprep.subr.bf16.mxu0 0
      %1288 = vmatpush2.bf16.msra.mxu0 0
      %1289 = vmatprep.subr.bf16.mxu0 0
      %1290 = vmatpush2.bf16.msra.mxu0 0
      %1291 = vmatprep.subr.bf16.mxu0 0
      %1292 = vmatpush2.bf16.msra.mxu0 0
      %1293 = vmatprep.subr.bf16.mxu0 0
      %1294 = vmatpush2.bf16.msra.mxu0 0
      %1295 = vmatprep.subr.bf16.mxu0 0
      %1296 = vmatpush2.bf16.msra.mxu0 0
      %1297 = vmatprep.subr.bf16.mxu0 0
      %1298 = vmatpush2.bf16.msra.mxu0 0
      %1299 = vmatprep.mubr.bf16.mxu0 0
      %1300 = vmatmul.mubr.bf16.gmra.mxu0 %v1265
      %v1301 = vpop.f32.mrf.mxu0
      %v1302 = vadd.f32 %v1261, %v1301
      %v1303 = vpop.f32.mrf.mxu0
      %v1304 = vpop.f32.mrf.mxu0
      %v1305 = vpop.f32.mrf.mxu0
      %1306 = vdwg.mxu0
      %v1307 = vadd.f32 %v1184, %v1302
      %v1308 = vld [vmem:[%s11] sm:$0x1]
      %v1309 = vld [vmem:[%s12] sm:$0x1]
      %v1310 = vsel %vm1156, %v1307, 0.0
      %1311 = vadd.xlane.f32.xlu0 %v1310
      %v1312 = vpop.xlane.xlu0 %1311
      %v1313 = vmul.f32 %v1312, %v1160
      %v1314 = vsub.f32 %v1307, %v1313
      %v1315 = vmul.f32 %v1314, %v1314
      %v1316 = vsel %vm1156, %v1315, 0.0
      %1317 = vadd.xlane.f32.xlu0 %v1316
      %v1318 = vpop.xlane.xlu0 %1317
      %v1319 = vmul.f32 %v1318, %v1160
      %v1320 = vadd.f32 %v1319, 1e-05
      %v1321 = vrsqrt.pop %v1320
      %v1322 = vmul.f32 %v1314, %v1321
      %v1324 = vlaneseq
      %v1325 = vshrl.u32 %v1324, 7
      %v1326 = vsub.s32 0, %v1325
      %v1327 = vrot.slane %v1308, %v1326
      %v1329 = vmul.f32 %v1322, %v1327
      %v1331 = vlaneseq
      %v1332 = vshrl.u32 %v1331, 7
      %v1333 = vsub.s32 0, %v1332
      %v1334 = vrot.slane %v1309, %v1333
      %v1336 = vadd.f32 %v1329, %v1334
      %1337 = vst.msk [vmem:[%s435] sm:$0x7f] %vm1156, %v1336
      %p1338 = scmp.lt.s32.totalorder %s24, 1
      %s1339 = scalar_select %p1338, %s24, 1
      %s1340 = smul.addr %s1339, 8
      %s1341 = scalar_lea.vmem %s13, %s1340
      // Predicated region
      $region73: #{teddy_forward.16} parent=71 // pred_check
        %p1342 = pneg %p320
      $region74: #{teddy_forward.16} parent=71 // pred_check_branch
        %1344 = sbr.rel (%p1342) target = $region76
      $region75: #{teddy_forward.16} parent=71 // pred_region
        _
      $region76: #{teddy_forward.16} parent=71 // pred_fallthru
        _
    $region72: #{teddy_forward.16} parent=5 // pred_fallthru
      _
    %p1345 = scmp.le.s32.totalorder 2, %s19
    // Predicated region
    $region77: #{teddy_forward.16} parent=5 // pred_check
      %p1346 = pneg %p1345
    $region78: #{teddy_forward.16} parent=5 // pred_check_branch
      %1348 = sbr.rel (%p1346) target = $region80
    $region79: #{teddy_forward.16} parent=5 // pred_region
      %s1349 = ssub.s32 %s19, 2
      // Predicated region
      $region81: #{teddy_forward.16} parent=79 // pred_check
        %p1350 = pneg %p326
      $region82: #{teddy_forward.16} parent=79 // pred_check_branch
        %1352 = sbr.rel (%p1350) target = $region84
      $region83: #{teddy_forward.16} parent=79 // pred_region
        %p1353 = scmp.lt.s32.totalorder %s25, 1
        %s1354 = scalar_select %p1353, %s25, 1
        %s1355 = smul.addr %s1354, 8
        %s1356 = scalar_lea.vmem %s13, %s1355
      $region84: #{teddy_forward.16} parent=79 // pred_fallthru
        _
    $region80: #{teddy_forward.16} parent=5 // pred_fallthru
      _
  $region6: #{teddy_forward.16} parent=0 // loop_footer
    %s23 = sadd.s32 1, %s19
  $region7: #{teddy_forward.16} parent=0 // loop_footer_branch
    %18 = sbr.rel target = $region3
  $region8: #{teddy_forward.16} parent=0 // loop_exit
    _

// kernel: teddy_forward.21
$region0: #{teddy_forward.21}
  #allocation0 [shape = 'u32[]', space=smem, size = 0x4, offset = 0x4, fixed_abs, tag = 'smem constant byte address 0x4 - core index']
  #allocation1 [shape = 'u32[144,128]{1,0:T(1,128)}', space=vmem, size = 0x12000, scoped, tag = 'internal scratch']
  %s0 = inlined_call_operand.vmem [shape: f32[10,32], index: 0, kind: input, shape index: {}]
  %s1 = inlined_call_operand.vmem [shape: f32[1,32], index: 1, kind: input, shape index: {}]
  %s2 = inlined_call_operand.vmem [shape: f32[1,32], index: 2, kind: input, shape index: {}]
  %s3 = inlined_call_operand.vmem [shape: f32[10,32], index: 3, kind: output, shape index: {}]
  %s4 = sld [smem:[#allocation0]]
  $region22: #{teddy_forward.21} parent=0
    _
  %s6 = ssub.s32 1, %s4
  %s7 = scalar_select 0, %s6, %s4
  // Predicated region
  $region2: #{teddy_forward.21} parent=0 // pred_check
    _
  $region3: #{teddy_forward.21} parent=0 // pred_check_branch
    %9 = sbr.rel (0) target = $region5
  $region4: #{teddy_forward.21} parent=0 // pred_region
    _
  $region5: #{teddy_forward.21} parent=0 // pred_fallthru
    _
  // Predicated region
  $region6: #{teddy_forward.21} parent=0 // pred_check
    _
  $region7: #{teddy_forward.21} parent=0 // pred_check_branch
    %11 = sbr.rel (0) target = $region9
  $region8: #{teddy_forward.21} parent=0 // pred_region
    _
  $region9: #{teddy_forward.21} parent=0 // pred_fallthru
    _
  // Predicated region
  $region10: #{teddy_forward.21} parent=0 // pred_check
    _
  $region11: #{teddy_forward.21} parent=0 // pred_check_branch
    %13 = sbr.rel (0) target = $region13
  $region12: #{teddy_forward.21} parent=0 // pred_region
    _
  $region13: #{teddy_forward.21} parent=0 // pred_fallthru
    _
  %v14 = vld [vmem:[%s0] sm:$0xff]
  %v15 = vld [vmem:[%s0 + $0x8] sm:$0x3]
  %v16 = vld [vmem:[%s1] sm:$0x1]
  %v17 = vld [vmem:[%s2] sm:$0x1]
  %vm18 = vcmask 261120
  %v19 = vsel %vm18, %v14, 0.0
  %20 = vadd.xlane.f32.xlu0 %v19
  %v21 = vpop.xlane.xlu0 %20
  %vm22 = vcmask 254976
  %v23 = vsel %vm22, %v15, 0.0
  %24 = vadd.xlane.f32.xlu0 %v23
  %v25 = vpop.xlane.xlu0 %24
  %v26 = vrcp.pop 32.0
  %v27 = vmul.f32 %v21, %v26
  %v28 = vmul.f32 %v25, %v26
  %v29 = vsub.f32 %v14, %v27
  %v30 = vsub.f32 %v15, %v28
  %v31 = vmul.f32 %v29, %v29
  %v32 = vmul.f32 %v30, %v30
  %v33 = vsel %vm18, %v31, 0.0
  %34 = vadd.xlane.f32.xlu0 %v33
  %v35 = vpop.xlane.xlu0 %34
  %v36 = vsel %vm22, %v32, 0.0
  %37 = vadd.xlane.f32.xlu0 %v36
  %v38 = vpop.xlane.xlu0 %37
  %v39 = vmul.f32 %v35, %v26
  %v40 = vmul.f32 %v38, %v26
  %v41 = vadd.f32 %v39, 1e-05
  %v42 = vadd.f32 %v40, 1e-05
  %v43 = vrsqrt.pop %v41
  %v44 = vrsqrt.pop %v42
  %v45 = vmul.f32 %v29, %v43
  %v46 = vmul.f32 %v30, %v44
  %v48 = vlaneseq
  %v49 = vshrl.u32 %v48, 7
  %v50 = vsub.s32 0, %v49
  %v51 = vrot.slane %v16, %v50
  %v53 = vmul.f32 %v45, %v51
  %v54 = vmul.f32 %v46, %v51
  %v56 = vlaneseq
  %v57 = vshrl.u32 %v56, 7
  %v58 = vsub.s32 0, %v57
  %v59 = vrot.slane %v17, %v58
  %v61 = vadd.f32 %v53, %v59
  %v62 = vadd.f32 %v54, %v59
  %63 = vst.msk [vmem:[%s3] sm:$0xff] %vm18, %v61
  %64 = vst.msk [vmem:[%s3 + $0x8] sm:$0x3] %vm22, %v62
  // Predicated region
  $region14: #{teddy_forward.21} parent=0 // pred_check
    _
  $region15: #{teddy_forward.21} parent=0 // pred_check_branch
    %66 = sbr.rel (0) target = $region17
  $region16: #{teddy_forward.21} parent=0 // pred_region
    _
  $region17: #{teddy_forward.21} parent=0 // pred_fallthru
    _
  // Predicated region
  $region18: #{teddy_forward.21} parent=0 // pred_check
    _
  $region19: #{teddy_forward.21} parent=0 // pred_check_branch
    %68 = sbr.rel (0) target = $region21
  $region20: #{teddy_forward.21} parent=0 // pred_region
    _
  $region21: #{teddy_forward.21} parent=0 // pred_fallthru
    _

// kernel: teddy_forward.13
$region0: #{teddy_forward.13}
  #allocation0 [shape = 'u32[]', space=smem, size = 0x4, offset = 0x4, fixed_abs, tag = 'smem constant byte address 0x4 - core index']
  #allocation1 [shape = 'u32[144,128]{1,0:T(1,128)}', space=vmem, size = 0x12000, scoped, tag = 'internal scratch']
  %s0 = inlined_call_operand.vmem [shape: f32[12,16], index: 0, kind: input, shape index: {}]
  %s1 = inlined_call_operand.vmem [shape: f32[16,32], index: 1, kind: input, shape index: {}]
  %s2 = inlined_call_operand.vmem [shape: f32[1,32], index: 2, kind: input, shape index: {}]
  %s3 = inlined_call_operand.vmem [shape: f32[12,32], index: 3, kind: output, shape index: {}]
  %s4 = sld [smem:[#allocation0]]
  $region22: #{teddy_forward.13} parent=0
    _
  %s6 = ssub.s32 1, %s4
  %s7 = scalar_select 0, %s6, %s4
  // Predicated region
  $region2: #{teddy_forward.13} parent=0 // pred_check
    _
  $region3: #{teddy_forward.13} parent=0 // pred_check_branch
    %9 = sbr.rel (0) target = $region5
  $region4: #{teddy_forward.13} parent=0 // pred_region
    _
  $region5: #{teddy_forward.13} parent=0 // pred_fallthru
    _
  // Predicated region
  $region6: #{teddy_forward.13} parent=0 // pred_check
    _
  $region7: #{teddy_forward.13} parent=0 // pred_check_branch
    %11 = sbr.rel (0) target = $region9
  $region8: #{teddy_forward.13} parent=0 // pred_region
    _
  $region9: #{teddy_forward.13} parent=0 // pred_fallthru
    _
  // Predicated region
  $region10: #{teddy_forward.13} parent=0 // pred_check
    _
  $region11: #{teddy_forward.13} parent=0 // pred_check_branch
    %13 = sbr.rel (0) target = $region13
  $region12: #{teddy_forward.13} parent=0 // pred_region
    _
  $region13: #{teddy_forward.13} parent=0 // pred_fallthru
    _
  %v15 = vld [vmem:[%s0] sm:$0xff]
  %v16 = vld [vmem:[%s0 + $0x8] sm:$0xf]
  %v17 = vld [vmem:[%s1] sm:$0xff]
  %v18 = vld [vmem:[%s1 + $0x8] sm:$0xff]
  %v19 = vpack.c.bf16 %v16, %v15
  %v20 = vpack.c.bf16 %v18, %v17
  %v21 = vld [vmem:[%s2] sm:$0x1]
  %v23 = vlaneseq
  %v24 = vshrl.u32 %v23, 7
  %v25 = vsub.s32 0, %v24
  %v26 = vrot.slane %v21, %v25
  %vm28 = vcmask 130048
  %v30 = vsel %vm28, %v19, 0
  %32 = vmatprep.subr.bf16.mxu0 0
  %33 = vmatpush1.bf16.msra.mxu0 0
  %34 = vmatprep.subr.bf16.mxu0 0
  %35 = vmatpush1.bf16.msra.mxu0 0
  %36 = vmatprep.subr.bf16.mxu0 0
  %37 = vmatpush1.bf16.msra.mxu0 0
  %38 = vmatprep.subr.bf16.mxu0 0
  %39 = vmatpush1.bf16.msra.mxu0 0
  %40 = vmatprep.subr.bf16.mxu0 0
  %41 = vmatpush1.bf16.msra.mxu0 0
  %42 = vmatprep.subr.bf16.mxu0 0
  %43 = vmatpush1.bf16.msra.mxu0 0
  %44 = vmatprep.subr.bf16.mxu0 0
  %45 = vmatpush1.bf16.msra.mxu0 0
  %46 = vmatprep.subr.bf16.mxu0 0
  %47 = vmatpush1.bf16.msra.mxu0 %v20
  %48 = vmatprep.subr.bf16.mxu0 0
  %49 = vmatpush2.bf16.msra.mxu0 0
  %50 = vmatprep.subr.bf16.mxu0 0
  %51 = vmatpush2.bf16.msra.mxu0 0
  %52 = vmatprep.subr.bf16.mxu0 0
  %53 = vmatpush2.bf16.msra.mxu0 0
  %54 = vmatprep.subr.bf16.mxu0 0
  %55 = vmatpush2.bf16.msra.mxu0 0
  %56 = vmatprep.subr.bf16.mxu0 0
  %57 = vmatpush2.bf16.msra.mxu0 0
  %58 = vmatprep.subr.bf16.mxu0 0
  %59 = vmatpush2.bf16.msra.mxu0 0
  %60 = vmatprep.subr.bf16.mxu0 0
  %61 = vmatpush2.bf16.msra.mxu0 0
  %62 = vmatprep.subr.bf16.mxu0 0
  %63 = vmatpush2.bf16.msra.mxu0 0
  %64 = vmatprep.mubr.bf16.mxu0 0
  %65 = vmatmul.mubr.bf16.gmra.mxu0 %v30
  %v66 = vpop.f32.mrf.mxu0
  %v67 = vadd.f32 %v26, %v66
  %v68 = vpop.f32.mrf.mxu0
  %v69 = vpop.f32.mrf.mxu0
  %v70 = vadd.f32 %v26, %v69
  %v71 = vpop.f32.mrf.mxu0
  %72 = vdwg.mxu0
  %vm73 = vcmask 261120
  %74 = vst.msk [vmem:[%s3] sm:$0xff] %vm73, %v67
  %vm75 = vcmask 257024
  %76 = vst.msk [vmem:[%s3 + $0x8] sm:$0xf] %vm75, %v70
  // Predicated region
  $region14: #{teddy_forward.13} parent=0 // pred_check
    _
  $region15: #{teddy_forward.13} parent=0 // pred_check_branch
    %78 = sbr.rel (0) target = $region17
  $region16: #{teddy_forward.13} parent=0 // pred_region
    _
  $region17: #{teddy_forward.13} parent=0 // pred_fallthru
    _
  // Predicated region
  $region18: #{teddy_forward.13} parent=0 // pred_check
    _
  $region19: #{teddy_forward.13} parent=0 // pred_check_branch
    %80 = sbr.rel (0) target = $region21
  $region20: #{teddy_forward.13} parent=0 // pred_region
    _
  $region21: #{teddy_forward.13} parent=0 // pred_fallthru
    _

// kernel: teddy_forward.24
$region0: #{teddy_forward.24}
  #allocation0 [shape = 'u32[]', space=smem, size = 0x4, offset = 0x4, fixed_abs, tag = 'smem constant byte address 0x4 - core index']
  #allocation1 [shape = 'u32[144,128]{1,0:T(1,128)}', space=vmem, size = 0x12000, scoped, tag = 'internal scratch']
  %s0 = inlined_call_operand.vmem [shape: f32[12,32], index: 0, kind: input, shape index: {}]
  %s1 = inlined_call_operand.vmem [shape: f32[1,32], index: 1, kind: input, shape index: {}]
  %s2 = inlined_call_operand.vmem [shape: f32[1,32], index: 2, kind: input, shape index: {}]
  %s3 = inlined_call_operand.vmem [shape: f32[12,32], index: 3, kind: output, shape index: {}]
  %s4 = sld [smem:[#allocation0]]
  $region22: #{teddy_forward.24} parent=0
    _
  %s6 = ssub.s32 1, %s4
  %s7 = scalar_select 0, %s6, %s4
  // Predicated region
  $region2: #{teddy_forward.24} parent=0 // pred_check
    _
  $region3: #{teddy_forward.24} parent=0 // pred_check_branch
    %9 = sbr.rel (0) target = $region5
  $region4: #{teddy_forward.24} parent=0 // pred_region
    _
  $region5: #{teddy_forward.24} parent=0 // pred_fallthru
    _
  // Predicated region
  $region6: #{teddy_forward.24} parent=0 // pred_check
    _
  $region7: #{teddy_forward.24} parent=0 // pred_check_branch
    %11 = sbr.rel (0) target = $region9
  $region8: #{teddy_forward.24} parent=0 // pred_region
    _
  $region9: #{teddy_forward.24} parent=0 // pred_fallthru
    _
  // Predicated region
  $region10: #{teddy_forward.24} parent=0 // pred_check
    _
  $region11: #{teddy_forward.24} parent=0 // pred_check_branch
    %13 = sbr.rel (0) target = $region13
  $region12: #{teddy_forward.24} parent=0 // pred_region
    _
  $region13: #{teddy_forward.24} parent=0 // pred_fallthru
    _
  %v14 = vld [vmem:[%s0] sm:$0xff]
  %v15 = vld [vmem:[%s0 + $0x8] sm:$0xf]
  %v16 = vld [vmem:[%s1] sm:$0x1]
  %v17 = vld [vmem:[%s2] sm:$0x1]
  %vm18 = vcmask 261120
  %v19 = vsel %vm18, %v14, 0.0
  %20 = vadd.xlane.f32.xlu0 %v19
  %v21 = vpop.xlane.xlu0 %20
  %vm22 = vcmask 257024
  %v23 = vsel %vm22, %v15, 0.0
  %24 = vadd.xlane.f32.xlu0 %v23
  %v25 = vpop.xlane.xlu0 %24
  %v26 = vrcp.pop 32.0
  %v27 = vmul.f32 %v21, %v26
  %v28 = vmul.f32 %v25, %v26
  %v29 = vsub.f32 %v14, %v27
  %v30 = vsub.f32 %v15, %v28
  %v31 = vmul.f32 %v29, %v29
  %v32 = vmul.f32 %v30, %v30
  %v33 = vsel %vm18, %v31, 0.0
  %34 = vadd.xlane.f32.xlu0 %v33
  %v35 = vpop.xlane.xlu0 %34
  %v36 = vsel %vm22, %v32, 0.0
  %37 = vadd.xlane.f32.xlu0 %v36
  %v38 = vpop.xlane.xlu0 %37
  %v39 = vmul.f32 %v35, %v26
  %v40 = vmul.f32 %v38, %v26
  %v41 = vadd.f32 %v39, 1e-05
  %v42 = vadd.f32 %v40, 1e-05
  %v43 = vrsqrt.pop %v41
  %v44 = vrsqrt.pop %v42
  %v45 = vmul.f32 %v29, %v43
  %v46 = vmul.f32 %v30, %v44
  %v48 = vlaneseq
  %v49 = vshrl.u32 %v48, 7
  %v50 = vsub.s32 0, %v49
  %v51 = vrot.slane %v16, %v50
  %v53 = vmul.f32 %v45, %v51
  %v54 = vmul.f32 %v46, %v51
  %v56 = vlaneseq
  %v57 = vshrl.u32 %v56, 7
  %v58 = vsub.s32 0, %v57
  %v59 = vrot.slane %v17, %v58
  %v61 = vadd.f32 %v53, %v59
  %v62 = vadd.f32 %v54, %v59
  %63 = vst.msk [vmem:[%s3] sm:$0xff] %vm18, %v61
  %64 = vst.msk [vmem:[%s3 + $0x8] sm:$0xf] %vm22, %v62
  // Predicated region
  $region14: #{teddy_forward.24} parent=0 // pred_check
    _
  $region15: #{teddy_forward.24} parent=0 // pred_check_branch
    %66 = sbr.rel (0) target = $region17
  $region16: #{teddy_forward.24} parent=0 // pred_region
    _
  $region17: #{teddy_forward.24} parent=0 // pred_fallthru
    _
  // Predicated region
  $region18: #{teddy_forward.24} parent=0 // pred_check
    _
  $region19: #{teddy_forward.24} parent=0 // pred_check_branch
    %68 = sbr.rel (0) target = $region21
  $region20: #{teddy_forward.24} parent=0 // pred_region
    _
  $region21: #{teddy_forward.24} parent=0 // pred_fallthru
    _

// kernel: teddy_forward.25
$region0: #{teddy_forward.25}
  #allocation0 [shape = 'u32[]', space=smem, size = 0x4, offset = 0x4, fixed_abs, tag = 'smem constant byte address 0x4 - core index']
  #allocation1 [shape = 'u32[144,128]{1,0:T(1,128)}', space=vmem, size = 0x12000, scoped, tag = 'internal scratch']
  %s0 = inlined_call_operand.vmem [shape: f32[24,32], index: 0, kind: input, shape index: {}]
  %s1 = inlined_call_operand.vmem [shape: f32[24,32], index: 1, kind: input, shape index: {}]
  %s2 = inlined_call_operand.vmem [shape: f32[32,16], index: 2, kind: input, shape index: {}]
  %s3 = inlined_call_operand.vmem [shape: f32[1,16], index: 3, kind: input, shape index: {}]
  %s4 = inlined_call_operand.vmem [shape: f32[16,8], index: 4, kind: input, shape index: {}]
  %s5 = inlined_call_operand.vmem [shape: f32[1,8], index: 5, kind: input, shape index: {}]
  %s6 = inlined_call_operand.vmem [shape: f32[8,3], index: 6, kind: input, shape index: {}]
  %s7 = inlined_call_operand.vmem [shape: f32[1,3], index: 7, kind: input, shape index: {}]
  %s8 = inlined_call_operand.vmem [shape: f32[24,3], index: 8, kind: output, shape index: {}]
  %s9 = sld [smem:[#allocation0]]
  $region42: #{teddy_forward.25} parent=0
    _
  %s11 = ssub.s32 1, %s9
  %s12 = scalar_select 0, %s11, %s9
  // Predicated region
  $region2: #{teddy_forward.25} parent=0 // pred_check
    _
  $region3: #{teddy_forward.25} parent=0 // pred_check_branch
    %14 = sbr.rel (0) target = $region5
  $region4: #{teddy_forward.25} parent=0 // pred_region
    _
  $region5: #{teddy_forward.25} parent=0 // pred_fallthru
    _
  // Predicated region
  $region6: #{teddy_forward.25} parent=0 // pred_check
    _
  $region7: #{teddy_forward.25} parent=0 // pred_check_branch
    %16 = sbr.rel (0) target = $region9
  $region8: #{teddy_forward.25} parent=0 // pred_region
    _
  $region9: #{teddy_forward.25} parent=0 // pred_fallthru
    _
  // Predicated region
  $region10: #{teddy_forward.25} parent=0 // pred_check
    _
  $region11: #{teddy_forward.25} parent=0 // pred_check_branch
    %18 = sbr.rel (0) target = $region13
  $region12: #{teddy_forward.25} parent=0 // pred_region
    _
  $region13: #{teddy_forward.25} parent=0 // pred_fallthru
    _
  // Predicated region
  $region14: #{teddy_forward.25} parent=0 // pred_check
    _
  $region15: #{teddy_forward.25} parent=0 // pred_check_branch
    %20 = sbr.rel (0) target = $region17
  $region16: #{teddy_forward.25} parent=0 // pred_region
    _
  $region17: #{teddy_forward.25} parent=0 // pred_fallthru
    _
  // Predicated region
  $region18: #{teddy_forward.25} parent=0 // pred_check
    _
  $region19: #{teddy_forward.25} parent=0 // pred_check_branch
    %22 = sbr.rel (0) target = $region21
  $region20: #{teddy_forward.25} parent=0 // pred_region
    _
  $region21: #{teddy_forward.25} parent=0 // pred_fallthru
    _
  // Predicated region
  $region22: #{teddy_forward.25} parent=0 // pred_check
    _
  $region23: #{teddy_forward.25} parent=0 // pred_check_branch
    %24 = sbr.rel (0) target = $region25
  $region24: #{teddy_forward.25} parent=0 // pred_region
    _
  $region25: #{teddy_forward.25} parent=0 // pred_fallthru
    _
  // Predicated region
  $region26: #{teddy_forward.25} parent=0 // pred_check
    _
  $region27: #{teddy_forward.25} parent=0 // pred_check_branch
    %26 = sbr.rel (0) target = $region29
  $region28: #{teddy_forward.25} parent=0 // pred_region
    _
  $region29: #{teddy_forward.25} parent=0 // pred_fallthru
    _
  // Predicated region
  $region30: #{teddy_forward.25} parent=0 // pred_check
    _
  $region31: #{teddy_forward.25} parent=0 // pred_check_branch
    %28 = sbr.rel (0) target = $region33
  $region32: #{teddy_forward.25} parent=0 // pred_region
    _
  $region33: #{teddy_forward.25} parent=0 // pred_fallthru
    _
  %v30 = vld [vmem:[%s0] sm:$0xff]
  %v31 = vld [vmem:[%s0 + $0x8] sm:$0xff]
  %v32 = vld [vmem:[%s0 + $0x10] sm:$0xff]
  %v33 = vld [vmem:[%s1] sm:$0xff]
  %v34 = vld [vmem:[%s1 + $0x8] sm:$0xff]
  %v35 = vld [vmem:[%s1 + $0x10] sm:$0xff]
  %v36 = vmul.f32 %v33, 0.0
  %v37 = vmul.f32 %v34, 0.0
  %v38 = vmul.f32 %v35, 0.0
  %v39 = vadd.f32 %v30, %v36
  %v40 = vadd.f32 %v31, %v37
  %v41 = vadd.f32 %v32, %v38
  %v42 = vld [vmem:[%s2] sm:$0xff]
  %v43 = vld [vmem:[%s2 + $0x8] sm:$0xff]
  %v44 = vld [vmem:[%s2 + $0x10] sm:$0xff]
  %v45 = vld [vmem:[%s2 + $0x18] sm:$0xff]
  %v46 = vpack.c.bf16 %v40, %v39
  %v47 = vpack.c.bf16 %v41, %v41
  %v48 = vpack.c.bf16 %v43, %v42
  %v49 = vpack.c.bf16 %v45, %v44
  %v50 = vld [vmem:[%s3] sm:$0x1]
  %v52 = vlaneseq
  %v53 = vshrl.u32 %v52, 7
  %v54 = vsub.s32 0, %v53
  %v55 = vrot.slane %v50, %v54
  %vm57 = vcmask 261120
  %v59 = vsel %vm57, %v46, 0
  %v62 = vsel %vm57, %v47, 0
  %64 = vmatprep.subr.bf16.mxu0 0
  %65 = vmatpush1.bf16.msra.mxu0 0
  %66 = vmatprep.subr.bf16.mxu0 0
  %67 = vmatpush1.bf16.msra.mxu0 0
  %68 = vmatprep.subr.bf16.mxu0 0
  %69 = vmatpush1.bf16.msra.mxu0 0
  %70 = vmatprep.subr.bf16.mxu0 0
  %71 = vmatpush1.bf16.msra.mxu0 0
  %72 = vmatprep.subr.bf16.mxu0 0
  %73 = vmatpush1.bf16.msra.mxu0 0
  %74 = vmatprep.subr.bf16.mxu0 0
  %75 = vmatpush1.bf16.msra.mxu0 0
  %76 = vmatprep.subr.bf16.mxu0 0
  %77 = vmatpush1.bf16.msra.mxu0 %v49
  %78 = vmatprep.subr.bf16.mxu0 0
  %79 = vmatpush1.bf16.msra.mxu0 %v48
  %80 = vmatprep.subr.bf16.mxu0 0
  %81 = vmatpush2.bf16.msra.mxu0 0
  %82 = vmatprep.subr.bf16.mxu0 0
  %83 = vmatpush2.bf16.msra.mxu0 0
  %84 = vmatprep.subr.bf16.mxu0 0
  %85 = vmatpush2.bf16.msra.mxu0 0
  %86 = vmatprep.subr.bf16.mxu0 0
  %87 = vmatpush2.bf16.msra.mxu0 0
  %88 = vmatprep.subr.bf16.mxu0 0
  %89 = vmatpush2.bf16.msra.mxu0 0
  %90 = vmatprep.subr.bf16.mxu0 0
  %91 = vmatpush2.bf16.msra.mxu0 0
  %92 = vmatprep.subr.bf16.mxu0 0
  %93 = vmatpush2.bf16.msra.mxu0 0
  %94 = vmatprep.subr.bf16.mxu0 0
  %95 = vmatpush2.bf16.msra.mxu0 0
  %96 = vmatprep.mubr.bf16.mxu0 0
  %97 = vmatmul.mubr.bf16.gmra.mxu0 %v59
  %v98 = vpop.f32.mrf.mxu0
  %v99 = vadd.f32 %v55, %v98
  %v100 = vpop.f32.mrf.mxu0
  %v101 = vpop.f32.mrf.mxu0
  %v102 = vadd.f32 %v55, %v101
  %v103 = vpop.f32.mrf.mxu0
  %104 = vmatprep.mubr.bf16.mxu0 0
  %105 = vmatmul.mubr.bf16.gmra.mxu0 %v62
  %v106 = vpop.f32.mrf.mxu0
  %v107 = vadd.f32 %v55, %v106
  %v108 = vpop.f32.mrf.mxu0
  %v109 = vpop.f32.mrf.mxu0
  %v110 = vpop.f32.mrf.mxu0
  %111 = vdwg.mxu0
  %v112 = vmax.f32 %v99, 0.0
  %v113 = vmax.f32 %v102, 0.0
  %v114 = vmax.f32 %v107, 0.0
  %v115 = vld [vmem:[%s4] sm:$0xff]
  %v116 = vld [vmem:[%s4 + $0x8] sm:$0xff]
  %v117 = vpack.c.bf16 %v113, %v112
  %v118 = vpack.c.bf16 %v114, %v114
  %v119 = vpack.c.bf16 %v116, %v115
  %v120 = vld [vmem:[%s5] sm:$0x1]
  %v122 = vlaneseq
  %v123 = vshrl.u32 %v122, 7
  %v124 = vsub.s32 0, %v123
  %v125 = vrot.slane %v120, %v124
  %vm127 = vcmask 130048
  %v129 = vsel %vm127, %v117, 0
  %v132 = vsel %vm127, %v118, 0
  %134 = vmatprep.subr.bf16.mxu0 0
  %135 = vmatpush1.bf16.msra.mxu0 0
  %136 = vmatprep.subr.bf16.mxu0 0
  %137 = vmatpush1.bf16.msra.mxu0 0
  %138 = vmatprep.subr.bf16.mxu0 0
  %139 = vmatpush1.bf16.msra.mxu0 0
  %140 = vmatprep.subr.bf16.mxu0 0
  %141 = vmatpush1.bf16.msra.mxu0 0
  %142 = vmatprep.subr.bf16.mxu0 0
  %143 = vmatpush1.bf16.msra.mxu0 0
  %144 = vmatprep.subr.bf16.mxu0 0
  %145 = vmatpush1.bf16.msra.mxu0 0
  %146 = vmatprep.subr.bf16.mxu0 0
  %147 = vmatpush1.bf16.msra.mxu0 0
  %148 = vmatprep.subr.bf16.mxu0 0
  %149 = vmatpush1.bf16.msra.mxu0 %v119
  %150 = vmatprep.subr.bf16.mxu0 0
  %151 = vmatpush2.bf16.msra.mxu0 0
  %152 = vmatprep.subr.bf16.mxu0 0
  %153 = vmatpush2.bf16.msra.mxu0 0
  %154 = vmatprep.subr.bf16.mxu0 0
  %155 = vmatpush2.bf16.msra.mxu0 0
  %156 = vmatprep.subr.bf16.mxu0 0
  %157 = vmatpush2.bf16.msra.mxu0 0
  %158 = vmatprep.subr.bf16.mxu0 0
  %159 = vmatpush2.bf16.msra.mxu0 0
  %160 = vmatprep.subr.bf16.mxu0 0
  %161 = vmatpush2.bf16.msra.mxu0 0
  %162 = vmatprep.subr.bf16.mxu0 0
  %163 = vmatpush2.bf16.msra.mxu0 0
  %164 = vmatprep.subr.bf16.mxu0 0
  %165 = vmatpush2.bf16.msra.mxu0 0
  %166 = vmatprep.mubr.bf16.mxu0 0
  %167 = vmatmul.mubr.bf16.gmra.mxu0 %v129
  %v168 = vpop.f32.mrf.mxu0
  %v169 = vadd.f32 %v125, %v168
  %v170 = vpop.f32.mrf.mxu0
  %v171 = vpop.f32.mrf.mxu0
  %v172 = vadd.f32 %v125, %v171
  %v173 = vpop.f32.mrf.mxu0
  %174 = vmatprep.mubr.bf16.mxu0 0
  %175 = vmatmul.mubr.bf16.gmra.mxu0 %v132
  %v176 = vpop.f32.mrf.mxu0
  %v177 = vadd.f32 %v125, %v176
  %v178 = vpop.f32.mrf.mxu0
  %v179 = vpop.f32.mrf.mxu0
  %v180 = vpop.f32.mrf.mxu0
  %181 = vdwg.mxu0
  %v182 = vmax.f32 %v169, 0.0
  %v183 = vmax.f32 %v172, 0.0
  %v184 = vmax.f32 %v177, 0.0
  %v185 = vld [vmem:[%s6] sm:$0xff]
  %v186 = vpack.c.bf16 %v183, %v182
  %v187 = vpack.c.bf16 %v184, %v184
  %v188 = vpack.c.bf16 %v185, %v185
  %v189 = vld [vmem:[%s7] sm:$0x1]
  %v191 = vlaneseq
  %v192 = vshrl.u32 %v191, 7
  %v193 = vsub.s32 0, %v192
  %v194 = vrot.slane %v189, %v193
  %vm196 = vcmask 64512
  %v198 = vsel %vm196, %v186, 0
  %v201 = vsel %vm196, %v187, 0
  %vm203 = vcmask 1043456
  %v205 = vsel %vm203, %v188, 0
  %207 = vmatprep.subr.bf16.mxu0 0
  %208 = vmatpush1.bf16.msra.mxu0 0
  %209 = vmatprep.subr.bf16.mxu0 0
  %210 = vmatpush1.bf16.msra.mxu0 0
  %211 = vmatprep.subr.bf16.mxu0 0
  %212 = vmatpush1.bf16.msra.mxu0 0
  %213 = vmatprep.subr.bf16.mxu0 0
  %214 = vmatpush1.bf16.msra.mxu0 0
  %215 = vmatprep.subr.bf16.mxu0 0
  %216 = vmatpush1.bf16.msra.mxu0 0
  %217 = vmatprep.subr.bf16.mxu0 0
  %218 = vmatpush1.bf16.msra.mxu0 0
  %219 = vmatprep.subr.bf16.mxu0 0
  %220 = vmatpush1.bf16.msra.mxu0 0
  %221 = vmatprep.subr.bf16.mxu0 0
  %222 = vmatpush1.bf16.msra.mxu0 %v205
  %223 = vmatprep.subr.bf16.mxu0 0
  %224 = vmatpush2.bf16.msra.mxu0 0
  %225 = vmatprep.subr.bf16.mxu0 0
  %226 = vmatpush2.bf16.msra.mxu0 0
  %227 = vmatprep.subr.bf16.mxu0 0
  %228 = vmatpush2.bf16.msra.mxu0 0
  %229 = vmatprep.subr.bf16.mxu0 0
  %230 = vmatpush2.bf16.msra.mxu0 0
  %231 = vmatprep.subr.bf16.mxu0 0
  %232 = vmatpush2.bf16.msra.mxu0 0
  %233 = vmatprep.subr.bf16.mxu0 0
  %234 = vmatpush2.bf16.msra.mxu0 0
  %235 = vmatprep.subr.bf16.mxu0 0
  %236 = vmatpush2.bf16.msra.mxu0 0
  %237 = vmatprep.subr.bf16.mxu0 0
  %238 = vmatpush2.bf16.msra.mxu0 0
  %239 = vmatprep.mubr.bf16.mxu0 0
  %240 = vmatmul.mubr.bf16.gmra.mxu0 %v198
  %v241 = vpop.f32.mrf.mxu0
  %v242 = vadd.f32 %v194, %v241
  %v243 = vpop.f32.mrf.mxu0
  %v244 = vpop.f32.mrf.mxu0
  %v245 = vadd.f32 %v194, %v244
  %v246 = vpop.f32.mrf.mxu0
  %247 = vmatprep.mubr.bf16.mxu0 0
  %248 = vmatmul.mubr.bf16.gmra.mxu0 %v201
  %v249 = vpop.f32.mrf.mxu0
  %v250 = vadd.f32 %v194, %v249
  %v251 = vpop.f32.mrf.mxu0
  %v252 = vpop.f32.mrf.mxu0
  %v253 = vpop.f32.mrf.mxu0
  %254 = vdwg.mxu0
  %v255 = vtanh.pop %v242
  %v256 = vtanh.pop %v245
  %v257 = vtanh.pop %v250
  %vm258 = vcmask 23552
  %259 = vst.msk [vmem:[%s8] sm:$0xff] %vm258, %v255
  %260 = vst.msk [vmem:[%s8 + $0x8] sm:$0xff] %vm258, %v256
  %261 = vst.msk [vmem:[%s8 + $0x10] sm:$0xff] %vm258, %v257
  // Predicated region
  $region34: #{teddy_forward.25} parent=0 // pred_check
    _
  $region35: #{teddy_forward.25} parent=0 // pred_check_branch
    %263 = sbr.rel (0) target = $region37
  $region36: #{teddy_forward.25} parent=0 // pred_region
    _
  $region37: #{teddy_forward.25} parent=0 // pred_fallthru
    _
  // Predicated region
  $region38: #{teddy_forward.25} parent=0 // pred_check
    _
  $region39: #{teddy_forward.25} parent=0 // pred_check_branch
    %265 = sbr.rel (0) target = $region41
  $region40: #{teddy_forward.25} parent=0 // pred_region
    _
  $region41: #{teddy_forward.25} parent=0 // pred_fallthru
    _

// kernel: teddy_forward.22
$region0: #{teddy_forward.22}
  #allocation0 [shape = 'u32[]', space=smem, size = 0x4, offset = 0x4, fixed_abs, tag = 'smem constant byte address 0x4 - core index']
  #allocation1 [shape = 'u32[144,128]{1,0:T(1,128)}', space=vmem, size = 0x12000, scoped, tag = 'internal scratch']
  %s0 = inlined_call_operand.vmem [shape: f32[2,6,32], index: 0, kind: input, shape index: {}]
  %s1 = inlined_call_operand.vmem [shape: f32[2,5,32], index: 1, kind: input, shape index: {}]
  %s2 = inlined_call_operand.vmem [shape: f32[32,96], index: 2, kind: input, shape index: {}]
  %s3 = inlined_call_operand.vmem [shape: f32[1,96], index: 3, kind: input, shape index: {}]
  %s4 = inlined_call_operand.vmem [shape: f32[32,32], index: 4, kind: input, shape index: {}]
  %s5 = inlined_call_operand.vmem [shape: f32[1,32], index: 5, kind: input, shape index: {}]
  %s6 = inlined_call_operand.vmem [shape: f32[1,32], index: 6, kind: input, shape index: {}]
  %s7 = inlined_call_operand.vmem [shape: f32[1,32], index: 7, kind: input, shape index: {}]
  %s8 = inlined_call_operand.vmem [shape: f32[32,32], index: 8, kind: input, shape index: {}]
  %s9 = inlined_call_operand.vmem [shape: f32[1,32], index: 9, kind: input, shape index: {}]
  %s10 = inlined_call_operand.vmem [shape: f32[32,64], index: 10, kind: input, shape index: {}]
  %s11 = inlined_call_operand.vmem [shape: f32[1,64], index: 11, kind: input, shape index: {}]
  %s12 = inlined_call_operand.vmem [shape: f32[32,32], index: 12, kind: input, shape index: {}]
  %s13 = inlined_call_operand.vmem [shape: f32[1,32], index: 13, kind: input, shape index: {}]
  %s14 = inlined_call_operand.vmem [shape: f32[1,32], index: 14, kind: input, shape index: {}]
  %s15 = inlined_call_operand.vmem [shape: f32[1,32], index: 15, kind: input, shape index: {}]
  %s16 = inlined_call_operand.vmem [shape: f32[32,64], index: 16, kind: input, shape index: {}]
  %s17 = inlined_call_operand.vmem [shape: f32[1,64], index: 17, kind: input, shape index: {}]
  %s18 = inlined_call_operand.vmem [shape: f32[64,32], index: 18, kind: input, shape index: {}]
  %s19 = inlined_call_operand.vmem [shape: f32[1,32], index: 19, kind: input, shape index: {}]
  %s20 = inlined_call_operand.vmem [shape: f32[1,32], index: 20, kind: input, shape index: {}]
  %s21 = inlined_call_operand.vmem [shape: f32[1,32], index: 21, kind: input, shape index: {}]
  %s22 = inlined_call_operand.vmem [shape: f32[2,6,32], index: 22, kind: output, shape index: {}]
  %s23 = sld [smem:[#allocation0]]
  $region121: #{teddy_forward.22} parent=0
    _
  %s25 = ssub.s32 1, %s23
  %s26 = scalar_select 0, %s25, %s23
  loop: start=0, step=1, limit=4
  $region2: #{teddy_forward.22} parent=0 // loop_pre_header
    _
  $region3: #{teddy_forward.22} parent=0 // loop_header
    %s28 = sphi 0, %s32
    %p29 = scmp.ge.s32.totalorder %s28, 4
    %s38 = sphi 0, %s40
    %s41 = sphi 0, %s38
    %s42 = sphi 0, %s41
    %s58 = sphi 0, %s42
    %s64 = sphi 0, %s66
    %s67 = sphi 0, %s64
    %s68 = sphi 0, %s67
    %s84 = sphi 0, %s68
    %s88 = sphi 0, %s88
    %s90 = sphi 0, %s88
    %s91 = sphi 0, %s90
    %s105 = sphi 0, %s91
    %s109 = sphi 0, %s109
    %s111 = sphi 0, %s109
    %s112 = sphi 0, %s111
    %s126 = sphi 0, %s112
    %s130 = sphi 0, %s130
    %s132 = sphi 0, %s130
    %s133 = sphi 0, %s132
    %s147 = sphi 0, %s133
    %s151 = sphi 0, %s151
    %s153 = sphi 0, %s151
    %s154 = sphi 0, %s153
    %s168 = sphi 0, %s154
    %s172 = sphi 0, %s172
    %s174 = sphi 0, %s172
    %s175 = sphi 0, %s174
    %s189 = sphi 0, %s175
    %s193 = sphi 0, %s193
    %s195 = sphi 0, %s193
    %s196 = sphi 0, %s195
    %s210 = sphi 0, %s196
    %s214 = sphi 0, %s214
    %s216 = sphi 0, %s214
    %s217 = sphi 0, %s216
    %s231 = sphi 0, %s217
    %s235 = sphi 0, %s235
    %s237 = sphi 0, %s235
    %s238 = sphi 0, %s237
    %s252 = sphi 0, %s238
    %s256 = sphi 0, %s256
    %s258 = sphi 0, %s256
    %s259 = sphi 0, %s258
    %s273 = sphi 0, %s259
    %s277 = sphi 0, %s277
    %s279 = sphi 0, %s277
    %s280 = sphi 0, %s279
    %s294 = sphi 0, %s280
    %s298 = sphi 0, %s298
    %s300 = sphi 0, %s298
    %s301 = sphi 0, %s300
    %s315 = sphi 0, %s301
    %s319 = sphi 0, %s319
    %s321 = sphi 0, %s319
    %s322 = sphi 0, %s321
    %s336 = sphi 0, %s322
    %s340 = sphi 0, %s340
    %s342 = sphi 0, %s340
    %s343 = sphi 0, %s342
    %s357 = sphi 0, %s343
    %s361 = sphi 0, %s361
    %s363 = sphi 0, %s361
    %s364 = sphi 0, %s363
    %s378 = sphi 0, %s364
    %s382 = sphi 0, %s382
    %s384 = sphi 0, %s382
    %s385 = sphi 0, %s384
    %s399 = sphi 0, %s385
    %s403 = sphi 0, %s403
    %s405 = sphi 0, %s403
    %s406 = sphi 0, %s405
    %s420 = sphi 0, %s406
    %s424 = sphi 0, %s424
    %s426 = sphi 0, %s424
    %s427 = sphi 0, %s426
    %s441 = sphi 0, %s427
    %s445 = sphi 0, %s445
    %s447 = sphi 0, %s445
    %s448 = sphi 0, %s447
    %s462 = sphi 0, %s448
    %s466 = sphi 0, %s466
    %s468 = sphi 0, %s466
    %s469 = sphi 0, %s468
    %s483 = sphi 0, %s469
    %s487 = sphi 0, %s487
    %s489 = sphi 0, %s487
    %s490 = sphi 0, %s489
    %s504 = sphi 0, %s490
    %s510 = sphi 0, %s512
    %s513 = sphi 0, %s510
    %s514 = sphi 0, %s513
    %s530 = sphi 0, %s514
  $region4: #{teddy_forward.22} parent=0 // loop_header_branch
    %31 = sbr.rel (%p29) target = $region8
  $region5: #{teddy_forward.22} parent=0 // loop_body
    %s33 = ssub.s32 %s28, 1
    %s34 = ssub.s32 %s28, 2
    %s35 = sadd.s32 %s28, 1
    %s36 = ssub.s32 %s28, %s35
    %p37 = scmp.eq.s32.totalorder %s36, 0
    %s39 = sadd.s32 %s38, 1
    %s40 = scalar_select %p37, %s38, %s39
    %p43 = pneg %p37
    %p44 = scmp.eq.s32.totalorder %s28, 1
    %p45 = por %p43, %p44
    %p46 = scmp.ne.s32.totalorder %s38, %s41
    %p47 = scmp.eq.s32.totalorder %s28, 0
    %p48 = por %p46, %p47
    %p49 = scmp.ne.s32.totalorder %s38, %s41
    %p50 = scmp.eq.s32.totalorder %s33, 1
    %p51 = por %p49, %p50
    %p52 = scmp.ne.s32.totalorder %s41, %s42
    %p53 = scmp.eq.s32.totalorder %s33, 0
    %p54 = por %p52, %p53
    %p55 = scmp.ne.s32.totalorder %s41, %s42
    %p56 = scmp.eq.s32.totalorder %s34, 1
    %p57 = por %p55, %p56
    %p59 = scmp.ne.s32.totalorder %s42, %s58
    %p60 = scmp.eq.s32.totalorder %s34, 0
    %p61 = por %p59, %p60
    %s62 = ssub.s32 %s28, %s35
    %p63 = scmp.eq.s32.totalorder %s62, 0
    %s65 = sadd.s32 %s64, 1
    %s66 = scalar_select %p63, %s64, %s65
    %p69 = pneg %p63
    %p70 = scmp.eq.s32.totalorder %s28, 1
    %p71 = por %p69, %p70
    %p72 = scmp.ne.s32.totalorder %s64, %s67
    %p73 = scmp.eq.s32.totalorder %s28, 0
    %p74 = por %p72, %p73
    %p75 = scmp.ne.s32.totalorder %s64, %s67
    %p76 = scmp.eq.s32.totalorder %s33, 1
    %p77 = por %p75, %p76
    %p78 = scmp.ne.s32.totalorder %s67, %s68
    %p79 = scmp.eq.s32.totalorder %s33, 0
    %p80 = por %p78, %p79
    %p81 = scmp.ne.s32.totalorder %s67, %s68
    %p82 = scmp.eq.s32.totalorder %s34, 1
    %p83 = por %p81, %p82
    %p85 = scmp.ne.s32.totalorder %s68, %s84
    %p86 = scmp.eq.s32.totalorder %s34, 0
    %p87 = por %p85, %p86
    %s89 = sadd.s32 %s88, 1
    %p92 = scmp.eq.s32.totalorder %s28, 1
    %p93 = scmp.ne.s32.totalorder %s88, %s90
    %p94 = scmp.eq.s32.totalorder %s28, 0
    %p95 = por %p93, %p94
    %p96 = scmp.ne.s32.totalorder %s88, %s90
    %p97 = scmp.eq.s32.totalorder %s33, 1
    %p98 = por %p96, %p97
    %p99 = scmp.ne.s32.totalorder %s90, %s91
    %p100 = scmp.eq.s32.totalorder %s33, 0
    %p101 = por %p99, %p100
    %p102 = scmp.ne.s32.totalorder %s90, %s91
    %p103 = scmp.eq.s32.totalorder %s34, 1
    %p104 = por %p102, %p103
    %p106 = scmp.ne.s32.totalorder %s91, %s105
    %p107 = scmp.eq.s32.totalorder %s34, 0
    %p108 = por %p106, %p107
    %s110 = sadd.s32 %s109, 1
    %p113 = scmp.eq.s32.totalorder %s28, 1
    %p114 = scmp.ne.s32.totalorder %s109, %s111
    %p115 = scmp.eq.s32.totalorder %s28, 0
    %p116 = por %p114, %p115
    %p117 = scmp.ne.s32.totalorder %s109, %s111
    %p118 = scmp.eq.s32.totalorder %s33, 1
    %p119 = por %p117, %p118
    %p120 = scmp.ne.s32.totalorder %s111, %s112
    %p121 = scmp.eq.s32.totalorder %s33, 0
    %p122 = por %p120, %p121
    %p123 = scmp.ne.s32.totalorder %s111, %s112
    %p124 = scmp.eq.s32.totalorder %s34, 1
    %p125 = por %p123, %p124
    %p127 = scmp.ne.s32.totalorder %s112, %s126
    %p128 = scmp.eq.s32.totalorder %s34, 0
    %p129 = por %p127, %p128
    %s131 = sadd.s32 %s130, 1
    %p134 = scmp.eq.s32.totalorder %s28, 1
    %p135 = scmp.ne.s32.totalorder %s130, %s132
    %p136 = scmp.eq.s32.totalorder %s28, 0
    %p137 = por %p135, %p136
    %p138 = scmp.ne.s32.totalorder %s130, %s132
    %p139 = scmp.eq.s32.totalorder %s33, 1
    %p140 = por %p138, %p139
    %p141 = scmp.ne.s32.totalorder %s132, %s133
    %p142 = scmp.eq.s32.totalorder %s33, 0
    %p143 = por %p141, %p142
    %p144 = scmp.ne.s32.totalorder %s132, %s133
    %p145 = scmp.eq.s32.totalorder %s34, 1
    %p146 = por %p144, %p145
    %p148 = scmp.ne.s32.totalorder %s133, %s147
    %p149 = scmp.eq.s32.totalorder %s34, 0
    %p150 = por %p148, %p149
    %s152 = sadd.s32 %s151, 1
    %p155 = scmp.eq.s32.totalorder %s28, 1
    %p156 = scmp.ne.s32.totalorder %s151, %s153
    %p157 = scmp.eq.s32.totalorder %s28, 0
    %p158 = por %p156, %p157
    %p159 = scmp.ne.s32.totalorder %s151, %s153
    %p160 = scmp.eq.s32.totalorder %s33, 1
    %p161 = por %p159, %p160
    %p162 = scmp.ne.s32.totalorder %s153, %s154
    %p163 = scmp.eq.s32.totalorder %s33, 0
    %p164 = por %p162, %p163
    %p165 = scmp.ne.s32.totalorder %s153, %s154
    %p166 = scmp.eq.s32.totalorder %s34, 1
    %p167 = por %p165, %p166
    %p169 = scmp.ne.s32.totalorder %s154, %s168
    %p170 = scmp.eq.s32.totalorder %s34, 0
    %p171 = por %p169, %p170
    %s173 = sadd.s32 %s172, 1
    %p176 = scmp.eq.s32.totalorder %s28, 1
    %p177 = scmp.ne.s32.totalorder %s172, %s174
    %p178 = scmp.eq.s32.totalorder %s28, 0
    %p179 = por %p177, %p178
    %p180 = scmp.ne.s32.totalorder %s172, %s174
    %p181 = scmp.eq.s32.totalorder %s33, 1
    %p182 = por %p180, %p181
    %p183 = scmp.ne.s32.totalorder %s174, %s175
    %p184 = scmp.eq.s32.totalorder %s33, 0
    %p185 = por %p183, %p184
    %p186 = scmp.ne.s32.totalorder %s174, %s175
    %p187 = scmp.eq.s32.totalorder %s34, 1
    %p188 = por %p186, %p187
    %p190 = scmp.ne.s32.totalorder %s175, %s189
    %p191 = scmp.eq.s32.totalorder %s34, 0
    %p192 = por %p190, %p191
    %s194 = sadd.s32 %s193, 1
    %p197 = scmp.eq.s32.totalorder %s28, 1
    %p198 = scmp.ne.s32.totalorder %s193, %s195
    %p199 = scmp.eq.s32.totalorder %s28, 0
    %p200 = por %p198, %p199
    %p201 = scmp.ne.s32.totalorder %s193, %s195
    %p202 = scmp.eq.s32.totalorder %s33, 1
    %p203 = por %p201, %p202
    %p204 = scmp.ne.s32.totalorder %s195, %s196
    %p205 = scmp.eq.s32.totalorder %s33, 0
    %p206 = por %p204, %p205
    %p207 = scmp.ne.s32.totalorder %s195, %s196
    %p208 = scmp.eq.s32.totalorder %s34, 1
    %p209 = por %p207, %p208
    %p211 = scmp.ne.s32.totalorder %s196, %s210
    %p212 = scmp.eq.s32.totalorder %s34, 0
    %p213 = por %p211, %p212
    %s215 = sadd.s32 %s214, 1
    %p218 = scmp.eq.s32.totalorder %s28, 1
    %p219 = scmp.ne.s32.totalorder %s214, %s216
    %p220 = scmp.eq.s32.totalorder %s28, 0
    %p221 = por %p219, %p220
    %p222 = scmp.ne.s32.totalorder %s214, %s216
    %p223 = scmp.eq.s32.totalorder %s33, 1
    %p224 = por %p222, %p223
    %p225 = scmp.ne.s32.totalorder %s216, %s217
    %p226 = scmp.eq.s32.totalorder %s33, 0
    %p227 = por %p225, %p226
    %p228 = scmp.ne.s32.totalorder %s216, %s217
    %p229 = scmp.eq.s32.totalorder %s34, 1
    %p230 = por %p228, %p229
    %p232 = scmp.ne.s32.totalorder %s217, %s231
    %p233 = scmp.eq.s32.totalorder %s34, 0
    %p234 = por %p232, %p233
    %s236 = sadd.s32 %s235, 1
    %p239 = scmp.eq.s32.totalorder %s28, 1
    %p240 = scmp.ne.s32.totalorder %s235, %s237
    %p241 = scmp.eq.s32.totalorder %s28, 0
    %p242 = por %p240, %p241
    %p243 = scmp.ne.s32.totalorder %s235, %s237
    %p244 = scmp.eq.s32.totalorder %s33, 1
    %p245 = por %p243, %p244
    %p246 = scmp.ne.s32.totalorder %s237, %s238
    %p247 = scmp.eq.s32.totalorder %s33, 0
    %p248 = por %p246, %p247
    %p249 = scmp.ne.s32.totalorder %s237, %s238
    %p250 = scmp.eq.s32.totalorder %s34, 1
    %p251 = por %p249, %p250
    %p253 = scmp.ne.s32.totalorder %s238, %s252
    %p254 = scmp.eq.s32.totalorder %s34, 0
    %p255 = por %p253, %p254
    %s257 = sadd.s32 %s256, 1
    %p260 = scmp.eq.s32.totalorder %s28, 1
    %p261 = scmp.ne.s32.totalorder %s256, %s258
    %p262 = scmp.eq.s32.totalorder %s28, 0
    %p263 = por %p261, %p262
    %p264 = scmp.ne.s32.totalorder %s256, %s258
    %p265 = scmp.eq.s32.totalorder %s33, 1
    %p266 = por %p264, %p265
    %p267 = scmp.ne.s32.totalorder %s258, %s259
    %p268 = scmp.eq.s32.totalorder %s33, 0
    %p269 = por %p267, %p268
    %p270 = scmp.ne.s32.totalorder %s258, %s259
    %p271 = scmp.eq.s32.totalorder %s34, 1
    %p272 = por %p270, %p271
    %p274 = scmp.ne.s32.totalorder %s259, %s273
    %p275 = scmp.eq.s32.totalorder %s34, 0
    %p276 = por %p274, %p275
    %s278 = sadd.s32 %s277, 1
    %p281 = scmp.eq.s32.totalorder %s28, 1
    %p282 = scmp.ne.s32.totalorder %s277, %s279
    %p283 = scmp.eq.s32.totalorder %s28, 0
    %p284 = por %p282, %p283
    %p285 = scmp.ne.s32.totalorder %s277, %s279
    %p286 = scmp.eq.s32.totalorder %s33, 1
    %p287 = por %p285, %p286
    %p288 = scmp.ne.s32.totalorder %s279, %s280
    %p289 = scmp.eq.s32.totalorder %s33, 0
    %p290 = por %p288, %p289
    %p291 = scmp.ne.s32.totalorder %s279, %s280
    %p292 = scmp.eq.s32.totalorder %s34, 1
    %p293 = por %p291, %p292
    %p295 = scmp.ne.s32.totalorder %s280, %s294
    %p296 = scmp.eq.s32.totalorder %s34, 0
    %p297 = por %p295, %p296
    %s299 = sadd.s32 %s298, 1
    %p302 = scmp.eq.s32.totalorder %s28, 1
    %p303 = scmp.ne.s32.totalorder %s298, %s300
    %p304 = scmp.eq.s32.totalorder %s28, 0
    %p305 = por %p303, %p304
    %p306 = scmp.ne.s32.totalorder %s298, %s300
    %p307 = scmp.eq.s32.totalorder %s33, 1
    %p308 = por %p306, %p307
    %p309 = scmp.ne.s32.totalorder %s300, %s301
    %p310 = scmp.eq.s32.totalorder %s33, 0
    %p311 = por %p309, %p310
    %p312 = scmp.ne.s32.totalorder %s300, %s301
    %p313 = scmp.eq.s32.totalorder %s34, 1
    %p314 = por %p312, %p313
    %p316 = scmp.ne.s32.totalorder %s301, %s315
    %p317 = scmp.eq.s32.totalorder %s34, 0
    %p318 = por %p316, %p317
    %s320 = sadd.s32 %s319, 1
    %p323 = scmp.eq.s32.totalorder %s28, 1
    %p324 = scmp.ne.s32.totalorder %s319, %s321
    %p325 = scmp.eq.s32.totalorder %s28, 0
    %p326 = por %p324, %p325
    %p327 = scmp.ne.s32.totalorder %s319, %s321
    %p328 = scmp.eq.s32.totalorder %s33, 1
    %p329 = por %p327, %p328
    %p330 = scmp.ne.s32.totalorder %s321, %s322
    %p331 = scmp.eq.s32.totalorder %s33, 0
    %p332 = por %p330, %p331
    %p333 = scmp.ne.s32.totalorder %s321, %s322
    %p334 = scmp.eq.s32.totalorder %s34, 1
    %p335 = por %p333, %p334
    %p337 = scmp.ne.s32.totalorder %s322, %s336
    %p338 = scmp.eq.s32.totalorder %s34, 0
    %p339 = por %p337, %p338
    %s341 = sadd.s32 %s340, 1
    %p344 = scmp.eq.s32.totalorder %s28, 1
    %p345 = scmp.ne.s32.totalorder %s340, %s342
    %p346 = scmp.eq.s32.totalorder %s28, 0
    %p347 = por %p345, %p346
    %p348 = scmp.ne.s32.totalorder %s340, %s342
    %p349 = scmp.eq.s32.totalorder %s33, 1
    %p350 = por %p348, %p349
    %p351 = scmp.ne.s32.totalorder %s342, %s343
    %p352 = scmp.eq.s32.totalorder %s33, 0
    %p353 = por %p351, %p352
    %p354 = scmp.ne.s32.totalorder %s342, %s343
    %p355 = scmp.eq.s32.totalorder %s34, 1
    %p356 = por %p354, %p355
    %p358 = scmp.ne.s32.totalorder %s343, %s357
    %p359 = scmp.eq.s32.totalorder %s34, 0
    %p360 = por %p358, %p359
    %s362 = sadd.s32 %s361, 1
    %p365 = scmp.eq.s32.totalorder %s28, 1
    %p366 = scmp.ne.s32.totalorder %s361, %s363
    %p367 = scmp.eq.s32.totalorder %s28, 0
    %p368 = por %p366, %p367
    %p369 = scmp.ne.s32.totalorder %s361, %s363
    %p370 = scmp.eq.s32.totalorder %s33, 1
    %p371 = por %p369, %p370
    %p372 = scmp.ne.s32.totalorder %s363, %s364
    %p373 = scmp.eq.s32.totalorder %s33, 0
    %p374 = por %p372, %p373
    %p375 = scmp.ne.s32.totalorder %s363, %s364
    %p376 = scmp.eq.s32.totalorder %s34, 1
    %p377 = por %p375, %p376
    %p379 = scmp.ne.s32.totalorder %s364, %s378
    %p380 = scmp.eq.s32.totalorder %s34, 0
    %p381 = por %p379, %p380
    %s383 = sadd.s32 %s382, 1
    %p386 = scmp.eq.s32.totalorder %s28, 1
    %p387 = scmp.ne.s32.totalorder %s382, %s384
    %p388 = scmp.eq.s32.totalorder %s28, 0
    %p389 = por %p387, %p388
    %p390 = scmp.ne.s32.totalorder %s382, %s384
    %p391 = scmp.eq.s32.totalorder %s33, 1
    %p392 = por %p390, %p391
    %p393 = scmp.ne.s32.totalorder %s384, %s385
    %p394 = scmp.eq.s32.totalorder %s33, 0
    %p395 = por %p393, %p394
    %p396 = scmp.ne.s32.totalorder %s384, %s385
    %p397 = scmp.eq.s32.totalorder %s34, 1
    %p398 = por %p396, %p397
    %p400 = scmp.ne.s32.totalorder %s385, %s399
    %p401 = scmp.eq.s32.totalorder %s34, 0
    %p402 = por %p400, %p401
    %s404 = sadd.s32 %s403, 1
    %p407 = scmp.eq.s32.totalorder %s28, 1
    %p408 = scmp.ne.s32.totalorder %s403, %s405
    %p409 = scmp.eq.s32.totalorder %s28, 0
    %p410 = por %p408, %p409
    %p411 = scmp.ne.s32.totalorder %s403, %s405
    %p412 = scmp.eq.s32.totalorder %s33, 1
    %p413 = por %p411, %p412
    %p414 = scmp.ne.s32.totalorder %s405, %s406
    %p415 = scmp.eq.s32.totalorder %s33, 0
    %p416 = por %p414, %p415
    %p417 = scmp.ne.s32.totalorder %s405, %s406
    %p418 = scmp.eq.s32.totalorder %s34, 1
    %p419 = por %p417, %p418
    %p421 = scmp.ne.s32.totalorder %s406, %s420
    %p422 = scmp.eq.s32.totalorder %s34, 0
    %p423 = por %p421, %p422
    %s425 = sadd.s32 %s424, 1
    %p428 = scmp.eq.s32.totalorder %s28, 1
    %p429 = scmp.ne.s32.totalorder %s424, %s426
    %p430 = scmp.eq.s32.totalorder %s28, 0
    %p431 = por %p429, %p430
    %p432 = scmp.ne.s32.totalorder %s424, %s426
    %p433 = scmp.eq.s32.totalorder %s33, 1
    %p434 = por %p432, %p433
    %p435 = scmp.ne.s32.totalorder %s426, %s427
    %p436 = scmp.eq.s32.totalorder %s33, 0
    %p437 = por %p435, %p436
    %p438 = scmp.ne.s32.totalorder %s426, %s427
    %p439 = scmp.eq.s32.totalorder %s34, 1
    %p440 = por %p438, %p439
    %p442 = scmp.ne.s32.totalorder %s427, %s441
    %p443 = scmp.eq.s32.totalorder %s34, 0
    %p444 = por %p442, %p443
    %s446 = sadd.s32 %s445, 1
    %p449 = scmp.eq.s32.totalorder %s28, 1
    %p450 = scmp.ne.s32.totalorder %s445, %s447
    %p451 = scmp.eq.s32.totalorder %s28, 0
    %p452 = por %p450, %p451
    %p453 = scmp.ne.s32.totalorder %s445, %s447
    %p454 = scmp.eq.s32.totalorder %s33, 1
    %p455 = por %p453, %p454
    %p456 = scmp.ne.s32.totalorder %s447, %s448
    %p457 = scmp.eq.s32.totalorder %s33, 0
    %p458 = por %p456, %p457
    %p459 = scmp.ne.s32.totalorder %s447, %s448
    %p460 = scmp.eq.s32.totalorder %s34, 1
    %p461 = por %p459, %p460
    %p463 = scmp.ne.s32.totalorder %s448, %s462
    %p464 = scmp.eq.s32.totalorder %s34, 0
    %p465 = por %p463, %p464
    %s467 = sadd.s32 %s466, 1
    %p470 = scmp.eq.s32.totalorder %s28, 1
    %p471 = scmp.ne.s32.totalorder %s466, %s468
    %p472 = scmp.eq.s32.totalorder %s28, 0
    %p473 = por %p471, %p472
    %p474 = scmp.ne.s32.totalorder %s466, %s468
    %p475 = scmp.eq.s32.totalorder %s33, 1
    %p476 = por %p474, %p475
    %p477 = scmp.ne.s32.totalorder %s468, %s469
    %p478 = scmp.eq.s32.totalorder %s33, 0
    %p479 = por %p477, %p478
    %p480 = scmp.ne.s32.totalorder %s468, %s469
    %p481 = scmp.eq.s32.totalorder %s34, 1
    %p482 = por %p480, %p481
    %p484 = scmp.ne.s32.totalorder %s469, %s483
    %p485 = scmp.eq.s32.totalorder %s34, 0
    %p486 = por %p484, %p485
    %s488 = sadd.s32 %s487, 1
    %p491 = scmp.eq.s32.totalorder %s28, 1
    %p492 = scmp.ne.s32.totalorder %s487, %s489
    %p493 = scmp.eq.s32.totalorder %s28, 0
    %p494 = por %p492, %p493
    %p495 = scmp.ne.s32.totalorder %s487, %s489
    %p496 = scmp.eq.s32.totalorder %s33, 1
    %p497 = por %p495, %p496
    %p498 = scmp.ne.s32.totalorder %s489, %s490
    %p499 = scmp.eq.s32.totalorder %s33, 0
    %p500 = por %p498, %p499
    %p501 = scmp.ne.s32.totalorder %s489, %s490
    %p502 = scmp.eq.s32.totalorder %s34, 1
    %p503 = por %p501, %p502
    %p505 = scmp.ne.s32.totalorder %s490, %s504
    %p506 = scmp.eq.s32.totalorder %s34, 0
    %p507 = por %p505, %p506
    %s508 = ssub.s32 %s28, %s35
    %p509 = scmp.eq.s32.totalorder %s508, 0
    %s511 = sadd.s32 %s510, 1
    %s512 = scalar_select %p509, %s510, %s511
    %p515 = pneg %p509
    %p516 = scmp.eq.s32.totalorder %s28, 1
    %p517 = por %p515, %p516
    %p518 = scmp.ne.s32.totalorder %s510, %s513
    %p519 = scmp.eq.s32.totalorder %s28, 0
    %p520 = por %p518, %p519
    %p521 = scmp.ne.s32.totalorder %s510, %s513
    %p522 = scmp.eq.s32.totalorder %s33, 1
    %p523 = por %p521, %p522
    %p524 = scmp.ne.s32.totalorder %s513, %s514
    %p525 = scmp.eq.s32.totalorder %s33, 0
    %p526 = por %p524, %p525
    %p527 = scmp.ne.s32.totalorder %s513, %s514
    %p528 = scmp.eq.s32.totalorder %s34, 1
    %p529 = por %p527, %p528
    %p531 = scmp.ne.s32.totalorder %s514, %s530
    %p532 = scmp.eq.s32.totalorder %s34, 0
    %p533 = por %p531, %p532
    %p534 = scmp.le.s32.totalorder 1, %s28
    %p535 = scmp.lt.s32.totalorder %s28, 3
    %p536 = pnand %p534, %p535
    %p537 = pneg %p536
    // Predicated region
    $region9: #{teddy_forward.22} parent=5 // pred_check
      _
    $region10: #{teddy_forward.22} parent=5 // pred_check_branch
      %539 = sbr.rel (%p536) target = $region12
    $region11: #{teddy_forward.22} parent=5 // pred_region
      %s540 = ssub.s32 %s28, 1
      // Predicated region
      $region13: #{teddy_forward.22} parent=11 // pred_check
        %p541 = pneg %p101
      $region14: #{teddy_forward.22} parent=11 // pred_check_branch
        %543 = sbr.rel (%p541) target = $region16
      $region15: #{teddy_forward.22} parent=11 // pred_region
        _
      $region16: #{teddy_forward.22} parent=11 // pred_fallthru
        _
      // Predicated region
      $region17: #{teddy_forward.22} parent=11 // pred_check
        %p544 = pneg %p122
      $region18: #{teddy_forward.22} parent=11 // pred_check_branch
        %546 = sbr.rel (%p544) target = $region20
      $region19: #{teddy_forward.22} parent=11 // pred_region
        _
      $region20: #{teddy_forward.22} parent=11 // pred_fallthru
        _
      // Predicated region
      $region21: #{teddy_forward.22} parent=11 // pred_check
        %p547 = pneg %p143
      $region22: #{teddy_forward.22} parent=11 // pred_check_branch
        %549 = sbr.rel (%p547) target = $region24
      $region23: #{teddy_forward.22} parent=11 // pred_region
        _
      $region24: #{teddy_forward.22} parent=11 // pred_fallthru
        _
      // Predicated region
      $region25: #{teddy_forward.22} parent=11 // pred_check
        %p550 = pneg %p164
      $region26: #{teddy_forward.22} parent=11 // pred_check_branch
        %552 = sbr.rel (%p550) target = $region28
      $region27: #{teddy_forward.22} parent=11 // pred_region
        _
      $region28: #{teddy_forward.22} parent=11 // pred_fallthru
        _
      // Predicated region
      $region29: #{teddy_forward.22} parent=11 // pred_check
        %p553 = pneg %p185
      $region30: #{teddy_forward.22} parent=11 // pred_check_branch
        %555 = sbr.rel (%p553) target = $region32
      $region31: #{teddy_forward.22} parent=11 // pred_region
        _
      $region32: #{teddy_forward.22} parent=11 // pred_fallthru
        _
      // Predicated region
      $region33: #{teddy_forward.22} parent=11 // pred_check
        %p556 = pneg %p206
      $region34: #{teddy_forward.22} parent=11 // pred_check_branch
        %558 = sbr.rel (%p556) target = $region36
      $region35: #{teddy_forward.22} parent=11 // pred_region
        _
      $region36: #{teddy_forward.22} parent=11 // pred_fallthru
        _
      // Predicated region
      $region37: #{teddy_forward.22} parent=11 // pred_check
        %p559 = pneg %p227
      $region38: #{teddy_forward.22} parent=11 // pred_check_branch
        %561 = sbr.rel (%p559) target = $region40
      $region39: #{teddy_forward.22} parent=11 // pred_region
        _
      $region40: #{teddy_forward.22} parent=11 // pred_fallthru
        _
      // Predicated region
      $region41: #{teddy_forward.22} parent=11 // pred_check
        %p562 = pneg %p248
      $region42: #{teddy_forward.22} parent=11 // pred_check_branch
        %564 = sbr.rel (%p562) target = $region44
      $region43: #{teddy_forward.22} parent=11 // pred_region
        _
      $region44: #{teddy_forward.22} parent=11 // pred_fallthru
        _
      // Predicated region
      $region45: #{teddy_forward.22} parent=11 // pred_check
        %p565 = pneg %p269
      $region46: #{teddy_forward.22} parent=11 // pred_check_branch
        %567 = sbr.rel (%p565) target = $region48
      $region47: #{teddy_forward.22} parent=11 // pred_region
        _
      $region48: #{teddy_forward.22} parent=11 // pred_fallthru
        _
      // Predicated region
      $region49: #{teddy_forward.22} parent=11 // pred_check
        %p568 = pneg %p290
      $region50: #{teddy_forward.22} parent=11 // pred_check_branch
        %570 = sbr.rel (%p568) target = $region52
      $region51: #{teddy_forward.22} parent=11 // pred_region
        _
      $region52: #{teddy_forward.22} parent=11 // pred_fallthru
        _
      // Predicated region
      $region53: #{teddy_forward.22} parent=11 // pred_check
        %p571 = pneg %p311
      $region54: #{teddy_forward.22} parent=11 // pred_check_branch
        %573 = sbr.rel (%p571) target = $region56
      $region55: #{teddy_forward.22} parent=11 // pred_region
        _
      $region56: #{teddy_forward.22} parent=11 // pred_fallthru
        _
      // Predicated region
      $region57: #{teddy_forward.22} parent=11 // pred_check
        %p574 = pneg %p332
      $region58: #{teddy_forward.22} parent=11 // pred_check_branch
        %576 = sbr.rel (%p574) target = $region60
      $region59: #{teddy_forward.22} parent=11 // pred_region
        _
      $region60: #{teddy_forward.22} parent=11 // pred_fallthru
        _
      // Predicated region
      $region61: #{teddy_forward.22} parent=11 // pred_check
        %p577 = pneg %p353
      $region62: #{teddy_forward.22} parent=11 // pred_check_branch
        %579 = sbr.rel (%p577) target = $region64
      $region63: #{teddy_forward.22} parent=11 // pred_region
        _
      $region64: #{teddy_forward.22} parent=11 // pred_fallthru
        _
      // Predicated region
      $region65: #{teddy_forward.22} parent=11 // pred_check
        %p580 = pneg %p374
      $region66: #{teddy_forward.22} parent=11 // pred_check_branch
        %582 = sbr.rel (%p580) target = $region68
      $region67: #{teddy_forward.22} parent=11 // pred_region
        _
      $region68: #{teddy_forward.22} parent=11 // pred_fallthru
        _
      // Predicated region
      $region69: #{teddy_forward.22} parent=11 // pred_check
        %p583 = pneg %p395
      $region70: #{teddy_forward.22} parent=11 // pred_check_branch
        %585 = sbr.rel (%p583) target = $region72
      $region71: #{teddy_forward.22} parent=11 // pred_region
        _
      $region72: #{teddy_forward.22} parent=11 // pred_fallthru
        _
      // Predicated region
      $region73: #{teddy_forward.22} parent=11 // pred_check
        %p586 = pneg %p416
      $region74: #{teddy_forward.22} parent=11 // pred_check_branch
        %588 = sbr.rel (%p586) target = $region76
      $region75: #{teddy_forward.22} parent=11 // pred_region
        _
      $region76: #{teddy_forward.22} parent=11 // pred_fallthru
        _
      // Predicated region
      $region77: #{teddy_forward.22} parent=11 // pred_check
        %p589 = pneg %p437
      $region78: #{teddy_forward.22} parent=11 // pred_check_branch
        %591 = sbr.rel (%p589) target = $region80
      $region79: #{teddy_forward.22} parent=11 // pred_region
        _
      $region80: #{teddy_forward.22} parent=11 // pred_fallthru
        _
      // Predicated region
      $region81: #{teddy_forward.22} parent=11 // pred_check
        %p592 = pneg %p458
      $region82: #{teddy_forward.22} parent=11 // pred_check_branch
        %594 = sbr.rel (%p592) target = $region84
      $region83: #{teddy_forward.22} parent=11 // pred_region
        _
      $region84: #{teddy_forward.22} parent=11 // pred_fallthru
        _
      // Predicated region
      $region85: #{teddy_forward.22} parent=11 // pred_check
        %p595 = pneg %p479
      $region86: #{teddy_forward.22} parent=11 // pred_check_branch
        %597 = sbr.rel (%p595) target = $region88
      $region87: #{teddy_forward.22} parent=11 // pred_region
        _
      $region88: #{teddy_forward.22} parent=11 // pred_fallthru
        _
      // Predicated region
      $region89: #{teddy_forward.22} parent=11 // pred_check
        %p598 = pneg %p500
      $region90: #{teddy_forward.22} parent=11 // pred_check_branch
        %600 = sbr.rel (%p598) target = $region92
      $region91: #{teddy_forward.22} parent=11 // pred_region
        _
      $region92: #{teddy_forward.22} parent=11 // pred_fallthru
        _
    $region12: #{teddy_forward.22} parent=5 // pred_fallthru
      _
    %p601 = scmp.lt.s32.totalorder %s28, 2
    // Predicated region
    $region93: #{teddy_forward.22} parent=5 // pred_check
      %p602 = pneg %p601
    $region94: #{teddy_forward.22} parent=5 // pred_check_branch
      %604 = sbr.rel (%p602) target = $region96
    $region95: #{teddy_forward.22} parent=5 // pred_region
      // Predicated region
      $region97: #{teddy_forward.22} parent=95 // pred_check
        %p605 = pneg %p48
      $region98: #{teddy_forward.22} parent=95 // pred_check_branch
        %607 = sbr.rel (%p605) target = $region100
      $region99: #{teddy_forward.22} parent=95 // pred_region
        %p608 = scmp.lt.s32.totalorder %s28, 1
        %s609 = scalar_select %p608, %s28, 1
        %s610 = smul.addr %s609, 8
        %s611 = scalar_lea.vmem %s0, %s610
      $region100: #{teddy_forward.22} parent=95 // pred_fallthru
        _
      // Predicated region
      $region101: #{teddy_forward.22} parent=95 // pred_check
        %p612 = pneg %p74
      $region102: #{teddy_forward.22} parent=95 // pred_check_branch
        %614 = sbr.rel (%p612) target = $region104
      $region103: #{teddy_forward.22} parent=95 // pred_region
        %p615 = scmp.lt.s32.totalorder %s28, 1
        %s616 = scalar_select %p615, %s28, 1
        %s617 = smul.addr %s616, 8
        %s618 = scalar_lea.vmem %s1, %s617
      $region104: #{teddy_forward.22} parent=95 // pred_fallthru
        _
    $region96: #{teddy_forward.22} parent=5 // pred_fallthru
      _
    %p619 = scmp.le.s32.totalorder 1, %s28
    %p620 = scmp.lt.s32.totalorder %s28, 3
    %p621 = pnand %p619, %p620
    %p622 = pneg %p621
    // Predicated region
    $region105: #{teddy_forward.22} parent=5 // pred_check
      _
    $region106: #{teddy_forward.22} parent=5 // pred_check_branch
      %624 = sbr.rel (%p621) target = $region108
    $region107: #{teddy_forward.22} parent=5 // pred_region
      %s625 = ssub.s32 %s28, 1
      %p626 = scmp.lt.s32.totalorder %s33, 1
      %s627 = scalar_select %p626, %s33, 1
      %s628 = smul.addr %s627, 8
      %s629 = scalar_lea.vmem %s0, %s628
      %p630 = pneg %p54
      %p631 = pneg %p51
      %p632 = scmp.lt.s32.totalorder %s33, 1
      %s633 = scalar_select %p632, %s33, 1
      %s634 = smul.addr %s633, 8
      %s635 = scalar_lea.vmem %s1, %s634
      %p636 = pneg %p80
      %p637 = pneg %p77
      %p638 = pneg %p101
      %p639 = pneg %p98
      %p640 = pneg %p122
      %p641 = pneg %p119
      %p642 = pneg %p143
      %p643 = pneg %p140
      %p644 = pneg %p164
      %p645 = pneg %p161
      %p646 = pneg %p185
      %p647 = pneg %p182
      %p648 = pneg %p206
      %p649 = pneg %p203
      %p650 = pneg %p227
      %p651 = pneg %p224
      %p652 = pneg %p248
      %p653 = pneg %p245
      %p654 = pneg %p269
      %p655 = pneg %p266
      %p656 = pneg %p290
      %p657 = pneg %p287
      %p658 = pneg %p311
      %p659 = pneg %p308
      %p660 = pneg %p332
      %p661 = pneg %p329
      %p662 = pneg %p353
      %p663 = pneg %p350
      %p664 = pneg %p374
      %p665 = pneg %p371
      %p666 = pneg %p395
      %p667 = pneg %p392
      %p668 = pneg %p416
      %p669 = pneg %p413
      %p670 = pneg %p437
      %p671 = pneg %p434
      %p672 = pneg %p458
      %p673 = pneg %p455
      %p674 = pneg %p479
      %p675 = pneg %p476
      %p676 = pneg %p500
      %p677 = pneg %p497
      %p678 = pneg %p526
      %p679 = pneg %p523
      %p680 = scmp.lt.s32.totalorder %s33, 1
      %s681 = scalar_select %p680, %s33, 1
      %s682 = smul.addr %s681, 8
      %s683 = scalar_lea.vmem %s22, %s682
      %p684 = scmp.lt.s32.totalorder %s33, 1
      %s685 = scalar_select %p684, %s33, 1
      %s686 = smul.addr %s685, 8
      %s687 = scalar_lea.vmem %s0, %s686
      %p688 = scmp.lt.s32.totalorder %s33, 1
      %s689 = scalar_select %p688, %s33, 1
      %s690 = smul.addr %s689, 8
      %s691 = scalar_lea.vmem %s1, %s690
      %p692 = scmp.lt.s32.totalorder %s33, 1
      %s693 = scalar_select %p692, %s33, 1
      %s694 = smul.addr %s693, 8
      %s695 = scalar_lea.vmem %s22, %s694
      %v697 = vld [vmem:[%s687] sm:$0x3f]
      %v698 = vld [vmem:[%s691] sm:$0x1f]
      %v699 = vld [vmem:[%s2] sm:$0xff]
      %v700 = vld [vmem:[%s2 + $0x8] sm:$0xff]
      %v701 = vld [vmem:[%s2 + $0x10] sm:$0xff]
      %v702 = vld [vmem:[%s2 + $0x18] sm:$0xff]
      %v703 = vld [vmem:[%s3] sm:$0x1]
      %v704 = vld [vmem:[%s4] sm:$0xff]
      %v705 = vld [vmem:[%s4 + $0x8] sm:$0xff]
      %v706 = vld [vmem:[%s4 + $0x10] sm:$0xff]
      %v707 = vld [vmem:[%s4 + $0x18] sm:$0xff]
      %v708 = vld [vmem:[%s5] sm:$0x1]
      %v709 = vpack.c.bf16 %v697, %v697
      %v710 = vpack.c.bf16 %v700, %v699
      %v711 = vpack.c.bf16 %v702, %v701
      %v713 = vlaneseq
      %v714 = vshrl.u32 %v713, 7
      %v715 = vsub.s32 0, %v714
      %v716 = vrot.slane %v703, %v715
      %vm718 = vcmask 261120
      %v720 = vsel %vm718, %v709, 0
      %722 = vmatprep.subr.bf16.mxu0 0
      %723 = vmatpush1.bf16.msra.mxu0 0
      %724 = vmatprep.subr.bf16.mxu0 0
      %725 = vmatpush1.bf16.msra.mxu0 0
      %726 = vmatprep.subr.bf16.mxu0 0
      %727 = vmatpush1.bf16.msra.mxu0 0
      %728 = vmatprep.subr.bf16.mxu0 0
      %729 = vmatpush1.bf16.msra.mxu0 0
      %730 = vmatprep.subr.bf16.mxu0 0
      %731 = vmatpush1.bf16.msra.mxu0 0
      %732 = vmatprep.subr.bf16.mxu0 0
      %733 = vmatpush1.bf16.msra.mxu0 0
      %734 = vmatprep.subr.bf16.mxu0 0
      %735 = vmatpush1.bf16.msra.mxu0 %v711
      %736 = vmatprep.subr.bf16.mxu0 0
      %737 = vmatpush1.bf16.msra.mxu0 %v710
      %738 = vmatprep.subr.bf16.mxu0 0
      %739 = vmatpush2.bf16.msra.mxu0 0
      %740 = vmatprep.subr.bf16.mxu0 0
      %741 = vmatpush2.bf16.msra.mxu0 0
      %742 = vmatprep.subr.bf16.mxu0 0
      %743 = vmatpush2.bf16.msra.mxu0 0
      %744 = vmatprep.subr.bf16.mxu0 0
      %745 = vmatpush2.bf16.msra.mxu0 0
      %746 = vmatprep.subr.bf16.mxu0 0
      %747 = vmatpush2.bf16.msra.mxu0 0
      %748 = vmatprep.subr.bf16.mxu0 0
      %749 = vmatpush2.bf16.msra.mxu0 0
      %750 = vmatprep.subr.bf16.mxu0 0
      %751 = vmatpush2.bf16.msra.mxu0 0
      %752 = vmatprep.subr.bf16.mxu0 0
      %753 = vmatpush2.bf16.msra.mxu0 0
      %754 = vmatprep.mubr.bf16.mxu0 0
      %755 = vmatmul.mubr.bf16.gmra.mxu0 %v720
      %v756 = vpop.f32.mrf.mxu0
      %v757 = vadd.f32 %v716, %v756
      %v758 = vpop.f32.mrf.mxu0
      %v759 = vpop.f32.mrf.mxu0
      %v760 = vpop.f32.mrf.mxu0
      %761 = vdwg.mxu0
      %v762 = vpack.c.bf16 %v757, %v757
      %764 = vrot.lane.b32.xlu0 %v762, 96
      %v765 = vpop.permute.xlu0 %764
      %vm766 = vcmask 64512
      %v768 = vsel %vm766, %v762, 0
      %v771 = vsel %vm766, %v765, 0
      %773 = vmatprep.subr.bf16.mxu0 0
      %774 = vmatpush1.bf16.xpose.msra.mxu0 0
      %775 = vmatprep.subr.bf16.mxu0 0
      %776 = vmatpush1.bf16.xpose.msra.mxu0 0
      %777 = vmatprep.subr.bf16.mxu0 0
      %778 = vmatpush1.bf16.xpose.msra.mxu0 0
      %779 = vmatprep.subr.bf16.mxu0 0
      %780 = vmatpush1.bf16.xpose.msra.mxu0 0
      %781 = vmatprep.subr.bf16.mxu0 0
      %782 = vmatpush1.bf16.xpose.msra.mxu0 0
      %783 = vmatprep.subr.bf16.mxu0 0
      %784 = vmatpush1.bf16.xpose.msra.mxu0 0
      %785 = vmatprep.subr.bf16.mxu0 0
      %786 = vmatpush1.bf16.xpose.msra.mxu0 0
      %787 = vmatprep.subr.bf16.mxu0 0
      %788 = vmatpush1.bf16.xpose.msra.mxu0 %v771
      %789 = vmatprep.subr.bf16.mxu0 0
      %790 = vmatpush2.bf16.xpose.msra.mxu0 0
      %791 = vmatprep.subr.bf16.mxu0 0
      %792 = vmatpush2.bf16.xpose.msra.mxu0 0
      %793 = vmatprep.subr.bf16.mxu0 0
      %794 = vmatpush2.bf16.xpose.msra.mxu0 0
      %795 = vmatprep.subr.bf16.mxu0 0
      %796 = vmatpush2.bf16.xpose.msra.mxu0 0
      %797 = vmatprep.subr.bf16.mxu0 0
      %798 = vmatpush2.bf16.xpose.msra.mxu0 0
      %799 = vmatprep.subr.bf16.mxu0 0
      %800 = vmatpush2.bf16.xpose.msra.mxu0 0
      %801 = vmatprep.subr.bf16.mxu0 0
      %802 = vmatpush2.bf16.xpose.msra.mxu0 0
      %803 = vmatprep.subr.bf16.mxu0 0
      %804 = vmatpush2.bf16.xpose.msra.mxu0 0
      %805 = vmatprep.mubr.bf16.mxu0 0
      %806 = vmatmul.mubr.bf16.gmra.mxu0 %v768
      %v807 = vpop.f32.mrf.mxu0
      %v808 = vadd.f32 0.0, %v807
      %v809 = vpop.f32.mrf.mxu0
      %v810 = vpop.f32.mrf.mxu0
      %v811 = vpop.f32.mrf.mxu0
      %812 = vdwg.mxu0
      %v813 = vmul.f32 %v808, 0.35355338
      %vm814 = vcmask 46080
      %v815 = vsel %vm814, %v813, -inf
      %816 = vmax.xlane.f32.xlu0 %v815
      %v817 = vpop.xlane.xlu0 %816
      %v818 = vsub.f32 %v813, %v817
      %v819 = vmul.f32 %v818, 1.442695
      %v820 = vpow.pop %v819
      %v821 = vsel %vm814, %v820, 0.0
      %822 = vadd.xlane.f32.xlu0 %v821
      %v823 = vpop.xlane.xlu0 %822
      %v824 = vrcp.pop %v823
      %v825 = vmul.f32 %v820, %v824
      %v826 = vpack.c.bf16 %v825, %v825
      %827 = vrot.lane.b32.xlu0 %v762, 64
      %v828 = vpop.permute.xlu0 %827
      %vm829 = vcmask 48128
      %v831 = vsel %vm829, %v826, 0
      %vm833 = vcmask 1042432
      %v835 = vsel %vm833, %v828, 0
      %837 = vmatprep.subr.bf16.mxu0 0
      %838 = vmatpush1.bf16.msra.mxu0 0
      %839 = vmatprep.subr.bf16.mxu0 0
      %840 = vmatpush1.bf16.msra.mxu0 0
      %841 = vmatprep.subr.bf16.mxu0 0
      %842 = vmatpush1.bf16.msra.mxu0 0
      %843 = vmatprep.subr.bf16.mxu0 0
      %844 = vmatpush1.bf16.msra.mxu0 0
      %845 = vmatprep.subr.bf16.mxu0 0
      %846 = vmatpush1.bf16.msra.mxu0 0
      %847 = vmatprep.subr.bf16.mxu0 0
      %848 = vmatpush1.bf16.msra.mxu0 0
      %849 = vmatprep.subr.bf16.mxu0 0
      %850 = vmatpush1.bf16.msra.mxu0 0
      %851 = vmatprep.subr.bf16.mxu0 0
      %852 = vmatpush1.bf16.msra.mxu0 %v835
      %853 = vmatprep.subr.bf16.mxu0 0
      %854 = vmatpush2.bf16.msra.mxu0 0
      %855 = vmatprep.subr.bf16.mxu0 0
      %856 = vmatpush2.bf16.msra.mxu0 0
      %857 = vmatprep.subr.bf16.mxu0 0
      %858 = vmatpush2.bf16.msra.mxu0 0
      %859 = vmatprep.subr.bf16.mxu0 0
      %860 = vmatpush2.bf16.msra.mxu0 0
      %861 = vmatprep.subr.bf16.mxu0 0
      %862 = vmatpush2.bf16.msra.mxu0 0
      %863 = vmatprep.subr.bf16.mxu0 0
      %864 = vmatpush2.bf16.msra.mxu0 0
      %865 = vmatprep.subr.bf16.mxu0 0
      %866 = vmatpush2.bf16.msra.mxu0 0
      %867 = vmatprep.subr.bf16.mxu0 0
      %868 = vmatpush2.bf16.msra.mxu0 0
      %869 = vmatprep.mubr.bf16.mxu0 0
      %870 = vmatmul.mubr.bf16.gmra.mxu0 %v831
      %v871 = vpop.f32.mrf.mxu0
      %v872 = vadd.f32 0.0, %v871
      %v873 = vpop.f32.mrf.mxu0
      %v874 = vpop.f32.mrf.mxu0
      %v875 = vpop.f32.mrf.mxu0
      %876 = vdwg.mxu0
      %v877 = vpack.c.bf16 %v872, %v872
      %v878 = vpack.c.bf16 %v704, %v704
      %879 = vrot.lane.b32.xlu0 %v762, 120
      %v880 = vpop.permute.xlu0 %879
      %881 = vrot.lane.b32.xlu0 %v762, 88
      %v882 = vpop.permute.xlu0 %881
      %v884 = vsel %vm766, %v880, 0
      %v887 = vsel %vm766, %v882, 0
      %889 = vmatprep.subr.bf16.mxu0 0
      %890 = vmatpush1.bf16.xpose.msra.mxu0 0
      %891 = vmatprep.subr.bf16.mxu0 0
      %892 = vmatpush1.bf16.xpose.msra.mxu0 0
      %893 = vmatprep.subr.bf16.mxu0 0
      %894 = vmatpush1.bf16.xpose.msra.mxu0 0
      %895 = vmatprep.subr.bf16.mxu0 0
      %896 = vmatpush1.bf16.xpose.msra.mxu0 0
      %897 = vmatprep.subr.bf16.mxu0 0
      %898 = vmatpush1.bf16.xpose.msra.mxu0 0
      %899 = vmatprep.subr.bf16.mxu0 0
      %900 = vmatpush1.bf16.xpose.msra.mxu0 0
      %901 = vmatprep.subr.bf16.mxu0 0
      %902 = vmatpush1.bf16.xpose.msra.mxu0 0
      %903 = vmatprep.subr.bf16.mxu0 0
      %904 = vmatpush1.bf16.xpose.msra.mxu0 %v887
      %905 = vmatprep.subr.bf16.mxu0 0
      %906 = vmatpush2.bf16.xpose.msra.mxu0 0
      %907 = vmatprep.subr.bf16.mxu0 0
      %908 = vmatpush2.bf16.xpose.msra.mxu0 0
      %909 = vmatprep.subr.bf16.mxu0 0
      %910 = vmatpush2.bf16.xpose.msra.mxu0 0
      %911 = vmatprep.subr.bf16.mxu0 0
      %912 = vmatpush2.bf16.xpose.msra.mxu0 0
      %913 = vmatprep.subr.bf16.mxu0 0
      %914 = vmatpush2.bf16.xpose.msra.mxu0 0
      %915 = vmatprep.subr.bf16.mxu0 0
      %916 = vmatpush2.bf16.xpose.msra.mxu0 0
      %917 = vmatprep.subr.bf16.mxu0 0
      %918 = vmatpush2.bf16.xpose.msra.mxu0 0
      %919 = vmatprep.subr.bf16.mxu0 0
      %920 = vmatpush2.bf16.xpose.msra.mxu0 0
      %921 = vmatprep.mubr.bf16.mxu0 0
      %922 = vmatmul.mubr.bf16.gmra.mxu0 %v884
      %v923 = vpop.f32.mrf.mxu0
      %v924 = vadd.f32 0.0, %v923
      %v925 = vpop.f32.mrf.mxu0
      %v926 = vpop.f32.mrf.mxu0
      %v927 = vpop.f32.mrf.mxu0
      %928 = vdwg.mxu0
      %v929 = vmul.f32 %v924, 0.35355338
      %v930 = vsel %vm814, %v929, -inf
      %931 = vmax.xlane.f32.xlu0 %v930
      %v932 = vpop.xlane.xlu0 %931
      %v933 = vsub.f32 %v929, %v932
      %v934 = vmul.f32 %v933, 1.442695
      %v935 = vpow.pop %v934
      %v936 = vsel %vm814, %v935, 0.0
      %937 = vadd.xlane.f32.xlu0 %v936
      %v938 = vpop.xlane.xlu0 %937
      %v939 = vrcp.pop %v938
      %v940 = vmul.f32 %v935, %v939
      %v941 = vpack.c.bf16 %v940, %v940
      %942 = vrot.lane.b32.xlu0 %v762, 56
      %v943 = vpop.permute.xlu0 %942
      %v945 = vsel %vm829, %v941, 0
      %v948 = vsel %vm833, %v943, 0
      %950 = vmatprep.subr.bf16.mxu0 0
      %951 = vmatpush1.bf16.msra.mxu0 0
      %952 = vmatprep.subr.bf16.mxu0 0
      %953 = vmatpush1.bf16.msra.mxu0 0
      %954 = vmatprep.subr.bf16.mxu0 0
      %955 = vmatpush1.bf16.msra.mxu0 0
      %956 = vmatprep.subr.bf16.mxu0 0
      %957 = vmatpush1.bf16.msra.mxu0 0
      %958 = vmatprep.subr.bf16.mxu0 0
      %959 = vmatpush1.bf16.msra.mxu0 0
      %960 = vmatprep.subr.bf16.mxu0 0
      %961 = vmatpush1.bf16.msra.mxu0 0
      %962 = vmatprep.subr.bf16.mxu0 0
      %963 = vmatpush1.bf16.msra.mxu0 0
      %964 = vmatprep.subr.bf16.mxu0 0
      %965 = vmatpush1.bf16.msra.mxu0 %v948
      %966 = vmatprep.subr.bf16.mxu0 0
      %967 = vmatpush2.bf16.msra.mxu0 0
      %968 = vmatprep.subr.bf16.mxu0 0
      %969 = vmatpush2.bf16.msra.mxu0 0
      %970 = vmatprep.subr.bf16.mxu0 0
      %971 = vmatpush2.bf16.msra.mxu0 0
      %972 = vmatprep.subr.bf16.mxu0 0
      %973 = vmatpush2.bf16.msra.mxu0 0
      %974 = vmatprep.subr.bf16.mxu0 0
      %975 = vmatpush2.bf16.msra.mxu0 0
      %976 = vmatprep.subr.bf16.mxu0 0
      %977 = vmatpush2.bf16.msra.mxu0 0
      %978 = vmatprep.subr.bf16.mxu0 0
      %979 = vmatpush2.bf16.msra.mxu0 0
      %980 = vmatprep.subr.bf16.mxu0 0
      %981 = vmatpush2.bf16.msra.mxu0 0
      %982 = vmatprep.mubr.bf16.mxu0 0
      %983 = vmatmul.mubr.bf16.gmra.mxu0 %v945
      %v984 = vpop.f32.mrf.mxu0
      %v985 = vadd.f32 0.0, %v984
      %v986 = vpop.f32.mrf.mxu0
      %v987 = vpop.f32.mrf.mxu0
      %v988 = vpop.f32.mrf.mxu0
      %989 = vdwg.mxu0
      %v990 = vpack.c.bf16 %v985, %v985
      %v991 = vpack.c.bf16 %v705, %v705
      %v993 = vsel %vm766, %v990, 0
      %vm995 = vcmask 1043456
      %v997 = vsel %vm995, %v991, 0
      %999 = vmatprep.subr.bf16.mxu0 0
      %1000 = vmatpush1.bf16.msra.mxu0 0
      %1001 = vmatprep.subr.bf16.mxu0 0
      %1002 = vmatpush1.bf16.msra.mxu0 0
      %1003 = vmatprep.subr.bf16.mxu0 0
      %1004 = vmatpush1.bf16.msra.mxu0 0
      %1005 = vmatprep.subr.bf16.mxu0 0
      %1006 = vmatpush1.bf16.msra.mxu0 0
      %1007 = vmatprep.subr.bf16.mxu0 0
      %1008 = vmatpush1.bf16.msra.mxu0 0
      %1009 = vmatprep.subr.bf16.mxu0 0
      %1010 = vmatpush1.bf16.msra.mxu0 0
      %1011 = vmatprep.subr.bf16.mxu0 0
      %1012 = vmatpush1.bf16.msra.mxu0 0
      %1013 = vmatprep.subr.bf16.mxu0 0
      %1014 = vmatpush1.bf16.msra.mxu0 %v997
      %1015 = vmatprep.subr.bf16.mxu0 0
      %1016 = vmatpush2.bf16.msra.mxu0 0
      %1017 = vmatprep.subr.bf16.mxu0 0
      %1018 = vmatpush2.bf16.msra.mxu0 0
      %1019 = vmatprep.subr.bf16.mxu0 0
      %1020 = vmatpush2.bf16.msra.mxu0 0
      %1021 = vmatprep.subr.bf16.mxu0 0
      %1022 = vmatpush2.bf16.msra.mxu0 0
      %1023 = vmatprep.subr.bf16.mxu0 0
      %1024 = vmatpush2.bf16.msra.mxu0 0
      %1025 = vmatprep.subr.bf16.mxu0 0
      %1026 = vmatpush2.bf16.msra.mxu0 0
      %1027 = vmatprep.subr.bf16.mxu0 0
      %1028 = vmatpush2.bf16.msra.mxu0 0
      %1029 = vmatprep.subr.bf16.mxu0 0
      %1030 = vmatpush2.bf16.msra.mxu0 0
      %1031 = vmatprep.mubr.bf16.mxu0 0
      %1032 = vmatmul.mubr.bf16.gmra.mxu0 %v993
      %v1033 = vpop.f32.mrf.mxu0
      %v1034 = vadd.f32 0.0, %v1033
      %v1035 = vpop.f32.mrf.mxu0
      %v1036 = vpop.f32.mrf.mxu0
      %v1037 = vpop.f32.mrf.mxu0
      %1038 = vdwg.mxu0
      %v1040 = vsel %vm766, %v877, 0
      %v1043 = vsel %vm995, %v878, 0
      %1045 = vmatprep.subr.bf16.mxu0 0
      %1046 = vmatpush1.bf16.msra.mxu0 0
      %1047 = vmatprep.subr.bf16.mxu0 0
      %1048 = vmatpush1.bf16.msra.mxu0 0
      %1049 = vmatprep.subr.bf16.mxu0 0
      %1050 = vmatpush1.bf16.msra.mxu0 0
      %1051 = vmatprep.subr.bf16.mxu0 0
      %1052 = vmatpush1.bf16.msra.mxu0 0
      %1053 = vmatprep.subr.bf16.mxu0 0
      %1054 = vmatpush1.bf16.msra.mxu0 0
      %1055 = vmatprep.subr.bf16.mxu0 0
      %1056 = vmatpush1.bf16.msra.mxu0 0
      %1057 = vmatprep.subr.bf16.mxu0 0
      %1058 = vmatpush1.bf16.msra.mxu0 0
      %1059 = vmatprep.subr.bf16.mxu0 0
      %1060 = vmatpush1.bf16.msra.mxu0 %v1043
      %1061 = vmatprep.subr.bf16.mxu0 0
      %1062 = vmatpush2.bf16.msra.mxu0 0
      %1063 = vmatprep.subr.bf16.mxu0 0
      %1064 = vmatpush2.bf16.msra.mxu0 0
      %1065 = vmatprep.subr.bf16.mxu0 0
      %1066 = vmatpush2.bf16.msra.mxu0 0
      %1067 = vmatprep.subr.bf16.mxu0 0
      %1068 = vmatpush2.bf16.msra.mxu0 0
      %1069 = vmatprep.subr.bf16.mxu0 0
      %1070 = vmatpush2.bf16.msra.mxu0 0
      %1071 = vmatprep.subr.bf16.mxu0 0
      %1072 = vmatpush2.bf16.msra.mxu0 0
      %1073 = vmatprep.subr.bf16.mxu0 0
      %1074 = vmatpush2.bf16.msra.mxu0 0
      %1075 = vmatprep.subr.bf16.mxu0 0
      %1076 = vmatpush2.bf16.msra.mxu0 0
      %1077 = vmatprep.mubr.bf16.mxu0 0
      %1078 = vmatmul.mubr.bf16.gmra.mxu0 %v1040
      %v1079 = vpop.f32.mrf.mxu0
      %v1080 = vadd.f32 %v1034, %v1079
      %v1081 = vpop.f32.mrf.mxu0
      %v1082 = vpop.f32.mrf.mxu0
      %v1083 = vpop.f32.mrf.mxu0
      %1084 = vdwg.mxu0
      %1085 = vrot.lane.b32.xlu0 %v762, 112
      %v1086 = vpop.permute.xlu0 %1085
      %1087 = vrot.lane.b32.xlu0 %v762, 80
      %v1088 = vpop.permute.xlu0 %1087
      %v1090 = vsel %vm766, %v1086, 0
      %v1093 = vsel %vm766, %v1088, 0
      %1095 = vmatprep.subr.bf16.mxu0 0
      %1096 = vmatpush1.bf16.xpose.msra.mxu0 0
      %1097 = vmatprep.subr.bf16.mxu0 0
      %1098 = vmatpush1.bf16.xpose.msra.mxu0 0
      %1099 = vmatprep.subr.bf16.mxu0 0
      %1100 = vmatpush1.bf16.xpose.msra.mxu0 0
      %1101 = vmatprep.subr.bf16.mxu0 0
      %1102 = vmatpush1.bf16.xpose.msra.mxu0 0
      %1103 = vmatprep.subr.bf16.mxu0 0
      %1104 = vmatpush1.bf16.xpose.msra.mxu0 0
      %1105 = vmatprep.subr.bf16.mxu0 0
      %1106 = vmatpush1.bf16.xpose.msra.mxu0 0
      %1107 = vmatprep.subr.bf16.mxu0 0
      %1108 = vmatpush1.bf16.xpose.msra.mxu0 0
      %1109 = vmatprep.subr.bf16.mxu0 0
      %1110 = vmatpush1.bf16.xpose.msra.mxu0 %v1093
      %1111 = vmatprep.subr.bf16.mxu0 0
      %1112 = vmatpush2.bf16.xpose.msra.mxu0 0
      %1113 = vmatprep.subr.bf16.mxu0 0
      %1114 = vmatpush2.bf16.xpose.msra.mxu0 0
      %1115 = vmatprep.subr.bf16.mxu0 0
      %1116 = vmatpush2.bf16.xpose.msra.mxu0 0
      %1117 = vmatprep.subr.bf16.mxu0 0
      %1118 = vmatpush2.bf16.xpose.msra.mxu0 0
      %1119 = vmatprep.subr.bf16.mxu0 0
      %1120 = vmatpush2.bf16.xpose.msra.mxu0 0
      %1121 = vmatprep.subr.bf16.mxu0 0
      %1122 = vmatpush2.bf16.xpose.msra.mxu0 0
      %1123 = vmatprep.subr.bf16.mxu0 0
      %1124 = vmatpush2.bf16.xpose.msra.mxu0 0
      %1125 = vmatprep.subr.bf16.mxu0 0
      %1126 = vmatpush2.bf16.xpose.msra.mxu0 0
      %1127 = vmatprep.mubr.bf16.mxu0 0
      %1128 = vmatmul.mubr.bf16.gmra.mxu0 %v1090
      %v1129 = vpop.f32.mrf.mxu0
      %v1130 = vadd.f32 0.0, %v1129
      %v1131 = vpop.f32.mrf.mxu0
      %v1132 = vpop.f32.mrf.mxu0
      %v1133 = vpop.f32.mrf.mxu0
      %1134 = vdwg.mxu0
      %v1135 = vmul.f32 %v1130, 0.35355338
      %v1136 = vsel %vm814, %v1135, -inf
      %1137 = vmax.xlane.f32.xlu0 %v1136
      %v1138 = vpop.xlane.xlu0 %1137
      %v1139 = vsub.f32 %v1135, %v1138
      %v1140 = vmul.f32 %v1139, 1.442695
      %v1141 = vpow.pop %v1140
      %v1142 = vsel %vm814, %v1141, 0.0
      %1143 = vadd.xlane.f32.xlu0 %v1142
      %v1144 = vpop.xlane.xlu0 %1143
      %v1145 = vrcp.pop %v1144
      %v1146 = vmul.f32 %v1141, %v1145
      %v1147 = vpack.c.bf16 %v1146, %v1146
      %1148 = vrot.lane.b32.xlu0 %v762, 48
      %v1149 = vpop.permute.xlu0 %1148
      %v1151 = vsel %vm829, %v1147, 0
      %v1154 = vsel %vm833, %v1149, 0
      %1156 = vmatprep.subr.bf16.mxu0 0
      %1157 = vmatpush1.bf16.msra.mxu0 0
      %1158 = vmatprep.subr.bf16.mxu0 0
      %1159 = vmatpush1.bf16.msra.mxu0 0
      %1160 = vmatprep.subr.bf16.mxu0 0
      %1161 = vmatpush1.bf16.msra.mxu0 0
      %1162 = vmatprep.subr.bf16.mxu0 0
      %1163 = vmatpush1.bf16.msra.mxu0 0
      %1164 = vmatprep.subr.bf16.mxu0 0
      %1165 = vmatpush1.bf16.msra.mxu0 0
      %1166 = vmatprep.subr.bf16.mxu0 0
      %1167 = vmatpush1.bf16.msra.mxu0 0
      %1168 = vmatprep.subr.bf16.mxu0 0
      %1169 = vmatpush1.bf16.msra.mxu0 0
      %1170 = vmatprep.subr.bf16.mxu0 0
      %1171 = vmatpush1.bf16.msra.mxu0 %v1154
      %1172 = vmatprep.subr.bf16.mxu0 0
      %1173 = vmatpush2.bf16.msra.mxu0 0
      %1174 = vmatprep.subr.bf16.mxu0 0
      %1175 = vmatpush2.bf16.msra.mxu0 0
      %1176 = vmatprep.subr.bf16.mxu0 0
      %1177 = vmatpush2.bf16.msra.mxu0 0
      %1178 = vmatprep.subr.bf16.mxu0 0
      %1179 = vmatpush2.bf16.msra.mxu0 0
      %1180 = vmatprep.subr.bf16.mxu0 0
      %1181 = vmatpush2.bf16.msra.mxu0 0
      %1182 = vmatprep.subr.bf16.mxu0 0
      %1183 = vmatpush2.bf16.msra.mxu0 0
      %1184 = vmatprep.subr.bf16.mxu0 0
      %1185 = vmatpush2.bf16.msra.mxu0 0
      %1186 = vmatprep.subr.bf16.mxu0 0
      %1187 = vmatpush2.bf16.msra.mxu0 0
      %1188 = vmatprep.mubr.bf16.mxu0 0
      %1189 = vmatmul.mubr.bf16.gmra.mxu0 %v1151
      %v1190 = vpop.f32.mrf.mxu0
      %v1191 = vadd.f32 0.0, %v1190
      %v1192 = vpop.f32.mrf.mxu0
      %v1193 = vpop.f32.mrf.mxu0
      %v1194 = vpop.f32.mrf.mxu0
      %1195 = vdwg.mxu0
      %v1196 = vpack.c.bf16 %v1191, %v1191
      %v1197 = vpack.c.bf16 %v706, %v706
      %v1199 = vsel %vm766, %v1196, 0
      %v1202 = vsel %vm995, %v1197, 0
      %1204 = vmatprep.subr.bf16.mxu0 0
      %1205 = vmatpush1.bf16.msra.mxu0 0
      %1206 = vmatprep.subr.bf16.mxu0 0
      %1207 = vmatpush1.bf16.msra.mxu0 0
      %1208 = vmatprep.subr.bf16.mxu0 0
      %1209 = vmatpush1.bf16.msra.mxu0 0
      %1210 = vmatprep.subr.bf16.mxu0 0
      %1211 = vmatpush1.bf16.msra.mxu0 0
      %1212 = vmatprep.subr.bf16.mxu0 0
      %1213 = vmatpush1.bf16.msra.mxu0 0
      %1214 = vmatprep.subr.bf16.mxu0 0
      %1215 = vmatpush1.bf16.msra.mxu0 0
      %1216 = vmatprep.subr.bf16.mxu0 0
      %1217 = vmatpush1.bf16.msra.mxu0 0
      %1218 = vmatprep.subr.bf16.mxu0 0
      %1219 = vmatpush1.bf16.msra.mxu0 %v1202
      %1220 = vmatprep.subr.bf16.mxu0 0
      %1221 = vmatpush2.bf16.msra.mxu0 0
      %1222 = vmatprep.subr.bf16.mxu0 0
      %1223 = vmatpush2.bf16.msra.mxu0 0
      %1224 = vmatprep.subr.bf16.mxu0 0
      %1225 = vmatpush2.bf16.msra.mxu0 0
      %1226 = vmatprep.subr.bf16.mxu0 0
      %1227 = vmatpush2.bf16.msra.mxu0 0
      %1228 = vmatprep.subr.bf16.mxu0 0
      %1229 = vmatpush2.bf16.msra.mxu0 0
      %1230 = vmatprep.subr.bf16.mxu0 0
      %1231 = vmatpush2.bf16.msra.mxu0 0
      %1232 = vmatprep.subr.bf16.mxu0 0
      %1233 = vmatpush2.bf16.msra.mxu0 0
      %1234 = vmatprep.subr.bf16.mxu0 0
      %1235 = vmatpush2.bf16.msra.mxu0 0
      %1236 = vmatprep.mubr.bf16.mxu0 0
      %1237 = vmatmul.mubr.bf16.gmra.mxu0 %v1199
      %v1238 = vpop.f32.mrf.mxu0
      %v1239 = vadd.f32 0.0, %v1238
      %v1240 = vpop.f32.mrf.mxu0
      %v1241 = vpop.f32.mrf.mxu0
      %v1242 = vpop.f32.mrf.mxu0
      %1243 = vdwg.mxu0
      %v1244 = vadd.f32 %v1080, %v1239
      %1245 = vrot.lane.b32.xlu0 %v762, 104
      %v1246 = vpop.permute.xlu0 %1245
      %1247 = vrot.lane.b32.xlu0 %v762, 72
      %v1248 = vpop.permute.xlu0 %1247
      %v1250 = vsel %vm766, %v1246, 0
      %v1253 = vsel %vm766, %v1248, 0
      %1255 = vmatprep.subr.bf16.mxu0 0
      %1256 = vmatpush1.bf16.xpose.msra.mxu0 0
      %1257 = vmatprep.subr.bf16.mxu0 0
      %1258 = vmatpush1.bf16.xpose.msra.mxu0 0
      %1259 = vmatprep.subr.bf16.mxu0 0
      %1260 = vmatpush1.bf16.xpose.msra.mxu0 0
      %1261 = vmatprep.subr.bf16.mxu0 0
      %1262 = vmatpush1.bf16.xpose.msra.mxu0 0
      %1263 = vmatprep.subr.bf16.mxu0 0
      %1264 = vmatpush1.bf16.xpose.msra.mxu0 0
      %1265 = vmatprep.subr.bf16.mxu0 0
      %1266 = vmatpush1.bf16.xpose.msra.mxu0 0
      %1267 = vmatprep.subr.bf16.mxu0 0
      %1268 = vmatpush1.bf16.xpose.msra.mxu0 0
      %1269 = vmatprep.subr.bf16.mxu0 0
      %1270 = vmatpush1.bf16.xpose.msra.mxu0 %v1253
      %1271 = vmatprep.subr.bf16.mxu0 0
      %1272 = vmatpush2.bf16.xpose.msra.mxu0 0
      %1273 = vmatprep.subr.bf16.mxu0 0
      %1274 = vmatpush2.bf16.xpose.msra.mxu0 0
      %1275 = vmatprep.subr.bf16.mxu0 0
      %1276 = vmatpush2.bf16.xpose.msra.mxu0 0
      %1277 = vmatprep.subr.bf16.mxu0 0
      %1278 = vmatpush2.bf16.xpose.msra.mxu0 0
      %1279 = vmatprep.subr.bf16.mxu0 0
      %1280 = vmatpush2.bf16.xpose.msra.mxu0 0
      %1281 = vmatprep.subr.bf16.mxu0 0
      %1282 = vmatpush2.bf16.xpose.msra.mxu0 0
      %1283 = vmatprep.subr.bf16.mxu0 0
      %1284 = vmatpush2.bf16.xpose.msra.mxu0 0
      %1285 = vmatprep.subr.bf16.mxu0 0
      %1286 = vmatpush2.bf16.xpose.msra.mxu0 0
      %1287 = vmatprep.mubr.bf16.mxu0 0
      %1288 = vmatmul.mubr.bf16.gmra.mxu0 %v1250
      %v1289 = vpop.f32.mrf.mxu0
      %v1290 = vadd.f32 0.0, %v1289
      %v1291 = vpop.f32.mrf.mxu0
      %v1292 = vpop.f32.mrf.mxu0
      %v1293 = vpop.f32.mrf.mxu0
      %1294 = vdwg.mxu0
      %v1295 = vmul.f32 %v1290, 0.35355338
      %v1296 = vsel %vm814, %v1295, -inf
      %1297 = vmax.xlane.f32.xlu0 %v1296
      %v1298 = vpop.xlane.xlu0 %1297
      %v1299 = vsub.f32 %v1295, %v1298
      %v1300 = vmul.f32 %v1299, 1.442695
      %v1301 = vpow.pop %v1300
      %v1302 = vsel %vm814, %v1301, 0.0
      %1303 = vadd.xlane.f32.xlu0 %v1302
      %v1304 = vpop.xlane.xlu0 %1303
      %v1305 = vrcp.pop %v1304
      %v1306 = vmul.f32 %v1301, %v1305
      %v1307 = vpack.c.bf16 %v1306, %v1306
      %1308 = vrot.lane.b32.xlu0 %v762, 40
      %v1309 = vpop.permute.xlu0 %1308
      %v1311 = vsel %vm829, %v1307, 0
      %v1314 = vsel %vm833, %v1309, 0
      %1316 = vmatprep.subr.bf16.mxu0 0
      %1317 = vmatpush1.bf16.msra.mxu0 0
      %1318 = vmatprep.subr.bf16.mxu0 0
      %1319 = vmatpush1.bf16.msra.mxu0 0
      %1320 = vmatprep.subr.bf16.mxu0 0
      %1321 = vmatpush1.bf16.msra.mxu0 0
      %1322 = vmatprep.subr.bf16.mxu0 0
      %1323 = vmatpush1.bf16.msra.mxu0 0
      %1324 = vmatprep.subr.bf16.mxu0 0
      %1325 = vmatpush1.bf16.msra.mxu0 0
      %1326 = vmatprep.subr.bf16.mxu0 0
      %1327 = vmatpush1.bf16.msra.mxu0 0
      %1328 = vmatprep.subr.bf16.mxu0 0
      %1329 = vmatpush1.bf16.msra.mxu0 0
      %1330 = vmatprep.subr.bf16.mxu0 0
      %1331 = vmatpush1.bf16.msra.mxu0 %v1314
      %1332 = vmatprep.subr.bf16.mxu0 0
      %1333 = vmatpush2.bf16.msra.mxu0 0
      %1334 = vmatprep.subr.bf16.mxu0 0
      %1335 = vmatpush2.bf16.msra.mxu0 0
      %1336 = vmatprep.subr.bf16.mxu0 0
      %1337 = vmatpush2.bf16.msra.mxu0 0
      %1338 = vmatprep.subr.bf16.mxu0 0
      %1339 = vmatpush2.bf16.msra.mxu0 0
      %1340 = vmatprep.subr.bf16.mxu0 0
      %1341 = vmatpush2.bf16.msra.mxu0 0
      %1342 = vmatprep.subr.bf16.mxu0 0
      %1343 = vmatpush2.bf16.msra.mxu0 0
      %1344 = vmatprep.subr.bf16.mxu0 0
      %1345 = vmatpush2.bf16.msra.mxu0 0
      %1346 = vmatprep.subr.bf16.mxu0 0
      %1347 = vmatpush2.bf16.msra.mxu0 0
      %1348 = vmatprep.mubr.bf16.mxu0 0
      %1349 = vmatmul.mubr.bf16.gmra.mxu0 %v1311
      %v1350 = vpop.f32.mrf.mxu0
      %v1351 = vadd.f32 0.0, %v1350
      %v1352 = vpop.f32.mrf.mxu0
      %v1353 = vpop.f32.mrf.mxu0
      %v1354 = vpop.f32.mrf.mxu0
      %1355 = vdwg.mxu0
      %v1356 = vpack.c.bf16 %v1351, %v1351
      %v1357 = vpack.c.bf16 %v707, %v707
      %v1359 = vsel %vm766, %v1356, 0
      %v1362 = vsel %vm995, %v1357, 0
      %1364 = vmatprep.subr.bf16.mxu0 0
      %1365 = vmatpush1.bf16.msra.mxu0 0
      %1366 = vmatprep.subr.bf16.mxu0 0
      %1367 = vmatpush1.bf16.msra.mxu0 0
      %1368 = vmatprep.subr.bf16.mxu0 0
      %1369 = vmatpush1.bf16.msra.mxu0 0
      %1370 = vmatprep.subr.bf16.mxu0 0
      %1371 = vmatpush1.bf16.msra.mxu0 0
      %1372 = vmatprep.subr.bf16.mxu0 0
      %1373 = vmatpush1.bf16.msra.mxu0 0
      %1374 = vmatprep.subr.bf16.mxu0 0
      %1375 = vmatpush1.bf16.msra.mxu0 0
      %1376 = vmatprep.subr.bf16.mxu0 0
      %1377 = vmatpush1.bf16.msra.mxu0 0
      %1378 = vmatprep.subr.bf16.mxu0 0
      %1379 = vmatpush1.bf16.msra.mxu0 %v1362
      %1380 = vmatprep.subr.bf16.mxu0 0
      %1381 = vmatpush2.bf16.msra.mxu0 0
      %1382 = vmatprep.subr.bf16.mxu0 0
      %1383 = vmatpush2.bf16.msra.mxu0 0
      %1384 = vmatprep.subr.bf16.mxu0 0
      %1385 = vmatpush2.bf16.msra.mxu0 0
      %1386 = vmatprep.subr.bf16.mxu0 0
      %1387 = vmatpush2.bf16.msra.mxu0 0
      %1388 = vmatprep.subr.bf16.mxu0 0
      %1389 = vmatpush2.bf16.msra.mxu0 0
      %1390 = vmatprep.subr.bf16.mxu0 0
      %1391 = vmatpush2.bf16.msra.mxu0 0
      %1392 = vmatprep.subr.bf16.mxu0 0
      %1393 = vmatpush2.bf16.msra.mxu0 0
      %1394 = vmatprep.subr.bf16.mxu0 0
      %1395 = vmatpush2.bf16.msra.mxu0 0
      %1396 = vmatprep.mubr.bf16.mxu0 0
      %1397 = vmatmul.mubr.bf16.gmra.mxu0 %v1359
      %v1398 = vpop.f32.mrf.mxu0
      %v1399 = vadd.f32 0.0, %v1398
      %v1400 = vpop.f32.mrf.mxu0
      %v1401 = vpop.f32.mrf.mxu0
      %v1402 = vpop.f32.mrf.mxu0
      %1403 = vdwg.mxu0
      %v1404 = vadd.f32 %v1244, %v1399
      %v1406 = vlaneseq
      %v1407 = vshrl.u32 %v1406, 7
      %v1408 = vsub.s32 0, %v1407
      %v1409 = vrot.slane %v708, %v1408
      %v1411 = vadd.f32 %v1404, %v1409
      %v1412 = vadd.f32 %v697, %v1411
      %v1413 = vld [vmem:[%s6] sm:$0x1]
      %v1414 = vld [vmem:[%s7] sm:$0x1]
      %vm1415 = vcmask 259072
      %v1416 = vsel %vm1415, %v1412, 0.0
      %1417 = vadd.xlane.f32.xlu0 %v1416
      %v1418 = vpop.xlane.xlu0 %1417
      %v1419 = vrcp.pop 32.0
      %v1420 = vmul.f32 %v1418, %v1419
      %v1421 = vsub.f32 %v1412, %v1420
      %v1422 = vmul.f32 %v1421, %v1421
      %v1423 = vsel %vm1415, %v1422, 0.0
      %1424 = vadd.xlane.f32.xlu0 %v1423
      %v1425 = vpop.xlane.xlu0 %1424
      %v1426 = vmul.f32 %v1425, %v1419
      %v1427 = vadd.f32 %v1426, 1e-05
      %v1428 = vrsqrt.pop %v1427
      %v1429 = vmul.f32 %v1421, %v1428
      %v1431 = vlaneseq
      %v1432 = vshrl.u32 %v1431, 7
      %v1433 = vsub.s32 0, %v1432
      %v1434 = vrot.slane %v1413, %v1433
      %v1436 = vmul.f32 %v1429, %v1434
      %v1438 = vlaneseq
      %v1439 = vshrl.u32 %v1438, 7
      %v1440 = vsub.s32 0, %v1439
      %v1441 = vrot.slane %v1414, %v1440
      %v1443 = vadd.f32 %v1436, %v1441
      %v1444 = vld [vmem:[%s8] sm:$0xff]
      %v1445 = vld [vmem:[%s8 + $0x8] sm:$0xff]
      %v1446 = vld [vmem:[%s8 + $0x10] sm:$0xff]
      %v1447 = vld [vmem:[%s8 + $0x18] sm:$0xff]
      %v1448 = vpack.c.bf16 %v1443, %v1443
      %v1449 = vpack.c.bf16 %v1445, %v1444
      %v1450 = vpack.c.bf16 %v1447, %v1446
      %v1451 = vld [vmem:[%s9] sm:$0x1]
      %v1453 = vlaneseq
      %v1454 = vshrl.u32 %v1453, 7
      %v1455 = vsub.s32 0, %v1454
      %v1456 = vrot.slane %v1451, %v1455
      %v1459 = vsel %vm718, %v1448, 0
      %1461 = vmatprep.subr.bf16.mxu0 0
      %1462 = vmatpush1.bf16.msra.mxu0 0
      %1463 = vmatprep.subr.bf16.mxu0 0
      %1464 = vmatpush1.bf16.msra.mxu0 0
      %1465 = vmatprep.subr.bf16.mxu0 0
      %1466 = vmatpush1.bf16.msra.mxu0 0
      %1467 = vmatprep.subr.bf16.mxu0 0
      %1468 = vmatpush1.bf16.msra.mxu0 0
      %1469 = vmatprep.subr.bf16.mxu0 0
      %1470 = vmatpush1.bf16.msra.mxu0 0
      %1471 = vmatprep.subr.bf16.mxu0 0
      %1472 = vmatpush1.bf16.msra.mxu0 0
      %1473 = vmatprep.subr.bf16.mxu0 0
      %1474 = vmatpush1.bf16.msra.mxu0 %v1450
      %1475 = vmatprep.subr.bf16.mxu0 0
      %1476 = vmatpush1.bf16.msra.mxu0 %v1449
      %1477 = vmatprep.subr.bf16.mxu0 0
      %1478 = vmatpush2.bf16.msra.mxu0 0
      %1479 = vmatprep.subr.bf16.mxu0 0
      %1480 = vmatpush2.bf16.msra.mxu0 0
      %1481 = vmatprep.subr.bf16.mxu0 0
      %1482 = vmatpush2.bf16.msra.mxu0 0
      %1483 = vmatprep.subr.bf16.mxu0 0
      %1484 = vmatpush2.bf16.msra.mxu0 0
      %1485 = vmatprep.subr.bf16.mxu0 0
      %1486 = vmatpush2.bf16.msra.mxu0 0
      %1487 = vmatprep.subr.bf16.mxu0 0
      %1488 = vmatpush2.bf16.msra.mxu0 0
      %1489 = vmatprep.subr.bf16.mxu0 0
      %1490 = vmatpush2.bf16.msra.mxu0 0
      %1491 = vmatprep.subr.bf16.mxu0 0
      %1492 = vmatpush2.bf16.msra.mxu0 0
      %1493 = vmatprep.mubr.bf16.mxu0 0
      %1494 = vmatmul.mubr.bf16.gmra.mxu0 %v1459
      %v1495 = vpop.f32.mrf.mxu0
      %v1496 = vadd.f32 %v1456, %v1495
      %v1497 = vpop.f32.mrf.mxu0
      %v1498 = vpop.f32.mrf.mxu0
      %v1499 = vpop.f32.mrf.mxu0
      %1500 = vdwg.mxu0
      %v1501 = vld [vmem:[%s10] sm:$0xff]
      %v1502 = vld [vmem:[%s10 + $0x8] sm:$0xff]
      %v1503 = vld [vmem:[%s10 + $0x10] sm:$0xff]
      %v1504 = vld [vmem:[%s10 + $0x18] sm:$0xff]
      %v1505 = vpack.c.bf16 %v698, %v698
      %v1506 = vpack.c.bf16 %v1502, %v1501
      %v1507 = vpack.c.bf16 %v1504, %v1503
      %v1508 = vld [vmem:[%s11] sm:$0x1]
      %v1510 = vlaneseq
      %v1511 = vshrl.u32 %v1510, 7
      %v1512 = vsub.s32 0, %v1511
      %v1513 = vrot.slane %v1508, %v1512
      %v1516 = vsel %vm718, %v1505, 0
      %1518 = vmatprep.subr.bf16.mxu0 0
      %1519 = vmatpush1.bf16.msra.mxu0 0
      %1520 = vmatprep.subr.bf16.mxu0 0
      %1521 = vmatpush1.bf16.msra.mxu0 0
      %1522 = vmatprep.subr.bf16.mxu0 0
      %1523 = vmatpush1.bf16.msra.mxu0 0
      %1524 = vmatprep.subr.bf16.mxu0 0
      %1525 = vmatpush1.bf16.msra.mxu0 0
      %1526 = vmatprep.subr.bf16.mxu0 0
      %1527 = vmatpush1.bf16.msra.mxu0 0
      %1528 = vmatprep.subr.bf16.mxu0 0
      %1529 = vmatpush1.bf16.msra.mxu0 0
      %1530 = vmatprep.subr.bf16.mxu0 0
      %1531 = vmatpush1.bf16.msra.mxu0 %v1507
      %1532 = vmatprep.subr.bf16.mxu0 0
      %1533 = vmatpush1.bf16.msra.mxu0 %v1506
      %1534 = vmatprep.subr.bf16.mxu0 0
      %1535 = vmatpush2.bf16.msra.mxu0 0
      %1536 = vmatprep.subr.bf16.mxu0 0
      %1537 = vmatpush2.bf16.msra.mxu0 0
      %1538 = vmatprep.subr.bf16.mxu0 0
      %1539 = vmatpush2.bf16.msra.mxu0 0
      %1540 = vmatprep.subr.bf16.mxu0 0
      %1541 = vmatpush2.bf16.msra.mxu0 0
      %1542 = vmatprep.subr.bf16.mxu0 0
      %1543 = vmatpush2.bf16.msra.mxu0 0
      %1544 = vmatprep.subr.bf16.mxu0 0
      %1545 = vmatpush2.bf16.msra.mxu0 0
      %1546 = vmatprep.subr.bf16.mxu0 0
      %1547 = vmatpush2.bf16.msra.mxu0 0
      %1548 = vmatprep.subr.bf16.mxu0 0
      %1549 = vmatpush2.bf16.msra.mxu0 0
      %1550 = vmatprep.mubr.bf16.mxu0 0
      %1551 = vmatmul.mubr.bf16.gmra.mxu0 %v1516
      %v1552 = vpop.f32.mrf.mxu0
      %v1553 = vadd.f32 %v1513, %v1552
      %v1554 = vpop.f32.mrf.mxu0
      %v1555 = vpop.f32.mrf.mxu0
      %v1556 = vpop.f32.mrf.mxu0
      %1557 = vdwg.mxu0
      %v1558 = vld [vmem:[%s12] sm:$0xff]
      %v1559 = vld [vmem:[%s12 + $0x8] sm:$0xff]
      %v1560 = vld [vmem:[%s12 + $0x10] sm:$0xff]
      %v1561 = vld [vmem:[%s12 + $0x18] sm:$0xff]
      %v1562 = vld [vmem:[%s13] sm:$0x1]
      %v1563 = vpack.c.bf16 %v1496, %v1496
      %v1564 = vpack.c.bf16 %v1553, %v1553
      %v1566 = vsel %vm766, %v1563, 0
      %v1569 = vsel %vm766, %v1564, 0
      %1571 = vmatprep.subr.bf16.mxu0 0
      %1572 = vmatpush1.bf16.xpose.msra.mxu0 0
      %1573 = vmatprep.subr.bf16.mxu0 0
      %1574 = vmatpush1.bf16.xpose.msra.mxu0 0
      %1575 = vmatprep.subr.bf16.mxu0 0
      %1576 = vmatpush1.bf16.xpose.msra.mxu0 0
      %1577 = vmatprep.subr.bf16.mxu0 0
      %1578 = vmatpush1.bf16.xpose.msra.mxu0 0
      %1579 = vmatprep.subr.bf16.mxu0 0
      %1580 = vmatpush1.bf16.xpose.msra.mxu0 0
      %1581 = vmatprep.subr.bf16.mxu0 0
      %1582 = vmatpush1.bf16.xpose.msra.mxu0 0
      %1583 = vmatprep.subr.bf16.mxu0 0
      %1584 = vmatpush1.bf16.xpose.msra.mxu0 0
      %1585 = vmatprep.subr.bf16.mxu0 0
      %1586 = vmatpush1.bf16.xpose.msra.mxu0 %v1569
      %1587 = vmatprep.subr.bf16.mxu0 0
      %1588 = vmatpush2.bf16.xpose.msra.mxu0 0
      %1589 = vmatprep.subr.bf16.mxu0 0
      %1590 = vmatpush2.bf16.xpose.msra.mxu0 0
      %1591 = vmatprep.subr.bf16.mxu0 0
      %1592 = vmatpush2.bf16.xpose.msra.mxu0 0
      %1593 = vmatprep.subr.bf16.mxu0 0
      %1594 = vmatpush2.bf16.xpose.msra.mxu0 0
      %1595 = vmatprep.subr.bf16.mxu0 0
      %1596 = vmatpush2.bf16.xpose.msra.mxu0 0
      %1597 = vmatprep.subr.bf16.mxu0 0
      %1598 = vmatpush2.bf16.xpose.msra.mxu0 0
      %1599 = vmatprep.subr.bf16.mxu0 0
      %1600 = vmatpush2.bf16.xpose.msra.mxu0 0
      %1601 = vmatprep.subr.bf16.mxu0 0
      %1602 = vmatpush2.bf16.xpose.msra.mxu0 0
      %1603 = vmatprep.mubr.bf16.mxu0 0
      %1604 = vmatmul.mubr.bf16.gmra.mxu0 %v1566
      %v1605 = vpop.f32.mrf.mxu0
      %v1606 = vadd.f32 0.0, %v1605
      %v1607 = vpop.f32.mrf.mxu0
      %v1608 = vpop.f32.mrf.mxu0
      %v1609 = vpop.f32.mrf.mxu0
      %1610 = vdwg.mxu0
      %v1611 = vmul.f32 %v1606, 0.35355338
      %vm1612 = vcmask 37888
      %v1613 = vsel %vm1612, %v1611, -inf
      %1614 = vmax.xlane.f32.xlu0 %v1613
      %v1615 = vpop.xlane.xlu0 %1614
      %v1616 = vsub.f32 %v1611, %v1615
      %v1617 = vmul.f32 %v1616, 1.442695
      %v1618 = vpow.pop %v1617
      %v1619 = vsel %vm1612, %v1618, 0.0
      %1620 = vadd.xlane.f32.xlu0 %v1619
      %v1621 = vpop.xlane.xlu0 %1620
      %v1622 = vrcp.pop %v1621
      %v1623 = vmul.f32 %v1618, %v1622
      %v1624 = vpack.c.bf16 %v1623, %v1623
      %1626 = vrot.lane.b32.xlu0 %v1564, 96
      %v1627 = vpop.permute.xlu0 %1626
      %vm1628 = vcmask 39936
      %v1630 = vsel %vm1628, %v1624, 0
      %vm1632 = vcmask 1041408
      %v1633 = vsel %vm1632, 4294967295, 65535
      %v1634 = vsel %vm833, %v1633, 0
      %v1636 = vand.u32 %v1627, %v1634
      %1638 = vmatprep.subr.bf16.mxu0 0
      %1639 = vmatpush1.bf16.msra.mxu0 0
      %1640 = vmatprep.subr.bf16.mxu0 0
      %1641 = vmatpush1.bf16.msra.mxu0 0
      %1642 = vmatprep.subr.bf16.mxu0 0
      %1643 = vmatpush1.bf16.msra.mxu0 0
      %1644 = vmatprep.subr.bf16.mxu0 0
      %1645 = vmatpush1.bf16.msra.mxu0 0
      %1646 = vmatprep.subr.bf16.mxu0 0
      %1647 = vmatpush1.bf16.msra.mxu0 0
      %1648 = vmatprep.subr.bf16.mxu0 0
      %1649 = vmatpush1.bf16.msra.mxu0 0
      %1650 = vmatprep.subr.bf16.mxu0 0
      %1651 = vmatpush1.bf16.msra.mxu0 0
      %1652 = vmatprep.subr.bf16.mxu0 0
      %1653 = vmatpush1.bf16.msra.mxu0 %v1636
      %1654 = vmatprep.subr.bf16.mxu0 0
      %1655 = vmatpush2.bf16.msra.mxu0 0
      %1656 = vmatprep.subr.bf16.mxu0 0
      %1657 = vmatpush2.bf16.msra.mxu0 0
      %1658 = vmatprep.subr.bf16.mxu0 0
      %1659 = vmatpush2.bf16.msra.mxu0 0
      %1660 = vmatprep.subr.bf16.mxu0 0
      %1661 = vmatpush2.bf16.msra.mxu0 0
      %1662 = vmatprep.subr.bf16.mxu0 0
      %1663 = vmatpush2.bf16.msra.mxu0 0
      %1664 = vmatprep.subr.bf16.mxu0 0
      %1665 = vmatpush2.bf16.msra.mxu0 0
      %1666 = vmatprep.subr.bf16.mxu0 0
      %1667 = vmatpush2.bf16.msra.mxu0 0
      %1668 = vmatprep.subr.bf16.mxu0 0
      %1669 = vmatpush2.bf16.msra.mxu0 0
      %1670 = vmatprep.mubr.bf16.mxu0 0
      %1671 = vmatmul.mubr.bf16.gmra.mxu0 %v1630
      %v1672 = vpop.f32.mrf.mxu0
      %v1673 = vadd.f32 0.0, %v1672
      %v1674 = vpop.f32.mrf.mxu0
      %v1675 = vpop.f32.mrf.mxu0
      %v1676 = vpop.f32.mrf.mxu0
      %1677 = vdwg.mxu0
      %v1678 = vpack.c.bf16 %v1673, %v1673
      %v1679 = vpack.c.bf16 %v1558, %v1558
      %1681 = vrot.lane.b32.xlu0 %v1563, 120
      %v1682 = vpop.permute.xlu0 %1681
      %1683 = vrot.lane.b32.xlu0 %v1564, 120
      %v1684 = vpop.permute.xlu0 %1683
      %v1686 = vsel %vm766, %v1682, 0
      %v1689 = vsel %vm766, %v1684, 0
      %1691 = vmatprep.subr.bf16.mxu0 0
      %1692 = vmatpush1.bf16.xpose.msra.mxu0 0
      %1693 = vmatprep.subr.bf16.mxu0 0
      %1694 = vmatpush1.bf16.xpose.msra.mxu0 0
      %1695 = vmatprep.subr.bf16.mxu0 0
      %1696 = vmatpush1.bf16.xpose.msra.mxu0 0
      %1697 = vmatprep.subr.bf16.mxu0 0
      %1698 = vmatpush1.bf16.xpose.msra.mxu0 0
      %1699 = vmatprep.subr.bf16.mxu0 0
      %1700 = vmatpush1.bf16.xpose.msra.mxu0 0
      %1701 = vmatprep.subr.bf16.mxu0 0
      %1702 = vmatpush1.bf16.xpose.msra.mxu0 0
      %1703 = vmatprep.subr.bf16.mxu0 0
      %1704 = vmatpush1.bf16.xpose.msra.mxu0 0
      %1705 = vmatprep.subr.bf16.mxu0 0
      %1706 = vmatpush1.bf16.xpose.msra.mxu0 %v1689
      %1707 = vmatprep.subr.bf16.mxu0 0
      %1708 = vmatpush2.bf16.xpose.msra.mxu0 0
      %1709 = vmatprep.subr.bf16.mxu0 0
      %1710 = vmatpush2.bf16.xpose.msra.mxu0 0
      %1711 = vmatprep.subr.bf16.mxu0 0
      %1712 = vmatpush2.bf16.xpose.msra.mxu0 0
      %1713 = vmatprep.subr.bf16.mxu0 0
      %1714 = vmatpush2.bf16.xpose.msra.mxu0 0
      %1715 = vmatprep.subr.bf16.mxu0 0
      %1716 = vmatpush2.bf16.xpose.msra.mxu0 0
      %1717 = vmatprep.subr.bf16.mxu0 0
      %1718 = vmatpush2.bf16.xpose.msra.mxu0 0
      %1719 = vmatprep.subr.bf16.mxu0 0
      %1720 = vmatpush2.bf16.xpose.msra.mxu0 0
      %1721 = vmatprep.subr.bf16.mxu0 0
      %1722 = vmatpush2.bf16.xpose.msra.mxu0 0
      %1723 = vmatprep.mubr.bf16.mxu0 0
      %1724 = vmatmul.mubr.bf16.gmra.mxu0 %v1686
      %v1725 = vpop.f32.mrf.mxu0
      %v1726 = vadd.f32 0.0, %v1725
      %v1727 = vpop.f32.mrf.mxu0
      %v1728 = vpop.f32.mrf.mxu0
      %v1729 = vpop.f32.mrf.mxu0
      %1730 = vdwg.mxu0
      %v1731 = vmul.f32 %v1726, 0.35355338
      %v1732 = vsel %vm1612, %v1731, -inf
      %1733 = vmax.xlane.f32.xlu0 %v1732
      %v1734 = vpop.xlane.xlu0 %1733
      %v1735 = vsub.f32 %v1731, %v1734
      %v1736 = vmul.f32 %v1735, 1.442695
      %v1737 = vpow.pop %v1736
      %v1738 = vsel %vm1612, %v1737, 0.0
      %1739 = vadd.xlane.f32.xlu0 %v1738
      %v1740 = vpop.xlane.xlu0 %1739
      %v1741 = vrcp.pop %v1740
      %v1742 = vmul.f32 %v1737, %v1741
      %v1743 = vpack.c.bf16 %v1742, %v1742
      %1744 = vrot.lane.b32.xlu0 %v1564, 88
      %v1745 = vpop.permute.xlu0 %1744
      %v1747 = vsel %vm1628, %v1743, 0
      %v1750 = vand.u32 %v1745, %v1634
      %1752 = vmatprep.subr.bf16.mxu0 0
      %1753 = vmatpush1.bf16.msra.mxu0 0
      %1754 = vmatprep.subr.bf16.mxu0 0
      %1755 = vmatpush1.bf16.msra.mxu0 0
      %1756 = vmatprep.subr.bf16.mxu0 0
      %1757 = vmatpush1.bf16.msra.mxu0 0
      %1758 = vmatprep.subr.bf16.mxu0 0
      %1759 = vmatpush1.bf16.msra.mxu0 0
      %1760 = vmatprep.subr.bf16.mxu0 0
      %1761 = vmatpush1.bf16.msra.mxu0 0
      %1762 = vmatprep.subr.bf16.mxu0 0
      %1763 = vmatpush1.bf16.msra.mxu0 0
      %1764 = vmatprep.subr.bf16.mxu0 0
      %1765 = vmatpush1.bf16.msra.mxu0 0
      %1766 = vmatprep.subr.bf16.mxu0 0
      %1767 = vmatpush1.bf16.msra.mxu0 %v1750
      %1768 = vmatprep.subr.bf16.mxu0 0
      %1769 = vmatpush2.bf16.msra.mxu0 0
      %1770 = vmatprep.subr.bf16.mxu0 0
      %1771 = vmatpush2.bf16.msra.mxu0 0
      %1772 = vmatprep.subr.bf16.mxu0 0
      %1773 = vmatpush2.bf16.msra.mxu0 0
      %1774 = vmatprep.subr.bf16.mxu0 0
      %1775 = vmatpush2.bf16.msra.mxu0 0
      %1776 = vmatprep.subr.bf16.mxu0 0
      %1777 = vmatpush2.bf16.msra.mxu0 0
      %1778 = vmatprep.subr.bf16.mxu0 0
      %1779 = vmatpush2.bf16.msra.mxu0 0
      %1780 = vmatprep.subr.bf16.mxu0 0
      %1781 = vmatpush2.bf16.msra.mxu0 0
      %1782 = vmatprep.subr.bf16.mxu0 0
      %1783 = vmatpush2.bf16.msra.mxu0 0
      %1784 = vmatprep.mubr.bf16.mxu0 0
      %1785 = vmatmul.mubr.bf16.gmra.mxu0 %v1747
      %v1786 = vpop.f32.mrf.mxu0
      %v1787 = vadd.f32 0.0, %v1786
      %v1788 = vpop.f32.mrf.mxu0
      %v1789 = vpop.f32.mrf.mxu0
      %v1790 = vpop.f32.mrf.mxu0
      %1791 = vdwg.mxu0
      %v1792 = vpack.c.bf16 %v1787, %v1787
      %v1793 = vpack.c.bf16 %v1559, %v1559
      %v1795 = vsel %vm766, %v1792, 0
      %v1798 = vsel %vm995, %v1793, 0
      %1800 = vmatprep.subr.bf16.mxu0 0
      %1801 = vmatpush1.bf16.msra.mxu0 0
      %1802 = vmatprep.subr.bf16.mxu0 0
      %1803 = vmatpush1.bf16.msra.mxu0 0
      %1804 = vmatprep.subr.bf16.mxu0 0
      %1805 = vmatpush1.bf16.msra.mxu0 0
      %1806 = vmatprep.subr.bf16.mxu0 0
      %1807 = vmatpush1.bf16.msra.mxu0 0
      %1808 = vmatprep.subr.bf16.mxu0 0
      %1809 = vmatpush1.bf16.msra.mxu0 0
      %1810 = vmatprep.subr.bf16.mxu0 0
      %1811 = vmatpush1.bf16.msra.mxu0 0
      %1812 = vmatprep.subr.bf16.mxu0 0
      %1813 = vmatpush1.bf16.msra.mxu0 0
      %1814 = vmatprep.subr.bf16.mxu0 0
      %1815 = vmatpush1.bf16.msra.mxu0 %v1798
      %1816 = vmatprep.subr.bf16.mxu0 0
      %1817 = vmatpush2.bf16.msra.mxu0 0
      %1818 = vmatprep.subr.bf16.mxu0 0
      %1819 = vmatpush2.bf16.msra.mxu0 0
      %1820 = vmatprep.subr.bf16.mxu0 0
      %1821 = vmatpush2.bf16.msra.mxu0 0
      %1822 = vmatprep.subr.bf16.mxu0 0
      %1823 = vmatpush2.bf16.msra.mxu0 0
      %1824 = vmatprep.subr.bf16.mxu0 0
      %1825 = vmatpush2.bf16.msra.mxu0 0
      %1826 = vmatprep.subr.bf16.mxu0 0
      %1827 = vmatpush2.bf16.msra.mxu0 0
      %1828 = vmatprep.subr.bf16.mxu0 0
      %1829 = vmatpush2.bf16.msra.mxu0 0
      %1830 = vmatprep.subr.bf16.mxu0 0
      %1831 = vmatpush2.bf16.msra.mxu0 0
      %1832 = vmatprep.mubr.bf16.mxu0 0
      %1833 = vmatmul.mubr.bf16.gmra.mxu0 %v1795
      %v1834 = vpop.f32.mrf.mxu0
      %v1835 = vadd.f32 0.0, %v1834
      %v1836 = vpop.f32.mrf.mxu0
      %v1837 = vpop.f32.mrf.mxu0
      %v1838 = vpop.f32.mrf.mxu0
      %1839 = vdwg.mxu0
      %v1841 = vsel %vm766, %v1678, 0
      %v1844 = vsel %vm995, %v1679, 0
      %1846 = vmatprep.subr.bf16.mxu0 0
      %1847 = vmatpush1.bf16.msra.mxu0 0
      %1848 = vmatprep.subr.bf16.mxu0 0
      %1849 = vmatpush1.bf16.msra.mxu0 0
      %1850 = vmatprep.subr.bf16.mxu0 0
      %1851 = vmatpush1.bf16.msra.mxu0 0
      %1852 = vmatprep.subr.bf16.mxu0 0
      %1853 = vmatpush1.bf16.msra.mxu0 0
      %1854 = vmatprep.subr.bf16.mxu0 0
      %1855 = vmatpush1.bf16.msra.mxu0 0
      %1856 = vmatprep.subr.bf16.mxu0 0
      %1857 = vmatpush1.bf16.msra.mxu0 0
      %1858 = vmatprep.subr.bf16.mxu0 0
      %1859 = vmatpush1.bf16.msra.mxu0 0
      %1860 = vmatprep.subr.bf16.mxu0 0
      %1861 = vmatpush1.bf16.msra.mxu0 %v1844
      %1862 = vmatprep.subr.bf16.mxu0 0
      %1863 = vmatpush2.bf16.msra.mxu0 0
      %1864 = vmatprep.subr.bf16.mxu0 0
      %1865 = vmatpush2.bf16.msra.mxu0 0
      %1866 = vmatprep.subr.bf16.mxu0 0
      %1867 = vmatpush2.bf16.msra.mxu0 0
      %1868 = vmatprep.subr.bf16.mxu0 0
      %1869 = vmatpush2.bf16.msra.mxu0 0
      %1870 = vmatprep.subr.bf16.mxu0 0
      %1871 = vmatpush2.bf16.msra.mxu0 0
      %1872 = vmatprep.subr.bf16.mxu0 0
      %1873 = vmatpush2.bf16.msra.mxu0 0
      %1874 = vmatprep.subr.bf16.mxu0 0
      %1875 = vmatpush2.bf16.msra.mxu0 0
      %1876 = vmatprep.subr.bf16.mxu0 0
      %1877 = vmatpush2.bf16.msra.mxu0 0
      %1878 = vmatprep.mubr.bf16.mxu0 0
      %1879 = vmatmul.mubr.bf16.gmra.mxu0 %v1841
      %v1880 = vpop.f32.mrf.mxu0
      %v1881 = vadd.f32 %v1835, %v1880
      %v1882 = vpop.f32.mrf.mxu0
      %v1883 = vpop.f32.mrf.mxu0
      %v1884 = vpop.f32.mrf.mxu0
      %1885 = vdwg.mxu0
      %1886 = vrot.lane.b32.xlu0 %v1563, 112
      %v1887 = vpop.permute.xlu0 %1886
      %1888 = vrot.lane.b32.xlu0 %v1564, 112
      %v1889 = vpop.permute.xlu0 %1888
      %v1891 = vsel %vm766, %v1887, 0
      %v1894 = vsel %vm766, %v1889, 0
      %1896 = vmatprep.subr.bf16.mxu0 0
      %1897 = vmatpush1.bf16.xpose.msra.mxu0 0
      %1898 = vmatprep.subr.bf16.mxu0 0
      %1899 = vmatpush1.bf16.xpose.msra.mxu0 0
      %1900 = vmatprep.subr.bf16.mxu0 0
      %1901 = vmatpush1.bf16.xpose.msra.mxu0 0
      %1902 = vmatprep.subr.bf16.mxu0 0
      %1903 = vmatpush1.bf16.xpose.msra.mxu0 0
      %1904 = vmatprep.subr.bf16.mxu0 0
      %1905 = vmatpush1.bf16.xpose.msra.mxu0 0
      %1906 = vmatprep.subr.bf16.mxu0 0
      %1907 = vmatpush1.bf16.xpose.msra.mxu0 0
      %1908 = vmatprep.subr.bf16.mxu0 0
      %1909 = vmatpush1.bf16.xpose.msra.mxu0 0
      %1910 = vmatprep.subr.bf16.mxu0 0
      %1911 = vmatpush1.bf16.xpose.msra.mxu0 %v1894
      %1912 = vmatprep.subr.bf16.mxu0 0
      %1913 = vmatpush2.bf16.xpose.msra.mxu0 0
      %1914 = vmatprep.subr.bf16.mxu0 0
      %1915 = vmatpush2.bf16.xpose.msra.mxu0 0
      %1916 = vmatprep.subr.bf16.mxu0 0
      %1917 = vmatpush2.bf16.xpose.msra.mxu0 0
      %1918 = vmatprep.subr.bf16.mxu0 0
      %1919 = vmatpush2.bf16.xpose.msra.mxu0 0
      %1920 = vmatprep.subr.bf16.mxu0 0
      %1921 = vmatpush2.bf16.xpose.msra.mxu0 0
      %1922 = vmatprep.subr.bf16.mxu0 0
      %1923 = vmatpush2.bf16.xpose.msra.mxu0 0
      %1924 = vmatprep.subr.bf16.mxu0 0
      %1925 = vmatpush2.bf16.xpose.msra.mxu0 0
      %1926 = vmatprep.subr.bf16.mxu0 0
      %1927 = vmatpush2.bf16.xpose.msra.mxu0 0
      %1928 = vmatprep.mubr.bf16.mxu0 0
      %1929 = vmatmul.mubr.bf16.gmra.mxu0 %v1891
      %v1930 = vpop.f32.mrf.mxu0
      %v1931 = vadd.f32 0.0, %v1930
      %v1932 = vpop.f32.mrf.mxu0
      %v1933 = vpop.f32.mrf.mxu0
      %v1934 = vpop.f32.mrf.mxu0
      %1935 = vdwg.mxu0
      %v1936 = vmul.f32 %v1931, 0.35355338
      %v1937 = vsel %vm1612, %v1936, -inf
      %1938 = vmax.xlane.f32.xlu0 %v1937
      %v1939 = vpop.xlane.xlu0 %1938
      %v1940 = vsub.f32 %v1936, %v1939
      %v1941 = vmul.f32 %v1940, 1.442695
      %v1942 = vpow.pop %v1941
      %v1943 = vsel %vm1612, %v1942, 0.0
      %1944 = vadd.xlane.f32.xlu0 %v1943
      %v1945 = vpop.xlane.xlu0 %1944
      %v1946 = vrcp.pop %v1945
      %v1947 = vmul.f32 %v1942, %v1946
      %v1948 = vpack.c.bf16 %v1947, %v1947
      %1949 = vrot.lane.b32.xlu0 %v1564, 80
      %v1950 = vpop.permute.xlu0 %1949
      %v1952 = vsel %vm1628, %v1948, 0
      %v1955 = vand.u32 %v1950, %v1634
      %1957 = vmatprep.subr.bf16.mxu0 0
      %1958 = vmatpush1.bf16.msra.mxu0 0
      %1959 = vmatprep.subr.bf16.mxu0 0
      %1960 = vmatpush1.bf16.msra.mxu0 0
      %1961 = vmatprep.subr.bf16.mxu0 0
      %1962 = vmatpush1.bf16.msra.mxu0 0
      %1963 = vmatprep.subr.bf16.mxu0 0
      %1964 = vmatpush1.bf16.msra.mxu0 0
      %1965 = vmatprep.subr.bf16.mxu0 0
      %1966 = vmatpush1.bf16.msra.mxu0 0
      %1967 = vmatprep.subr.bf16.mxu0 0
      %1968 = vmatpush1.bf16.msra.mxu0 0
      %1969 = vmatprep.subr.bf16.mxu0 0
      %1970 = vmatpush1.bf16.msra.mxu0 0
      %1971 = vmatprep.subr.bf16.mxu0 0
      %1972 = vmatpush1.bf16.msra.mxu0 %v1955
      %1973 = vmatprep.subr.bf16.mxu0 0
      %1974 = vmatpush2.bf16.msra.mxu0 0
      %1975 = vmatprep.subr.bf16.mxu0 0
      %1976 = vmatpush2.bf16.msra.mxu0 0
      %1977 = vmatprep.subr.bf16.mxu0 0
      %1978 = vmatpush2.bf16.msra.mxu0 0
      %1979 = vmatprep.subr.bf16.mxu0 0
      %1980 = vmatpush2.bf16.msra.mxu0 0
      %1981 = vmatprep.subr.bf16.mxu0 0
      %1982 = vmatpush2.bf16.msra.mxu0 0
      %1983 = vmatprep.subr.bf16.mxu0 0
      %1984 = vmatpush2.bf16.msra.mxu0 0
      %1985 = vmatprep.subr.bf16.mxu0 0
      %1986 = vmatpush2.bf16.msra.mxu0 0
      %1987 = vmatprep.subr.bf16.mxu0 0
      %1988 = vmatpush2.bf16.msra.mxu0 0
      %1989 = vmatprep.mubr.bf16.mxu0 0
      %1990 = vmatmul.mubr.bf16.gmra.mxu0 %v1952
      %v1991 = vpop.f32.mrf.mxu0
      %v1992 = vadd.f32 0.0, %v1991
      %v1993 = vpop.f32.mrf.mxu0
      %v1994 = vpop.f32.mrf.mxu0
      %v1995 = vpop.f32.mrf.mxu0
      %1996 = vdwg.mxu0
      %v1997 = vpack.c.bf16 %v1992, %v1992
      %v1998 = vpack.c.bf16 %v1560, %v1560
      %v2000 = vsel %vm766, %v1997, 0
      %v2003 = vsel %vm995, %v1998, 0
      %2005 = vmatprep.subr.bf16.mxu0 0
      %2006 = vmatpush1.bf16.msra.mxu0 0
      %2007 = vmatprep.subr.bf16.mxu0 0
      %2008 = vmatpush1.bf16.msra.mxu0 0
      %2009 = vmatprep.subr.bf16.mxu0 0
      %2010 = vmatpush1.bf16.msra.mxu0 0
      %2011 = vmatprep.subr.bf16.mxu0 0
      %2012 = vmatpush1.bf16.msra.mxu0 0
      %2013 = vmatprep.subr.bf16.mxu0 0
      %2014 = vmatpush1.bf16.msra.mxu0 0
      %2015 = vmatprep.subr.bf16.mxu0 0
      %2016 = vmatpush1.bf16.msra.mxu0 0
      %2017 = vmatprep.subr.bf16.mxu0 0
      %2018 = vmatpush1.bf16.msra.mxu0 0
      %2019 = vmatprep.subr.bf16.mxu0 0
      %2020 = vmatpush1.bf16.msra.mxu0 %v2003
      %2021 = vmatprep.subr.bf16.mxu0 0
      %2022 = vmatpush2.bf16.msra.mxu0 0
      %2023 = vmatprep.subr.bf16.mxu0 0
      %2024 = vmatpush2.bf16.msra.mxu0 0
      %2025 = vmatprep.subr.bf16.mxu0 0
      %2026 = vmatpush2.bf16.msra.mxu0 0
      %2027 = vmatprep.subr.bf16.mxu0 0
      %2028 = vmatpush2.bf16.msra.mxu0 0
      %2029 = vmatprep.subr.bf16.mxu0 0
      %2030 = vmatpush2.bf16.msra.mxu0 0
      %2031 = vmatprep.subr.bf16.mxu0 0
      %2032 = vmatpush2.bf16.msra.mxu0 0
      %2033 = vmatprep.subr.bf16.mxu0 0
      %2034 = vmatpush2.bf16.msra.mxu0 0
      %2035 = vmatprep.subr.bf16.mxu0 0
      %2036 = vmatpush2.bf16.msra.mxu0 0
      %2037 = vmatprep.mubr.bf16.mxu0 0
      %2038 = vmatmul.mubr.bf16.gmra.mxu0 %v2000
      %v2039 = vpop.f32.mrf.mxu0
      %v2040 = vadd.f32 0.0, %v2039
      %v2041 = vpop.f32.mrf.mxu0
      %v2042 = vpop.f32.mrf.mxu0
      %v2043 = vpop.f32.mrf.mxu0
      %2044 = vdwg.mxu0
      %v2045 = vadd.f32 %v1881, %v2040
      %2046 = vrot.lane.b32.xlu0 %v1563, 104
      %v2047 = vpop.permute.xlu0 %2046
      %2048 = vrot.lane.b32.xlu0 %v1564, 104
      %v2049 = vpop.permute.xlu0 %2048
      %v2051 = vsel %vm766, %v2047, 0
      %v2054 = vsel %vm766, %v2049, 0
      %2056 = vmatprep.subr.bf16.mxu0 0
      %2057 = vmatpush1.bf16.xpose.msra.mxu0 0
      %2058 = vmatprep.subr.bf16.mxu0 0
      %2059 = vmatpush1.bf16.xpose.msra.mxu0 0
      %2060 = vmatprep.subr.bf16.mxu0 0
      %2061 = vmatpush1.bf16.xpose.msra.mxu0 0
      %2062 = vmatprep.subr.bf16.mxu0 0
      %2063 = vmatpush1.bf16.xpose.msra.mxu0 0
      %2064 = vmatprep.subr.bf16.mxu0 0
      %2065 = vmatpush1.bf16.xpose.msra.mxu0 0
      %2066 = vmatprep.subr.bf16.mxu0 0
      %2067 = vmatpush1.bf16.xpose.msra.mxu0 0
      %2068 = vmatprep.subr.bf16.mxu0 0
      %2069 = vmatpush1.bf16.xpose.msra.mxu0 0
      %2070 = vmatprep.subr.bf16.mxu0 0
      %2071 = vmatpush1.bf16.xpose.msra.mxu0 %v2054
      %2072 = vmatprep.subr.bf16.mxu0 0
      %2073 = vmatpush2.bf16.xpose.msra.mxu0 0
      %2074 = vmatprep.subr.bf16.mxu0 0
      %2075 = vmatpush2.bf16.xpose.msra.mxu0 0
      %2076 = vmatprep.subr.bf16.mxu0 0
      %2077 = vmatpush2.bf16.xpose.msra.mxu0 0
      %2078 = vmatprep.subr.bf16.mxu0 0
      %2079 = vmatpush2.bf16.xpose.msra.mxu0 0
      %2080 = vmatprep.subr.bf16.mxu0 0
      %2081 = vmatpush2.bf16.xpose.msra.mxu0 0
      %2082 = vmatprep.subr.bf16.mxu0 0
      %2083 = vmatpush2.bf16.xpose.msra.mxu0 0
      %2084 = vmatprep.subr.bf16.mxu0 0
      %2085 = vmatpush2.bf16.xpose.msra.mxu0 0
      %2086 = vmatprep.subr.bf16.mxu0 0
      %2087 = vmatpush2.bf16.xpose.msra.mxu0 0
      %2088 = vmatprep.mubr.bf16.mxu0 0
      %2089 = vmatmul.mubr.bf16.gmra.mxu0 %v2051
      %v2090 = vpop.f32.mrf.mxu0
      %v2091 = vadd.f32 0.0, %v2090
      %v2092 = vpop.f32.mrf.mxu0
      %v2093 = vpop.f32.mrf.mxu0
      %v2094 = vpop.f32.mrf.mxu0
      %2095 = vdwg.mxu0
      %v2096 = vmul.f32 %v2091, 0.35355338
      %v2097 = vsel %vm1612, %v2096, -inf
      %2098 = vmax.xlane.f32.xlu0 %v2097
      %v2099 = vpop.xlane.xlu0 %2098
      %v2100 = vsub.f32 %v2096, %v2099
      %v2101 = vmul.f32 %v2100, 1.442695
      %v2102 = vpow.pop %v2101
      %v2103 = vsel %vm1612, %v2102, 0.0
      %2104 = vadd.xlane.f32.xlu0 %v2103
      %v2105 = vpop.xlane.xlu0 %2104
      %v2106 = vrcp.pop %v2105
      %v2107 = vmul.f32 %v2102, %v2106
      %v2108 = vpack.c.bf16 %v2107, %v2107
      %2109 = vrot.lane.b32.xlu0 %v1564, 72
      %v2110 = vpop.permute.xlu0 %2109
      %v2112 = vsel %vm1628, %v2108, 0
      %v2115 = vand.u32 %v2110, %v1634
      %2117 = vmatprep.subr.bf16.mxu0 0
      %2118 = vmatpush1.bf16.msra.mxu0 0
      %2119 = vmatprep.subr.bf16.mxu0 0
      %2120 = vmatpush1.bf16.msra.mxu0 0
      %2121 = vmatprep.subr.bf16.mxu0 0
      %2122 = vmatpush1.bf16.msra.mxu0 0
      %2123 = vmatprep.subr.bf16.mxu0 0
      %2124 = vmatpush1.bf16.msra.mxu0 0
      %2125 = vmatprep.subr.bf16.mxu0 0
      %2126 = vmatpush1.bf16.msra.mxu0 0
      %2127 = vmatprep.subr.bf16.mxu0 0
      %2128 = vmatpush1.bf16.msra.mxu0 0
      %2129 = vmatprep.subr.bf16.mxu0 0
      %2130 = vmatpush1.bf16.msra.mxu0 0
      %2131 = vmatprep.subr.bf16.mxu0 0
      %2132 = vmatpush1.bf16.msra.mxu0 %v2115
      %2133 = vmatprep.subr.bf16.mxu0 0
      %2134 = vmatpush2.bf16.msra.mxu0 0
      %2135 = vmatprep.subr.bf16.mxu0 0
      %2136 = vmatpush2.bf16.msra.mxu0 0
      %2137 = vmatprep.subr.bf16.mxu0 0
      %2138 = vmatpush2.bf16.msra.mxu0 0
      %2139 = vmatprep.subr.bf16.mxu0 0
      %2140 = vmatpush2.bf16.msra.mxu0 0
      %2141 = vmatprep.subr.bf16.mxu0 0
      %2142 = vmatpush2.bf16.msra.mxu0 0
      %2143 = vmatprep.subr.bf16.mxu0 0
      %2144 = vmatpush2.bf16.msra.mxu0 0
      %2145 = vmatprep.subr.bf16.mxu0 0
      %2146 = vmatpush2.bf16.msra.mxu0 0
      %2147 = vmatprep.subr.bf16.mxu0 0
      %2148 = vmatpush2.bf16.msra.mxu0 0
      %2149 = vmatprep.mubr.bf16.mxu0 0
      %2150 = vmatmul.mubr.bf16.gmra.mxu0 %v2112
      %v2151 = vpop.f32.mrf.mxu0
      %v2152 = vadd.f32 0.0, %v2151
      %v2153 = vpop.f32.mrf.mxu0
      %v2154 = vpop.f32.mrf.mxu0
      %v2155 = vpop.f32.mrf.mxu0
      %2156 = vdwg.mxu0
      %v2157 = vpack.c.bf16 %v2152, %v2152
      %v2158 = vpack.c.bf16 %v1561, %v1561
      %v2160 = vsel %vm766, %v2157, 0
      %v2163 = vsel %vm995, %v2158, 0
      %2165 = vmatprep.subr.bf16.mxu0 0
      %2166 = vmatpush1.bf16.msra.mxu0 0
      %2167 = vmatprep.subr.bf16.mxu0 0
      %2168 = vmatpush1.bf16.msra.mxu0 0
      %2169 = vmatprep.subr.bf16.mxu0 0
      %2170 = vmatpush1.bf16.msra.mxu0 0
      %2171 = vmatprep.subr.bf16.mxu0 0
      %2172 = vmatpush1.bf16.msra.mxu0 0
      %2173 = vmatprep.subr.bf16.mxu0 0
      %2174 = vmatpush1.bf16.msra.mxu0 0
      %2175 = vmatprep.subr.bf16.mxu0 0
      %2176 = vmatpush1.bf16.msra.mxu0 0
      %2177 = vmatprep.subr.bf16.mxu0 0
      %2178 = vmatpush1.bf16.msra.mxu0 0
      %2179 = vmatprep.subr.bf16.mxu0 0
      %2180 = vmatpush1.bf16.msra.mxu0 %v2163
      %2181 = vmatprep.subr.bf16.mxu0 0
      %2182 = vmatpush2.bf16.msra.mxu0 0
      %2183 = vmatprep.subr.bf16.mxu0 0
      %2184 = vmatpush2.bf16.msra.mxu0 0
      %2185 = vmatprep.subr.bf16.mxu0 0
      %2186 = vmatpush2.bf16.msra.mxu0 0
      %2187 = vmatprep.subr.bf16.mxu0 0
      %2188 = vmatpush2.bf16.msra.mxu0 0
      %2189 = vmatprep.subr.bf16.mxu0 0
      %2190 = vmatpush2.bf16.msra.mxu0 0
      %2191 = vmatprep.subr.bf16.mxu0 0
      %2192 = vmatpush2.bf16.msra.mxu0 0
      %2193 = vmatprep.subr.bf16.mxu0 0
      %2194 = vmatpush2.bf16.msra.mxu0 0
      %2195 = vmatprep.subr.bf16.mxu0 0
      %2196 = vmatpush2.bf16.msra.mxu0 0
      %2197 = vmatprep.mubr.bf16.mxu0 0
      %2198 = vmatmul.mubr.bf16.gmra.mxu0 %v2160
      %v2199 = vpop.f32.mrf.mxu0
      %v2200 = vadd.f32 0.0, %v2199
      %v2201 = vpop.f32.mrf.mxu0
      %v2202 = vpop.f32.mrf.mxu0
      %v2203 = vpop.f32.mrf.mxu0
      %2204 = vdwg.mxu0
      %v2205 = vadd.f32 %v2045, %v2200
      %v2207 = vlaneseq
      %v2208 = vshrl.u32 %v2207, 7
      %v2209 = vsub.s32 0, %v2208
      %v2210 = vrot.slane %v1562, %v2209
      %v2212 = vadd.f32 %v2205, %v2210
      %v2213 = vadd.f32 %v1443, %v2212
      %v2214 = vld [vmem:[%s14] sm:$0x1]
      %v2215 = vld [vmem:[%s15] sm:$0x1]
      %v2216 = vsel %vm1415, %v2213, 0.0
      %2217 = vadd.xlane.f32.xlu0 %v2216
      %v2218 = vpop.xlane.xlu0 %2217
      %v2219 = vmul.f32 %v2218, %v1419
      %v2220 = vsub.f32 %v2213, %v2219
      %v2221 = vmul.f32 %v2220, %v2220
      %v2222 = vsel %vm1415, %v2221, 0.0
      %2223 = vadd.xlane.f32.xlu0 %v2222
      %v2224 = vpop.xlane.xlu0 %2223
      %v2225 = vmul.f32 %v2224, %v1419
      %v2226 = vadd.f32 %v2225, 1e-05
      %v2227 = vrsqrt.pop %v2226
      %v2228 = vmul.f32 %v2220, %v2227
      %v2230 = vlaneseq
      %v2231 = vshrl.u32 %v2230, 7
      %v2232 = vsub.s32 0, %v2231
      %v2233 = vrot.slane %v2214, %v2232
      %v2235 = vmul.f32 %v2228, %v2233
      %v2237 = vlaneseq
      %v2238 = vshrl.u32 %v2237, 7
      %v2239 = vsub.s32 0, %v2238
      %v2240 = vrot.slane %v2215, %v2239
      %v2242 = vadd.f32 %v2235, %v2240
      %v2243 = vld [vmem:[%s16] sm:$0xff]
      %v2244 = vld [vmem:[%s16 + $0x8] sm:$0xff]
      %v2245 = vld [vmem:[%s16 + $0x10] sm:$0xff]
      %v2246 = vld [vmem:[%s16 + $0x18] sm:$0xff]
      %v2247 = vld [vmem:[%s17] sm:$0x1]
      %v2248 = vld [vmem:[%s18] sm:$0xff]
      %v2249 = vld [vmem:[%s18 + $0x8] sm:$0xff]
      %v2250 = vld [vmem:[%s18 + $0x10] sm:$0xff]
      %v2251 = vld [vmem:[%s18 + $0x18] sm:$0xff]
      %v2252 = vld [vmem:[%s18 + $0x20] sm:$0xff]
      %v2253 = vld [vmem:[%s18 + $0x28] sm:$0xff]
      %v2254 = vld [vmem:[%s18 + $0x30] sm:$0xff]
      %v2255 = vld [vmem:[%s18 + $0x38] sm:$0xff]
      %v2256 = vld [vmem:[%s19] sm:$0x1]
      %v2257 = vpack.c.bf16 %v2242, %v2242
      %v2258 = vpack.c.bf16 %v2244, %v2243
      %v2259 = vpack.c.bf16 %v2246, %v2245
      %v2261 = vlaneseq
      %v2262 = vshrl.u32 %v2261, 7
      %v2263 = vsub.s32 0, %v2262
      %v2264 = vrot.slane %v2247, %v2263
      %v2267 = vsel %vm718, %v2257, 0
      %2269 = vmatprep.subr.bf16.mxu0 0
      %2270 = vmatpush1.bf16.msra.mxu0 0
      %2271 = vmatprep.subr.bf16.mxu0 0
      %2272 = vmatpush1.bf16.msra.mxu0 0
      %2273 = vmatprep.subr.bf16.mxu0 0
      %2274 = vmatpush1.bf16.msra.mxu0 0
      %2275 = vmatprep.subr.bf16.mxu0 0
      %2276 = vmatpush1.bf16.msra.mxu0 0
      %2277 = vmatprep.subr.bf16.mxu0 0
      %2278 = vmatpush1.bf16.msra.mxu0 0
      %2279 = vmatprep.subr.bf16.mxu0 0
      %2280 = vmatpush1.bf16.msra.mxu0 0
      %2281 = vmatprep.subr.bf16.mxu0 0
      %2282 = vmatpush1.bf16.msra.mxu0 %v2259
      %2283 = vmatprep.subr.bf16.mxu0 0
      %2284 = vmatpush1.bf16.msra.mxu0 %v2258
      %2285 = vmatprep.subr.bf16.mxu0 0
      %2286 = vmatpush2.bf16.msra.mxu0 0
      %2287 = vmatprep.subr.bf16.mxu0 0
      %2288 = vmatpush2.bf16.msra.mxu0 0
      %2289 = vmatprep.subr.bf16.mxu0 0
      %2290 = vmatpush2.bf16.msra.mxu0 0
      %2291 = vmatprep.subr.bf16.mxu0 0
      %2292 = vmatpush2.bf16.msra.mxu0 0
      %2293 = vmatprep.subr.bf16.mxu0 0
      %2294 = vmatpush2.bf16.msra.mxu0 0
      %2295 = vmatprep.subr.bf16.mxu0 0
      %2296 = vmatpush2.bf16.msra.mxu0 0
      %2297 = vmatprep.subr.bf16.mxu0 0
      %2298 = vmatpush2.bf16.msra.mxu0 0
      %2299 = vmatprep.subr.bf16.mxu0 0
      %2300 = vmatpush2.bf16.msra.mxu0 0
      %2301 = vmatprep.mubr.bf16.mxu0 0
      %2302 = vmatmul.mubr.bf16.gmra.mxu0 %v2267
      %v2303 = vpop.f32.mrf.mxu0
      %v2304 = vadd.f32 %v2264, %v2303
      %v2305 = vpop.f32.mrf.mxu0
      %v2306 = vpop.f32.mrf.mxu0
      %v2307 = vpop.f32.mrf.mxu0
      %2308 = vdwg.mxu0
      %v2309 = vmax.f32 %v2304, 0.0
      %v2310 = vpack.c.bf16 %v2309, %v2309
      %v2311 = vpack.c.bf16 %v2249, %v2248
      %v2312 = vpack.c.bf16 %v2251, %v2250
      %v2313 = vpack.c.bf16 %v2253, %v2252
      %v2314 = vpack.c.bf16 %v2255, %v2254
      %v2316 = vlaneseq
      %v2317 = vshrl.u32 %v2316, 7
      %v2318 = vsub.s32 0, %v2317
      %v2319 = vrot.slane %v2256, %v2318
      %vm2321 = vcmask 523264
      %v2323 = vsel %vm2321, %v2310, 0
      %2325 = vmatprep.subr.bf16.mxu0 0
      %2326 = vmatpush1.bf16.msra.mxu0 0
      %2327 = vmatprep.subr.bf16.mxu0 0
      %2328 = vmatpush1.bf16.msra.mxu0 0
      %2329 = vmatprep.subr.bf16.mxu0 0
      %2330 = vmatpush1.bf16.msra.mxu0 0
      %2331 = vmatprep.subr.bf16.mxu0 0
      %2332 = vmatpush1.bf16.msra.mxu0 0
      %2333 = vmatprep.subr.bf16.mxu0 0
      %2334 = vmatpush1.bf16.msra.mxu0 %v2314
      %2335 = vmatprep.subr.bf16.mxu0 0
      %2336 = vmatpush1.bf16.msra.mxu0 %v2313
      %2337 = vmatprep.subr.bf16.mxu0 0
      %2338 = vmatpush1.bf16.msra.mxu0 %v2312
      %2339 = vmatprep.subr.bf16.mxu0 0
      %2340 = vmatpush1.bf16.msra.mxu0 %v2311
      %2341 = vmatprep.subr.bf16.mxu0 0
      %2342 = vmatpush2.bf16.msra.mxu0 0
      %2343 = vmatprep.subr.bf16.mxu0 0
      %2344 = vmatpush2.bf16.msra.mxu0 0
      %2345 = vmatprep.subr.bf16.mxu0 0
      %2346 = vmatpush2.bf16.msra.mxu0 0
      %2347 = vmatprep.subr.bf16.mxu0 0
      %2348 = vmatpush2.bf16.msra.mxu0 0
      %2349 = vmatprep.subr.bf16.mxu0 0
      %2350 = vmatpush2.bf16.msra.mxu0 0
      %2351 = vmatprep.subr.bf16.mxu0 0
      %2352 = vmatpush2.bf16.msra.mxu0 0
      %2353 = vmatprep.subr.bf16.mxu0 0
      %2354 = vmatpush2.bf16.msra.mxu0 0
      %2355 = vmatprep.subr.bf16.mxu0 0
      %2356 = vmatpush2.bf16.msra.mxu0 0
      %2357 = vmatprep.mubr.bf16.mxu0 0
      %2358 = vmatmul.mubr.bf16.gmra.mxu0 %v2323
      %v2359 = vpop.f32.mrf.mxu0
      %v2360 = vadd.f32 %v2319, %v2359
      %v2361 = vpop.f32.mrf.mxu0
      %v2362 = vpop.f32.mrf.mxu0
      %v2363 = vpop.f32.mrf.mxu0
      %2364 = vdwg.mxu0
      %v2365 = vadd.f32 %v2242, %v2360
      %v2366 = vld [vmem:[%s20] sm:$0x1]
      %v2367 = vld [vmem:[%s21] sm:$0x1]
      %v2368 = vsel %vm1415, %v2365, 0.0
      %2369 = vadd.xlane.f32.xlu0 %v2368
      %v2370 = vpop.xlane.xlu0 %2369
      %v2371 = vmul.f32 %v2370, %v1419
      %v2372 = vsub.f32 %v2365, %v2371
      %v2373 = vmul.f32 %v2372, %v2372
      %v2374 = vsel %vm1415, %v2373, 0.0
      %2375 = vadd.xlane.f32.xlu0 %v2374
      %v2376 = vpop.xlane.xlu0 %2375
      %v2377 = vmul.f32 %v2376, %v1419
      %v2378 = vadd.f32 %v2377, 1e-05
      %v2379 = vrsqrt.pop %v2378
      %v2380 = vmul.f32 %v2372, %v2379
      %v2382 = vlaneseq
      %v2383 = vshrl.u32 %v2382, 7
      %v2384 = vsub.s32 0, %v2383
      %v2385 = vrot.slane %v2366, %v2384
      %v2387 = vmul.f32 %v2380, %v2385
      %v2389 = vlaneseq
      %v2390 = vshrl.u32 %v2389, 7
      %v2391 = vsub.s32 0, %v2390
      %v2392 = vrot.slane %v2367, %v2391
      %v2394 = vadd.f32 %v2387, %v2392
      %2395 = vst.msk [vmem:[%s695] sm:$0x3f] %vm1415, %v2394
      %p2396 = scmp.lt.s32.totalorder %s33, 1
      %s2397 = scalar_select %p2396, %s33, 1
      %s2398 = smul.addr %s2397, 8
      %s2399 = scalar_lea.vmem %s22, %s2398
      // Predicated region
      $region109: #{teddy_forward.22} parent=107 // pred_check
        %p2400 = pneg %p523
      $region110: #{teddy_forward.22} parent=107 // pred_check_branch
        %2402 = sbr.rel (%p2400) target = $region112
      $region111: #{teddy_forward.22} parent=107 // pred_region
        _
      $region112: #{teddy_forward.22} parent=107 // pred_fallthru
        _
    $region108: #{teddy_forward.22} parent=5 // pred_fallthru
      _
    %p2403 = scmp.le.s32.totalorder 2, %s28
    // Predicated region
    $region113: #{teddy_forward.22} parent=5 // pred_check
      %p2404 = pneg %p2403
    $region114: #{teddy_forward.22} parent=5 // pred_check_branch
      %2406 = sbr.rel (%p2404) target = $region116
    $region115: #{teddy_forward.22} parent=5 // pred_region
      %s2407 = ssub.s32 %s28, 2
      // Predicated region
      $region117: #{teddy_forward.22} parent=115 // pred_check
        %p2408 = pneg %p529
      $region118: #{teddy_forward.22} parent=115 // pred_check_branch
        %2410 = sbr.rel (%p2408) target = $region120
      $region119: #{teddy_forward.22} parent=115 // pred_region
        %p2411 = scmp.lt.s32.totalorder %s34, 1
        %s2412 = scalar_select %p2411, %s34, 1
        %s2413 = smul.addr %s2412, 8
        %s2414 = scalar_lea.vmem %s22, %s2413
      $region120: #{teddy_forward.22} parent=115 // pred_fallthru
        _
    $region116: #{teddy_forward.22} parent=5 // pred_fallthru
      _
  $region6: #{teddy_forward.22} parent=0 // loop_footer
    %s32 = sadd.s32 1, %s28
  $region7: #{teddy_forward.22} parent=0 // loop_footer_branch
    %27 = sbr.rel target = $region3
  $region8: #{teddy_forward.22} parent=0 // loop_exit
    _

// kernel: teddy_forward.19
$region0: #{teddy_forward.19}
  #allocation0 [shape = 'u32[]', space=smem, size = 0x4, offset = 0x4, fixed_abs, tag = 'smem constant byte address 0x4 - core index']
  #allocation1 [shape = 'u32[144,128]{1,0:T(1,128)}', space=vmem, size = 0x12000, scoped, tag = 'internal scratch']
  %s0 = inlined_call_operand.vmem [shape: f32[2,5,32], index: 0, kind: input, shape index: {}]
  %s1 = inlined_call_operand.vmem [shape: f32[2,7,32], index: 1, kind: input, shape index: {}]
  %s2 = inlined_call_operand.vmem [shape: f32[32,96], index: 2, kind: input, shape index: {}]
  %s3 = inlined_call_operand.vmem [shape: f32[1,96], index: 3, kind: input, shape index: {}]
  %s4 = inlined_call_operand.vmem [shape: f32[32,32], index: 4, kind: input, shape index: {}]
  %s5 = inlined_call_operand.vmem [shape: f32[1,32], index: 5, kind: input, shape index: {}]
  %s6 = inlined_call_operand.vmem [shape: f32[1,32], index: 6, kind: input, shape index: {}]
  %s7 = inlined_call_operand.vmem [shape: f32[1,32], index: 7, kind: input, shape index: {}]
  %s8 = inlined_call_operand.vmem [shape: f32[32,32], index: 8, kind: input, shape index: {}]
  %s9 = inlined_call_operand.vmem [shape: f32[1,32], index: 9, kind: input, shape index: {}]
  %s10 = inlined_call_operand.vmem [shape: f32[32,64], index: 10, kind: input, shape index: {}]
  %s11 = inlined_call_operand.vmem [shape: f32[1,64], index: 11, kind: input, shape index: {}]
  %s12 = inlined_call_operand.vmem [shape: f32[32,32], index: 12, kind: input, shape index: {}]
  %s13 = inlined_call_operand.vmem [shape: f32[1,32], index: 13, kind: input, shape index: {}]
  %s14 = inlined_call_operand.vmem [shape: f32[1,32], index: 14, kind: input, shape index: {}]
  %s15 = inlined_call_operand.vmem [shape: f32[1,32], index: 15, kind: input, shape index: {}]
  %s16 = inlined_call_operand.vmem [shape: f32[32,64], index: 16, kind: input, shape index: {}]
  %s17 = inlined_call_operand.vmem [shape: f32[1,64], index: 17, kind: input, shape index: {}]
  %s18 = inlined_call_operand.vmem [shape: f32[64,32], index: 18, kind: input, shape index: {}]
  %s19 = inlined_call_operand.vmem [shape: f32[1,32], index: 19, kind: input, shape index: {}]
  %s20 = inlined_call_operand.vmem [shape: f32[1,32], index: 20, kind: input, shape index: {}]
  %s21 = inlined_call_operand.vmem [shape: f32[1,32], index: 21, kind: input, shape index: {}]
  %s22 = inlined_call_operand.vmem [shape: f32[2,5,32], index: 22, kind: output, shape index: {}]
  %s23 = sld [smem:[#allocation0]]
  $region121: #{teddy_forward.19} parent=0
    _
  %s25 = ssub.s32 1, %s23
  %s26 = scalar_select 0, %s25, %s23
  loop: start=0, step=1, limit=4
  $region2: #{teddy_forward.19} parent=0 // loop_pre_header
    _
  $region3: #{teddy_forward.19} parent=0 // loop_header
    %s28 = sphi 0, %s32
    %p29 = scmp.ge.s32.totalorder %s28, 4
    %s38 = sphi 0, %s40
    %s41 = sphi 0, %s38
    %s42 = sphi 0, %s41
    %s58 = sphi 0, %s42
    %s64 = sphi 0, %s66
    %s67 = sphi 0, %s64
    %s68 = sphi 0, %s67
    %s84 = sphi 0, %s68
    %s88 = sphi 0, %s88
    %s90 = sphi 0, %s88
    %s91 = sphi 0, %s90
    %s105 = sphi 0, %s91
    %s109 = sphi 0, %s109
    %s111 = sphi 0, %s109
    %s112 = sphi 0, %s111
    %s126 = sphi 0, %s112
    %s130 = sphi 0, %s130
    %s132 = sphi 0, %s130
    %s133 = sphi 0, %s132
    %s147 = sphi 0, %s133
    %s151 = sphi 0, %s151
    %s153 = sphi 0, %s151
    %s154 = sphi 0, %s153
    %s168 = sphi 0, %s154
    %s172 = sphi 0, %s172
    %s174 = sphi 0, %s172
    %s175 = sphi 0, %s174
    %s189 = sphi 0, %s175
    %s193 = sphi 0, %s193
    %s195 = sphi 0, %s193
    %s196 = sphi 0, %s195
    %s210 = sphi 0, %s196
    %s214 = sphi 0, %s214
    %s216 = sphi 0, %s214
    %s217 = sphi 0, %s216
    %s231 = sphi 0, %s217
    %s235 = sphi 0, %s235
    %s237 = sphi 0, %s235
    %s238 = sphi 0, %s237
    %s252 = sphi 0, %s238
    %s256 = sphi 0, %s256
    %s258 = sphi 0, %s256
    %s259 = sphi 0, %s258
    %s273 = sphi 0, %s259
    %s277 = sphi 0, %s277
    %s279 = sphi 0, %s277
    %s280 = sphi 0, %s279
    %s294 = sphi 0, %s280
    %s298 = sphi 0, %s298
    %s300 = sphi 0, %s298
    %s301 = sphi 0, %s300
    %s315 = sphi 0, %s301
    %s319 = sphi 0, %s319
    %s321 = sphi 0, %s319
    %s322 = sphi 0, %s321
    %s336 = sphi 0, %s322
    %s340 = sphi 0, %s340
    %s342 = sphi 0, %s340
    %s343 = sphi 0, %s342
    %s357 = sphi 0, %s343
    %s361 = sphi 0, %s361
    %s363 = sphi 0, %s361
    %s364 = sphi 0, %s363
    %s378 = sphi 0, %s364
    %s382 = sphi 0, %s382
    %s384 = sphi 0, %s382
    %s385 = sphi 0, %s384
    %s399 = sphi 0, %s385
    %s403 = sphi 0, %s403
    %s405 = sphi 0, %s403
    %s406 = sphi 0, %s405
    %s420 = sphi 0, %s406
    %s424 = sphi 0, %s424
    %s426 = sphi 0, %s424
    %s427 = sphi 0, %s426
    %s441 = sphi 0, %s427
    %s445 = sphi 0, %s445
    %s447 = sphi 0, %s445
    %s448 = sphi 0, %s447
    %s462 = sphi 0, %s448
    %s466 = sphi 0, %s466
    %s468 = sphi 0, %s466
    %s469 = sphi 0, %s468
    %s483 = sphi 0, %s469
    %s487 = sphi 0, %s487
    %s489 = sphi 0, %s487
    %s490 = sphi 0, %s489
    %s504 = sphi 0, %s490
    %s510 = sphi 0, %s512
    %s513 = sphi 0, %s510
    %s514 = sphi 0, %s513
    %s530 = sphi 0, %s514
  $region4: #{teddy_forward.19} parent=0 // loop_header_branch
    %31 = sbr.rel (%p29) target = $region8
  $region5: #{teddy_forward.19} parent=0 // loop_body
    %s33 = ssub.s32 %s28, 1
    %s34 = ssub.s32 %s28, 2
    %s35 = sadd.s32 %s28, 1
    %s36 = ssub.s32 %s28, %s35
    %p37 = scmp.eq.s32.totalorder %s36, 0
    %s39 = sadd.s32 %s38, 1
    %s40 = scalar_select %p37, %s38, %s39
    %p43 = pneg %p37
    %p44 = scmp.eq.s32.totalorder %s28, 1
    %p45 = por %p43, %p44
    %p46 = scmp.ne.s32.totalorder %s38, %s41
    %p47 = scmp.eq.s32.totalorder %s28, 0
    %p48 = por %p46, %p47
    %p49 = scmp.ne.s32.totalorder %s38, %s41
    %p50 = scmp.eq.s32.totalorder %s33, 1
    %p51 = por %p49, %p50
    %p52 = scmp.ne.s32.totalorder %s41, %s42
    %p53 = scmp.eq.s32.totalorder %s33, 0
    %p54 = por %p52, %p53
    %p55 = scmp.ne.s32.totalorder %s41, %s42
    %p56 = scmp.eq.s32.totalorder %s34, 1
    %p57 = por %p55, %p56
    %p59 = scmp.ne.s32.totalorder %s42, %s58
    %p60 = scmp.eq.s32.totalorder %s34, 0
    %p61 = por %p59, %p60
    %s62 = ssub.s32 %s28, %s35
    %p63 = scmp.eq.s32.totalorder %s62, 0
    %s65 = sadd.s32 %s64, 1
    %s66 = scalar_select %p63, %s64, %s65
    %p69 = pneg %p63
    %p70 = scmp.eq.s32.totalorder %s28, 1
    %p71 = por %p69, %p70
    %p72 = scmp.ne.s32.totalorder %s64, %s67
    %p73 = scmp.eq.s32.totalorder %s28, 0
    %p74 = por %p72, %p73
    %p75 = scmp.ne.s32.totalorder %s64, %s67
    %p76 = scmp.eq.s32.totalorder %s33, 1
    %p77 = por %p75, %p76
    %p78 = scmp.ne.s32.totalorder %s67, %s68
    %p79 = scmp.eq.s32.totalorder %s33, 0
    %p80 = por %p78, %p79
    %p81 = scmp.ne.s32.totalorder %s67, %s68
    %p82 = scmp.eq.s32.totalorder %s34, 1
    %p83 = por %p81, %p82
    %p85 = scmp.ne.s32.totalorder %s68, %s84
    %p86 = scmp.eq.s32.totalorder %s34, 0
    %p87 = por %p85, %p86
    %s89 = sadd.s32 %s88, 1
    %p92 = scmp.eq.s32.totalorder %s28, 1
    %p93 = scmp.ne.s32.totalorder %s88, %s90
    %p94 = scmp.eq.s32.totalorder %s28, 0
    %p95 = por %p93, %p94
    %p96 = scmp.ne.s32.totalorder %s88, %s90
    %p97 = scmp.eq.s32.totalorder %s33, 1
    %p98 = por %p96, %p97
    %p99 = scmp.ne.s32.totalorder %s90, %s91
    %p100 = scmp.eq.s32.totalorder %s33, 0
    %p101 = por %p99, %p100
    %p102 = scmp.ne.s32.totalorder %s90, %s91
    %p103 = scmp.eq.s32.totalorder %s34, 1
    %p104 = por %p102, %p103
    %p106 = scmp.ne.s32.totalorder %s91, %s105
    %p107 = scmp.eq.s32.totalorder %s34, 0
    %p108 = por %p106, %p107
    %s110 = sadd.s32 %s109, 1
    %p113 = scmp.eq.s32.totalorder %s28, 1
    %p114 = scmp.ne.s32.totalorder %s109, %s111
    %p115 = scmp.eq.s32.totalorder %s28, 0
    %p116 = por %p114, %p115
    %p117 = scmp.ne.s32.totalorder %s109, %s111
    %p118 = scmp.eq.s32.totalorder %s33, 1
    %p119 = por %p117, %p118
    %p120 = scmp.ne.s32.totalorder %s111, %s112
    %p121 = scmp.eq.s32.totalorder %s33, 0
    %p122 = por %p120, %p121
    %p123 = scmp.ne.s32.totalorder %s111, %s112
    %p124 = scmp.eq.s32.totalorder %s34, 1
    %p125 = por %p123, %p124
    %p127 = scmp.ne.s32.totalorder %s112, %s126
    %p128 = scmp.eq.s32.totalorder %s34, 0
    %p129 = por %p127, %p128
    %s131 = sadd.s32 %s130, 1
    %p134 = scmp.eq.s32.totalorder %s28, 1
    %p135 = scmp.ne.s32.totalorder %s130, %s132
    %p136 = scmp.eq.s32.totalorder %s28, 0
    %p137 = por %p135, %p136
    %p138 = scmp.ne.s32.totalorder %s130, %s132
    %p139 = scmp.eq.s32.totalorder %s33, 1
    %p140 = por %p138, %p139
    %p141 = scmp.ne.s32.totalorder %s132, %s133
    %p142 = scmp.eq.s32.totalorder %s33, 0
    %p143 = por %p141, %p142
    %p144 = scmp.ne.s32.totalorder %s132, %s133
    %p145 = scmp.eq.s32.totalorder %s34, 1
    %p146 = por %p144, %p145
    %p148 = scmp.ne.s32.totalorder %s133, %s147
    %p149 = scmp.eq.s32.totalorder %s34, 0
    %p150 = por %p148, %p149
    %s152 = sadd.s32 %s151, 1
    %p155 = scmp.eq.s32.totalorder %s28, 1
    %p156 = scmp.ne.s32.totalorder %s151, %s153
    %p157 = scmp.eq.s32.totalorder %s28, 0
    %p158 = por %p156, %p157
    %p159 = scmp.ne.s32.totalorder %s151, %s153
    %p160 = scmp.eq.s32.totalorder %s33, 1
    %p161 = por %p159, %p160
    %p162 = scmp.ne.s32.totalorder %s153, %s154
    %p163 = scmp.eq.s32.totalorder %s33, 0
    %p164 = por %p162, %p163
    %p165 = scmp.ne.s32.totalorder %s153, %s154
    %p166 = scmp.eq.s32.totalorder %s34, 1
    %p167 = por %p165, %p166
    %p169 = scmp.ne.s32.totalorder %s154, %s168
    %p170 = scmp.eq.s32.totalorder %s34, 0
    %p171 = por %p169, %p170
    %s173 = sadd.s32 %s172, 1
    %p176 = scmp.eq.s32.totalorder %s28, 1
    %p177 = scmp.ne.s32.totalorder %s172, %s174
    %p178 = scmp.eq.s32.totalorder %s28, 0
    %p179 = por %p177, %p178
    %p180 = scmp.ne.s32.totalorder %s172, %s174
    %p181 = scmp.eq.s32.totalorder %s33, 1
    %p182 = por %p180, %p181
    %p183 = scmp.ne.s32.totalorder %s174, %s175
    %p184 = scmp.eq.s32.totalorder %s33, 0
    %p185 = por %p183, %p184
    %p186 = scmp.ne.s32.totalorder %s174, %s175
    %p187 = scmp.eq.s32.totalorder %s34, 1
    %p188 = por %p186, %p187
    %p190 = scmp.ne.s32.totalorder %s175, %s189
    %p191 = scmp.eq.s32.totalorder %s34, 0
    %p192 = por %p190, %p191
    %s194 = sadd.s32 %s193, 1
    %p197 = scmp.eq.s32.totalorder %s28, 1
    %p198 = scmp.ne.s32.totalorder %s193, %s195
    %p199 = scmp.eq.s32.totalorder %s28, 0
    %p200 = por %p198, %p199
    %p201 = scmp.ne.s32.totalorder %s193, %s195
    %p202 = scmp.eq.s32.totalorder %s33, 1
    %p203 = por %p201, %p202
    %p204 = scmp.ne.s32.totalorder %s195, %s196
    %p205 = scmp.eq.s32.totalorder %s33, 0
    %p206 = por %p204, %p205
    %p207 = scmp.ne.s32.totalorder %s195, %s196
    %p208 = scmp.eq.s32.totalorder %s34, 1
    %p209 = por %p207, %p208
    %p211 = scmp.ne.s32.totalorder %s196, %s210
    %p212 = scmp.eq.s32.totalorder %s34, 0
    %p213 = por %p211, %p212
    %s215 = sadd.s32 %s214, 1
    %p218 = scmp.eq.s32.totalorder %s28, 1
    %p219 = scmp.ne.s32.totalorder %s214, %s216
    %p220 = scmp.eq.s32.totalorder %s28, 0
    %p221 = por %p219, %p220
    %p222 = scmp.ne.s32.totalorder %s214, %s216
    %p223 = scmp.eq.s32.totalorder %s33, 1
    %p224 = por %p222, %p223
    %p225 = scmp.ne.s32.totalorder %s216, %s217
    %p226 = scmp.eq.s32.totalorder %s33, 0
    %p227 = por %p225, %p226
    %p228 = scmp.ne.s32.totalorder %s216, %s217
    %p229 = scmp.eq.s32.totalorder %s34, 1
    %p230 = por %p228, %p229
    %p232 = scmp.ne.s32.totalorder %s217, %s231
    %p233 = scmp.eq.s32.totalorder %s34, 0
    %p234 = por %p232, %p233
    %s236 = sadd.s32 %s235, 1
    %p239 = scmp.eq.s32.totalorder %s28, 1
    %p240 = scmp.ne.s32.totalorder %s235, %s237
    %p241 = scmp.eq.s32.totalorder %s28, 0
    %p242 = por %p240, %p241
    %p243 = scmp.ne.s32.totalorder %s235, %s237
    %p244 = scmp.eq.s32.totalorder %s33, 1
    %p245 = por %p243, %p244
    %p246 = scmp.ne.s32.totalorder %s237, %s238
    %p247 = scmp.eq.s32.totalorder %s33, 0
    %p248 = por %p246, %p247
    %p249 = scmp.ne.s32.totalorder %s237, %s238
    %p250 = scmp.eq.s32.totalorder %s34, 1
    %p251 = por %p249, %p250
    %p253 = scmp.ne.s32.totalorder %s238, %s252
    %p254 = scmp.eq.s32.totalorder %s34, 0
    %p255 = por %p253, %p254
    %s257 = sadd.s32 %s256, 1
    %p260 = scmp.eq.s32.totalorder %s28, 1
    %p261 = scmp.ne.s32.totalorder %s256, %s258
    %p262 = scmp.eq.s32.totalorder %s28, 0
    %p263 = por %p261, %p262
    %p264 = scmp.ne.s32.totalorder %s256, %s258
    %p265 = scmp.eq.s32.totalorder %s33, 1
    %p266 = por %p264, %p265
    %p267 = scmp.ne.s32.totalorder %s258, %s259
    %p268 = scmp.eq.s32.totalorder %s33, 0
    %p269 = por %p267, %p268
    %p270 = scmp.ne.s32.totalorder %s258, %s259
    %p271 = scmp.eq.s32.totalorder %s34, 1
    %p272 = por %p270, %p271
    %p274 = scmp.ne.s32.totalorder %s259, %s273
    %p275 = scmp.eq.s32.totalorder %s34, 0
    %p276 = por %p274, %p275
    %s278 = sadd.s32 %s277, 1
    %p281 = scmp.eq.s32.totalorder %s28, 1
    %p282 = scmp.ne.s32.totalorder %s277, %s279
    %p283 = scmp.eq.s32.totalorder %s28, 0
    %p284 = por %p282, %p283
    %p285 = scmp.ne.s32.totalorder %s277, %s279
    %p286 = scmp.eq.s32.totalorder %s33, 1
    %p287 = por %p285, %p286
    %p288 = scmp.ne.s32.totalorder %s279, %s280
    %p289 = scmp.eq.s32.totalorder %s33, 0
    %p290 = por %p288, %p289
    %p291 = scmp.ne.s32.totalorder %s279, %s280
    %p292 = scmp.eq.s32.totalorder %s34, 1
    %p293 = por %p291, %p292
    %p295 = scmp.ne.s32.totalorder %s280, %s294
    %p296 = scmp.eq.s32.totalorder %s34, 0
    %p297 = por %p295, %p296
    %s299 = sadd.s32 %s298, 1
    %p302 = scmp.eq.s32.totalorder %s28, 1
    %p303 = scmp.ne.s32.totalorder %s298, %s300
    %p304 = scmp.eq.s32.totalorder %s28, 0
    %p305 = por %p303, %p304
    %p306 = scmp.ne.s32.totalorder %s298, %s300
    %p307 = scmp.eq.s32.totalorder %s33, 1
    %p308 = por %p306, %p307
    %p309 = scmp.ne.s32.totalorder %s300, %s301
    %p310 = scmp.eq.s32.totalorder %s33, 0
    %p311 = por %p309, %p310
    %p312 = scmp.ne.s32.totalorder %s300, %s301
    %p313 = scmp.eq.s32.totalorder %s34, 1
    %p314 = por %p312, %p313
    %p316 = scmp.ne.s32.totalorder %s301, %s315
    %p317 = scmp.eq.s32.totalorder %s34, 0
    %p318 = por %p316, %p317
    %s320 = sadd.s32 %s319, 1
    %p323 = scmp.eq.s32.totalorder %s28, 1
    %p324 = scmp.ne.s32.totalorder %s319, %s321
    %p325 = scmp.eq.s32.totalorder %s28, 0
    %p326 = por %p324, %p325
    %p327 = scmp.ne.s32.totalorder %s319, %s321
    %p328 = scmp.eq.s32.totalorder %s33, 1
    %p329 = por %p327, %p328
    %p330 = scmp.ne.s32.totalorder %s321, %s322
    %p331 = scmp.eq.s32.totalorder %s33, 0
    %p332 = por %p330, %p331
    %p333 = scmp.ne.s32.totalorder %s321, %s322
    %p334 = scmp.eq.s32.totalorder %s34, 1
    %p335 = por %p333, %p334
    %p337 = scmp.ne.s32.totalorder %s322, %s336
    %p338 = scmp.eq.s32.totalorder %s34, 0
    %p339 = por %p337, %p338
    %s341 = sadd.s32 %s340, 1
    %p344 = scmp.eq.s32.totalorder %s28, 1
    %p345 = scmp.ne.s32.totalorder %s340, %s342
    %p346 = scmp.eq.s32.totalorder %s28, 0
    %p347 = por %p345, %p346
    %p348 = scmp.ne.s32.totalorder %s340, %s342
    %p349 = scmp.eq.s32.totalorder %s33, 1
    %p350 = por %p348, %p349
    %p351 = scmp.ne.s32.totalorder %s342, %s343
    %p352 = scmp.eq.s32.totalorder %s33, 0
    %p353 = por %p351, %p352
    %p354 = scmp.ne.s32.totalorder %s342, %s343
    %p355 = scmp.eq.s32.totalorder %s34, 1
    %p356 = por %p354, %p355
    %p358 = scmp.ne.s32.totalorder %s343, %s357
    %p359 = scmp.eq.s32.totalorder %s34, 0
    %p360 = por %p358, %p359
    %s362 = sadd.s32 %s361, 1
    %p365 = scmp.eq.s32.totalorder %s28, 1
    %p366 = scmp.ne.s32.totalorder %s361, %s363
    %p367 = scmp.eq.s32.totalorder %s28, 0
    %p368 = por %p366, %p367
    %p369 = scmp.ne.s32.totalorder %s361, %s363
    %p370 = scmp.eq.s32.totalorder %s33, 1
    %p371 = por %p369, %p370
    %p372 = scmp.ne.s32.totalorder %s363, %s364
    %p373 = scmp.eq.s32.totalorder %s33, 0
    %p374 = por %p372, %p373
    %p375 = scmp.ne.s32.totalorder %s363, %s364
    %p376 = scmp.eq.s32.totalorder %s34, 1
    %p377 = por %p375, %p376
    %p379 = scmp.ne.s32.totalorder %s364, %s378
    %p380 = scmp.eq.s32.totalorder %s34, 0
    %p381 = por %p379, %p380
    %s383 = sadd.s32 %s382, 1
    %p386 = scmp.eq.s32.totalorder %s28, 1
    %p387 = scmp.ne.s32.totalorder %s382, %s384
    %p388 = scmp.eq.s32.totalorder %s28, 0
    %p389 = por %p387, %p388
    %p390 = scmp.ne.s32.totalorder %s382, %s384
    %p391 = scmp.eq.s32.totalorder %s33, 1
    %p392 = por %p390, %p391
    %p393 = scmp.ne.s32.totalorder %s384, %s385
    %p394 = scmp.eq.s32.totalorder %s33, 0
    %p395 = por %p393, %p394
    %p396 = scmp.ne.s32.totalorder %s384, %s385
    %p397 = scmp.eq.s32.totalorder %s34, 1
    %p398 = por %p396, %p397
    %p400 = scmp.ne.s32.totalorder %s385, %s399
    %p401 = scmp.eq.s32.totalorder %s34, 0
    %p402 = por %p400, %p401
    %s404 = sadd.s32 %s403, 1
    %p407 = scmp.eq.s32.totalorder %s28, 1
    %p408 = scmp.ne.s32.totalorder %s403, %s405
    %p409 = scmp.eq.s32.totalorder %s28, 0
    %p410 = por %p408, %p409
    %p411 = scmp.ne.s32.totalorder %s403, %s405
    %p412 = scmp.eq.s32.totalorder %s33, 1
    %p413 = por %p411, %p412
    %p414 = scmp.ne.s32.totalorder %s405, %s406
    %p415 = scmp.eq.s32.totalorder %s33, 0
    %p416 = por %p414, %p415
    %p417 = scmp.ne.s32.totalorder %s405, %s406
    %p418 = scmp.eq.s32.totalorder %s34, 1
    %p419 = por %p417, %p418
    %p421 = scmp.ne.s32.totalorder %s406, %s420
    %p422 = scmp.eq.s32.totalorder %s34, 0
    %p423 = por %p421, %p422
    %s425 = sadd.s32 %s424, 1
    %p428 = scmp.eq.s32.totalorder %s28, 1
    %p429 = scmp.ne.s32.totalorder %s424, %s426
    %p430 = scmp.eq.s32.totalorder %s28, 0
    %p431 = por %p429, %p430
    %p432 = scmp.ne.s32.totalorder %s424, %s426
    %p433 = scmp.eq.s32.totalorder %s33, 1
    %p434 = por %p432, %p433
    %p435 = scmp.ne.s32.totalorder %s426, %s427
    %p436 = scmp.eq.s32.totalorder %s33, 0
    %p437 = por %p435, %p436
    %p438 = scmp.ne.s32.totalorder %s426, %s427
    %p439 = scmp.eq.s32.totalorder %s34, 1
    %p440 = por %p438, %p439
    %p442 = scmp.ne.s32.totalorder %s427, %s441
    %p443 = scmp.eq.s32.totalorder %s34, 0
    %p444 = por %p442, %p443
    %s446 = sadd.s32 %s445, 1
    %p449 = scmp.eq.s32.totalorder %s28, 1
    %p450 = scmp.ne.s32.totalorder %s445, %s447
    %p451 = scmp.eq.s32.totalorder %s28, 0
    %p452 = por %p450, %p451
    %p453 = scmp.ne.s32.totalorder %s445, %s447
    %p454 = scmp.eq.s32.totalorder %s33, 1
    %p455 = por %p453, %p454
    %p456 = scmp.ne.s32.totalorder %s447, %s448
    %p457 = scmp.eq.s32.totalorder %s33, 0
    %p458 = por %p456, %p457
    %p459 = scmp.ne.s32.totalorder %s447, %s448
    %p460 = scmp.eq.s32.totalorder %s34, 1
    %p461 = por %p459, %p460
    %p463 = scmp.ne.s32.totalorder %s448, %s462
    %p464 = scmp.eq.s32.totalorder %s34, 0
    %p465 = por %p463, %p464
    %s467 = sadd.s32 %s466, 1
    %p470 = scmp.eq.s32.totalorder %s28, 1
    %p471 = scmp.ne.s32.totalorder %s466, %s468
    %p472 = scmp.eq.s32.totalorder %s28, 0
    %p473 = por %p471, %p472
    %p474 = scmp.ne.s32.totalorder %s466, %s468
    %p475 = scmp.eq.s32.totalorder %s33, 1
    %p476 = por %p474, %p475
    %p477 = scmp.ne.s32.totalorder %s468, %s469
    %p478 = scmp.eq.s32.totalorder %s33, 0
    %p479 = por %p477, %p478
    %p480 = scmp.ne.s32.totalorder %s468, %s469
    %p481 = scmp.eq.s32.totalorder %s34, 1
    %p482 = por %p480, %p481
    %p484 = scmp.ne.s32.totalorder %s469, %s483
    %p485 = scmp.eq.s32.totalorder %s34, 0
    %p486 = por %p484, %p485
    %s488 = sadd.s32 %s487, 1
    %p491 = scmp.eq.s32.totalorder %s28, 1
    %p492 = scmp.ne.s32.totalorder %s487, %s489
    %p493 = scmp.eq.s32.totalorder %s28, 0
    %p494 = por %p492, %p493
    %p495 = scmp.ne.s32.totalorder %s487, %s489
    %p496 = scmp.eq.s32.totalorder %s33, 1
    %p497 = por %p495, %p496
    %p498 = scmp.ne.s32.totalorder %s489, %s490
    %p499 = scmp.eq.s32.totalorder %s33, 0
    %p500 = por %p498, %p499
    %p501 = scmp.ne.s32.totalorder %s489, %s490
    %p502 = scmp.eq.s32.totalorder %s34, 1
    %p503 = por %p501, %p502
    %p505 = scmp.ne.s32.totalorder %s490, %s504
    %p506 = scmp.eq.s32.totalorder %s34, 0
    %p507 = por %p505, %p506
    %s508 = ssub.s32 %s28, %s35
    %p509 = scmp.eq.s32.totalorder %s508, 0
    %s511 = sadd.s32 %s510, 1
    %s512 = scalar_select %p509, %s510, %s511
    %p515 = pneg %p509
    %p516 = scmp.eq.s32.totalorder %s28, 1
    %p517 = por %p515, %p516
    %p518 = scmp.ne.s32.totalorder %s510, %s513
    %p519 = scmp.eq.s32.totalorder %s28, 0
    %p520 = por %p518, %p519
    %p521 = scmp.ne.s32.totalorder %s510, %s513
    %p522 = scmp.eq.s32.totalorder %s33, 1
    %p523 = por %p521, %p522
    %p524 = scmp.ne.s32.totalorder %s513, %s514
    %p525 = scmp.eq.s32.totalorder %s33, 0
    %p526 = por %p524, %p525
    %p527 = scmp.ne.s32.totalorder %s513, %s514
    %p528 = scmp.eq.s32.totalorder %s34, 1
    %p529 = por %p527, %p528
    %p531 = scmp.ne.s32.totalorder %s514, %s530
    %p532 = scmp.eq.s32.totalorder %s34, 0
    %p533 = por %p531, %p532
    %p534 = scmp.le.s32.totalorder 1, %s28
    %p535 = scmp.lt.s32.totalorder %s28, 3
    %p536 = pnand %p534, %p535
    %p537 = pneg %p536
    // Predicated region
    $region9: #{teddy_forward.19} parent=5 // pred_check
      _
    $region10: #{teddy_forward.19} parent=5 // pred_check_branch
      %539 = sbr.rel (%p536) target = $region12
    $region11: #{teddy_forward.19} parent=5 // pred_region
      %s540 = ssub.s32 %s28, 1
      // Predicated region
      $region13: #{teddy_forward.19} parent=11 // pred_check
        %p541 = pneg %p101
      $region14: #{teddy_forward.19} parent=11 // pred_check_branch
        %543 = sbr.rel (%p541) target = $region16
      $region15: #{teddy_forward.19} parent=11 // pred_region
        _
      $region16: #{teddy_forward.19} parent=11 // pred_fallthru
        _
      // Predicated region
      $region17: #{teddy_forward.19} parent=11 // pred_check
        %p544 = pneg %p122
      $region18: #{teddy_forward.19} parent=11 // pred_check_branch
        %546 = sbr.rel (%p544) target = $region20
      $region19: #{teddy_forward.19} parent=11 // pred_region
        _
      $region20: #{teddy_forward.19} parent=11 // pred_fallthru
        _
      // Predicated region
      $region21: #{teddy_forward.19} parent=11 // pred_check
        %p547 = pneg %p143
      $region22: #{teddy_forward.19} parent=11 // pred_check_branch
        %549 = sbr.rel (%p547) target = $region24
      $region23: #{teddy_forward.19} parent=11 // pred_region
        _
      $region24: #{teddy_forward.19} parent=11 // pred_fallthru
        _
      // Predicated region
      $region25: #{teddy_forward.19} parent=11 // pred_check
        %p550 = pneg %p164
      $region26: #{teddy_forward.19} parent=11 // pred_check_branch
        %552 = sbr.rel (%p550) target = $region28
      $region27: #{teddy_forward.19} parent=11 // pred_region
        _
      $region28: #{teddy_forward.19} parent=11 // pred_fallthru
        _
      // Predicated region
      $region29: #{teddy_forward.19} parent=11 // pred_check
        %p553 = pneg %p185
      $region30: #{teddy_forward.19} parent=11 // pred_check_branch
        %555 = sbr.rel (%p553) target = $region32
      $region31: #{teddy_forward.19} parent=11 // pred_region
        _
      $region32: #{teddy_forward.19} parent=11 // pred_fallthru
        _
      // Predicated region
      $region33: #{teddy_forward.19} parent=11 // pred_check
        %p556 = pneg %p206
      $region34: #{teddy_forward.19} parent=11 // pred_check_branch
        %558 = sbr.rel (%p556) target = $region36
      $region35: #{teddy_forward.19} parent=11 // pred_region
        _
      $region36: #{teddy_forward.19} parent=11 // pred_fallthru
        _
      // Predicated region
      $region37: #{teddy_forward.19} parent=11 // pred_check
        %p559 = pneg %p227
      $region38: #{teddy_forward.19} parent=11 // pred_check_branch
        %561 = sbr.rel (%p559) target = $region40
      $region39: #{teddy_forward.19} parent=11 // pred_region
        _
      $region40: #{teddy_forward.19} parent=11 // pred_fallthru
        _
      // Predicated region
      $region41: #{teddy_forward.19} parent=11 // pred_check
        %p562 = pneg %p248
      $region42: #{teddy_forward.19} parent=11 // pred_check_branch
        %564 = sbr.rel (%p562) target = $region44
      $region43: #{teddy_forward.19} parent=11 // pred_region
        _
      $region44: #{teddy_forward.19} parent=11 // pred_fallthru
        _
      // Predicated region
      $region45: #{teddy_forward.19} parent=11 // pred_check
        %p565 = pneg %p269
      $region46: #{teddy_forward.19} parent=11 // pred_check_branch
        %567 = sbr.rel (%p565) target = $region48
      $region47: #{teddy_forward.19} parent=11 // pred_region
        _
      $region48: #{teddy_forward.19} parent=11 // pred_fallthru
        _
      // Predicated region
      $region49: #{teddy_forward.19} parent=11 // pred_check
        %p568 = pneg %p290
      $region50: #{teddy_forward.19} parent=11 // pred_check_branch
        %570 = sbr.rel (%p568) target = $region52
      $region51: #{teddy_forward.19} parent=11 // pred_region
        _
      $region52: #{teddy_forward.19} parent=11 // pred_fallthru
        _
      // Predicated region
      $region53: #{teddy_forward.19} parent=11 // pred_check
        %p571 = pneg %p311
      $region54: #{teddy_forward.19} parent=11 // pred_check_branch
        %573 = sbr.rel (%p571) target = $region56
      $region55: #{teddy_forward.19} parent=11 // pred_region
        _
      $region56: #{teddy_forward.19} parent=11 // pred_fallthru
        _
      // Predicated region
      $region57: #{teddy_forward.19} parent=11 // pred_check
        %p574 = pneg %p332
      $region58: #{teddy_forward.19} parent=11 // pred_check_branch
        %576 = sbr.rel (%p574) target = $region60
      $region59: #{teddy_forward.19} parent=11 // pred_region
        _
      $region60: #{teddy_forward.19} parent=11 // pred_fallthru
        _
      // Predicated region
      $region61: #{teddy_forward.19} parent=11 // pred_check
        %p577 = pneg %p353
      $region62: #{teddy_forward.19} parent=11 // pred_check_branch
        %579 = sbr.rel (%p577) target = $region64
      $region63: #{teddy_forward.19} parent=11 // pred_region
        _
      $region64: #{teddy_forward.19} parent=11 // pred_fallthru
        _
      // Predicated region
      $region65: #{teddy_forward.19} parent=11 // pred_check
        %p580 = pneg %p374
      $region66: #{teddy_forward.19} parent=11 // pred_check_branch
        %582 = sbr.rel (%p580) target = $region68
      $region67: #{teddy_forward.19} parent=11 // pred_region
        _
      $region68: #{teddy_forward.19} parent=11 // pred_fallthru
        _
      // Predicated region
      $region69: #{teddy_forward.19} parent=11 // pred_check
        %p583 = pneg %p395
      $region70: #{teddy_forward.19} parent=11 // pred_check_branch
        %585 = sbr.rel (%p583) target = $region72
      $region71: #{teddy_forward.19} parent=11 // pred_region
        _
      $region72: #{teddy_forward.19} parent=11 // pred_fallthru
        _
      // Predicated region
      $region73: #{teddy_forward.19} parent=11 // pred_check
        %p586 = pneg %p416
      $region74: #{teddy_forward.19} parent=11 // pred_check_branch
        %588 = sbr.rel (%p586) target = $region76
      $region75: #{teddy_forward.19} parent=11 // pred_region
        _
      $region76: #{teddy_forward.19} parent=11 // pred_fallthru
        _
      // Predicated region
      $region77: #{teddy_forward.19} parent=11 // pred_check
        %p589 = pneg %p437
      $region78: #{teddy_forward.19} parent=11 // pred_check_branch
        %591 = sbr.rel (%p589) target = $region80
      $region79: #{teddy_forward.19} parent=11 // pred_region
        _
      $region80: #{teddy_forward.19} parent=11 // pred_fallthru
        _
      // Predicated region
      $region81: #{teddy_forward.19} parent=11 // pred_check
        %p592 = pneg %p458
      $region82: #{teddy_forward.19} parent=11 // pred_check_branch
        %594 = sbr.rel (%p592) target = $region84
      $region83: #{teddy_forward.19} parent=11 // pred_region
        _
      $region84: #{teddy_forward.19} parent=11 // pred_fallthru
        _
      // Predicated region
      $region85: #{teddy_forward.19} parent=11 // pred_check
        %p595 = pneg %p479
      $region86: #{teddy_forward.19} parent=11 // pred_check_branch
        %597 = sbr.rel (%p595) target = $region88
      $region87: #{teddy_forward.19} parent=11 // pred_region
        _
      $region88: #{teddy_forward.19} parent=11 // pred_fallthru
        _
      // Predicated region
      $region89: #{teddy_forward.19} parent=11 // pred_check
        %p598 = pneg %p500
      $region90: #{teddy_forward.19} parent=11 // pred_check_branch
        %600 = sbr.rel (%p598) target = $region92
      $region91: #{teddy_forward.19} parent=11 // pred_region
        _
      $region92: #{teddy_forward.19} parent=11 // pred_fallthru
        _
    $region12: #{teddy_forward.19} parent=5 // pred_fallthru
      _
    %p601 = scmp.lt.s32.totalorder %s28, 2
    // Predicated region
    $region93: #{teddy_forward.19} parent=5 // pred_check
      %p602 = pneg %p601
    $region94: #{teddy_forward.19} parent=5 // pred_check_branch
      %604 = sbr.rel (%p602) target = $region96
    $region95: #{teddy_forward.19} parent=5 // pred_region
      // Predicated region
      $region97: #{teddy_forward.19} parent=95 // pred_check
        %p605 = pneg %p48
      $region98: #{teddy_forward.19} parent=95 // pred_check_branch
        %607 = sbr.rel (%p605) target = $region100
      $region99: #{teddy_forward.19} parent=95 // pred_region
        %p608 = scmp.lt.s32.totalorder %s28, 1
        %s609 = scalar_select %p608, %s28, 1
        %s610 = smul.addr %s609, 8
        %s611 = scalar_lea.vmem %s0, %s610
      $region100: #{teddy_forward.19} parent=95 // pred_fallthru
        _
      // Predicated region
      $region101: #{teddy_forward.19} parent=95 // pred_check
        %p612 = pneg %p74
      $region102: #{teddy_forward.19} parent=95 // pred_check_branch
        %614 = sbr.rel (%p612) target = $region104
      $region103: #{teddy_forward.19} parent=95 // pred_region
        %p615 = scmp.lt.s32.totalorder %s28, 1
        %s616 = scalar_select %p615, %s28, 1
        %s617 = smul.addr %s616, 8
        %s618 = scalar_lea.vmem %s1, %s617
      $region104: #{teddy_forward.19} parent=95 // pred_fallthru
        _
    $region96: #{teddy_forward.19} parent=5 // pred_fallthru
      _
    %p619 = scmp.le.s32.totalorder 1, %s28
    %p620 = scmp.lt.s32.totalorder %s28, 3
    %p621 = pnand %p619, %p620
    %p622 = pneg %p621
    // Predicated region
    $region105: #{teddy_forward.19} parent=5 // pred_check
      _
    $region106: #{teddy_forward.19} parent=5 // pred_check_branch
      %624 = sbr.rel (%p621) target = $region108
    $region107: #{teddy_forward.19} parent=5 // pred_region
      %s625 = ssub.s32 %s28, 1
      %p626 = scmp.lt.s32.totalorder %s33, 1
      %s627 = scalar_select %p626, %s33, 1
      %s628 = smul.addr %s627, 8
      %s629 = scalar_lea.vmem %s0, %s628
      %p630 = pneg %p54
      %p631 = pneg %p51
      %p632 = scmp.lt.s32.totalorder %s33, 1
      %s633 = scalar_select %p632, %s33, 1
      %s634 = smul.addr %s633, 8
      %s635 = scalar_lea.vmem %s1, %s634
      %p636 = pneg %p80
      %p637 = pneg %p77
      %p638 = pneg %p101
      %p639 = pneg %p98
      %p640 = pneg %p122
      %p641 = pneg %p119
      %p642 = pneg %p143
      %p643 = pneg %p140
      %p644 = pneg %p164
      %p645 = pneg %p161
      %p646 = pneg %p185
      %p647 = pneg %p182
      %p648 = pneg %p206
      %p649 = pneg %p203
      %p650 = pneg %p227
      %p651 = pneg %p224
      %p652 = pneg %p248
      %p653 = pneg %p245
      %p654 = pneg %p269
      %p655 = pneg %p266
      %p656 = pneg %p290
      %p657 = pneg %p287
      %p658 = pneg %p311
      %p659 = pneg %p308
      %p660 = pneg %p332
      %p661 = pneg %p329
      %p662 = pneg %p353
      %p663 = pneg %p350
      %p664 = pneg %p374
      %p665 = pneg %p371
      %p666 = pneg %p395
      %p667 = pneg %p392
      %p668 = pneg %p416
      %p669 = pneg %p413
      %p670 = pneg %p437
      %p671 = pneg %p434
      %p672 = pneg %p458
      %p673 = pneg %p455
      %p674 = pneg %p479
      %p675 = pneg %p476
      %p676 = pneg %p500
      %p677 = pneg %p497
      %p678 = pneg %p526
      %p679 = pneg %p523
      %p680 = scmp.lt.s32.totalorder %s33, 1
      %s681 = scalar_select %p680, %s33, 1
      %s682 = smul.addr %s681, 8
      %s683 = scalar_lea.vmem %s22, %s682
      %p684 = scmp.lt.s32.totalorder %s33, 1
      %s685 = scalar_select %p684, %s33, 1
      %s686 = smul.addr %s685, 8
      %s687 = scalar_lea.vmem %s0, %s686
      %p688 = scmp.lt.s32.totalorder %s33, 1
      %s689 = scalar_select %p688, %s33, 1
      %s690 = smul.addr %s689, 8
      %s691 = scalar_lea.vmem %s1, %s690
      %p692 = scmp.lt.s32.totalorder %s33, 1
      %s693 = scalar_select %p692, %s33, 1
      %s694 = smul.addr %s693, 8
      %s695 = scalar_lea.vmem %s22, %s694
      %v697 = vld [vmem:[%s687] sm:$0x1f]
      %v698 = vld [vmem:[%s691] sm:$0x7f]
      %v699 = vld [vmem:[%s2] sm:$0xff]
      %v700 = vld [vmem:[%s2 + $0x8] sm:$0xff]
      %v701 = vld [vmem:[%s2 + $0x10] sm:$0xff]
      %v702 = vld [vmem:[%s2 + $0x18] sm:$0xff]
      %v703 = vld [vmem:[%s3] sm:$0x1]
      %v704 = vld [vmem:[%s4] sm:$0xff]
      %v705 = vld [vmem:[%s4 + $0x8] sm:$0xff]
      %v706 = vld [vmem:[%s4 + $0x10] sm:$0xff]
      %v707 = vld [vmem:[%s4 + $0x18] sm:$0xff]
      %v708 = vld [vmem:[%s5] sm:$0x1]
      %v709 = vpack.c.bf16 %v697, %v697
      %v710 = vpack.c.bf16 %v700, %v699
      %v711 = vpack.c.bf16 %v702, %v701
      %v713 = vlaneseq
      %v714 = vshrl.u32 %v713, 7
      %v715 = vsub.s32 0, %v714
      %v716 = vrot.slane %v703, %v715
      %vm718 = vcmask 261120
      %v720 = vsel %vm718, %v709, 0
      %722 = vmatprep.subr.bf16.mxu0 0
      %723 = vmatpush1.bf16.msra.mxu0 0
      %724 = vmatprep.subr.bf16.mxu0 0
      %725 = vmatpush1.bf16.msra.mxu0 0
      %726 = vmatprep.subr.bf16.mxu0 0
      %727 = vmatpush1.bf16.msra.mxu0 0
      %728 = vmatprep.subr.bf16.mxu0 0
      %729 = vmatpush1.bf16.msra.mxu0 0
      %730 = vmatprep.subr.bf16.mxu0 0
      %731 = vmatpush1.bf16.msra.mxu0 0
      %732 = vmatprep.subr.bf16.mxu0 0
      %733 = vmatpush1.bf16.msra.mxu0 0
      %734 = vmatprep.subr.bf16.mxu0 0
      %735 = vmatpush1.bf16.msra.mxu0 %v711
      %736 = vmatprep.subr.bf16.mxu0 0
      %737 = vmatpush1.bf16.msra.mxu0 %v710
      %738 = vmatprep.subr.bf16.mxu0 0
      %739 = vmatpush2.bf16.msra.mxu0 0
      %740 = vmatprep.subr.bf16.mxu0 0
      %741 = vmatpush2.bf16.msra.mxu0 0
      %742 = vmatprep.subr.bf16.mxu0 0
      %743 = vmatpush2.bf16.msra.mxu0 0
      %744 = vmatprep.subr.bf16.mxu0 0
      %745 = vmatpush2.bf16.msra.mxu0 0
      %746 = vmatprep.subr.bf16.mxu0 0
      %747 = vmatpush2.bf16.msra.mxu0 0
      %748 = vmatprep.subr.bf16.mxu0 0
      %749 = vmatpush2.bf16.msra.mxu0 0
      %750 = vmatprep.subr.bf16.mxu0 0
      %751 = vmatpush2.bf16.msra.mxu0 0
      %752 = vmatprep.subr.bf16.mxu0 0
      %753 = vmatpush2.bf16.msra.mxu0 0
      %754 = vmatprep.mubr.bf16.mxu0 0
      %755 = vmatmul.mubr.bf16.gmra.mxu0 %v720
      %v756 = vpop.f32.mrf.mxu0
      %v757 = vadd.f32 %v716, %v756
      %v758 = vpop.f32.mrf.mxu0
      %v759 = vpop.f32.mrf.mxu0
      %v760 = vpop.f32.mrf.mxu0
      %761 = vdwg.mxu0
      %v762 = vpack.c.bf16 %v757, %v757
      %764 = vrot.lane.b32.xlu0 %v762, 96
      %v765 = vpop.permute.xlu0 %764
      %vm766 = vcmask 64512
      %v768 = vsel %vm766, %v762, 0
      %v771 = vsel %vm766, %v765, 0
      %773 = vmatprep.subr.bf16.mxu0 0
      %774 = vmatpush1.bf16.xpose.msra.mxu0 0
      %775 = vmatprep.subr.bf16.mxu0 0
      %776 = vmatpush1.bf16.xpose.msra.mxu0 0
      %777 = vmatprep.subr.bf16.mxu0 0
      %778 = vmatpush1.bf16.xpose.msra.mxu0 0
      %779 = vmatprep.subr.bf16.mxu0 0
      %780 = vmatpush1.bf16.xpose.msra.mxu0 0
      %781 = vmatprep.subr.bf16.mxu0 0
      %782 = vmatpush1.bf16.xpose.msra.mxu0 0
      %783 = vmatprep.subr.bf16.mxu0 0
      %784 = vmatpush1.bf16.xpose.msra.mxu0 0
      %785 = vmatprep.subr.bf16.mxu0 0
      %786 = vmatpush1.bf16.xpose.msra.mxu0 0
      %787 = vmatprep.subr.bf16.mxu0 0
      %788 = vmatpush1.bf16.xpose.msra.mxu0 %v771
      %789 = vmatprep.subr.bf16.mxu0 0
      %790 = vmatpush2.bf16.xpose.msra.mxu0 0
      %791 = vmatprep.subr.bf16.mxu0 0
      %792 = vmatpush2.bf16.xpose.msra.mxu0 0
      %793 = vmatprep.subr.bf16.mxu0 0
      %794 = vmatpush2.bf16.xpose.msra.mxu0 0
      %795 = vmatprep.subr.bf16.mxu0 0
      %796 = vmatpush2.bf16.xpose.msra.mxu0 0
      %797 = vmatprep.subr.bf16.mxu0 0
      %798 = vmatpush2.bf16.xpose.msra.mxu0 0
      %799 = vmatprep.subr.bf16.mxu0 0
      %800 = vmatpush2.bf16.xpose.msra.mxu0 0
      %801 = vmatprep.subr.bf16.mxu0 0
      %802 = vmatpush2.bf16.xpose.msra.mxu0 0
      %803 = vmatprep.subr.bf16.mxu0 0
      %804 = vmatpush2.bf16.xpose.msra.mxu0 0
      %805 = vmatprep.mubr.bf16.mxu0 0
      %806 = vmatmul.mubr.bf16.gmra.mxu0 %v768
      %v807 = vpop.f32.mrf.mxu0
      %v808 = vadd.f32 0.0, %v807
      %v809 = vpop.f32.mrf.mxu0
      %v810 = vpop.f32.mrf.mxu0
      %v811 = vpop.f32.mrf.mxu0
      %812 = vdwg.mxu0
      %v813 = vmul.f32 %v808, 0.35355338
      %vm814 = vcmask 36864
      %v815 = vsel %vm814, %v813, -inf
      %816 = vmax.xlane.f32.xlu0 %v815
      %v817 = vpop.xlane.xlu0 %816
      %v818 = vsub.f32 %v813, %v817
      %v819 = vmul.f32 %v818, 1.442695
      %v820 = vpow.pop %v819
      %v821 = vsel %vm814, %v820, 0.0
      %822 = vadd.xlane.f32.xlu0 %v821
      %v823 = vpop.xlane.xlu0 %822
      %v824 = vrcp.pop %v823
      %v825 = vmul.f32 %v820, %v824
      %v826 = vpack.c.bf16 %v825, %v825
      %827 = vrot.lane.b32.xlu0 %v762, 64
      %v828 = vpop.permute.xlu0 %827
      %vm829 = vcmask 39936
      %v831 = vsel %vm829, %v826, 0
      %vm833 = vcmask 1041408
      %vm834 = vcmask 1042432
      %v835 = vsel %vm833, 4294967295, 65535
      %v836 = vsel %vm834, %v835, 0
      %v838 = vand.u32 %v828, %v836
      %840 = vmatprep.subr.bf16.mxu0 0
      %841 = vmatpush1.bf16.msra.mxu0 0
      %842 = vmatprep.subr.bf16.mxu0 0
      %843 = vmatpush1.bf16.msra.mxu0 0
      %844 = vmatprep.subr.bf16.mxu0 0
      %845 = vmatpush1.bf16.msra.mxu0 0
      %846 = vmatprep.subr.bf16.mxu0 0
      %847 = vmatpush1.bf16.msra.mxu0 0
      %848 = vmatprep.subr.bf16.mxu0 0
      %849 = vmatpush1.bf16.msra.mxu0 0
      %850 = vmatprep.subr.bf16.mxu0 0
      %851 = vmatpush1.bf16.msra.mxu0 0
      %852 = vmatprep.subr.bf16.mxu0 0
      %853 = vmatpush1.bf16.msra.mxu0 0
      %854 = vmatprep.subr.bf16.mxu0 0
      %855 = vmatpush1.bf16.msra.mxu0 %v838
      %856 = vmatprep.subr.bf16.mxu0 0
      %857 = vmatpush2.bf16.msra.mxu0 0
      %858 = vmatprep.subr.bf16.mxu0 0
      %859 = vmatpush2.bf16.msra.mxu0 0
      %860 = vmatprep.subr.bf16.mxu0 0
      %861 = vmatpush2.bf16.msra.mxu0 0
      %862 = vmatprep.subr.bf16.mxu0 0
      %863 = vmatpush2.bf16.msra.mxu0 0
      %864 = vmatprep.subr.bf16.mxu0 0
      %865 = vmatpush2.bf16.msra.mxu0 0
      %866 = vmatprep.subr.bf16.mxu0 0
      %867 = vmatpush2.bf16.msra.mxu0 0
      %868 = vmatprep.subr.bf16.mxu0 0
      %869 = vmatpush2.bf16.msra.mxu0 0
      %870 = vmatprep.subr.bf16.mxu0 0
      %871 = vmatpush2.bf16.msra.mxu0 0
      %872 = vmatprep.mubr.bf16.mxu0 0
      %873 = vmatmul.mubr.bf16.gmra.mxu0 %v831
      %v874 = vpop.f32.mrf.mxu0
      %v875 = vadd.f32 0.0, %v874
      %v876 = vpop.f32.mrf.mxu0
      %v877 = vpop.f32.mrf.mxu0
      %v878 = vpop.f32.mrf.mxu0
      %879 = vdwg.mxu0
      %v880 = vpack.c.bf16 %v875, %v875
      %v881 = vpack.c.bf16 %v704, %v704
      %882 = vrot.lane.b32.xlu0 %v762, 120
      %v883 = vpop.permute.xlu0 %882
      %884 = vrot.lane.b32.xlu0 %v762, 88
      %v885 = vpop.permute.xlu0 %884
      %v887 = vsel %vm766, %v883, 0
      %v890 = vsel %vm766, %v885, 0
      %892 = vmatprep.subr.bf16.mxu0 0
      %893 = vmatpush1.bf16.xpose.msra.mxu0 0
      %894 = vmatprep.subr.bf16.mxu0 0
      %895 = vmatpush1.bf16.xpose.msra.mxu0 0
      %896 = vmatprep.subr.bf16.mxu0 0
      %897 = vmatpush1.bf16.xpose.msra.mxu0 0
      %898 = vmatprep.subr.bf16.mxu0 0
      %899 = vmatpush1.bf16.xpose.msra.mxu0 0
      %900 = vmatprep.subr.bf16.mxu0 0
      %901 = vmatpush1.bf16.xpose.msra.mxu0 0
      %902 = vmatprep.subr.bf16.mxu0 0
      %903 = vmatpush1.bf16.xpose.msra.mxu0 0
      %904 = vmatprep.subr.bf16.mxu0 0
      %905 = vmatpush1.bf16.xpose.msra.mxu0 0
      %906 = vmatprep.subr.bf16.mxu0 0
      %907 = vmatpush1.bf16.xpose.msra.mxu0 %v890
      %908 = vmatprep.subr.bf16.mxu0 0
      %909 = vmatpush2.bf16.xpose.msra.mxu0 0
      %910 = vmatprep.subr.bf16.mxu0 0
      %911 = vmatpush2.bf16.xpose.msra.mxu0 0
      %912 = vmatprep.subr.bf16.mxu0 0
      %913 = vmatpush2.bf16.xpose.msra.mxu0 0
      %914 = vmatprep.subr.bf16.mxu0 0
      %915 = vmatpush2.bf16.xpose.msra.mxu0 0
      %916 = vmatprep.subr.bf16.mxu0 0
      %917 = vmatpush2.bf16.xpose.msra.mxu0 0
      %918 = vmatprep.subr.bf16.mxu0 0
      %919 = vmatpush2.bf16.xpose.msra.mxu0 0
      %920 = vmatprep.subr.bf16.mxu0 0
      %921 = vmatpush2.bf16.xpose.msra.mxu0 0
      %922 = vmatprep.subr.bf16.mxu0 0
      %923 = vmatpush2.bf16.xpose.msra.mxu0 0
      %924 = vmatprep.mubr.bf16.mxu0 0
      %925 = vmatmul.mubr.bf16.gmra.mxu0 %v887
      %v926 = vpop.f32.mrf.mxu0
      %v927 = vadd.f32 0.0, %v926
      %v928 = vpop.f32.mrf.mxu0
      %v929 = vpop.f32.mrf.mxu0
      %v930 = vpop.f32.mrf.mxu0
      %931 = vdwg.mxu0
      %v932 = vmul.f32 %v927, 0.35355338
      %v933 = vsel %vm814, %v932, -inf
      %934 = vmax.xlane.f32.xlu0 %v933
      %v935 = vpop.xlane.xlu0 %934
      %v936 = vsub.f32 %v932, %v935
      %v937 = vmul.f32 %v936, 1.442695
      %v938 = vpow.pop %v937
      %v939 = vsel %vm814, %v938, 0.0
      %940 = vadd.xlane.f32.xlu0 %v939
      %v941 = vpop.xlane.xlu0 %940
      %v942 = vrcp.pop %v941
      %v943 = vmul.f32 %v938, %v942
      %v944 = vpack.c.bf16 %v943, %v943
      %945 = vrot.lane.b32.xlu0 %v762, 56
      %v946 = vpop.permute.xlu0 %945
      %v948 = vsel %vm829, %v944, 0
      %v951 = vand.u32 %v946, %v836
      %953 = vmatprep.subr.bf16.mxu0 0
      %954 = vmatpush1.bf16.msra.mxu0 0
      %955 = vmatprep.subr.bf16.mxu0 0
      %956 = vmatpush1.bf16.msra.mxu0 0
      %957 = vmatprep.subr.bf16.mxu0 0
      %958 = vmatpush1.bf16.msra.mxu0 0
      %959 = vmatprep.subr.bf16.mxu0 0
      %960 = vmatpush1.bf16.msra.mxu0 0
      %961 = vmatprep.subr.bf16.mxu0 0
      %962 = vmatpush1.bf16.msra.mxu0 0
      %963 = vmatprep.subr.bf16.mxu0 0
      %964 = vmatpush1.bf16.msra.mxu0 0
      %965 = vmatprep.subr.bf16.mxu0 0
      %966 = vmatpush1.bf16.msra.mxu0 0
      %967 = vmatprep.subr.bf16.mxu0 0
      %968 = vmatpush1.bf16.msra.mxu0 %v951
      %969 = vmatprep.subr.bf16.mxu0 0
      %970 = vmatpush2.bf16.msra.mxu0 0
      %971 = vmatprep.subr.bf16.mxu0 0
      %972 = vmatpush2.bf16.msra.mxu0 0
      %973 = vmatprep.subr.bf16.mxu0 0
      %974 = vmatpush2.bf16.msra.mxu0 0
      %975 = vmatprep.subr.bf16.mxu0 0
      %976 = vmatpush2.bf16.msra.mxu0 0
      %977 = vmatprep.subr.bf16.mxu0 0
      %978 = vmatpush2.bf16.msra.mxu0 0
      %979 = vmatprep.subr.bf16.mxu0 0
      %980 = vmatpush2.bf16.msra.mxu0 0
      %981 = vmatprep.subr.bf16.mxu0 0
      %982 = vmatpush2.bf16.msra.mxu0 0
      %983 = vmatprep.subr.bf16.mxu0 0
      %984 = vmatpush2.bf16.msra.mxu0 0
      %985 = vmatprep.mubr.bf16.mxu0 0
      %986 = vmatmul.mubr.bf16.gmra.mxu0 %v948
      %v987 = vpop.f32.mrf.mxu0
      %v988 = vadd.f32 0.0, %v987
      %v989 = vpop.f32.mrf.mxu0
      %v990 = vpop.f32.mrf.mxu0
      %v991 = vpop.f32.mrf.mxu0
      %992 = vdwg.mxu0
      %v993 = vpack.c.bf16 %v988, %v988
      %v994 = vpack.c.bf16 %v705, %v705
      %v996 = vsel %vm766, %v993, 0
      %vm998 = vcmask 1043456
      %v1000 = vsel %vm998, %v994, 0
      %1002 = vmatprep.subr.bf16.mxu0 0
      %1003 = vmatpush1.bf16.msra.mxu0 0
      %1004 = vmatprep.subr.bf16.mxu0 0
      %1005 = vmatpush1.bf16.msra.mxu0 0
      %1006 = vmatprep.subr.bf16.mxu0 0
      %1007 = vmatpush1.bf16.msra.mxu0 0
      %1008 = vmatprep.subr.bf16.mxu0 0
      %1009 = vmatpush1.bf16.msra.mxu0 0
      %1010 = vmatprep.subr.bf16.mxu0 0
      %1011 = vmatpush1.bf16.msra.mxu0 0
      %1012 = vmatprep.subr.bf16.mxu0 0
      %1013 = vmatpush1.bf16.msra.mxu0 0
      %1014 = vmatprep.subr.bf16.mxu0 0
      %1015 = vmatpush1.bf16.msra.mxu0 0
      %1016 = vmatprep.subr.bf16.mxu0 0
      %1017 = vmatpush1.bf16.msra.mxu0 %v1000
      %1018 = vmatprep.subr.bf16.mxu0 0
      %1019 = vmatpush2.bf16.msra.mxu0 0
      %1020 = vmatprep.subr.bf16.mxu0 0
      %1021 = vmatpush2.bf16.msra.mxu0 0
      %1022 = vmatprep.subr.bf16.mxu0 0
      %1023 = vmatpush2.bf16.msra.mxu0 0
      %1024 = vmatprep.subr.bf16.mxu0 0
      %1025 = vmatpush2.bf16.msra.mxu0 0
      %1026 = vmatprep.subr.bf16.mxu0 0
      %1027 = vmatpush2.bf16.msra.mxu0 0
      %1028 = vmatprep.subr.bf16.mxu0 0
      %1029 = vmatpush2.bf16.msra.mxu0 0
      %1030 = vmatprep.subr.bf16.mxu0 0
      %1031 = vmatpush2.bf16.msra.mxu0 0
      %1032 = vmatprep.subr.bf16.mxu0 0
      %1033 = vmatpush2.bf16.msra.mxu0 0
      %1034 = vmatprep.mubr.bf16.mxu0 0
      %1035 = vmatmul.mubr.bf16.gmra.mxu0 %v996
      %v1036 = vpop.f32.mrf.mxu0
      %v1037 = vadd.f32 0.0, %v1036
      %v1038 = vpop.f32.mrf.mxu0
      %v1039 = vpop.f32.mrf.mxu0
      %v1040 = vpop.f32.mrf.mxu0
      %1041 = vdwg.mxu0
      %v1043 = vsel %vm766, %v880, 0
      %v1046 = vsel %vm998, %v881, 0
      %1048 = vmatprep.subr.bf16.mxu0 0
      %1049 = vmatpush1.bf16.msra.mxu0 0
      %1050 = vmatprep.subr.bf16.mxu0 0
      %1051 = vmatpush1.bf16.msra.mxu0 0
      %1052 = vmatprep.subr.bf16.mxu0 0
      %1053 = vmatpush1.bf16.msra.mxu0 0
      %1054 = vmatprep.subr.bf16.mxu0 0
      %1055 = vmatpush1.bf16.msra.mxu0 0
      %1056 = vmatprep.subr.bf16.mxu0 0
      %1057 = vmatpush1.bf16.msra.mxu0 0
      %1058 = vmatprep.subr.bf16.mxu0 0
      %1059 = vmatpush1.bf16.msra.mxu0 0
      %1060 = vmatprep.subr.bf16.mxu0 0
      %1061 = vmatpush1.bf16.msra.mxu0 0
      %1062 = vmatprep.subr.bf16.mxu0 0
      %1063 = vmatpush1.bf16.msra.mxu0 %v1046
      %1064 = vmatprep.subr.bf16.mxu0 0
      %1065 = vmatpush2.bf16.msra.mxu0 0
      %1066 = vmatprep.subr.bf16.mxu0 0
      %1067 = vmatpush2.bf16.msra.mxu0 0
      %1068 = vmatprep.subr.bf16.mxu0 0
      %1069 = vmatpush2.bf16.msra.mxu0 0
      %1070 = vmatprep.subr.bf16.mxu0 0
      %1071 = vmatpush2.bf16.msra.mxu0 0
      %1072 = vmatprep.subr.bf16.mxu0 0
      %1073 = vmatpush2.bf16.msra.mxu0 0
      %1074 = vmatprep.subr.bf16.mxu0 0
      %1075 = vmatpush2.bf16.msra.mxu0 0
      %1076 = vmatprep.subr.bf16.mxu0 0
      %1077 = vmatpush2.bf16.msra.mxu0 0
      %1078 = vmatprep.subr.bf16.mxu0 0
      %1079 = vmatpush2.bf16.msra.mxu0 0
      %1080 = vmatprep.mubr.bf16.mxu0 0
      %1081 = vmatmul.mubr.bf16.gmra.mxu0 %v1043
      %v1082 = vpop.f32.mrf.mxu0
      %v1083 = vadd.f32 %v1037, %v1082
      %v1084 = vpop.f32.mrf.mxu0
      %v1085 = vpop.f32.mrf.mxu0
      %v1086 = vpop.f32.mrf.mxu0
      %1087 = vdwg.mxu0
      %1088 = vrot.lane.b32.xlu0 %v762, 112
      %v1089 = vpop.permute.xlu0 %1088
      %1090 = vrot.lane.b32.xlu0 %v762, 80
      %v1091 = vpop.permute.xlu0 %1090
      %v1093 = vsel %vm766, %v1089, 0
      %v1096 = vsel %vm766, %v1091, 0
      %1098 = vmatprep.subr.bf16.mxu0 0
      %1099 = vmatpush1.bf16.xpose.msra.mxu0 0
      %1100 = vmatprep.subr.bf16.mxu0 0
      %1101 = vmatpush1.bf16.xpose.msra.mxu0 0
      %1102 = vmatprep.subr.bf16.mxu0 0
      %1103 = vmatpush1.bf16.xpose.msra.mxu0 0
      %1104 = vmatprep.subr.bf16.mxu0 0
      %1105 = vmatpush1.bf16.xpose.msra.mxu0 0
      %1106 = vmatprep.subr.bf16.mxu0 0
      %1107 = vmatpush1.bf16.xpose.msra.mxu0 0
      %1108 = vmatprep.subr.bf16.mxu0 0
      %1109 = vmatpush1.bf16.xpose.msra.mxu0 0
      %1110 = vmatprep.subr.bf16.mxu0 0
      %1111 = vmatpush1.bf16.xpose.msra.mxu0 0
      %1112 = vmatprep.subr.bf16.mxu0 0
      %1113 = vmatpush1.bf16.xpose.msra.mxu0 %v1096
      %1114 = vmatprep.subr.bf16.mxu0 0
      %1115 = vmatpush2.bf16.xpose.msra.mxu0 0
      %1116 = vmatprep.subr.bf16.mxu0 0
      %1117 = vmatpush2.bf16.xpose.msra.mxu0 0
      %1118 = vmatprep.subr.bf16.mxu0 0
      %1119 = vmatpush2.bf16.xpose.msra.mxu0 0
      %1120 = vmatprep.subr.bf16.mxu0 0
      %1121 = vmatpush2.bf16.xpose.msra.mxu0 0
      %1122 = vmatprep.subr.bf16.mxu0 0
      %1123 = vmatpush2.bf16.xpose.msra.mxu0 0
      %1124 = vmatprep.subr.bf16.mxu0 0
      %1125 = vmatpush2.bf16.xpose.msra.mxu0 0
      %1126 = vmatprep.subr.bf16.mxu0 0
      %1127 = vmatpush2.bf16.xpose.msra.mxu0 0
      %1128 = vmatprep.subr.bf16.mxu0 0
      %1129 = vmatpush2.bf16.xpose.msra.mxu0 0
      %1130 = vmatprep.mubr.bf16.mxu0 0
      %1131 = vmatmul.mubr.bf16.gmra.mxu0 %v1093
      %v1132 = vpop.f32.mrf.mxu0
      %v1133 = vadd.f32 0.0, %v1132
      %v1134 = vpop.f32.mrf.mxu0
      %v1135 = vpop.f32.mrf.mxu0
      %v1136 = vpop.f32.mrf.mxu0
      %1137 = vdwg.mxu0
      %v1138 = vmul.f32 %v1133, 0.35355338
      %v1139 = vsel %vm814, %v1138, -inf
      %1140 = vmax.xlane.f32.xlu0 %v1139
      %v1141 = vpop.xlane.xlu0 %1140
      %v1142 = vsub.f32 %v1138, %v1141
      %v1143 = vmul.f32 %v1142, 1.442695
      %v1144 = vpow.pop %v1143
      %v1145 = vsel %vm814, %v1144, 0.0
      %1146 = vadd.xlane.f32.xlu0 %v1145
      %v1147 = vpop.xlane.xlu0 %1146
      %v1148 = vrcp.pop %v1147
      %v1149 = vmul.f32 %v1144, %v1148
      %v1150 = vpack.c.bf16 %v1149, %v1149
      %1151 = vrot.lane.b32.xlu0 %v762, 48
      %v1152 = vpop.permute.xlu0 %1151
      %v1154 = vsel %vm829, %v1150, 0
      %v1157 = vand.u32 %v1152, %v836
      %1159 = vmatprep.subr.bf16.mxu0 0
      %1160 = vmatpush1.bf16.msra.mxu0 0
      %1161 = vmatprep.subr.bf16.mxu0 0
      %1162 = vmatpush1.bf16.msra.mxu0 0
      %1163 = vmatprep.subr.bf16.mxu0 0
      %1164 = vmatpush1.bf16.msra.mxu0 0
      %1165 = vmatprep.subr.bf16.mxu0 0
      %1166 = vmatpush1.bf16.msra.mxu0 0
      %1167 = vmatprep.subr.bf16.mxu0 0
      %1168 = vmatpush1.bf16.msra.mxu0 0
      %1169 = vmatprep.subr.bf16.mxu0 0
      %1170 = vmatpush1.bf16.msra.mxu0 0
      %1171 = vmatprep.subr.bf16.mxu0 0
      %1172 = vmatpush1.bf16.msra.mxu0 0
      %1173 = vmatprep.subr.bf16.mxu0 0
      %1174 = vmatpush1.bf16.msra.mxu0 %v1157
      %1175 = vmatprep.subr.bf16.mxu0 0
      %1176 = vmatpush2.bf16.msra.mxu0 0
      %1177 = vmatprep.subr.bf16.mxu0 0
      %1178 = vmatpush2.bf16.msra.mxu0 0
      %1179 = vmatprep.subr.bf16.mxu0 0
      %1180 = vmatpush2.bf16.msra.mxu0 0
      %1181 = vmatprep.subr.bf16.mxu0 0
      %1182 = vmatpush2.bf16.msra.mxu0 0
      %1183 = vmatprep.subr.bf16.mxu0 0
      %1184 = vmatpush2.bf16.msra.mxu0 0
      %1185 = vmatprep.subr.bf16.mxu0 0
      %1186 = vmatpush2.bf16.msra.mxu0 0
      %1187 = vmatprep.subr.bf16.mxu0 0
      %1188 = vmatpush2.bf16.msra.mxu0 0
      %1189 = vmatprep.subr.bf16.mxu0 0
      %1190 = vmatpush2.bf16.msra.mxu0 0
      %1191 = vmatprep.mubr.bf16.mxu0 0
      %1192 = vmatmul.mubr.bf16.gmra.mxu0 %v1154
      %v1193 = vpop.f32.mrf.mxu0
      %v1194 = vadd.f32 0.0, %v1193
      %v1195 = vpop.f32.mrf.mxu0
      %v1196 = vpop.f32.mrf.mxu0
      %v1197 = vpop.f32.mrf.mxu0
      %1198 = vdwg.mxu0
      %v1199 = vpack.c.bf16 %v1194, %v1194
      %v1200 = vpack.c.bf16 %v706, %v706
      %v1202 = vsel %vm766, %v1199, 0
      %v1205 = vsel %vm998, %v1200, 0
      %1207 = vmatprep.subr.bf16.mxu0 0
      %1208 = vmatpush1.bf16.msra.mxu0 0
      %1209 = vmatprep.subr.bf16.mxu0 0
      %1210 = vmatpush1.bf16.msra.mxu0 0
      %1211 = vmatprep.subr.bf16.mxu0 0
      %1212 = vmatpush1.bf16.msra.mxu0 0
      %1213 = vmatprep.subr.bf16.mxu0 0
      %1214 = vmatpush1.bf16.msra.mxu0 0
      %1215 = vmatprep.subr.bf16.mxu0 0
      %1216 = vmatpush1.bf16.msra.mxu0 0
      %1217 = vmatprep.subr.bf16.mxu0 0
      %1218 = vmatpush1.bf16.msra.mxu0 0
      %1219 = vmatprep.subr.bf16.mxu0 0
      %1220 = vmatpush1.bf16.msra.mxu0 0
      %1221 = vmatprep.subr.bf16.mxu0 0
      %1222 = vmatpush1.bf16.msra.mxu0 %v1205
      %1223 = vmatprep.subr.bf16.mxu0 0
      %1224 = vmatpush2.bf16.msra.mxu0 0
      %1225 = vmatprep.subr.bf16.mxu0 0
      %1226 = vmatpush2.bf16.msra.mxu0 0
      %1227 = vmatprep.subr.bf16.mxu0 0
      %1228 = vmatpush2.bf16.msra.mxu0 0
      %1229 = vmatprep.subr.bf16.mxu0 0
      %1230 = vmatpush2.bf16.msra.mxu0 0
      %1231 = vmatprep.subr.bf16.mxu0 0
      %1232 = vmatpush2.bf16.msra.mxu0 0
      %1233 = vmatprep.subr.bf16.mxu0 0
      %1234 = vmatpush2.bf16.msra.mxu0 0
      %1235 = vmatprep.subr.bf16.mxu0 0
      %1236 = vmatpush2.bf16.msra.mxu0 0
      %1237 = vmatprep.subr.bf16.mxu0 0
      %1238 = vmatpush2.bf16.msra.mxu0 0
      %1239 = vmatprep.mubr.bf16.mxu0 0
      %1240 = vmatmul.mubr.bf16.gmra.mxu0 %v1202
      %v1241 = vpop.f32.mrf.mxu0
      %v1242 = vadd.f32 0.0, %v1241
      %v1243 = vpop.f32.mrf.mxu0
      %v1244 = vpop.f32.mrf.mxu0
      %v1245 = vpop.f32.mrf.mxu0
      %1246 = vdwg.mxu0
      %v1247 = vadd.f32 %v1083, %v1242
      %1248 = vrot.lane.b32.xlu0 %v762, 104
      %v1249 = vpop.permute.xlu0 %1248
      %1250 = vrot.lane.b32.xlu0 %v762, 72
      %v1251 = vpop.permute.xlu0 %1250
      %v1253 = vsel %vm766, %v1249, 0
      %v1256 = vsel %vm766, %v1251, 0
      %1258 = vmatprep.subr.bf16.mxu0 0
      %1259 = vmatpush1.bf16.xpose.msra.mxu0 0
      %1260 = vmatprep.subr.bf16.mxu0 0
      %1261 = vmatpush1.bf16.xpose.msra.mxu0 0
      %1262 = vmatprep.subr.bf16.mxu0 0
      %1263 = vmatpush1.bf16.xpose.msra.mxu0 0
      %1264 = vmatprep.subr.bf16.mxu0 0
      %1265 = vmatpush1.bf16.xpose.msra.mxu0 0
      %1266 = vmatprep.subr.bf16.mxu0 0
      %1267 = vmatpush1.bf16.xpose.msra.mxu0 0
      %1268 = vmatprep.subr.bf16.mxu0 0
      %1269 = vmatpush1.bf16.xpose.msra.mxu0 0
      %1270 = vmatprep.subr.bf16.mxu0 0
      %1271 = vmatpush1.bf16.xpose.msra.mxu0 0
      %1272 = vmatprep.subr.bf16.mxu0 0
      %1273 = vmatpush1.bf16.xpose.msra.mxu0 %v1256
      %1274 = vmatprep.subr.bf16.mxu0 0
      %1275 = vmatpush2.bf16.xpose.msra.mxu0 0
      %1276 = vmatprep.subr.bf16.mxu0 0
      %1277 = vmatpush2.bf16.xpose.msra.mxu0 0
      %1278 = vmatprep.subr.bf16.mxu0 0
      %1279 = vmatpush2.bf16.xpose.msra.mxu0 0
      %1280 = vmatprep.subr.bf16.mxu0 0
      %1281 = vmatpush2.bf16.xpose.msra.mxu0 0
      %1282 = vmatprep.subr.bf16.mxu0 0
      %1283 = vmatpush2.bf16.xpose.msra.mxu0 0
      %1284 = vmatprep.subr.bf16.mxu0 0
      %1285 = vmatpush2.bf16.xpose.msra.mxu0 0
      %1286 = vmatprep.subr.bf16.mxu0 0
      %1287 = vmatpush2.bf16.xpose.msra.mxu0 0
      %1288 = vmatprep.subr.bf16.mxu0 0
      %1289 = vmatpush2.bf16.xpose.msra.mxu0 0
      %1290 = vmatprep.mubr.bf16.mxu0 0
      %1291 = vmatmul.mubr.bf16.gmra.mxu0 %v1253
      %v1292 = vpop.f32.mrf.mxu0
      %v1293 = vadd.f32 0.0, %v1292
      %v1294 = vpop.f32.mrf.mxu0
      %v1295 = vpop.f32.mrf.mxu0
      %v1296 = vpop.f32.mrf.mxu0
      %1297 = vdwg.mxu0
      %v1298 = vmul.f32 %v1293, 0.35355338
      %v1299 = vsel %vm814, %v1298, -inf
      %1300 = vmax.xlane.f32.xlu0 %v1299
      %v1301 = vpop.xlane.xlu0 %1300
      %v1302 = vsub.f32 %v1298, %v1301
      %v1303 = vmul.f32 %v1302, 1.442695
      %v1304 = vpow.pop %v1303
      %v1305 = vsel %vm814, %v1304, 0.0
      %1306 = vadd.xlane.f32.xlu0 %v1305
      %v1307 = vpop.xlane.xlu0 %1306
      %v1308 = vrcp.pop %v1307
      %v1309 = vmul.f32 %v1304, %v1308
      %v1310 = vpack.c.bf16 %v1309, %v1309
      %1311 = vrot.lane.b32.xlu0 %v762, 40
      %v1312 = vpop.permute.xlu0 %1311
      %v1314 = vsel %vm829, %v1310, 0
      %v1317 = vand.u32 %v1312, %v836
      %1319 = vmatprep.subr.bf16.mxu0 0
      %1320 = vmatpush1.bf16.msra.mxu0 0
      %1321 = vmatprep.subr.bf16.mxu0 0
      %1322 = vmatpush1.bf16.msra.mxu0 0
      %1323 = vmatprep.subr.bf16.mxu0 0
      %1324 = vmatpush1.bf16.msra.mxu0 0
      %1325 = vmatprep.subr.bf16.mxu0 0
      %1326 = vmatpush1.bf16.msra.mxu0 0
      %1327 = vmatprep.subr.bf16.mxu0 0
      %1328 = vmatpush1.bf16.msra.mxu0 0
      %1329 = vmatprep.subr.bf16.mxu0 0
      %1330 = vmatpush1.bf16.msra.mxu0 0
      %1331 = vmatprep.subr.bf16.mxu0 0
      %1332 = vmatpush1.bf16.msra.mxu0 0
      %1333 = vmatprep.subr.bf16.mxu0 0
      %1334 = vmatpush1.bf16.msra.mxu0 %v1317
      %1335 = vmatprep.subr.bf16.mxu0 0
      %1336 = vmatpush2.bf16.msra.mxu0 0
      %1337 = vmatprep.subr.bf16.mxu0 0
      %1338 = vmatpush2.bf16.msra.mxu0 0
      %1339 = vmatprep.subr.bf16.mxu0 0
      %1340 = vmatpush2.bf16.msra.mxu0 0
      %1341 = vmatprep.subr.bf16.mxu0 0
      %1342 = vmatpush2.bf16.msra.mxu0 0
      %1343 = vmatprep.subr.bf16.mxu0 0
      %1344 = vmatpush2.bf16.msra.mxu0 0
      %1345 = vmatprep.subr.bf16.mxu0 0
      %1346 = vmatpush2.bf16.msra.mxu0 0
      %1347 = vmatprep.subr.bf16.mxu0 0
      %1348 = vmatpush2.bf16.msra.mxu0 0
      %1349 = vmatprep.subr.bf16.mxu0 0
      %1350 = vmatpush2.bf16.msra.mxu0 0
      %1351 = vmatprep.mubr.bf16.mxu0 0
      %1352 = vmatmul.mubr.bf16.gmra.mxu0 %v1314
      %v1353 = vpop.f32.mrf.mxu0
      %v1354 = vadd.f32 0.0, %v1353
      %v1355 = vpop.f32.mrf.mxu0
      %v1356 = vpop.f32.mrf.mxu0
      %v1357 = vpop.f32.mrf.mxu0
      %1358 = vdwg.mxu0
      %v1359 = vpack.c.bf16 %v1354, %v1354
      %v1360 = vpack.c.bf16 %v707, %v707
      %v1362 = vsel %vm766, %v1359, 0
      %v1365 = vsel %vm998, %v1360, 0
      %1367 = vmatprep.subr.bf16.mxu0 0
      %1368 = vmatpush1.bf16.msra.mxu0 0
      %1369 = vmatprep.subr.bf16.mxu0 0
      %1370 = vmatpush1.bf16.msra.mxu0 0
      %1371 = vmatprep.subr.bf16.mxu0 0
      %1372 = vmatpush1.bf16.msra.mxu0 0
      %1373 = vmatprep.subr.bf16.mxu0 0
      %1374 = vmatpush1.bf16.msra.mxu0 0
      %1375 = vmatprep.subr.bf16.mxu0 0
      %1376 = vmatpush1.bf16.msra.mxu0 0
      %1377 = vmatprep.subr.bf16.mxu0 0
      %1378 = vmatpush1.bf16.msra.mxu0 0
      %1379 = vmatprep.subr.bf16.mxu0 0
      %1380 = vmatpush1.bf16.msra.mxu0 0
      %1381 = vmatprep.subr.bf16.mxu0 0
      %1382 = vmatpush1.bf16.msra.mxu0 %v1365
      %1383 = vmatprep.subr.bf16.mxu0 0
      %1384 = vmatpush2.bf16.msra.mxu0 0
      %1385 = vmatprep.subr.bf16.mxu0 0
      %1386 = vmatpush2.bf16.msra.mxu0 0
      %1387 = vmatprep.subr.bf16.mxu0 0
      %1388 = vmatpush2.bf16.msra.mxu0 0
      %1389 = vmatprep.subr.bf16.mxu0 0
      %1390 = vmatpush2.bf16.msra.mxu0 0
      %1391 = vmatprep.subr.bf16.mxu0 0
      %1392 = vmatpush2.bf16.msra.mxu0 0
      %1393 = vmatprep.subr.bf16.mxu0 0
      %1394 = vmatpush2.bf16.msra.mxu0 0
      %1395 = vmatprep.subr.bf16.mxu0 0
      %1396 = vmatpush2.bf16.msra.mxu0 0
      %1397 = vmatprep.subr.bf16.mxu0 0
      %1398 = vmatpush2.bf16.msra.mxu0 0
      %1399 = vmatprep.mubr.bf16.mxu0 0
      %1400 = vmatmul.mubr.bf16.gmra.mxu0 %v1362
      %v1401 = vpop.f32.mrf.mxu0
      %v1402 = vadd.f32 0.0, %v1401
      %v1403 = vpop.f32.mrf.mxu0
      %v1404 = vpop.f32.mrf.mxu0
      %v1405 = vpop.f32.mrf.mxu0
      %1406 = vdwg.mxu0
      %v1407 = vadd.f32 %v1247, %v1402
      %v1409 = vlaneseq
      %v1410 = vshrl.u32 %v1409, 7
      %v1411 = vsub.s32 0, %v1410
      %v1412 = vrot.slane %v708, %v1411
      %v1414 = vadd.f32 %v1407, %v1412
      %v1415 = vadd.f32 %v697, %v1414
      %v1416 = vld [vmem:[%s6] sm:$0x1]
      %v1417 = vld [vmem:[%s7] sm:$0x1]
      %vm1418 = vcmask 258048
      %v1419 = vsel %vm1418, %v1415, 0.0
      %1420 = vadd.xlane.f32.xlu0 %v1419
      %v1421 = vpop.xlane.xlu0 %1420
      %v1422 = vrcp.pop 32.0
      %v1423 = vmul.f32 %v1421, %v1422
      %v1424 = vsub.f32 %v1415, %v1423
      %v1425 = vmul.f32 %v1424, %v1424
      %v1426 = vsel %vm1418, %v1425, 0.0
      %1427 = vadd.xlane.f32.xlu0 %v1426
      %v1428 = vpop.xlane.xlu0 %1427
      %v1429 = vmul.f32 %v1428, %v1422
      %v1430 = vadd.f32 %v1429, 1e-05
      %v1431 = vrsqrt.pop %v1430
      %v1432 = vmul.f32 %v1424, %v1431
      %v1434 = vlaneseq
      %v1435 = vshrl.u32 %v1434, 7
      %v1436 = vsub.s32 0, %v1435
      %v1437 = vrot.slane %v1416, %v1436
      %v1439 = vmul.f32 %v1432, %v1437
      %v1441 = vlaneseq
      %v1442 = vshrl.u32 %v1441, 7
      %v1443 = vsub.s32 0, %v1442
      %v1444 = vrot.slane %v1417, %v1443
      %v1446 = vadd.f32 %v1439, %v1444
      %v1447 = vld [vmem:[%s8] sm:$0xff]
      %v1448 = vld [vmem:[%s8 + $0x8] sm:$0xff]
      %v1449 = vld [vmem:[%s8 + $0x10] sm:$0xff]
      %v1450 = vld [vmem:[%s8 + $0x18] sm:$0xff]
      %v1451 = vpack.c.bf16 %v1446, %v1446
      %v1452 = vpack.c.bf16 %v1448, %v1447
      %v1453 = vpack.c.bf16 %v1450, %v1449
      %v1454 = vld [vmem:[%s9] sm:$0x1]
      %v1456 = vlaneseq
      %v1457 = vshrl.u32 %v1456, 7
      %v1458 = vsub.s32 0, %v1457
      %v1459 = vrot.slane %v1454, %v1458
      %v1462 = vsel %vm718, %v1451, 0
      %1464 = vmatprep.subr.bf16.mxu0 0
      %1465 = vmatpush1.bf16.msra.mxu0 0
      %1466 = vmatprep.subr.bf16.mxu0 0
      %1467 = vmatpush1.bf16.msra.mxu0 0
      %1468 = vmatprep.subr.bf16.mxu0 0
      %1469 = vmatpush1.bf16.msra.mxu0 0
      %1470 = vmatprep.subr.bf16.mxu0 0
      %1471 = vmatpush1.bf16.msra.mxu0 0
      %1472 = vmatprep.subr.bf16.mxu0 0
      %1473 = vmatpush1.bf16.msra.mxu0 0
      %1474 = vmatprep.subr.bf16.mxu0 0
      %1475 = vmatpush1.bf16.msra.mxu0 0
      %1476 = vmatprep.subr.bf16.mxu0 0
      %1477 = vmatpush1.bf16.msra.mxu0 %v1453
      %1478 = vmatprep.subr.bf16.mxu0 0
      %1479 = vmatpush1.bf16.msra.mxu0 %v1452
      %1480 = vmatprep.subr.bf16.mxu0 0
      %1481 = vmatpush2.bf16.msra.mxu0 0
      %1482 = vmatprep.subr.bf16.mxu0 0
      %1483 = vmatpush2.bf16.msra.mxu0 0
      %1484 = vmatprep.subr.bf16.mxu0 0
      %1485 = vmatpush2.bf16.msra.mxu0 0
      %1486 = vmatprep.subr.bf16.mxu0 0
      %1487 = vmatpush2.bf16.msra.mxu0 0
      %1488 = vmatprep.subr.bf16.mxu0 0
      %1489 = vmatpush2.bf16.msra.mxu0 0
      %1490 = vmatprep.subr.bf16.mxu0 0
      %1491 = vmatpush2.bf16.msra.mxu0 0
      %1492 = vmatprep.subr.bf16.mxu0 0
      %1493 = vmatpush2.bf16.msra.mxu0 0
      %1494 = vmatprep.subr.bf16.mxu0 0
      %1495 = vmatpush2.bf16.msra.mxu0 0
      %1496 = vmatprep.mubr.bf16.mxu0 0
      %1497 = vmatmul.mubr.bf16.gmra.mxu0 %v1462
      %v1498 = vpop.f32.mrf.mxu0
      %v1499 = vadd.f32 %v1459, %v1498
      %v1500 = vpop.f32.mrf.mxu0
      %v1501 = vpop.f32.mrf.mxu0
      %v1502 = vpop.f32.mrf.mxu0
      %1503 = vdwg.mxu0
      %v1504 = vld [vmem:[%s10] sm:$0xff]
      %v1505 = vld [vmem:[%s10 + $0x8] sm:$0xff]
      %v1506 = vld [vmem:[%s10 + $0x10] sm:$0xff]
      %v1507 = vld [vmem:[%s10 + $0x18] sm:$0xff]
      %v1508 = vpack.c.bf16 %v698, %v698
      %v1509 = vpack.c.bf16 %v1505, %v1504
      %v1510 = vpack.c.bf16 %v1507, %v1506
      %v1511 = vld [vmem:[%s11] sm:$0x1]
      %v1513 = vlaneseq
      %v1514 = vshrl.u32 %v1513, 7
      %v1515 = vsub.s32 0, %v1514
      %v1516 = vrot.slane %v1511, %v1515
      %v1519 = vsel %vm718, %v1508, 0
      %1521 = vmatprep.subr.bf16.mxu0 0
      %1522 = vmatpush1.bf16.msra.mxu0 0
      %1523 = vmatprep.subr.bf16.mxu0 0
      %1524 = vmatpush1.bf16.msra.mxu0 0
      %1525 = vmatprep.subr.bf16.mxu0 0
      %1526 = vmatpush1.bf16.msra.mxu0 0
      %1527 = vmatprep.subr.bf16.mxu0 0
      %1528 = vmatpush1.bf16.msra.mxu0 0
      %1529 = vmatprep.subr.bf16.mxu0 0
      %1530 = vmatpush1.bf16.msra.mxu0 0
      %1531 = vmatprep.subr.bf16.mxu0 0
      %1532 = vmatpush1.bf16.msra.mxu0 0
      %1533 = vmatprep.subr.bf16.mxu0 0
      %1534 = vmatpush1.bf16.msra.mxu0 %v1510
      %1535 = vmatprep.subr.bf16.mxu0 0
      %1536 = vmatpush1.bf16.msra.mxu0 %v1509
      %1537 = vmatprep.subr.bf16.mxu0 0
      %1538 = vmatpush2.bf16.msra.mxu0 0
      %1539 = vmatprep.subr.bf16.mxu0 0
      %1540 = vmatpush2.bf16.msra.mxu0 0
      %1541 = vmatprep.subr.bf16.mxu0 0
      %1542 = vmatpush2.bf16.msra.mxu0 0
      %1543 = vmatprep.subr.bf16.mxu0 0
      %1544 = vmatpush2.bf16.msra.mxu0 0
      %1545 = vmatprep.subr.bf16.mxu0 0
      %1546 = vmatpush2.bf16.msra.mxu0 0
      %1547 = vmatprep.subr.bf16.mxu0 0
      %1548 = vmatpush2.bf16.msra.mxu0 0
      %1549 = vmatprep.subr.bf16.mxu0 0
      %1550 = vmatpush2.bf16.msra.mxu0 0
      %1551 = vmatprep.subr.bf16.mxu0 0
      %1552 = vmatpush2.bf16.msra.mxu0 0
      %1553 = vmatprep.mubr.bf16.mxu0 0
      %1554 = vmatmul.mubr.bf16.gmra.mxu0 %v1519
      %v1555 = vpop.f32.mrf.mxu0
      %v1556 = vadd.f32 %v1516, %v1555
      %v1557 = vpop.f32.mrf.mxu0
      %v1558 = vpop.f32.mrf.mxu0
      %v1559 = vpop.f32.mrf.mxu0
      %1560 = vdwg.mxu0
      %v1561 = vld [vmem:[%s12] sm:$0xff]
      %v1562 = vld [vmem:[%s12 + $0x8] sm:$0xff]
      %v1563 = vld [vmem:[%s12 + $0x10] sm:$0xff]
      %v1564 = vld [vmem:[%s12 + $0x18] sm:$0xff]
      %v1565 = vld [vmem:[%s13] sm:$0x1]
      %v1566 = vpack.c.bf16 %v1499, %v1499
      %v1567 = vpack.c.bf16 %v1556, %v1556
      %v1569 = vsel %vm766, %v1566, 0
      %v1572 = vsel %vm766, %v1567, 0
      %1574 = vmatprep.subr.bf16.mxu0 0
      %1575 = vmatpush1.bf16.xpose.msra.mxu0 0
      %1576 = vmatprep.subr.bf16.mxu0 0
      %1577 = vmatpush1.bf16.xpose.msra.mxu0 0
      %1578 = vmatprep.subr.bf16.mxu0 0
      %1579 = vmatpush1.bf16.xpose.msra.mxu0 0
      %1580 = vmatprep.subr.bf16.mxu0 0
      %1581 = vmatpush1.bf16.xpose.msra.mxu0 0
      %1582 = vmatprep.subr.bf16.mxu0 0
      %1583 = vmatpush1.bf16.xpose.msra.mxu0 0
      %1584 = vmatprep.subr.bf16.mxu0 0
      %1585 = vmatpush1.bf16.xpose.msra.mxu0 0
      %1586 = vmatprep.subr.bf16.mxu0 0
      %1587 = vmatpush1.bf16.xpose.msra.mxu0 0
      %1588 = vmatprep.subr.bf16.mxu0 0
      %1589 = vmatpush1.bf16.xpose.msra.mxu0 %v1572
      %1590 = vmatprep.subr.bf16.mxu0 0
      %1591 = vmatpush2.bf16.xpose.msra.mxu0 0
      %1592 = vmatprep.subr.bf16.mxu0 0
      %1593 = vmatpush2.bf16.xpose.msra.mxu0 0
      %1594 = vmatprep.subr.bf16.mxu0 0
      %1595 = vmatpush2.bf16.xpose.msra.mxu0 0
      %1596 = vmatprep.subr.bf16.mxu0 0
      %1597 = vmatpush2.bf16.xpose.msra.mxu0 0
      %1598 = vmatprep.subr.bf16.mxu0 0
      %1599 = vmatpush2.bf16.xpose.msra.mxu0 0
      %1600 = vmatprep.subr.bf16.mxu0 0
      %1601 = vmatpush2.bf16.xpose.msra.mxu0 0
      %1602 = vmatprep.subr.bf16.mxu0 0
      %1603 = vmatpush2.bf16.xpose.msra.mxu0 0
      %1604 = vmatprep.subr.bf16.mxu0 0
      %1605 = vmatpush2.bf16.xpose.msra.mxu0 0
      %1606 = vmatprep.mubr.bf16.mxu0 0
      %1607 = vmatmul.mubr.bf16.gmra.mxu0 %v1569
      %v1608 = vpop.f32.mrf.mxu0
      %v1609 = vadd.f32 0.0, %v1608
      %v1610 = vpop.f32.mrf.mxu0
      %v1611 = vpop.f32.mrf.mxu0
      %v1612 = vpop.f32.mrf.mxu0
      %1613 = vdwg.mxu0
      %v1614 = vmul.f32 %v1609, 0.35355338
      %vm1615 = vcmask 53248
      %v1616 = vsel %vm1615, %v1614, -inf
      %1617 = vmax.xlane.f32.xlu0 %v1616
      %v1618 = vpop.xlane.xlu0 %1617
      %v1619 = vsub.f32 %v1614, %v1618
      %v1620 = vmul.f32 %v1619, 1.442695
      %v1621 = vpow.pop %v1620
      %v1622 = vsel %vm1615, %v1621, 0.0
      %1623 = vadd.xlane.f32.xlu0 %v1622
      %v1624 = vpop.xlane.xlu0 %1623
      %v1625 = vrcp.pop %v1624
      %v1626 = vmul.f32 %v1621, %v1625
      %v1627 = vpack.c.bf16 %v1626, %v1626
      %1629 = vrot.lane.b32.xlu0 %v1567, 96
      %v1630 = vpop.permute.xlu0 %1629
      %vm1631 = vcmask 56320
      %v1633 = vsel %vm1631, %v1627, 0
      %v1635 = vsel %vm834, 4294967295, 65535
      %v1636 = vsel %vm998, %v1635, 0
      %v1638 = vand.u32 %v1630, %v1636
      %1640 = vmatprep.subr.bf16.mxu0 0
      %1641 = vmatpush1.bf16.msra.mxu0 0
      %1642 = vmatprep.subr.bf16.mxu0 0
      %1643 = vmatpush1.bf16.msra.mxu0 0
      %1644 = vmatprep.subr.bf16.mxu0 0
      %1645 = vmatpush1.bf16.msra.mxu0 0
      %1646 = vmatprep.subr.bf16.mxu0 0
      %1647 = vmatpush1.bf16.msra.mxu0 0
      %1648 = vmatprep.subr.bf16.mxu0 0
      %1649 = vmatpush1.bf16.msra.mxu0 0
      %1650 = vmatprep.subr.bf16.mxu0 0
      %1651 = vmatpush1.bf16.msra.mxu0 0
      %1652 = vmatprep.subr.bf16.mxu0 0
      %1653 = vmatpush1.bf16.msra.mxu0 0
      %1654 = vmatprep.subr.bf16.mxu0 0
      %1655 = vmatpush1.bf16.msra.mxu0 %v1638
      %1656 = vmatprep.subr.bf16.mxu0 0
      %1657 = vmatpush2.bf16.msra.mxu0 0
      %1658 = vmatprep.subr.bf16.mxu0 0
      %1659 = vmatpush2.bf16.msra.mxu0 0
      %1660 = vmatprep.subr.bf16.mxu0 0
      %1661 = vmatpush2.bf16.msra.mxu0 0
      %1662 = vmatprep.subr.bf16.mxu0 0
      %1663 = vmatpush2.bf16.msra.mxu0 0
      %1664 = vmatprep.subr.bf16.mxu0 0
      %1665 = vmatpush2.bf16.msra.mxu0 0
      %1666 = vmatprep.subr.bf16.mxu0 0
      %1667 = vmatpush2.bf16.msra.mxu0 0
      %1668 = vmatprep.subr.bf16.mxu0 0
      %1669 = vmatpush2.bf16.msra.mxu0 0
      %1670 = vmatprep.subr.bf16.mxu0 0
      %1671 = vmatpush2.bf16.msra.mxu0 0
      %1672 = vmatprep.mubr.bf16.mxu0 0
      %1673 = vmatmul.mubr.bf16.gmra.mxu0 %v1633
      %v1674 = vpop.f32.mrf.mxu0
      %v1675 = vadd.f32 0.0, %v1674
      %v1676 = vpop.f32.mrf.mxu0
      %v1677 = vpop.f32.mrf.mxu0
      %v1678 = vpop.f32.mrf.mxu0
      %1679 = vdwg.mxu0
      %v1680 = vpack.c.bf16 %v1675, %v1675
      %v1681 = vpack.c.bf16 %v1561, %v1561
      %1683 = vrot.lane.b32.xlu0 %v1566, 120
      %v1684 = vpop.permute.xlu0 %1683
      %1685 = vrot.lane.b32.xlu0 %v1567, 120
      %v1686 = vpop.permute.xlu0 %1685
      %v1688 = vsel %vm766, %v1684, 0
      %v1691 = vsel %vm766, %v1686, 0
      %1693 = vmatprep.subr.bf16.mxu0 0
      %1694 = vmatpush1.bf16.xpose.msra.mxu0 0
      %1695 = vmatprep.subr.bf16.mxu0 0
      %1696 = vmatpush1.bf16.xpose.msra.mxu0 0
      %1697 = vmatprep.subr.bf16.mxu0 0
      %1698 = vmatpush1.bf16.xpose.msra.mxu0 0
      %1699 = vmatprep.subr.bf16.mxu0 0
      %1700 = vmatpush1.bf16.xpose.msra.mxu0 0
      %1701 = vmatprep.subr.bf16.mxu0 0
      %1702 = vmatpush1.bf16.xpose.msra.mxu0 0
      %1703 = vmatprep.subr.bf16.mxu0 0
      %1704 = vmatpush1.bf16.xpose.msra.mxu0 0
      %1705 = vmatprep.subr.bf16.mxu0 0
      %1706 = vmatpush1.bf16.xpose.msra.mxu0 0
      %1707 = vmatprep.subr.bf16.mxu0 0
      %1708 = vmatpush1.bf16.xpose.msra.mxu0 %v1691
      %1709 = vmatprep.subr.bf16.mxu0 0
      %1710 = vmatpush2.bf16.xpose.msra.mxu0 0
      %1711 = vmatprep.subr.bf16.mxu0 0
      %1712 = vmatpush2.bf16.xpose.msra.mxu0 0
      %1713 = vmatprep.subr.bf16.mxu0 0
      %1714 = vmatpush2.bf16.xpose.msra.mxu0 0
      %1715 = vmatprep.subr.bf16.mxu0 0
      %1716 = vmatpush2.bf16.xpose.msra.mxu0 0
      %1717 = vmatprep.subr.bf16.mxu0 0
      %1718 = vmatpush2.bf16.xpose.msra.mxu0 0
      %1719 = vmatprep.subr.bf16.mxu0 0
      %1720 = vmatpush2.bf16.xpose.msra.mxu0 0
      %1721 = vmatprep.subr.bf16.mxu0 0
      %1722 = vmatpush2.bf16.xpose.msra.mxu0 0
      %1723 = vmatprep.subr.bf16.mxu0 0
      %1724 = vmatpush2.bf16.xpose.msra.mxu0 0
      %1725 = vmatprep.mubr.bf16.mxu0 0
      %1726 = vmatmul.mubr.bf16.gmra.mxu0 %v1688
      %v1727 = vpop.f32.mrf.mxu0
      %v1728 = vadd.f32 0.0, %v1727
      %v1729 = vpop.f32.mrf.mxu0
      %v1730 = vpop.f32.mrf.mxu0
      %v1731 = vpop.f32.mrf.mxu0
      %1732 = vdwg.mxu0
      %v1733 = vmul.f32 %v1728, 0.35355338
      %v1734 = vsel %vm1615, %v1733, -inf
      %1735 = vmax.xlane.f32.xlu0 %v1734
      %v1736 = vpop.xlane.xlu0 %1735
      %v1737 = vsub.f32 %v1733, %v1736
      %v1738 = vmul.f32 %v1737, 1.442695
      %v1739 = vpow.pop %v1738
      %v1740 = vsel %vm1615, %v1739, 0.0
      %1741 = vadd.xlane.f32.xlu0 %v1740
      %v1742 = vpop.xlane.xlu0 %1741
      %v1743 = vrcp.pop %v1742
      %v1744 = vmul.f32 %v1739, %v1743
      %v1745 = vpack.c.bf16 %v1744, %v1744
      %1746 = vrot.lane.b32.xlu0 %v1567, 88
      %v1747 = vpop.permute.xlu0 %1746
      %v1749 = vsel %vm1631, %v1745, 0
      %v1752 = vand.u32 %v1747, %v1636
      %1754 = vmatprep.subr.bf16.mxu0 0
      %1755 = vmatpush1.bf16.msra.mxu0 0
      %1756 = vmatprep.subr.bf16.mxu0 0
      %1757 = vmatpush1.bf16.msra.mxu0 0
      %1758 = vmatprep.subr.bf16.mxu0 0
      %1759 = vmatpush1.bf16.msra.mxu0 0
      %1760 = vmatprep.subr.bf16.mxu0 0
      %1761 = vmatpush1.bf16.msra.mxu0 0
      %1762 = vmatprep.subr.bf16.mxu0 0
      %1763 = vmatpush1.bf16.msra.mxu0 0
      %1764 = vmatprep.subr.bf16.mxu0 0
      %1765 = vmatpush1.bf16.msra.mxu0 0
      %1766 = vmatprep.subr.bf16.mxu0 0
      %1767 = vmatpush1.bf16.msra.mxu0 0
      %1768 = vmatprep.subr.bf16.mxu0 0
      %1769 = vmatpush1.bf16.msra.mxu0 %v1752
      %1770 = vmatprep.subr.bf16.mxu0 0
      %1771 = vmatpush2.bf16.msra.mxu0 0
      %1772 = vmatprep.subr.bf16.mxu0 0
      %1773 = vmatpush2.bf16.msra.mxu0 0
      %1774 = vmatprep.subr.bf16.mxu0 0
      %1775 = vmatpush2.bf16.msra.mxu0 0
      %1776 = vmatprep.subr.bf16.mxu0 0
      %1777 = vmatpush2.bf16.msra.mxu0 0
      %1778 = vmatprep.subr.bf16.mxu0 0
      %1779 = vmatpush2.bf16.msra.mxu0 0
      %1780 = vmatprep.subr.bf16.mxu0 0
      %1781 = vmatpush2.bf16.msra.mxu0 0
      %1782 = vmatprep.subr.bf16.mxu0 0
      %1783 = vmatpush2.bf16.msra.mxu0 0
      %1784 = vmatprep.subr.bf16.mxu0 0
      %1785 = vmatpush2.bf16.msra.mxu0 0
      %1786 = vmatprep.mubr.bf16.mxu0 0
      %1787 = vmatmul.mubr.bf16.gmra.mxu0 %v1749
      %v1788 = vpop.f32.mrf.mxu0
      %v1789 = vadd.f32 0.0, %v1788
      %v1790 = vpop.f32.mrf.mxu0
      %v1791 = vpop.f32.mrf.mxu0
      %v1792 = vpop.f32.mrf.mxu0
      %1793 = vdwg.mxu0
      %v1794 = vpack.c.bf16 %v1789, %v1789
      %v1795 = vpack.c.bf16 %v1562, %v1562
      %v1797 = vsel %vm766, %v1794, 0
      %v1800 = vsel %vm998, %v1795, 0
      %1802 = vmatprep.subr.bf16.mxu0 0
      %1803 = vmatpush1.bf16.msra.mxu0 0
      %1804 = vmatprep.subr.bf16.mxu0 0
      %1805 = vmatpush1.bf16.msra.mxu0 0
      %1806 = vmatprep.subr.bf16.mxu0 0
      %1807 = vmatpush1.bf16.msra.mxu0 0
      %1808 = vmatprep.subr.bf16.mxu0 0
      %1809 = vmatpush1.bf16.msra.mxu0 0
      %1810 = vmatprep.subr.bf16.mxu0 0
      %1811 = vmatpush1.bf16.msra.mxu0 0
      %1812 = vmatprep.subr.bf16.mxu0 0
      %1813 = vmatpush1.bf16.msra.mxu0 0
      %1814 = vmatprep.subr.bf16.mxu0 0
      %1815 = vmatpush1.bf16.msra.mxu0 0
      %1816 = vmatprep.subr.bf16.mxu0 0
      %1817 = vmatpush1.bf16.msra.mxu0 %v1800
      %1818 = vmatprep.subr.bf16.mxu0 0
      %1819 = vmatpush2.bf16.msra.mxu0 0
      %1820 = vmatprep.subr.bf16.mxu0 0
      %1821 = vmatpush2.bf16.msra.mxu0 0
      %1822 = vmatprep.subr.bf16.mxu0 0
      %1823 = vmatpush2.bf16.msra.mxu0 0
      %1824 = vmatprep.subr.bf16.mxu0 0
      %1825 = vmatpush2.bf16.msra.mxu0 0
      %1826 = vmatprep.subr.bf16.mxu0 0
      %1827 = vmatpush2.bf16.msra.mxu0 0
      %1828 = vmatprep.subr.bf16.mxu0 0
      %1829 = vmatpush2.bf16.msra.mxu0 0
      %1830 = vmatprep.subr.bf16.mxu0 0
      %1831 = vmatpush2.bf16.msra.mxu0 0
      %1832 = vmatprep.subr.bf16.mxu0 0
      %1833 = vmatpush2.bf16.msra.mxu0 0
      %1834 = vmatprep.mubr.bf16.mxu0 0
      %1835 = vmatmul.mubr.bf16.gmra.mxu0 %v1797
      %v1836 = vpop.f32.mrf.mxu0
      %v1837 = vadd.f32 0.0, %v1836
      %v1838 = vpop.f32.mrf.mxu0
      %v1839 = vpop.f32.mrf.mxu0
      %v1840 = vpop.f32.mrf.mxu0
      %1841 = vdwg.mxu0
      %v1843 = vsel %vm766, %v1680, 0
      %v1846 = vsel %vm998, %v1681, 0
      %1848 = vmatprep.subr.bf16.mxu0 0
      %1849 = vmatpush1.bf16.msra.mxu0 0
      %1850 = vmatprep.subr.bf16.mxu0 0
      %1851 = vmatpush1.bf16.msra.mxu0 0
      %1852 = vmatprep.subr.bf16.mxu0 0
      %1853 = vmatpush1.bf16.msra.mxu0 0
      %1854 = vmatprep.subr.bf16.mxu0 0
      %1855 = vmatpush1.bf16.msra.mxu0 0
      %1856 = vmatprep.subr.bf16.mxu0 0
      %1857 = vmatpush1.bf16.msra.mxu0 0
      %1858 = vmatprep.subr.bf16.mxu0 0
      %1859 = vmatpush1.bf16.msra.mxu0 0
      %1860 = vmatprep.subr.bf16.mxu0 0
      %1861 = vmatpush1.bf16.msra.mxu0 0
      %1862 = vmatprep.subr.bf16.mxu0 0
      %1863 = vmatpush1.bf16.msra.mxu0 %v1846
      %1864 = vmatprep.subr.bf16.mxu0 0
      %1865 = vmatpush2.bf16.msra.mxu0 0
      %1866 = vmatprep.subr.bf16.mxu0 0
      %1867 = vmatpush2.bf16.msra.mxu0 0
      %1868 = vmatprep.subr.bf16.mxu0 0
      %1869 = vmatpush2.bf16.msra.mxu0 0
      %1870 = vmatprep.subr.bf16.mxu0 0
      %1871 = vmatpush2.bf16.msra.mxu0 0
      %1872 = vmatprep.subr.bf16.mxu0 0
      %1873 = vmatpush2.bf16.msra.mxu0 0
      %1874 = vmatprep.subr.bf16.mxu0 0
      %1875 = vmatpush2.bf16.msra.mxu0 0
      %1876 = vmatprep.subr.bf16.mxu0 0
      %1877 = vmatpush2.bf16.msra.mxu0 0
      %1878 = vmatprep.subr.bf16.mxu0 0
      %1879 = vmatpush2.bf16.msra.mxu0 0
      %1880 = vmatprep.mubr.bf16.mxu0 0
      %1881 = vmatmul.mubr.bf16.gmra.mxu0 %v1843
      %v1882 = vpop.f32.mrf.mxu0
      %v1883 = vadd.f32 %v1837, %v1882
      %v1884 = vpop.f32.mrf.mxu0
      %v1885 = vpop.f32.mrf.mxu0
      %v1886 = vpop.f32.mrf.mxu0
      %1887 = vdwg.mxu0
      %1888 = vrot.lane.b32.xlu0 %v1566, 112
      %v1889 = vpop.permute.xlu0 %1888
      %1890 = vrot.lane.b32.xlu0 %v1567, 112
      %v1891 = vpop.permute.xlu0 %1890
      %v1893 = vsel %vm766, %v1889, 0
      %v1896 = vsel %vm766, %v1891, 0
      %1898 = vmatprep.subr.bf16.mxu0 0
      %1899 = vmatpush1.bf16.xpose.msra.mxu0 0
      %1900 = vmatprep.subr.bf16.mxu0 0
      %1901 = vmatpush1.bf16.xpose.msra.mxu0 0
      %1902 = vmatprep.subr.bf16.mxu0 0
      %1903 = vmatpush1.bf16.xpose.msra.mxu0 0
      %1904 = vmatprep.subr.bf16.mxu0 0
      %1905 = vmatpush1.bf16.xpose.msra.mxu0 0
      %1906 = vmatprep.subr.bf16.mxu0 0
      %1907 = vmatpush1.bf16.xpose.msra.mxu0 0
      %1908 = vmatprep.subr.bf16.mxu0 0
      %1909 = vmatpush1.bf16.xpose.msra.mxu0 0
      %1910 = vmatprep.subr.bf16.mxu0 0
      %1911 = vmatpush1.bf16.xpose.msra.mxu0 0
      %1912 = vmatprep.subr.bf16.mxu0 0
      %1913 = vmatpush1.bf16.xpose.msra.mxu0 %v1896
      %1914 = vmatprep.subr.bf16.mxu0 0
      %1915 = vmatpush2.bf16.xpose.msra.mxu0 0
      %1916 = vmatprep.subr.bf16.mxu0 0
      %1917 = vmatpush2.bf16.xpose.msra.mxu0 0
      %1918 = vmatprep.subr.bf16.mxu0 0
      %1919 = vmatpush2.bf16.xpose.msra.mxu0 0
      %1920 = vmatprep.subr.bf16.mxu0 0
      %1921 = vmatpush2.bf16.xpose.msra.mxu0 0
      %1922 = vmatprep.subr.bf16.mxu0 0
      %1923 = vmatpush2.bf16.xpose.msra.mxu0 0
      %1924 = vmatprep.subr.bf16.mxu0 0
      %1925 = vmatpush2.bf16.xpose.msra.mxu0 0
      %1926 = vmatprep.subr.bf16.mxu0 0
      %1927 = vmatpush2.bf16.xpose.msra.mxu0 0
      %1928 = vmatprep.subr.bf16.mxu0 0
      %1929 = vmatpush2.bf16.xpose.msra.mxu0 0
      %1930 = vmatprep.mubr.bf16.mxu0 0
      %1931 = vmatmul.mubr.bf16.gmra.mxu0 %v1893
      %v1932 = vpop.f32.mrf.mxu0
      %v1933 = vadd.f32 0.0, %v1932
      %v1934 = vpop.f32.mrf.mxu0
      %v1935 = vpop.f32.mrf.mxu0
      %v1936 = vpop.f32.mrf.mxu0
      %1937 = vdwg.mxu0
      %v1938 = vmul.f32 %v1933, 0.35355338
      %v1939 = vsel %vm1615, %v1938, -inf
      %1940 = vmax.xlane.f32.xlu0 %v1939
      %v1941 = vpop.xlane.xlu0 %1940
      %v1942 = vsub.f32 %v1938, %v1941
      %v1943 = vmul.f32 %v1942, 1.442695
      %v1944 = vpow.pop %v1943
      %v1945 = vsel %vm1615, %v1944, 0.0
      %1946 = vadd.xlane.f32.xlu0 %v1945
      %v1947 = vpop.xlane.xlu0 %1946
      %v1948 = vrcp.pop %v1947
      %v1949 = vmul.f32 %v1944, %v1948
      %v1950 = vpack.c.bf16 %v1949, %v1949
      %1951 = vrot.lane.b32.xlu0 %v1567, 80
      %v1952 = vpop.permute.xlu0 %1951
      %v1954 = vsel %vm1631, %v1950, 0
      %v1957 = vand.u32 %v1952, %v1636
      %1959 = vmatprep.subr.bf16.mxu0 0
      %1960 = vmatpush1.bf16.msra.mxu0 0
      %1961 = vmatprep.subr.bf16.mxu0 0
      %1962 = vmatpush1.bf16.msra.mxu0 0
      %1963 = vmatprep.subr.bf16.mxu0 0
      %1964 = vmatpush1.bf16.msra.mxu0 0
      %1965 = vmatprep.subr.bf16.mxu0 0
      %1966 = vmatpush1.bf16.msra.mxu0 0
      %1967 = vmatprep.subr.bf16.mxu0 0
      %1968 = vmatpush1.bf16.msra.mxu0 0
      %1969 = vmatprep.subr.bf16.mxu0 0
      %1970 = vmatpush1.bf16.msra.mxu0 0
      %1971 = vmatprep.subr.bf16.mxu0 0
      %1972 = vmatpush1.bf16.msra.mxu0 0
      %1973 = vmatprep.subr.bf16.mxu0 0
      %1974 = vmatpush1.bf16.msra.mxu0 %v1957
      %1975 = vmatprep.subr.bf16.mxu0 0
      %1976 = vmatpush2.bf16.msra.mxu0 0
      %1977 = vmatprep.subr.bf16.mxu0 0
      %1978 = vmatpush2.bf16.msra.mxu0 0
      %1979 = vmatprep.subr.bf16.mxu0 0
      %1980 = vmatpush2.bf16.msra.mxu0 0
      %1981 = vmatprep.subr.bf16.mxu0 0
      %1982 = vmatpush2.bf16.msra.mxu0 0
      %1983 = vmatprep.subr.bf16.mxu0 0
      %1984 = vmatpush2.bf16.msra.mxu0 0
      %1985 = vmatprep.subr.bf16.mxu0 0
      %1986 = vmatpush2.bf16.msra.mxu0 0
      %1987 = vmatprep.subr.bf16.mxu0 0
      %1988 = vmatpush2.bf16.msra.mxu0 0
      %1989 = vmatprep.subr.bf16.mxu0 0
      %1990 = vmatpush2.bf16.msra.mxu0 0
      %1991 = vmatprep.mubr.bf16.mxu0 0
      %1992 = vmatmul.mubr.bf16.gmra.mxu0 %v1954
      %v1993 = vpop.f32.mrf.mxu0
      %v1994 = vadd.f32 0.0, %v1993
      %v1995 = vpop.f32.mrf.mxu0
      %v1996 = vpop.f32.mrf.mxu0
      %v1997 = vpop.f32.mrf.mxu0
      %1998 = vdwg.mxu0
      %v1999 = vpack.c.bf16 %v1994, %v1994
      %v2000 = vpack.c.bf16 %v1563, %v1563
      %v2002 = vsel %vm766, %v1999, 0
      %v2005 = vsel %vm998, %v2000, 0
      %2007 = vmatprep.subr.bf16.mxu0 0
      %2008 = vmatpush1.bf16.msra.mxu0 0
      %2009 = vmatprep.subr.bf16.mxu0 0
      %2010 = vmatpush1.bf16.msra.mxu0 0
      %2011 = vmatprep.subr.bf16.mxu0 0
      %2012 = vmatpush1.bf16.msra.mxu0 0
      %2013 = vmatprep.subr.bf16.mxu0 0
      %2014 = vmatpush1.bf16.msra.mxu0 0
      %2015 = vmatprep.subr.bf16.mxu0 0
      %2016 = vmatpush1.bf16.msra.mxu0 0
      %2017 = vmatprep.subr.bf16.mxu0 0
      %2018 = vmatpush1.bf16.msra.mxu0 0
      %2019 = vmatprep.subr.bf16.mxu0 0
      %2020 = vmatpush1.bf16.msra.mxu0 0
      %2021 = vmatprep.subr.bf16.mxu0 0
      %2022 = vmatpush1.bf16.msra.mxu0 %v2005
      %2023 = vmatprep.subr.bf16.mxu0 0
      %2024 = vmatpush2.bf16.msra.mxu0 0
      %2025 = vmatprep.subr.bf16.mxu0 0
      %2026 = vmatpush2.bf16.msra.mxu0 0
      %2027 = vmatprep.subr.bf16.mxu0 0
      %2028 = vmatpush2.bf16.msra.mxu0 0
      %2029 = vmatprep.subr.bf16.mxu0 0
      %2030 = vmatpush2.bf16.msra.mxu0 0
      %2031 = vmatprep.subr.bf16.mxu0 0
      %2032 = vmatpush2.bf16.msra.mxu0 0
      %2033 = vmatprep.subr.bf16.mxu0 0
      %2034 = vmatpush2.bf16.msra.mxu0 0
      %2035 = vmatprep.subr.bf16.mxu0 0
      %2036 = vmatpush2.bf16.msra.mxu0 0
      %2037 = vmatprep.subr.bf16.mxu0 0
      %2038 = vmatpush2.bf16.msra.mxu0 0
      %2039 = vmatprep.mubr.bf16.mxu0 0
      %2040 = vmatmul.mubr.bf16.gmra.mxu0 %v2002
      %v2041 = vpop.f32.mrf.mxu0
      %v2042 = vadd.f32 0.0, %v2041
      %v2043 = vpop.f32.mrf.mxu0
      %v2044 = vpop.f32.mrf.mxu0
      %v2045 = vpop.f32.mrf.mxu0
      %2046 = vdwg.mxu0
      %v2047 = vadd.f32 %v1883, %v2042
      %2048 = vrot.lane.b32.xlu0 %v1566, 104
      %v2049 = vpop.permute.xlu0 %2048
      %2050 = vrot.lane.b32.xlu0 %v1567, 104
      %v2051 = vpop.permute.xlu0 %2050
      %v2053 = vsel %vm766, %v2049, 0
      %v2056 = vsel %vm766, %v2051, 0
      %2058 = vmatprep.subr.bf16.mxu0 0
      %2059 = vmatpush1.bf16.xpose.msra.mxu0 0
      %2060 = vmatprep.subr.bf16.mxu0 0
      %2061 = vmatpush1.bf16.xpose.msra.mxu0 0
      %2062 = vmatprep.subr.bf16.mxu0 0
      %2063 = vmatpush1.bf16.xpose.msra.mxu0 0
      %2064 = vmatprep.subr.bf16.mxu0 0
      %2065 = vmatpush1.bf16.xpose.msra.mxu0 0
      %2066 = vmatprep.subr.bf16.mxu0 0
      %2067 = vmatpush1.bf16.xpose.msra.mxu0 0
      %2068 = vmatprep.subr.bf16.mxu0 0
      %2069 = vmatpush1.bf16.xpose.msra.mxu0 0
      %2070 = vmatprep.subr.bf16.mxu0 0
      %2071 = vmatpush1.bf16.xpose.msra.mxu0 0
      %2072 = vmatprep.subr.bf16.mxu0 0
      %2073 = vmatpush1.bf16.xpose.msra.mxu0 %v2056
      %2074 = vmatprep.subr.bf16.mxu0 0
      %2075 = vmatpush2.bf16.xpose.msra.mxu0 0
      %2076 = vmatprep.subr.bf16.mxu0 0
      %2077 = vmatpush2.bf16.xpose.msra.mxu0 0
      %2078 = vmatprep.subr.bf16.mxu0 0
      %2079 = vmatpush2.bf16.xpose.msra.mxu0 0
      %2080 = vmatprep.subr.bf16.mxu0 0
      %2081 = vmatpush2.bf16.xpose.msra.mxu0 0
      %2082 = vmatprep.subr.bf16.mxu0 0
      %2083 = vmatpush2.bf16.xpose.msra.mxu0 0
      %2084 = vmatprep.subr.bf16.mxu0 0
      %2085 = vmatpush2.bf16.xpose.msra.mxu0 0
      %2086 = vmatprep.subr.bf16.mxu0 0
      %2087 = vmatpush2.bf16.xpose.msra.mxu0 0
      %2088 = vmatprep.subr.bf16.mxu0 0
      %2089 = vmatpush2.bf16.xpose.msra.mxu0 0
      %2090 = vmatprep.mubr.bf16.mxu0 0
      %2091 = vmatmul.mubr.bf16.gmra.mxu0 %v2053
      %v2092 = vpop.f32.mrf.mxu0
      %v2093 = vadd.f32 0.0, %v2092
      %v2094 = vpop.f32.mrf.mxu0
      %v2095 = vpop.f32.mrf.mxu0
      %v2096 = vpop.f32.mrf.mxu0
      %2097 = vdwg.mxu0
      %v2098 = vmul.f32 %v2093, 0.35355338
      %v2099 = vsel %vm1615, %v2098, -inf
      %2100 = vmax.xlane.f32.xlu0 %v2099
      %v2101 = vpop.xlane.xlu0 %2100
      %v2102 = vsub.f32 %v2098, %v2101
      %v2103 = vmul.f32 %v2102, 1.442695
      %v2104 = vpow.pop %v2103
      %v2105 = vsel %vm1615, %v2104, 0.0
      %2106 = vadd.xlane.f32.xlu0 %v2105
      %v2107 = vpop.xlane.xlu0 %2106
      %v2108 = vrcp.pop %v2107
      %v2109 = vmul.f32 %v2104, %v2108
      %v2110 = vpack.c.bf16 %v2109, %v2109
      %2111 = vrot.lane.b32.xlu0 %v1567, 72
      %v2112 = vpop.permute.xlu0 %2111
      %v2114 = vsel %vm1631, %v2110, 0
      %v2117 = vand.u32 %v2112, %v1636
      %2119 = vmatprep.subr.bf16.mxu0 0
      %2120 = vmatpush1.bf16.msra.mxu0 0
      %2121 = vmatprep.subr.bf16.mxu0 0
      %2122 = vmatpush1.bf16.msra.mxu0 0
      %2123 = vmatprep.subr.bf16.mxu0 0
      %2124 = vmatpush1.bf16.msra.mxu0 0
      %2125 = vmatprep.subr.bf16.mxu0 0
      %2126 = vmatpush1.bf16.msra.mxu0 0
      %2127 = vmatprep.subr.bf16.mxu0 0
      %2128 = vmatpush1.bf16.msra.mxu0 0
      %2129 = vmatprep.subr.bf16.mxu0 0
      %2130 = vmatpush1.bf16.msra.mxu0 0
      %2131 = vmatprep.subr.bf16.mxu0 0
      %2132 = vmatpush1.bf16.msra.mxu0 0
      %2133 = vmatprep.subr.bf16.mxu0 0
      %2134 = vmatpush1.bf16.msra.mxu0 %v2117
      %2135 = vmatprep.subr.bf16.mxu0 0
      %2136 = vmatpush2.bf16.msra.mxu0 0
      %2137 = vmatprep.subr.bf16.mxu0 0
      %2138 = vmatpush2.bf16.msra.mxu0 0
      %2139 = vmatprep.subr.bf16.mxu0 0
      %2140 = vmatpush2.bf16.msra.mxu0 0
      %2141 = vmatprep.subr.bf16.mxu0 0
      %2142 = vmatpush2.bf16.msra.mxu0 0
      %2143 = vmatprep.subr.bf16.mxu0 0
      %2144 = vmatpush2.bf16.msra.mxu0 0
      %2145 = vmatprep.subr.bf16.mxu0 0
      %2146 = vmatpush2.bf16.msra.mxu0 0
      %2147 = vmatprep.subr.bf16.mxu0 0
      %2148 = vmatpush2.bf16.msra.mxu0 0
      %2149 = vmatprep.subr.bf16.mxu0 0
      %2150 = vmatpush2.bf16.msra.mxu0 0
      %2151 = vmatprep.mubr.bf16.mxu0 0
      %2152 = vmatmul.mubr.bf16.gmra.mxu0 %v2114
      %v2153 = vpop.f32.mrf.mxu0
      %v2154 = vadd.f32 0.0, %v2153
      %v2155 = vpop.f32.mrf.mxu0
      %v2156 = vpop.f32.mrf.mxu0
      %v2157 = vpop.f32.mrf.mxu0
      %2158 = vdwg.mxu0
      %v2159 = vpack.c.bf16 %v2154, %v2154
      %v2160 = vpack.c.bf16 %v1564, %v1564
      %v2162 = vsel %vm766, %v2159, 0
      %v2165 = vsel %vm998, %v2160, 0
      %2167 = vmatprep.subr.bf16.mxu0 0
      %2168 = vmatpush1.bf16.msra.mxu0 0
      %2169 = vmatprep.subr.bf16.mxu0 0
      %2170 = vmatpush1.bf16.msra.mxu0 0
      %2171 = vmatprep.subr.bf16.mxu0 0
      %2172 = vmatpush1.bf16.msra.mxu0 0
      %2173 = vmatprep.subr.bf16.mxu0 0
      %2174 = vmatpush1.bf16.msra.mxu0 0
      %2175 = vmatprep.subr.bf16.mxu0 0
      %2176 = vmatpush1.bf16.msra.mxu0 0
      %2177 = vmatprep.subr.bf16.mxu0 0
      %2178 = vmatpush1.bf16.msra.mxu0 0
      %2179 = vmatprep.subr.bf16.mxu0 0
      %2180 = vmatpush1.bf16.msra.mxu0 0
      %2181 = vmatprep.subr.bf16.mxu0 0
      %2182 = vmatpush1.bf16.msra.mxu0 %v2165
      %2183 = vmatprep.subr.bf16.mxu0 0
      %2184 = vmatpush2.bf16.msra.mxu0 0
      %2185 = vmatprep.subr.bf16.mxu0 0
      %2186 = vmatpush2.bf16.msra.mxu0 0
      %2187 = vmatprep.subr.bf16.mxu0 0
      %2188 = vmatpush2.bf16.msra.mxu0 0
      %2189 = vmatprep.subr.bf16.mxu0 0
      %2190 = vmatpush2.bf16.msra.mxu0 0
      %2191 = vmatprep.subr.bf16.mxu0 0
      %2192 = vmatpush2.bf16.msra.mxu0 0
      %2193 = vmatprep.subr.bf16.mxu0 0
      %2194 = vmatpush2.bf16.msra.mxu0 0
      %2195 = vmatprep.subr.bf16.mxu0 0
      %2196 = vmatpush2.bf16.msra.mxu0 0
      %2197 = vmatprep.subr.bf16.mxu0 0
      %2198 = vmatpush2.bf16.msra.mxu0 0
      %2199 = vmatprep.mubr.bf16.mxu0 0
      %2200 = vmatmul.mubr.bf16.gmra.mxu0 %v2162
      %v2201 = vpop.f32.mrf.mxu0
      %v2202 = vadd.f32 0.0, %v2201
      %v2203 = vpop.f32.mrf.mxu0
      %v2204 = vpop.f32.mrf.mxu0
      %v2205 = vpop.f32.mrf.mxu0
      %2206 = vdwg.mxu0
      %v2207 = vadd.f32 %v2047, %v2202
      %v2209 = vlaneseq
      %v2210 = vshrl.u32 %v2209, 7
      %v2211 = vsub.s32 0, %v2210
      %v2212 = vrot.slane %v1565, %v2211
      %v2214 = vadd.f32 %v2207, %v2212
      %v2215 = vadd.f32 %v1446, %v2214
      %v2216 = vld [vmem:[%s14] sm:$0x1]
      %v2217 = vld [vmem:[%s15] sm:$0x1]
      %v2218 = vsel %vm1418, %v2215, 0.0
      %2219 = vadd.xlane.f32.xlu0 %v2218
      %v2220 = vpop.xlane.xlu0 %2219
      %v2221 = vmul.f32 %v2220, %v1422
      %v2222 = vsub.f32 %v2215, %v2221
      %v2223 = vmul.f32 %v2222, %v2222
      %v2224 = vsel %vm1418, %v2223, 0.0
      %2225 = vadd.xlane.f32.xlu0 %v2224
      %v2226 = vpop.xlane.xlu0 %2225
      %v2227 = vmul.f32 %v2226, %v1422
      %v2228 = vadd.f32 %v2227, 1e-05
      %v2229 = vrsqrt.pop %v2228
      %v2230 = vmul.f32 %v2222, %v2229
      %v2232 = vlaneseq
      %v2233 = vshrl.u32 %v2232, 7
      %v2234 = vsub.s32 0, %v2233
      %v2235 = vrot.slane %v2216, %v2234
      %v2237 = vmul.f32 %v2230, %v2235
      %v2239 = vlaneseq
      %v2240 = vshrl.u32 %v2239, 7
      %v2241 = vsub.s32 0, %v2240
      %v2242 = vrot.slane %v2217, %v2241
      %v2244 = vadd.f32 %v2237, %v2242
      %v2245 = vld [vmem:[%s16] sm:$0xff]
      %v2246 = vld [vmem:[%s16 + $0x8] sm:$0xff]
      %v2247 = vld [vmem:[%s16 + $0x10] sm:$0xff]
      %v2248 = vld [vmem:[%s16 + $0x18] sm:$0xff]
      %v2249 = vld [vmem:[%s17] sm:$0x1]
      %v2250 = vld [vmem:[%s18] sm:$0xff]
      %v2251 = vld [vmem:[%s18 + $0x8] sm:$0xff]
      %v2252 = vld [vmem:[%s18 + $0x10] sm:$0xff]
      %v2253 = vld [vmem:[%s18 + $0x18] sm:$0xff]
      %v2254 = vld [vmem:[%s18 + $0x20] sm:$0xff]
      %v2255 = vld [vmem:[%s18 + $0x28] sm:$0xff]
      %v2256 = vld [vmem:[%s18 + $0x30] sm:$0xff]
      %v2257 = vld [vmem:[%s18 + $0x38] sm:$0xff]
      %v2258 = vld [vmem:[%s19] sm:$0x1]
      %v2259 = vpack.c.bf16 %v2244, %v2244
      %v2260 = vpack.c.bf16 %v2246, %v2245
      %v2261 = vpack.c.bf16 %v2248, %v2247
      %v2263 = vlaneseq
      %v2264 = vshrl.u32 %v2263, 7
      %v2265 = vsub.s32 0, %v2264
      %v2266 = vrot.slane %v2249, %v2265
      %v2269 = vsel %vm718, %v2259, 0
      %2271 = vmatprep.subr.bf16.mxu0 0
      %2272 = vmatpush1.bf16.msra.mxu0 0
      %2273 = vmatprep.subr.bf16.mxu0 0
      %2274 = vmatpush1.bf16.msra.mxu0 0
      %2275 = vmatprep.subr.bf16.mxu0 0
      %2276 = vmatpush1.bf16.msra.mxu0 0
      %2277 = vmatprep.subr.bf16.mxu0 0
      %2278 = vmatpush1.bf16.msra.mxu0 0
      %2279 = vmatprep.subr.bf16.mxu0 0
      %2280 = vmatpush1.bf16.msra.mxu0 0
      %2281 = vmatprep.subr.bf16.mxu0 0
      %2282 = vmatpush1.bf16.msra.mxu0 0
      %2283 = vmatprep.subr.bf16.mxu0 0
      %2284 = vmatpush1.bf16.msra.mxu0 %v2261
      %2285 = vmatprep.subr.bf16.mxu0 0
      %2286 = vmatpush1.bf16.msra.mxu0 %v2260
      %2287 = vmatprep.subr.bf16.mxu0 0
      %2288 = vmatpush2.bf16.msra.mxu0 0
      %2289 = vmatprep.subr.bf16.mxu0 0
      %2290 = vmatpush2.bf16.msra.mxu0 0
      %2291 = vmatprep.subr.bf16.mxu0 0
      %2292 = vmatpush2.bf16.msra.mxu0 0
      %2293 = vmatprep.subr.bf16.mxu0 0
      %2294 = vmatpush2.bf16.msra.mxu0 0
      %2295 = vmatprep.subr.bf16.mxu0 0
      %2296 = vmatpush2.bf16.msra.mxu0 0
      %2297 = vmatprep.subr.bf16.mxu0 0
      %2298 = vmatpush2.bf16.msra.mxu0 0
      %2299 = vmatprep.subr.bf16.mxu0 0
      %2300 = vmatpush2.bf16.msra.mxu0 0
      %2301 = vmatprep.subr.bf16.mxu0 0
      %2302 = vmatpush2.bf16.msra.mxu0 0
      %2303 = vmatprep.mubr.bf16.mxu0 0
      %2304 = vmatmul.mubr.bf16.gmra.mxu0 %v2269
      %v2305 = vpop.f32.mrf.mxu0
      %v2306 = vadd.f32 %v2266, %v2305
      %v2307 = vpop.f32.mrf.mxu0
      %v2308 = vpop.f32.mrf.mxu0
      %v2309 = vpop.f32.mrf.mxu0
      %2310 = vdwg.mxu0
      %v2311 = vmax.f32 %v2306, 0.0
      %v2312 = vpack.c.bf16 %v2311, %v2311
      %v2313 = vpack.c.bf16 %v2251, %v2250
      %v2314 = vpack.c.bf16 %v2253, %v2252
      %v2315 = vpack.c.bf16 %v2255, %v2254
      %v2316 = vpack.c.bf16 %v2257, %v2256
      %v2318 = vlaneseq
      %v2319 = vshrl.u32 %v2318, 7
      %v2320 = vsub.s32 0, %v2319
      %v2321 = vrot.slane %v2258, %v2320
      %vm2323 = vcmask 523264
      %v2325 = vsel %vm2323, %v2312, 0
      %2327 = vmatprep.subr.bf16.mxu0 0
      %2328 = vmatpush1.bf16.msra.mxu0 0
      %2329 = vmatprep.subr.bf16.mxu0 0
      %2330 = vmatpush1.bf16.msra.mxu0 0
      %2331 = vmatprep.subr.bf16.mxu0 0
      %2332 = vmatpush1.bf16.msra.mxu0 0
      %2333 = vmatprep.subr.bf16.mxu0 0
      %2334 = vmatpush1.bf16.msra.mxu0 0
      %2335 = vmatprep.subr.bf16.mxu0 0
      %2336 = vmatpush1.bf16.msra.mxu0 %v2316
      %2337 = vmatprep.subr.bf16.mxu0 0
      %2338 = vmatpush1.bf16.msra.mxu0 %v2315
      %2339 = vmatprep.subr.bf16.mxu0 0
      %2340 = vmatpush1.bf16.msra.mxu0 %v2314
      %2341 = vmatprep.subr.bf16.mxu0 0
      %2342 = vmatpush1.bf16.msra.mxu0 %v2313
      %2343 = vmatprep.subr.bf16.mxu0 0
      %2344 = vmatpush2.bf16.msra.mxu0 0
      %2345 = vmatprep.subr.bf16.mxu0 0
      %2346 = vmatpush2.bf16.msra.mxu0 0
      %2347 = vmatprep.subr.bf16.mxu0 0
      %2348 = vmatpush2.bf16.msra.mxu0 0
      %2349 = vmatprep.subr.bf16.mxu0 0
      %2350 = vmatpush2.bf16.msra.mxu0 0
      %2351 = vmatprep.subr.bf16.mxu0 0
      %2352 = vmatpush2.bf16.msra.mxu0 0
      %2353 = vmatprep.subr.bf16.mxu0 0
      %2354 = vmatpush2.bf16.msra.mxu0 0
      %2355 = vmatprep.subr.bf16.mxu0 0
      %2356 = vmatpush2.bf16.msra.mxu0 0
      %2357 = vmatprep.subr.bf16.mxu0 0
      %2358 = vmatpush2.bf16.msra.mxu0 0
      %2359 = vmatprep.mubr.bf16.mxu0 0
      %2360 = vmatmul.mubr.bf16.gmra.mxu0 %v2325
      %v2361 = vpop.f32.mrf.mxu0
      %v2362 = vadd.f32 %v2321, %v2361
      %v2363 = vpop.f32.mrf.mxu0
      %v2364 = vpop.f32.mrf.mxu0
      %v2365 = vpop.f32.mrf.mxu0
      %2366 = vdwg.mxu0
      %v2367 = vadd.f32 %v2244, %v2362
      %v2368 = vld [vmem:[%s20] sm:$0x1]
      %v2369 = vld [vmem:[%s21] sm:$0x1]
      %v2370 = vsel %vm1418, %v2367, 0.0
      %2371 = vadd.xlane.f32.xlu0 %v2370
      %v2372 = vpop.xlane.xlu0 %2371
      %v2373 = vmul.f32 %v2372, %v1422
      %v2374 = vsub.f32 %v2367, %v2373
      %v2375 = vmul.f32 %v2374, %v2374
      %v2376 = vsel %vm1418, %v2375, 0.0
      %2377 = vadd.xlane.f32.xlu0 %v2376
      %v2378 = vpop.xlane.xlu0 %2377
      %v2379 = vmul.f32 %v2378, %v1422
      %v2380 = vadd.f32 %v2379, 1e-05
      %v2381 = vrsqrt.pop %v2380
      %v2382 = vmul.f32 %v2374, %v2381
      %v2384 = vlaneseq
      %v2385 = vshrl.u32 %v2384, 7
      %v2386 = vsub.s32 0, %v2385
      %v2387 = vrot.slane %v2368, %v2386
      %v2389 = vmul.f32 %v2382, %v2387
      %v2391 = vlaneseq
      %v2392 = vshrl.u32 %v2391, 7
      %v2393 = vsub.s32 0, %v2392
      %v2394 = vrot.slane %v2369, %v2393
      %v2396 = vadd.f32 %v2389, %v2394
      %2397 = vst.msk [vmem:[%s695] sm:$0x1f] %vm1418, %v2396
      %p2398 = scmp.lt.s32.totalorder %s33, 1
      %s2399 = scalar_select %p2398, %s33, 1
      %s2400 = smul.addr %s2399, 8
      %s2401 = scalar_lea.vmem %s22, %s2400
      // Predicated region
      $region109: #{teddy_forward.19} parent=107 // pred_check
        %p2402 = pneg %p523
      $region110: #{teddy_forward.19} parent=107 // pred_check_branch
        %2404 = sbr.rel (%p2402) target = $region112
      $region111: #{teddy_forward.19} parent=107 // pred_region
        _
      $region112: #{teddy_forward.19} parent=107 // pred_fallthru
        _
    $region108: #{teddy_forward.19} parent=5 // pred_fallthru
      _
    %p2405 = scmp.le.s32.totalorder 2, %s28
    // Predicated region
    $region113: #{teddy_forward.19} parent=5 // pred_check
      %p2406 = pneg %p2405
    $region114: #{teddy_forward.19} parent=5 // pred_check_branch
      %2408 = sbr.rel (%p2406) target = $region116
    $region115: #{teddy_forward.19} parent=5 // pred_region
      %s2409 = ssub.s32 %s28, 2
      // Predicated region
      $region117: #{teddy_forward.19} parent=115 // pred_check
        %p2410 = pneg %p529
      $region118: #{teddy_forward.19} parent=115 // pred_check_branch
        %2412 = sbr.rel (%p2410) target = $region120
      $region119: #{teddy_forward.19} parent=115 // pred_region
        %p2413 = scmp.lt.s32.totalorder %s34, 1
        %s2414 = scalar_select %p2413, %s34, 1
        %s2415 = smul.addr %s2414, 8
        %s2416 = scalar_lea.vmem %s22, %s2415
      $region120: #{teddy_forward.19} parent=115 // pred_fallthru
        _
    $region116: #{teddy_forward.19} parent=5 // pred_fallthru
      _
  $region6: #{teddy_forward.19} parent=0 // loop_footer
    %s32 = sadd.s32 1, %s28
  $region7: #{teddy_forward.19} parent=0 // loop_footer_branch
    %27 = sbr.rel target = $region3
  $region8: #{teddy_forward.19} parent=0 // loop_exit
    _

</llo_original>
